<compile_context>
chip_gen: v5e
topology: v5e:2x2
jax: 0.10.0
libtpu: 0.0.40
codegen_flags: <defaults>
</compile_context>

<pallas_src>
import jax
import jax.numpy as jnp
from jax.experimental import pallas as pl
from jax.experimental.pallas import tpu as pltpu


# ------------------------------ kernel --------------------------------------


def fused_basic_block_kernel(x_ref, w1_ref, b1_ref, w2_ref, b2_ref, out_ref,
                             xpad_ref, h1pad_ref, acc_ref):
    # x_ref:   (1, H, W, Cp) f32        w1_ref/w2_ref: (9, Cp, Cp) bf16
    # b1_ref/b2_ref: (1, Cp) f32        out_ref: (1, H, W, Cp) f32
    # xpad_ref/h1pad_ref: (H+2, Wp2, Cp) bf16 VMEM scratch (Wp2 = rup(W+2, 8))
    # acc_ref: (H*W, Cp) f32 VMEM accumulator (reused by both convs)
    _, H, W, Cp = out_ref.shape
    Hp, Wp2, _ = xpad_ref.shape

    # ---- zero only the 1-pixel conv borders (interior overwritten below) ---
    def zero_border(pad_ref):
        zrow = jnp.zeros((1, Wp2, Cp), pad_ref.dtype)
        zcol = jnp.zeros((Hp, 1, Cp), pad_ref.dtype)
        pad_ref[pl.ds(0, 1), :, :] = zrow          # top pad row
        pad_ref[pl.ds(H + 1, 1), :, :] = zrow      # bottom pad row
        pad_ref[:, pl.ds(0, 1), :] = zcol          # left pad col
        pad_ref[:, pl.ds(W + 1, 1), :] = zcol      # right pad col
        # Columns W+2 .. Wp2-1 (alignment slack) are never read by any tap.

    zero_border(xpad_ref)
    zero_border(h1pad_ref)

    # ---- padded input interior (no HBM round trip) --------------------------
    xpad_ref[pl.ds(1, H), pl.ds(1, W), :] = x_ref[0].astype(xpad_ref.dtype)

    def conv3x3(pad_ref, w_ref):
        # 9 accumulated MXU dots; f32 accumulation lives in VMEM (acc_ref),
        # so there is no slab and no vreg-resident accumulator to spill.
        first = True
        for kh in range(3):
            for kw in range(3):
                patch = pad_ref[pl.ds(kh, H), pl.ds(kw, W), :]
                contrib = jnp.dot(patch.reshape(H * W, Cp),
                                  w_ref[kh * 3 + kw],
                                  preferred_element_type=jnp.float32)
                if first:
                    acc_ref[...] = contrib
                    first = False
                else:
                    acc_ref[...] += contrib
        return acc_ref[...]

    # ---- conv1 (bn1 scale folded into w1) + bias + ReLU ---------------------
    h1 = jnp.maximum(conv3x3(xpad_ref, w1_ref) + b1_ref[...], 0.0)   # f32
    h1pad_ref[pl.ds(1, H), pl.ds(1, W), :] = (
        h1.reshape(H, W, Cp).astype(h1pad_ref.dtype))

    # ---- conv2 (bn2 scale folded into w2) + bias + residual + ReLU ----------
    y = conv3x3(h1pad_ref, w2_ref) + b2_ref[...]
    y = y + x_ref[0].reshape(H * W, Cp)          # residual re-loaded here (f32)
    out_ref[0] = jnp.maximum(y, 0.0).reshape(H, W, Cp)


# ------------------------------ wrapper --------------------------------------


def _round_up(v, m):
    return (v + m - 1) // m * m


def _fold_bn(gamma, beta, mean, var, eps=1e-5):   # eps matches nn.BatchNorm2d
    scale = gamma / jnp.sqrt(var + eps)
    bias = beta - mean * scale
    return scale, bias


@jax.jit
def basic_block_forward(x_nchw, w1_oihw, bn1, w2_oihw, bn2):
    """BasicBlock forward: conv1->bn1->relu->conv2->bn2->(+x)->relu."""
    N, C, H, W = x_nchw.shape
    assert w1_oihw.shape == (C, C, 3, 3) and w2_oihw.shape == (C, C, 3, 3), (
        "BasicBlock forward requires inplanes == planes, stride == 1, "
        "no downsample")
    assert (H * W) % 8 == 0, "H*W must be a multiple of 8 (sublane tiling)"

    Cp = _round_up(C, 128)            # lane-dense channels (>=256 keeps MXU N full)
    Wp2 = _round_up(W + 2, 8)         # 8-aligned second-minor dim for pad scratch

    # NCHW -> NHWC, pad channels to Cp (zeros in padded lanes). f32 I/O keeps
    # the identity/residual path exact; bf16 I/O is an optional mem-bound win.
    x = jnp.transpose(x_nchw, (0, 2, 3, 1)).astype(jnp.float32)
    x = jnp.pad(x, ((0, 0), (0, 0), (0, 0), (0, Cp - C)))

    s1, b1 = _fold_bn(*bn1)
    s2, b2 = _fold_bn(*bn2)

    def prep_w(w_oihw, scale):
        # OIHW -> HWIO, fold BN scale into out-channels, pad, keep taps as the
        # leading axis (9, Cp, Cp), cast to bf16 (f32 accumulate in-kernel).
        w = jnp.transpose(w_oihw, (2, 3, 1, 0)).astype(jnp.float32)
        w = w * scale[None, None, None, :]
        w = jnp.pad(w, ((0, 0), (0, 0), (0, Cp - C), (0, Cp - C)))
        return w.reshape(9, Cp, Cp).astype(jnp.bfloat16)

    w1 = prep_w(w1_oihw, s1)
    w2 = prep_w(w2_oihw, s2)
    b1p = jnp.pad(b1, (0, Cp - C)).reshape(1, Cp).astype(jnp.float32)
    b2p = jnp.pad(b2, (0, Cp - C)).reshape(1, Cp).astype(jnp.float32)

    # Honest HBM-side cost estimate (two convs, bf16 weights, f32 activations).
    cost = pl.CostEstimate(
        flops=2 * 2 * N * H * W * (9 * Cp) * Cp,
        transcendentals=0,
        bytes_accessed=(2 * N * H * W * Cp * 4            # x in + out (f32)
                        + 2 * 9 * Cp * Cp * 2             # bf16 weights
                        + 2 * Cp * 4))                    # biases

    # Per-step VMEM footprint (+ headroom) -> vmem_limit_bytes.
    blk_bytes = H * W * Cp * 4
    vmem_bytes = (2 * 2 * blk_bytes                        # in/out double-buffered
                  + 2 * 9 * Cp * Cp * 2 + 2 * Cp * 4      # weights + biases (1x)
                  + 2 * (H + 2) * Wp2 * Cp * 2            # two pad scratches
                  + blk_bytes)                            # f32 accumulator
    vmem_limit = min(int(vmem_bytes * 2) + (4 << 20), 48 << 20)

    out = pl.pallas_call(
        fused_basic_block_kernel,
        out_shape=jax.ShapeDtypeStruct((N, H, W, Cp), jnp.float32),
        grid=(N,),
        in_specs=[
            pl.BlockSpec((1, H, W, Cp), lambda b: (b, 0, 0, 0)),
            # Grid-invariant weights/biases: whole-array VMEM residency,
            # single-buffered (no duplicate copies from the pipeliner).
            pl.BlockSpec(memory_space=pltpu.MemorySpace.VMEM),
            pl.BlockSpec(memory_space=pltpu.MemorySpace.VMEM),
            pl.BlockSpec(memory_space=pltpu.MemorySpace.VMEM),
            pl.BlockSpec(memory_space=pltpu.MemorySpace.VMEM),
        ],
        out_specs=pl.BlockSpec((1, H, W, Cp), lambda b: (b, 0, 0, 0)),
        scratch_shapes=[
            pltpu.VMEM((H + 2, Wp2, Cp), jnp.bfloat16),   # padded input
            pltpu.VMEM((H + 2, Wp2, Cp), jnp.bfloat16),   # padded h1
            pltpu.VMEM((H * W, Cp), jnp.float32),         # f32 conv accumulator
        ],
        compiler_params=pltpu.CompilerParams(
            dimension_semantics=("parallel",),
            vmem_limit_bytes=vmem_limit),
        cost_estimate=cost,
    )(x, w1, b1p, w2, b2p)

    out = out[:, :, :, :C]                                  # drop lane padding
    return jnp.transpose(out, (0, 3, 1, 2))                 # back to NCHW


# ------------------------------ reference ------------------------------------


def _reference(x_nchw, w1_oihw, bn1, w2_oihw, bn2):
    x = jnp.transpose(x_nchw, (0, 2, 3, 1)).astype(jnp.float32)
    w1 = jnp.transpose(w1_oihw, (2, 3, 1, 0)).astype(jnp.float32)
    w2 = jnp.transpose(w2_oihw, (2, 3, 1, 0)).astype(jnp.float32)
    s1, b1 = _fold_bn(*bn1)
    s2, b2 = _fold_bn(*bn2)
    dn = jax.lax.conv_dimension_numbers(x.shape, w1.shape,
                                        ("NHWC", "HWIO", "NHWC"))
    h = jax.lax.conv_general_dilated(x, w1, (1, 1), "SAME",
                                     dimension_numbers=dn)
    h = jnp.maximum(h * s1[None, None, None, :] + b1[None, None, None, :], 0.0)
    h2 = jax.lax.conv_general_dilated(h, w2, (1, 1), "SAME",
                                      dimension_numbers=dn)
    h2 = h2 * s2[None, None, None, :] + b2[None, None, None, :]
    out = jnp.maximum(h2 + x, 0.0)
    return jnp.transpose(out, (0, 3, 1, 2))


# -------------------------------- main ----------------------------------------


if __name__ == "__main__":
    key = jax.random.PRNGKey(0)
    N, C, H, W = 2, 4, 16, 16  # inplanes == planes == 4, stride=1, no downsample
    ks = jax.random.split(key, 11)

    x = jax.random.normal(ks[0], (N, C, H, W), jnp.float32)

    # Conv weights in PyTorch OIHW convention: (planes, inplanes, 3, 3)
    w1 = jax.random.normal(ks[1], (C, C, 3, 3), jnp.float32) * 0.1
    w2 = jax.random.normal(ks[2], (C, C, 3, 3), jnp.float32) * 0.1

    # BatchNorm params/buffers (inference mode).
    bn1 = (
        jax.random.uniform(ks[3], (C,), minval=0.5, maxval=1.5),  # gamma
        jax.random.normal(ks[4], (C,)) * 0.1,                     # beta
        jax.random.normal(ks[5], (C,)) * 0.1,                     # running_mean
        jax.random.uniform(ks[6], (C,), minval=0.5, maxval=1.5),  # running_var
    )
    bn2 = (
        jax.random.uniform(ks[7], (C,), minval=0.5, maxval=1.5),
        jax.random.normal(ks[8], (C,)) * 0.1,
        jax.random.normal(ks[9], (C,)) * 0.1,
        jax.random.uniform(ks[10], (C,), minval=0.5, maxval=1.5),
    )

    out = jax.block_until_ready(basic_block_forward(x, w1, bn1, w2, bn2))
    ref = jax.block_until_ready(_reference(x, w1, bn1, w2, bn2))

    assert out.shape == (N, C, H, W)
    # bf16 MXU operands with f32 accumulate -> loosened tolerance vs f32 ref.
    max_err = float(jnp.max(jnp.abs(out - ref)))
    assert jnp.allclose(out, ref, rtol=5e-2, atol=5e-2), max_err

    print("KERNEL_OK")
</pallas_src>

<mosaic_0001>
module attributes {stable_mosaic.version = 11 : i64} {
  func.func @fused_basic_block_kernel(%arg0: i32, %arg1: memref<1x16x16x128xf32, #tpu.memory_space<vmem>>, %arg2: memref<9x128x128xbf16, #tpu.memory_space<vmem>>, %arg3: memref<1x128xf32, #tpu.memory_space<vmem>>, %arg4: memref<9x128x128xbf16, #tpu.memory_space<vmem>>, %arg5: memref<1x128xf32, #tpu.memory_space<vmem>>, %arg6: memref<1x16x16x128xf32, #tpu.memory_space<vmem>>, %arg7: memref<18x24x128xbf16, #tpu.memory_space<vmem>>, %arg8: memref<18x24x128xbf16, #tpu.memory_space<vmem>>, %arg9: memref<256x128xf32, #tpu.memory_space<vmem>>) attributes {dimension_semantics = [#tpu.dimension_semantics<parallel>], iteration_bounds = array<i64: 2>, scalar_prefetch = 0 : i64, scratch_operands = 3 : i64, tpu.core_type = #tpu.core_type<tc>, window_params = [{transform_indices = @transform_0, window_bounds = array<i64: 1, 16, 16, 128>}, {pipeline_mode = #tpu.pipeline_mode<synchronous>, transform_indices = @transform_1, window_bounds = array<i64: 9, 128, 128>}, {pipeline_mode = #tpu.pipeline_mode<synchronous>, transform_indices = @transform_2, window_bounds = array<i64: 1, 128>}, {pipeline_mode = #tpu.pipeline_mode<synchronous>, transform_indices = @transform_3, window_bounds = array<i64: 9, 128, 128>}, {pipeline_mode = #tpu.pipeline_mode<synchronous>, transform_indices = @transform_4, window_bounds = array<i64: 1, 128>}, {transform_indices = @transform_5, window_bounds = array<i64: 1, 16, 16, 128>}]} {
    %cst = arith.constant 0.000000e+00 : bf16
    %0 = vector.broadcast %cst : bf16 to vector<1x24x128xbf16>
    %cst_0 = arith.constant 0.000000e+00 : bf16
    %1 = vector.broadcast %cst_0 : bf16 to vector<18x1x128xbf16>
    %c0 = arith.constant 0 : index
    %c0_1 = arith.constant 0 : index
    %c0_2 = arith.constant 0 : index
    %2 = vector.load %arg7[%c0, %c0_1, %c0_2] : memref<18x24x128xbf16, #tpu.memory_space<vmem>>, vector<1x24x128xbf16>
    tpu.vector_store %arg7[%c0, %c0_1, %c0_2], %0 {strides = array<i32>} : memref<18x24x128xbf16, #tpu.memory_space<vmem>>, vector<1x24x128xbf16>,
    %c17 = arith.constant 17 : index
    %c0_3 = arith.constant 0 : index
    %c0_4 = arith.constant 0 : index
    %3 = vector.load %arg7[%c17, %c0_3, %c0_4] : memref<18x24x128xbf16, #tpu.memory_space<vmem>>, vector<1x24x128xbf16>
    tpu.vector_store %arg7[%c17, %c0_3, %c0_4], %0 {strides = array<i32>} : memref<18x24x128xbf16, #tpu.memory_space<vmem>>, vector<1x24x128xbf16>,
    %c0_5 = arith.constant 0 : index
    %c0_6 = arith.constant 0 : index
    %c0_7 = arith.constant 0 : index
    %4 = vector.load %arg7[%c0_5, %c0_6, %c0_7] : memref<18x24x128xbf16, #tpu.memory_space<vmem>>, vector<18x1x128xbf16>
    tpu.vector_store %arg7[%c0_5, %c0_6, %c0_7], %1 {strides = array<i32>} : memref<18x24x128xbf16, #tpu.memory_space<vmem>>, vector<18x1x128xbf16>,
    %c0_8 = arith.constant 0 : index
    %c17_9 = arith.constant 17 : index
    %c0_10 = arith.constant 0 : index
    %5 = vector.load %arg7[%c0_8, %c17_9, %c0_10] : memref<18x24x128xbf16, #tpu.memory_space<vmem>>, vector<18x1x128xbf16>
    tpu.vector_store %arg7[%c0_8, %c17_9, %c0_10], %1 {strides = array<i32>} : memref<18x24x128xbf16, #tpu.memory_space<vmem>>, vector<18x1x128xbf16>,
    %cst_11 = arith.constant 0.000000e+00 : bf16
    %6 = vector.broadcast %cst_11 : bf16 to vector<1x24x128xbf16>
    %cst_12 = arith.constant 0.000000e+00 : bf16
    %7 = vector.broadcast %cst_12 : bf16 to vector<18x1x128xbf16>
    %c0_13 = arith.constant 0 : index
    %c0_14 = arith.constant 0 : index
    %c0_15 = arith.constant 0 : index
    %8 = vector.load %arg8[%c0_13, %c0_14, %c0_15] : memref<18x24x128xbf16, #tpu.memory_space<vmem>>, vector<1x24x128xbf16>
    tpu.vector_store %arg8[%c0_13, %c0_14, %c0_15], %6 {strides = array<i32>} : memref<18x24x128xbf16, #tpu.memory_space<vmem>>, vector<1x24x128xbf16>,
    %c17_16 = arith.constant 17 : index
    %c0_17 = arith.constant 0 : index
    %c0_18 = arith.constant 0 : index
    %9 = vector.load %arg8[%c17_16, %c0_17, %c0_18] : memref<18x24x128xbf16, #tpu.memory_space<vmem>>, vector<1x24x128xbf16>
    tpu.vector_store %arg8[%c17_16, %c0_17, %c0_18], %6 {strides = array<i32>} : memref<18x24x128xbf16, #tpu.memory_space<vmem>>, vector<1x24x128xbf16>,
    %c0_19 = arith.constant 0 : index
    %c0_20 = arith.constant 0 : index
    %c0_21 = arith.constant 0 : index
    %10 = vector.load %arg8[%c0_19, %c0_20, %c0_21] : memref<18x24x128xbf16, #tpu.memory_space<vmem>>, vector<18x1x128xbf16>
    tpu.vector_store %arg8[%c0_19, %c0_20, %c0_21], %7 {strides = array<i32>} : memref<18x24x128xbf16, #tpu.memory_space<vmem>>, vector<18x1x128xbf16>,
    %c0_22 = arith.constant 0 : index
    %c17_23 = arith.constant 17 : index
    %c0_24 = arith.constant 0 : index
    %11 = vector.load %arg8[%c0_22, %c17_23, %c0_24] : memref<18x24x128xbf16, #tpu.memory_space<vmem>>, vector<18x1x128xbf16>
    tpu.vector_store %arg8[%c0_22, %c17_23, %c0_24], %7 {strides = array<i32>} : memref<18x24x128xbf16, #tpu.memory_space<vmem>>, vector<18x1x128xbf16>,
    %c0_25 = arith.constant 0 : index
    %c0_26 = arith.constant 0 : index
    %c0_27 = arith.constant 0 : index
    %c0_28 = arith.constant 0 : index
    %12 = vector.load %arg1[%c0_25, %c0_26, %c0_27, %c0_28] : memref<1x16x16x128xf32, #tpu.memory_space<vmem>>, vector<1x16x16x128xf32>
    %13 = vector.shape_cast %12 : vector<1x16x16x128xf32> to vector<16x16x128xf32>
    %14 = arith.truncf %13 : vector<16x16x128xf32> to vector<16x16x128xbf16>
    %c1 = arith.constant 1 : index
    %c1_29 = arith.constant 1 : index
    %c0_30 = arith.constant 0 : index
    %15 = vector.load %arg7[%c1, %c1_29, %c0_30] : memref<18x24x128xbf16, #tpu.memory_space<vmem>>, vector<16x16x128xbf16>
    tpu.vector_store %arg7[%c1, %c1_29, %c0_30], %14 {strides = array<i32>} : memref<18x24x128xbf16, #tpu.memory_space<vmem>>, vector<16x16x128xbf16>,
    %c0_31 = arith.constant 0 : index
    %c0_32 = arith.constant 0 : index
    %c0_33 = arith.constant 0 : index
    %16 = vector.load %arg7[%c0_31, %c0_32, %c0_33] : memref<18x24x128xbf16, #tpu.memory_space<vmem>>, vector<16x16x128xbf16>
    %17 = vector.shape_cast %16 : vector<16x16x128xbf16> to vector<256x128xbf16>
    %c0_34 = arith.constant 0 : index
    %c0_35 = arith.constant 0 : index
    %c0_36 = arith.constant 0 : index
    %18 = vector.load %arg2[%c0_34, %c0_35, %c0_36] : memref<9x128x128xbf16, #tpu.memory_space<vmem>>, vector<1x128x128xbf16>
    %19 = vector.shape_cast %18 : vector<1x128x128xbf16> to vector<128x128xbf16>
    %cst_37 = arith.constant dense<0.000000e+00> : vector<256x128xf32>
    %20 = tpu.matmul %17, %19, %cst_37 {dimension_numbers = #tpu.dot_dimension_numbers<[1], [0], [0], [1], [0, 0, 1, 1], [], []>} : vector<256x128xbf16>, vector<128x128xbf16>, vector<256x128xf32> -> vector<256x128xf32>
    %c0_38 = arith.constant 0 : index
    %c0_39 = arith.constant 0 : index
    %21 = vector.load %arg9[%c0_38, %c0_39] : memref<256x128xf32, #tpu.memory_space<vmem>>, vector<256x128xf32>
    tpu.vector_store %arg9[%c0_38, %c0_39], %20 {strides = array<i32>} : memref<256x128xf32, #tpu.memory_space<vmem>>, vector<256x128xf32>,
    %c0_40 = arith.constant 0 : index
    %c1_41 = arith.constant 1 : index
    %c0_42 = arith.constant 0 : index
    %22 = vector.load %arg7[%c0_40, %c1_41, %c0_42] : memref<18x24x128xbf16, #tpu.memory_space<vmem>>, vector<16x16x128xbf16>
    %23 = vector.shape_cast %22 : vector<16x16x128xbf16> to vector<256x128xbf16>
    %c1_43 = arith.constant 1 : index
    %c0_44 = arith.constant 0 : index
    %c0_45 = arith.constant 0 : index
    %24 = vector.load %arg2[%c1_43, %c0_44, %c0_45] : memref<9x128x128xbf16, #tpu.memory_space<vmem>>, vector<1x128x128xbf16>
    %25 = vector.shape_cast %24 : vector<1x128x128xbf16> to vector<128x128xbf16>
    %cst_46 = arith.constant dense<0.000000e+00> : vector<256x128xf32>
    %26 = tpu.matmul %23, %25, %cst_46 {dimension_numbers = #tpu.dot_dimension_numbers<[1], [0], [0], [1], [0, 0, 1, 1], [], []>} : vector<256x128xbf16>, vector<128x128xbf16>, vector<256x128xf32> -> vector<256x128xf32>
    %c0_47 = arith.constant 0 : index
    %c0_48 = arith.constant 0 : index
    %27 = vector.load %arg9[%c0_47, %c0_48] : memref<256x128xf32, #tpu.memory_space<vmem>>, vector<256x128xf32>
    %28 = arith.addf %27, %26 : vector<256x128xf32>
    %c0_49 = arith.constant 0 : index
    %c0_50 = arith.constant 0 : index
    %29 = vector.load %arg9[%c0_49, %c0_50] : memref<256x128xf32, #tpu.memory_space<vmem>>, vector<256x128xf32>
    tpu.vector_store %arg9[%c0_49, %c0_50], %28 {strides = array<i32>} : memref<256x128xf32, #tpu.memory_space<vmem>>, vector<256x128xf32>,
    %c0_51 = arith.constant 0 : index
    %c2 = arith.constant 2 : index
    %c0_52 = arith.constant 0 : index
    %30 = vector.load %arg7[%c0_51, %c2, %c0_52] : memref<18x24x128xbf16, #tpu.memory_space<vmem>>, vector<16x16x128xbf16>
    %31 = vector.shape_cast %30 : vector<16x16x128xbf16> to vector<256x128xbf16>
    %c2_53 = arith.constant 2 : index
    %c0_54 = arith.constant 0 : index
    %c0_55 = arith.constant 0 : index
    %32 = vector.load %arg2[%c2_53, %c0_54, %c0_55] : memref<9x128x128xbf16, #tpu.memory_space<vmem>>, vector<1x128x128xbf16>
    %33 = vector.shape_cast %32 : vector<1x128x128xbf16> to vector<128x128xbf16>
    %cst_56 = arith.constant dense<0.000000e+00> : vector<256x128xf32>
    %34 = tpu.matmul %31, %33, %cst_56 {dimension_numbers = #tpu.dot_dimension_numbers<[1], [0], [0], [1], [0, 0, 1, 1], [], []>} : vector<256x128xbf16>, vector<128x128xbf16>, vector<256x128xf32> -> vector<256x128xf32>
    %c0_57 = arith.constant 0 : index
    %c0_58 = arith.constant 0 : index
    %35 = vector.load %arg9[%c0_57, %c0_58] : memref<256x128xf32, #tpu.memory_space<vmem>>, vector<256x128xf32>
    %36 = arith.addf %35, %34 : vector<256x128xf32>
    %c0_59 = arith.constant 0 : index
    %c0_60 = arith.constant 0 : index
    %37 = vector.load %arg9[%c0_59, %c0_60] : memref<256x128xf32, #tpu.memory_space<vmem>>, vector<256x128xf32>
    tpu.vector_store %arg9[%c0_59, %c0_60], %36 {strides = array<i32>} : memref<256x128xf32, #tpu.memory_space<vmem>>, vector<256x128xf32>,
    %c1_61 = arith.constant 1 : index
    %c0_62 = arith.constant 0 : index
    %c0_63 = arith.constant 0 : index
    %38 = vector.load %arg7[%c1_61, %c0_62, %c0_63] : memref<18x24x128xbf16, #tpu.memory_space<vmem>>, vector<16x16x128xbf16>
    %39 = vector.shape_cast %38 : vector<16x16x128xbf16> to vector<256x128xbf16>
    %c3 = arith.constant 3 : index
    %c0_64 = arith.constant 0 : index
    %c0_65 = arith.constant 0 : index
    %40 = vector.load %arg2[%c3, %c0_64, %c0_65] : memref<9x128x128xbf16, #tpu.memory_space<vmem>>, vector<1x128x128xbf16>
    %41 = vector.shape_cast %40 : vector<1x128x128xbf16> to vector<128x128xbf16>
    %cst_66 = arith.constant dense<0.000000e+00> : vector<256x128xf32>
    %42 = tpu.matmul %39, %41, %cst_66 {dimension_numbers = #tpu.dot_dimension_numbers<[1], [0], [0], [1], [0, 0, 1, 1], [], []>} : vector<256x128xbf16>, vector<128x128xbf16>, vector<256x128xf32> -> vector<256x128xf32>
    %c0_67 = arith.constant 0 : index
    %c0_68 = arith.constant 0 : index
    %43 = vector.load %arg9[%c0_67, %c0_68] : memref<256x128xf32, #tpu.memory_space<vmem>>, vector<256x128xf32>
    %44 = arith.addf %43, %42 : vector<256x128xf32>
    %c0_69 = arith.constant 0 : index
    %c0_70 = arith.constant 0 : index
    %45 = vector.load %arg9[%c0_69, %c0_70] : memref<256x128xf32, #tpu.memory_space<vmem>>, vector<256x128xf32>
    tpu.vector_store %arg9[%c0_69, %c0_70], %44 {strides = array<i32>} : memref<256x128xf32, #tpu.memory_space<vmem>>, vector<256x128xf32>,
    %c1_71 = arith.constant 1 : index
    %c1_72 = arith.constant 1 : index
    %c0_73 = arith.constant 0 : index
    %46 = vector.load %arg7[%c1_71, %c1_72, %c0_73] : memref<18x24x128xbf16, #tpu.memory_space<vmem>>, vector<16x16x128xbf16>
    %47 = vector.shape_cast %46 : vector<16x16x128xbf16> to vector<256x128xbf16>
    %c4 = arith.constant 4 : index
    %c0_74 = arith.constant 0 : index
    %c0_75 = arith.constant 0 : index
    %48 = vector.load %arg2[%c4, %c0_74, %c0_75] : memref<9x128x128xbf16, #tpu.memory_space<vmem>>, vector<1x128x128xbf16>
    %49 = vector.shape_cast %48 : vector<1x128x128xbf16> to vector<128x128xbf16>
    %cst_76 = arith.constant dense<0.000000e+00> : vector<256x128xf32>
    %50 = tpu.matmul %47, %49, %cst_76 {dimension_numbers = #tpu.dot_dimension_numbers<[1], [0], [0], [1], [0, 0, 1, 1], [], []>} : vector<256x128xbf16>, vector<128x128xbf16>, vector<256x128xf32> -> vector<256x128xf32>
    %c0_77 = arith.constant 0 : index
    %c0_78 = arith.constant 0 : index
    %51 = vector.load %arg9[%c0_77, %c0_78] : memref<256x128xf32, #tpu.memory_space<vmem>>, vector<256x128xf32>
    %52 = arith.addf %51, %50 : vector<256x128xf32>
    %c0_79 = arith.constant 0 : index
    %c0_80 = arith.constant 0 : index
    %53 = vector.load %arg9[%c0_79, %c0_80] : memref<256x128xf32, #tpu.memory_space<vmem>>, vector<256x128xf32>
    tpu.vector_store %arg9[%c0_79, %c0_80], %52 {strides = array<i32>} : memref<256x128xf32, #tpu.memory_space<vmem>>, vector<256x128xf32>,
    %c1_81 = arith.constant 1 : index
    %c2_82 = arith.constant 2 : index
    %c0_83 = arith.constant 0 : index
    %54 = vector.load %arg7[%c1_81, %c2_82, %c0_83] : memref<18x24x128xbf16, #tpu.memory_space<vmem>>, vector<16x16x128xbf16>
    %55 = vector.shape_cast %54 : vector<16x16x128xbf16> to vector<256x128xbf16>
    %c5 = arith.constant 5 : index
    %c0_84 = arith.constant 0 : index
    %c0_85 = arith.constant 0 : index
    %56 = vector.load %arg2[%c5, %c0_84, %c0_85] : memref<9x128x128xbf16, #tpu.memory_space<vmem>>, vector<1x128x128xbf16>
    %57 = vector.shape_cast %56 : vector<1x128x128xbf16> to vector<128x128xbf16>
    %cst_86 = arith.constant dense<0.000000e+00> : vector<256x128xf32>
    %58 = tpu.matmul %55, %57, %cst_86 {dimension_numbers = #tpu.dot_dimension_numbers<[1], [0], [0], [1], [0, 0, 1, 1], [], []>} : vector<256x128xbf16>, vector<128x128xbf16>, vector<256x128xf32> -> vector<256x128xf32>
    %c0_87 = arith.constant 0 : index
    %c0_88 = arith.constant 0 : index
    %59 = vector.load %arg9[%c0_87, %c0_88] : memref<256x128xf32, #tpu.memory_space<vmem>>, vector<256x128xf32>
    %60 = arith.addf %59, %58 : vector<256x128xf32>
    %c0_89 = arith.constant 0 : index
    %c0_90 = arith.constant 0 : index
    %61 = vector.load %arg9[%c0_89, %c0_90] : memref<256x128xf32, #tpu.memory_space<vmem>>, vector<256x128xf32>
    tpu.vector_store %arg9[%c0_89, %c0_90], %60 {strides = array<i32>} : memref<256x128xf32, #tpu.memory_space<vmem>>, vector<256x128xf32>,
    %c2_91 = arith.constant 2 : index
    %c0_92 = arith.constant 0 : index
    %c0_93 = arith.constant 0 : index
    %62 = vector.load %arg7[%c2_91, %c0_92, %c0_93] : memref<18x24x128xbf16, #tpu.memory_space<vmem>>, vector<16x16x128xbf16>
    %63 = vector.shape_cast %62 : vector<16x16x128xbf16> to vector<256x128xbf16>
    %c6 = arith.constant 6 : index
    %c0_94 = arith.constant 0 : index
    %c0_95 = arith.constant 0 : index
    %64 = vector.load %arg2[%c6, %c0_94, %c0_95] : memref<9x128x128xbf16, #tpu.memory_space<vmem>>, vector<1x128x128xbf16>
    %65 = vector.shape_cast %64 : vector<1x128x128xbf16> to vector<128x128xbf16>
    %cst_96 = arith.constant dense<0.000000e+00> : vector<256x128xf32>
    %66 = tpu.matmul %63, %65, %cst_96 {dimension_numbers = #tpu.dot_dimension_numbers<[1], [0], [0], [1], [0, 0, 1, 1], [], []>} : vector<256x128xbf16>, vector<128x128xbf16>, vector<256x128xf32> -> vector<256x128xf32>
    %c0_97 = arith.constant 0 : index
    %c0_98 = arith.constant 0 : index
    %67 = vector.load %arg9[%c0_97, %c0_98] : memref<256x128xf32, #tpu.memory_space<vmem>>, vector<256x128xf32>
    %68 = arith.addf %67, %66 : vector<256x128xf32>
    %c0_99 = arith.constant 0 : index
    %c0_100 = arith.constant 0 : index
    %69 = vector.load %arg9[%c0_99, %c0_100] : memref<256x128xf32, #tpu.memory_space<vmem>>, vector<256x128xf32>
    tpu.vector_store %arg9[%c0_99, %c0_100], %68 {strides = array<i32>} : memref<256x128xf32, #tpu.memory_space<vmem>>, vector<256x128xf32>,
    %c2_101 = arith.constant 2 : index
    %c1_102 = arith.constant 1 : index
    %c0_103 = arith.constant 0 : index
    %70 = vector.load %arg7[%c2_101, %c1_102, %c0_103] : memref<18x24x128xbf16, #tpu.memory_space<vmem>>, vector<16x16x128xbf16>
    %71 = vector.shape_cast %70 : vector<16x16x128xbf16> to vector<256x128xbf16>
    %c7 = arith.constant 7 : index
    %c0_104 = arith.constant 0 : index
    %c0_105 = arith.constant 0 : index
    %72 = vector.load %arg2[%c7, %c0_104, %c0_105] : memref<9x128x128xbf16, #tpu.memory_space<vmem>>, vector<1x128x128xbf16>
    %73 = vector.shape_cast %72 : vector<1x128x128xbf16> to vector<128x128xbf16>
    %cst_106 = arith.constant dense<0.000000e+00> : vector<256x128xf32>
    %74 = tpu.matmul %71, %73, %cst_106 {dimension_numbers = #tpu.dot_dimension_numbers<[1], [0], [0], [1], [0, 0, 1, 1], [], []>} : vector<256x128xbf16>, vector<128x128xbf16>, vector<256x128xf32> -> vector<256x128xf32>
    %c0_107 = arith.constant 0 : index
    %c0_108 = arith.constant 0 : index
    %75 = vector.load %arg9[%c0_107, %c0_108] : memref<256x128xf32, #tpu.memory_space<vmem>>, vector<256x128xf32>
    %76 = arith.addf %75, %74 : vector<256x128xf32>
    %c0_109 = arith.constant 0 : index
    %c0_110 = arith.constant 0 : index
    %77 = vector.load %arg9[%c0_109, %c0_110] : memref<256x128xf32, #tpu.memory_space<vmem>>, vector<256x128xf32>
    tpu.vector_store %arg9[%c0_109, %c0_110], %76 {strides = array<i32>} : memref<256x128xf32, #tpu.memory_space<vmem>>, vector<256x128xf32>,
    %c2_111 = arith.constant 2 : index
    %c2_112 = arith.constant 2 : index
    %c0_113 = arith.constant 0 : index
    %78 = vector.load %arg7[%c2_111, %c2_112, %c0_113] : memref<18x24x128xbf16, #tpu.memory_space<vmem>>, vector<16x16x128xbf16>
    %79 = vector.shape_cast %78 : vector<16x16x128xbf16> to vector<256x128xbf16>
    %c8 = arith.constant 8 : index
    %c0_114 = arith.constant 0 : index
    %c0_115 = arith.constant 0 : index
    %80 = vector.load %arg2[%c8, %c0_114, %c0_115] : memref<9x128x128xbf16, #tpu.memory_space<vmem>>, vector<1x128x128xbf16>
    %81 = vector.shape_cast %80 : vector<1x128x128xbf16> to vector<128x128xbf16>
    %cst_116 = arith.constant dense<0.000000e+00> : vector<256x128xf32>
    %82 = tpu.matmul %79, %81, %cst_116 {dimension_numbers = #tpu.dot_dimension_numbers<[1], [0], [0], [1], [0, 0, 1, 1], [], []>} : vector<256x128xbf16>, vector<128x128xbf16>, vector<256x128xf32> -> vector<256x128xf32>
    %c0_117 = arith.constant 0 : index
    %c0_118 = arith.constant 0 : index
    %83 = vector.load %arg9[%c0_117, %c0_118] : memref<256x128xf32, #tpu.memory_space<vmem>>, vector<256x128xf32>
    %84 = arith.addf %83, %82 : vector<256x128xf32>
    %c0_119 = arith.constant 0 : index
    %c0_120 = arith.constant 0 : index
    %85 = vector.load %arg9[%c0_119, %c0_120] : memref<256x128xf32, #tpu.memory_space<vmem>>, vector<256x128xf32>
    tpu.vector_store %arg9[%c0_119, %c0_120], %84 {strides = array<i32>} : memref<256x128xf32, #tpu.memory_space<vmem>>, vector<256x128xf32>,
    %c0_121 = arith.constant 0 : index
    %c0_122 = arith.constant 0 : index
    %86 = vector.load %arg9[%c0_121, %c0_122] : memref<256x128xf32, #tpu.memory_space<vmem>>, vector<256x128xf32>
    %c0_123 = arith.constant 0 : index
    %c0_124 = arith.constant 0 : index
    %87 = vector.load %arg3[%c0_123, %c0_124] : memref<1x128xf32, #tpu.memory_space<vmem>>, vector<1x128xf32>
    %88 = vector.broadcast %87 : vector<1x128xf32> to vector<256x128xf32>
    %89 = arith.addf %86, %88 : vector<256x128xf32>
    %cst_125 = arith.constant 0.000000e+00 : f32
    %90 = vector.broadcast %cst_125 : f32 to vector<256x128xf32>
    %91 = arith.maximumf %89, %90 : vector<256x128xf32>
    %92 = vector.shape_cast %91 : vector<256x128xf32> to vector<16x16x128xf32>
    %93 = arith.truncf %92 : vector<16x16x128xf32> to vector<16x16x128xbf16>
    %c1_126 = arith.constant 1 : index
    %c1_127 = arith.constant 1 : index
    %c0_128 = arith.constant 0 : index
    %94 = vector.load %arg8[%c1_126, %c1_127, %c0_128] : memref<18x24x128xbf16, #tpu.memory_space<vmem>>, vector<16x16x128xbf16>
    tpu.vector_store %arg8[%c1_126, %c1_127, %c0_128], %93 {strides = array<i32>} : memref<18x24x128xbf16, #tpu.memory_space<vmem>>, vector<16x16x128xbf16>,
    %c0_129 = arith.constant 0 : index
    %c0_130 = arith.constant 0 : index
    %c0_131 = arith.constant 0 : index
    %95 = vector.load %arg8[%c0_129, %c0_130, %c0_131] : memref<18x24x128xbf16, #tpu.memory_space<vmem>>, vector<16x16x128xbf16>
    %96 = vector.shape_cast %95 : vector<16x16x128xbf16> to vector<256x128xbf16>
    %c0_132 = arith.constant 0 : index
    %c0_133 = arith.constant 0 : index
    %c0_134 = arith.constant 0 : index
    %97 = vector.load %arg4[%c0_132, %c0_133, %c0_134] : memref<9x128x128xbf16, #tpu.memory_space<vmem>>, vector<1x128x128xbf16>
    %98 = vector.shape_cast %97 : vector<1x128x128xbf16> to vector<128x128xbf16>
    %cst_135 = arith.constant dense<0.000000e+00> : vector<256x128xf32>
    %99 = tpu.matmul %96, %98, %cst_135 {dimension_numbers = #tpu.dot_dimension_numbers<[1], [0], [0], [1], [0, 0, 1, 1], [], []>} : vector<256x128xbf16>, vector<128x128xbf16>, vector<256x128xf32> -> vector<256x128xf32>
    %c0_136 = arith.constant 0 : index
    %c0_137 = arith.constant 0 : index
    %100 = vector.load %arg9[%c0_136, %c0_137] : memref<256x128xf32, #tpu.memory_space<vmem>>, vector<256x128xf32>
    tpu.vector_store %arg9[%c0_136, %c0_137], %99 {strides = array<i32>} : memref<256x128xf32, #tpu.memory_space<vmem>>, vector<256x128xf32>,
    %c0_138 = arith.constant 0 : index
    %c1_139 = arith.constant 1 : index
    %c0_140 = arith.constant 0 : index
    %101 = vector.load %arg8[%c0_138, %c1_139, %c0_140] : memref<18x24x128xbf16, #tpu.memory_space<vmem>>, vector<16x16x128xbf16>
    %102 = vector.shape_cast %101 : vector<16x16x128xbf16> to vector<256x128xbf16>
    %c1_141 = arith.constant 1 : index
    %c0_142 = arith.constant 0 : index
    %c0_143 = arith.constant 0 : index
    %103 = vector.load %arg4[%c1_141, %c0_142, %c0_143] : memref<9x128x128xbf16, #tpu.memory_space<vmem>>, vector<1x128x128xbf16>
    %104 = vector.shape_cast %103 : vector<1x128x128xbf16> to vector<128x128xbf16>
    %cst_144 = arith.constant dense<0.000000e+00> : vector<256x128xf32>
    %105 = tpu.matmul %102, %104, %cst_144 {dimension_numbers = #tpu.dot_dimension_numbers<[1], [0], [0], [1], [0, 0, 1, 1], [], []>} : vector<256x128xbf16>, vector<128x128xbf16>, vector<256x128xf32> -> vector<256x128xf32>
    %c0_145 = arith.constant 0 : index
    %c0_146 = arith.constant 0 : index
    %106 = vector.load %arg9[%c0_145, %c0_146] : memref<256x128xf32, #tpu.memory_space<vmem>>, vector<256x128xf32>
    %107 = arith.addf %106, %105 : vector<256x128xf32>
    %c0_147 = arith.constant 0 : index
    %c0_148 = arith.constant 0 : index
    %108 = vector.load %arg9[%c0_147, %c0_148] : memref<256x128xf32, #tpu.memory_space<vmem>>, vector<256x128xf32>
    tpu.vector_store %arg9[%c0_147, %c0_148], %107 {strides = array<i32>} : memref<256x128xf32, #tpu.memory_space<vmem>>, vector<256x128xf32>,
    %c0_149 = arith.constant 0 : index
    %c2_150 = arith.constant 2 : index
    %c0_151 = arith.constant 0 : index
    %109 = vector.load %arg8[%c0_149, %c2_150, %c0_151] : memref<18x24x128xbf16, #tpu.memory_space<vmem>>, vector<16x16x128xbf16>
    %110 = vector.shape_cast %109 : vector<16x16x128xbf16> to vector<256x128xbf16>
    %c2_152 = arith.constant 2 : index
    %c0_153 = arith.constant 0 : index
    %c0_154 = arith.constant 0 : index
    %111 = vector.load %arg4[%c2_152, %c0_153, %c0_154] : memref<9x128x128xbf16, #tpu.memory_space<vmem>>, vector<1x128x128xbf16>
    %112 = vector.shape_cast %111 : vector<1x128x128xbf16> to vector<128x128xbf16>
    %cst_155 = arith.constant dense<0.000000e+00> : vector<256x128xf32>
    %113 = tpu.matmul %110, %112, %cst_155 {dimension_numbers = #tpu.dot_dimension_numbers<[1], [0], [0], [1], [0, 0, 1, 1], [], []>} : vector<256x128xbf16>, vector<128x128xbf16>, vector<256x128xf32> -> vector<256x128xf32>
    %c0_156 = arith.constant 0 : index
    %c0_157 = arith.constant 0 : index
    %114 = vector.load %arg9[%c0_156, %c0_157] : memref<256x128xf32, #tpu.memory_space<vmem>>, vector<256x128xf32>
    %115 = arith.addf %114, %113 : vector<256x128xf32>
    %c0_158 = arith.constant 0 : index
    %c0_159 = arith.constant 0 : index
    %116 = vector.load %arg9[%c0_158, %c0_159] : memref<256x128xf32, #tpu.memory_space<vmem>>, vector<256x128xf32>
    tpu.vector_store %arg9[%c0_158, %c0_159], %115 {strides = array<i32>} : memref<256x128xf32, #tpu.memory_space<vmem>>, vector<256x128xf32>,
    %c1_160 = arith.constant 1 : index
    %c0_161 = arith.constant 0 : index
    %c0_162 = arith.constant 0 : index
    %117 = vector.load %arg8[%c1_160, %c0_161, %c0_162] : memref<18x24x128xbf16, #tpu.memory_space<vmem>>, vector<16x16x128xbf16>
    %118 = vector.shape_cast %117 : vector<16x16x128xbf16> to vector<256x128xbf16>
    %c3_163 = arith.constant 3 : index
    %c0_164 = arith.constant 0 : index
    %c0_165 = arith.constant 0 : index
    %119 = vector.load %arg4[%c3_163, %c0_164, %c0_165] : memref<9x128x128xbf16, #tpu.memory_space<vmem>>, vector<1x128x128xbf16>
    %120 = vector.shape_cast %119 : vector<1x128x128xbf16> to vector<128x128xbf16>
    %cst_166 = arith.constant dense<0.000000e+00> : vector<256x128xf32>
    %121 = tpu.matmul %118, %120, %cst_166 {dimension_numbers = #tpu.dot_dimension_numbers<[1], [0], [0], [1], [0, 0, 1, 1], [], []>} : vector<256x128xbf16>, vector<128x128xbf16>, vector<256x128xf32> -> vector<256x128xf32>
    %c0_167 = arith.constant 0 : index
    %c0_168 = arith.constant 0 : index
    %122 = vector.load %arg9[%c0_167, %c0_168] : memref<256x128xf32, #tpu.memory_space<vmem>>, vector<256x128xf32>
    %123 = arith.addf %122, %121 : vector<256x128xf32>
    %c0_169 = arith.constant 0 : index
    %c0_170 = arith.constant 0 : index
    %124 = vector.load %arg9[%c0_169, %c0_170] : memref<256x128xf32, #tpu.memory_space<vmem>>, vector<256x128xf32>
    tpu.vector_store %arg9[%c0_169, %c0_170], %123 {strides = array<i32>} : memref<256x128xf32, #tpu.memory_space<vmem>>, vector<256x128xf32>,
    %c1_171 = arith.constant 1 : index
    %c1_172 = arith.constant 1 : index
    %c0_173 = arith.constant 0 : index
    %125 = vector.load %arg8[%c1_171, %c1_172, %c0_173] : memref<18x24x128xbf16, #tpu.memory_space<vmem>>, vector<16x16x128xbf16>
    %126 = vector.shape_cast %125 : vector<16x16x128xbf16> to vector<256x128xbf16>
    %c4_174 = arith.constant 4 : index
    %c0_175 = arith.constant 0 : index
    %c0_176 = arith.constant 0 : index
    %127 = vector.load %arg4[%c4_174, %c0_175, %c0_176] : memref<9x128x128xbf16, #tpu.memory_space<vmem>>, vector<1x128x128xbf16>
    %128 = vector.shape_cast %127 : vector<1x128x128xbf16> to vector<128x128xbf16>
    %cst_177 = arith.constant dense<0.000000e+00> : vector<256x128xf32>
    %129 = tpu.matmul %126, %128, %cst_177 {dimension_numbers = #tpu.dot_dimension_numbers<[1], [0], [0], [1], [0, 0, 1, 1], [], []>} : vector<256x128xbf16>, vector<128x128xbf16>, vector<256x128xf32> -> vector<256x128xf32>
    %c0_178 = arith.constant 0 : index
    %c0_179 = arith.constant 0 : index
    %130 = vector.load %arg9[%c0_178, %c0_179] : memref<256x128xf32, #tpu.memory_space<vmem>>, vector<256x128xf32>
    %131 = arith.addf %130, %129 : vector<256x128xf32>
    %c0_180 = arith.constant 0 : index
    %c0_181 = arith.constant 0 : index
    %132 = vector.load %arg9[%c0_180, %c0_181] : memref<256x128xf32, #tpu.memory_space<vmem>>, vector<256x128xf32>
    tpu.vector_store %arg9[%c0_180, %c0_181], %131 {strides = array<i32>} : memref<256x128xf32, #tpu.memory_space<vmem>>, vector<256x128xf32>,
    %c1_182 = arith.constant 1 : index
    %c2_183 = arith.constant 2 : index
    %c0_184 = arith.constant 0 : index
    %133 = vector.load %arg8[%c1_182, %c2_183, %c0_184] : memref<18x24x128xbf16, #tpu.memory_space<vmem>>, vector<16x16x128xbf16>
    %134 = vector.shape_cast %133 : vector<16x16x128xbf16> to vector<256x128xbf16>
    %c5_185 = arith.constant 5 : index
    %c0_186 = arith.constant 0 : index
    %c0_187 = arith.constant 0 : index
    %135 = vector.load %arg4[%c5_185, %c0_186, %c0_187] : memref<9x128x128xbf16, #tpu.memory_space<vmem>>, vector<1x128x128xbf16>
    %136 = vector.shape_cast %135 : vector<1x128x128xbf16> to vector<128x128xbf16>
    %cst_188 = arith.constant dense<0.000000e+00> : vector<256x128xf32>
    %137 = tpu.matmul %134, %136, %cst_188 {dimension_numbers = #tpu.dot_dimension_numbers<[1], [0], [0], [1], [0, 0, 1, 1], [], []>} : vector<256x128xbf16>, vector<128x128xbf16>, vector<256x128xf32> -> vector<256x128xf32>
    %c0_189 = arith.constant 0 : index
    %c0_190 = arith.constant 0 : index
    %138 = vector.load %arg9[%c0_189, %c0_190] : memref<256x128xf32, #tpu.memory_space<vmem>>, vector<256x128xf32>
    %139 = arith.addf %138, %137 : vector<256x128xf32>
    %c0_191 = arith.constant 0 : index
    %c0_192 = arith.constant 0 : index
    %140 = vector.load %arg9[%c0_191, %c0_192] : memref<256x128xf32, #tpu.memory_space<vmem>>, vector<256x128xf32>
    tpu.vector_store %arg9[%c0_191, %c0_192], %139 {strides = array<i32>} : memref<256x128xf32, #tpu.memory_space<vmem>>, vector<256x128xf32>,
    %c2_193 = arith.constant 2 : index
    %c0_194 = arith.constant 0 : index
    %c0_195 = arith.constant 0 : index
    %141 = vector.load %arg8[%c2_193, %c0_194, %c0_195] : memref<18x24x128xbf16, #tpu.memory_space<vmem>>, vector<16x16x128xbf16>
    %142 = vector.shape_cast %141 : vector<16x16x128xbf16> to vector<256x128xbf16>
    %c6_196 = arith.constant 6 : index
    %c0_197 = arith.constant 0 : index
    %c0_198 = arith.constant 0 : index
    %143 = vector.load %arg4[%c6_196, %c0_197, %c0_198] : memref<9x128x128xbf16, #tpu.memory_space<vmem>>, vector<1x128x128xbf16>
    %144 = vector.shape_cast %143 : vector<1x128x128xbf16> to vector<128x128xbf16>
    %cst_199 = arith.constant dense<0.000000e+00> : vector<256x128xf32>
    %145 = tpu.matmul %142, %144, %cst_199 {dimension_numbers = #tpu.dot_dimension_numbers<[1], [0], [0], [1], [0, 0, 1, 1], [], []>} : vector<256x128xbf16>, vector<128x128xbf16>, vector<256x128xf32> -> vector<256x128xf32>
    %c0_200 = arith.constant 0 : index
    %c0_201 = arith.constant 0 : index
    %146 = vector.load %arg9[%c0_200, %c0_201] : memref<256x128xf32, #tpu.memory_space<vmem>>, vector<256x128xf32>
    %147 = arith.addf %146, %145 : vector<256x128xf32>
    %c0_202 = arith.constant 0 : index
    %c0_203 = arith.constant 0 : index
    %148 = vector.load %arg9[%c0_202, %c0_203] : memref<256x128xf32, #tpu.memory_space<vmem>>, vector<256x128xf32>
    tpu.vector_store %arg9[%c0_202, %c0_203], %147 {strides = array<i32>} : memref<256x128xf32, #tpu.memory_space<vmem>>, vector<256x128xf32>,
    %c2_204 = arith.constant 2 : index
    %c1_205 = arith.constant 1 : index
    %c0_206 = arith.constant 0 : index
    %149 = vector.load %arg8[%c2_204, %c1_205, %c0_206] : memref<18x24x128xbf16, #tpu.memory_space<vmem>>, vector<16x16x128xbf16>
    %150 = vector.shape_cast %149 : vector<16x16x128xbf16> to vector<256x128xbf16>
    %c7_207 = arith.constant 7 : index
    %c0_208 = arith.constant 0 : index
    %c0_209 = arith.constant 0 : index
    %151 = vector.load %arg4[%c7_207, %c0_208, %c0_209] : memref<9x128x128xbf16, #tpu.memory_space<vmem>>, vector<1x128x128xbf16>
    %152 = vector.shape_cast %151 : vector<1x128x128xbf16> to vector<128x128xbf16>
    %cst_210 = arith.constant dense<0.000000e+00> : vector<256x128xf32>
    %153 = tpu.matmul %150, %152, %cst_210 {dimension_numbers = #tpu.dot_dimension_numbers<[1], [0], [0], [1], [0, 0, 1, 1], [], []>} : vector<256x128xbf16>, vector<128x128xbf16>, vector<256x128xf32> -> vector<256x128xf32>
    %c0_211 = arith.constant 0 : index
    %c0_212 = arith.constant 0 : index
    %154 = vector.load %arg9[%c0_211, %c0_212] : memref<256x128xf32, #tpu.memory_space<vmem>>, vector<256x128xf32>
    %155 = arith.addf %154, %153 : vector<256x128xf32>
    %c0_213 = arith.constant 0 : index
    %c0_214 = arith.constant 0 : index
    %156 = vector.load %arg9[%c0_213, %c0_214] : memref<256x128xf32, #tpu.memory_space<vmem>>, vector<256x128xf32>
    tpu.vector_store %arg9[%c0_213, %c0_214], %155 {strides = array<i32>} : memref<256x128xf32, #tpu.memory_space<vmem>>, vector<256x128xf32>,
    %c2_215 = arith.constant 2 : index
    %c2_216 = arith.constant 2 : index
    %c0_217 = arith.constant 0 : index
    %157 = vector.load %arg8[%c2_215, %c2_216, %c0_217] : memref<18x24x128xbf16, #tpu.memory_space<vmem>>, vector<16x16x128xbf16>
    %158 = vector.shape_cast %157 : vector<16x16x128xbf16> to vector<256x128xbf16>
    %c8_218 = arith.constant 8 : index
    %c0_219 = arith.constant 0 : index
    %c0_220 = arith.constant 0 : index
    %159 = vector.load %arg4[%c8_218, %c0_219, %c0_220] : memref<9x128x128xbf16, #tpu.memory_space<vmem>>, vector<1x128x128xbf16>
    %160 = vector.shape_cast %159 : vector<1x128x128xbf16> to vector<128x128xbf16>
    %cst_221 = arith.constant dense<0.000000e+00> : vector<256x128xf32>
    %161 = tpu.matmul %158, %160, %cst_221 {dimension_numbers = #tpu.dot_dimension_numbers<[1], [0], [0], [1], [0, 0, 1, 1], [], []>} : vector<256x128xbf16>, vector<128x128xbf16>, vector<256x128xf32> -> vector<256x128xf32>
    %c0_222 = arith.constant 0 : index
    %c0_223 = arith.constant 0 : index
    %162 = vector.load %arg9[%c0_222, %c0_223] : memref<256x128xf32, #tpu.memory_space<vmem>>, vector<256x128xf32>
    %163 = arith.addf %162, %161 : vector<256x128xf32>
    %c0_224 = arith.constant 0 : index
    %c0_225 = arith.constant 0 : index
    %164 = vector.load %arg9[%c0_224, %c0_225] : memref<256x128xf32, #tpu.memory_space<vmem>>, vector<256x128xf32>
    tpu.vector_store %arg9[%c0_224, %c0_225], %163 {strides = array<i32>} : memref<256x128xf32, #tpu.memory_space<vmem>>, vector<256x128xf32>,
    %c0_226 = arith.constant 0 : index
    %c0_227 = arith.constant 0 : index
    %165 = vector.load %arg9[%c0_226, %c0_227] : memref<256x128xf32, #tpu.memory_space<vmem>>, vector<256x128xf32>
    %c0_228 = arith.constant 0 : index
    %c0_229 = arith.constant 0 : index
    %166 = vector.load %arg5[%c0_228, %c0_229] : memref<1x128xf32, #tpu.memory_space<vmem>>, vector<1x128xf32>
    %167 = vector.broadcast %166 : vector<1x128xf32> to vector<256x128xf32>
    %168 = arith.addf %165, %167 : vector<256x128xf32>
    %c0_230 = arith.constant 0 : index
    %c0_231 = arith.constant 0 : index
    %c0_232 = arith.constant 0 : index
    %c0_233 = arith.constant 0 : index
    %169 = vector.load %arg1[%c0_230, %c0_231, %c0_232, %c0_233] : memref<1x16x16x128xf32, #tpu.memory_space<vmem>>, vector<1x16x16x128xf32>
    %170 = vector.shape_cast %169 : vector<1x16x16x128xf32> to vector<16x16x128xf32>
    %171 = vector.shape_cast %170 : vector<16x16x128xf32> to vector<256x128xf32>
    %172 = arith.addf %168, %171 : vector<256x128xf32>
    %cst_234 = arith.constant 0.000000e+00 : f32
    %173 = vector.broadcast %cst_234 : f32 to vector<256x128xf32>
    %174 = arith.maximumf %172, %173 : vector<256x128xf32>
    %175 = vector.shape_cast %174 : vector<256x128xf32> to vector<16x16x128xf32>
    %c0_235 = arith.constant 0 : index
    %c0_236 = arith.constant 0 : index
    %c0_237 = arith.constant 0 : index
    %c0_238 = arith.constant 0 : index
    %176 = vector.load %arg6[%c0_235, %c0_236, %c0_237, %c0_238] : memref<1x16x16x128xf32, #tpu.memory_space<vmem>>, vector<1x16x16x128xf32>
    %177 = vector.shape_cast %176 : vector<1x16x16x128xf32> to vector<16x16x128xf32>
    %178 = vector.shape_cast %175 : vector<16x16x128xf32> to vector<1x16x16x128xf32>
    tpu.vector_store %arg6[%c0_235, %c0_236, %c0_237, %c0_238], %178 {strides = array<i32>} : memref<1x16x16x128xf32, #tpu.memory_space<vmem>>, vector<1x16x16x128xf32>,
    return
  }
  func.func @transform_0(%arg0: i32) -> (i32, i32, i32, i32) {
    %c0_i32 = arith.constant 0 : i32
    %c0_i32_0 = arith.constant 0 : i32
    %c0_i32_1 = arith.constant 0 : i32
    %c0_i32_2 = arith.constant 0 : i32
    return %arg0, %c0_i32, %c0_i32_0, %c0_i32_1 : i32, i32, i32, i32
  }
  func.func @transform_1(%arg0: i32) -> (i32, i32, i32) {
    %c0_i32 = arith.constant 0 : i32
    %c0_i32_0 = arith.constant 0 : i32
    %c0_i32_1 = arith.constant 0 : i32
    %c0_i32_2 = arith.constant 0 : i32
    return %c0_i32, %c0_i32_0, %c0_i32_1 : i32, i32, i32
  }
  func.func @transform_2(%arg0: i32) -> (i32, i32) {
    %c0_i32 = arith.constant 0 : i32
    %c0_i32_0 = arith.constant 0 : i32
    %c0_i32_1 = arith.constant 0 : i32
    return %c0_i32, %c0_i32_0 : i32, i32
  }
  func.func @transform_3(%arg0: i32) -> (i32, i32, i32) {
    %c0_i32 = arith.constant 0 : i32
    %c0_i32_0 = arith.constant 0 : i32
    %c0_i32_1 = arith.constant 0 : i32
    %c0_i32_2 = arith.constant 0 : i32
    return %c0_i32, %c0_i32_0, %c0_i32_1 : i32, i32, i32
  }
  func.func @transform_4(%arg0: i32) -> (i32, i32) {
    %c0_i32 = arith.constant 0 : i32
    %c0_i32_0 = arith.constant 0 : i32
    %c0_i32_1 = arith.constant 0 : i32
    return %c0_i32, %c0_i32_0 : i32, i32
  }
  func.func @transform_5(%arg0: i32) -> (i32, i32, i32, i32) {
    %c0_i32 = arith.constant 0 : i32
    %c0_i32_0 = arith.constant 0 : i32
    %c0_i32_1 = arith.constant 0 : i32
    %c0_i32_2 = arith.constant 0 : i32
    return %arg0, %c0_i32, %c0_i32_0, %c0_i32_1 : i32, i32, i32, i32
  }
}

</mosaic_0001>

<llo_original>
// kernel: basic_block_forward.1
$region0: #{basic_block_forward.1}
  #allocation0 [shape = 'u32[]', space=smem, size = 0x4, offset = 0x4, fixed_abs, tag = 'smem constant byte address 0x4 - core index']
  #allocation1 [shape = 'u32[72,128]{1,0:T(1,128)}', space=vmem, size = 0x9000, scoped, tag = 'internal scratch']
  #allocation2 [shape = 'bf16[18,24,128]{2,1,0:T(8,128)(2,1)}', space=vmem, size = 0x1b000, scoped, tag = 'scratch operand']
  #allocation3 [shape = 'bf16[18,24,128]{2,1,0:T(8,128)(2,1)}', space=vmem, size = 0x1b000, scoped, tag = 'scratch operand']
  #allocation4 [shape = 'f32[256,128]{1,0:T(8,128)}', space=vmem, size = 0x20000, scoped, tag = 'scratch operand']
  %s0 = inlined_call_operand.vmem [shape: f32[2,16,16,128], index: 0, kind: input, shape index: {}]
  %s1 = inlined_call_operand.vmem [shape: bf16[9,128,128], index: 1, kind: input, shape index: {}]
  %s2 = inlined_call_operand.vmem [shape: f32[1,128], index: 2, kind: input, shape index: {}]
  %s3 = inlined_call_operand.vmem [shape: bf16[9,128,128], index: 3, kind: input, shape index: {}]
  %s4 = inlined_call_operand.vmem [shape: f32[1,128], index: 4, kind: input, shape index: {}]
  %s5 = inlined_call_operand.vmem [shape: f32[2,16,16,128], index: 5, kind: output, shape index: {}]
  %s6 = sld [smem:[#allocation0]]
  $region53: #{basic_block_forward.1} parent=0
    _
  %s8 = ssub.s32 1, %s6
  %s9 = scalar_select 0, %s8, %s6
  loop: start=0, step=1, limit=4
  $region2: #{basic_block_forward.1} parent=0 // loop_pre_header
    _
  $region3: #{basic_block_forward.1} parent=0 // loop_header
    %s11 = sphi 0, %s15
    %p12 = scmp.ge.s32.totalorder %s11, 4
    %s21 = sphi 0, %s23
    %s24 = sphi 0, %s21
    %s25 = sphi 0, %s24
    %s41 = sphi 0, %s25
    %s45 = sphi 0, %s45
    %s47 = sphi 0, %s45
    %s48 = sphi 0, %s47
    %s62 = sphi 0, %s48
    %s66 = sphi 0, %s66
    %s68 = sphi 0, %s66
    %s69 = sphi 0, %s68
    %s83 = sphi 0, %s69
    %s87 = sphi 0, %s87
    %s89 = sphi 0, %s87
    %s90 = sphi 0, %s89
    %s104 = sphi 0, %s90
    %s108 = sphi 0, %s108
    %s110 = sphi 0, %s108
    %s111 = sphi 0, %s110
    %s125 = sphi 0, %s111
    %s131 = sphi 0, %s133
    %s134 = sphi 0, %s131
    %s135 = sphi 0, %s134
    %s151 = sphi 0, %s135
  $region4: #{basic_block_forward.1} parent=0 // loop_header_branch
    %14 = sbr.rel (%p12) target = $region8
  $region5: #{basic_block_forward.1} parent=0 // loop_body
    %s16 = ssub.s32 %s11, 1
    %s17 = ssub.s32 %s11, 2
    %s18 = sadd.s32 %s11, 1
    %s19 = ssub.s32 %s11, %s18
    %p20 = scmp.eq.s32.totalorder %s19, 0
    %s22 = sadd.s32 %s21, 1
    %s23 = scalar_select %p20, %s21, %s22
    %p26 = pneg %p20
    %p27 = scmp.eq.s32.totalorder %s11, 1
    %p28 = por %p26, %p27
    %p29 = scmp.ne.s32.totalorder %s21, %s24
    %p30 = scmp.eq.s32.totalorder %s11, 0
    %p31 = por %p29, %p30
    %p32 = scmp.ne.s32.totalorder %s21, %s24
    %p33 = scmp.eq.s32.totalorder %s16, 1
    %p34 = por %p32, %p33
    %p35 = scmp.ne.s32.totalorder %s24, %s25
    %p36 = scmp.eq.s32.totalorder %s16, 0
    %p37 = por %p35, %p36
    %p38 = scmp.ne.s32.totalorder %s24, %s25
    %p39 = scmp.eq.s32.totalorder %s17, 1
    %p40 = por %p38, %p39
    %p42 = scmp.ne.s32.totalorder %s25, %s41
    %p43 = scmp.eq.s32.totalorder %s17, 0
    %p44 = por %p42, %p43
    %s46 = sadd.s32 %s45, 1
    %p49 = scmp.eq.s32.totalorder %s11, 1
    %p50 = scmp.ne.s32.totalorder %s45, %s47
    %p51 = scmp.eq.s32.totalorder %s11, 0
    %p52 = por %p50, %p51
    %p53 = scmp.ne.s32.totalorder %s45, %s47
    %p54 = scmp.eq.s32.totalorder %s16, 1
    %p55 = por %p53, %p54
    %p56 = scmp.ne.s32.totalorder %s47, %s48
    %p57 = scmp.eq.s32.totalorder %s16, 0
    %p58 = por %p56, %p57
    %p59 = scmp.ne.s32.totalorder %s47, %s48
    %p60 = scmp.eq.s32.totalorder %s17, 1
    %p61 = por %p59, %p60
    %p63 = scmp.ne.s32.totalorder %s48, %s62
    %p64 = scmp.eq.s32.totalorder %s17, 0
    %p65 = por %p63, %p64
    %s67 = sadd.s32 %s66, 1
    %p70 = scmp.eq.s32.totalorder %s11, 1
    %p71 = scmp.ne.s32.totalorder %s66, %s68
    %p72 = scmp.eq.s32.totalorder %s11, 0
    %p73 = por %p71, %p72
    %p74 = scmp.ne.s32.totalorder %s66, %s68
    %p75 = scmp.eq.s32.totalorder %s16, 1
    %p76 = por %p74, %p75
    %p77 = scmp.ne.s32.totalorder %s68, %s69
    %p78 = scmp.eq.s32.totalorder %s16, 0
    %p79 = por %p77, %p78
    %p80 = scmp.ne.s32.totalorder %s68, %s69
    %p81 = scmp.eq.s32.totalorder %s17, 1
    %p82 = por %p80, %p81
    %p84 = scmp.ne.s32.totalorder %s69, %s83
    %p85 = scmp.eq.s32.totalorder %s17, 0
    %p86 = por %p84, %p85
    %s88 = sadd.s32 %s87, 1
    %p91 = scmp.eq.s32.totalorder %s11, 1
    %p92 = scmp.ne.s32.totalorder %s87, %s89
    %p93 = scmp.eq.s32.totalorder %s11, 0
    %p94 = por %p92, %p93
    %p95 = scmp.ne.s32.totalorder %s87, %s89
    %p96 = scmp.eq.s32.totalorder %s16, 1
    %p97 = por %p95, %p96
    %p98 = scmp.ne.s32.totalorder %s89, %s90
    %p99 = scmp.eq.s32.totalorder %s16, 0
    %p100 = por %p98, %p99
    %p101 = scmp.ne.s32.totalorder %s89, %s90
    %p102 = scmp.eq.s32.totalorder %s17, 1
    %p103 = por %p101, %p102
    %p105 = scmp.ne.s32.totalorder %s90, %s104
    %p106 = scmp.eq.s32.totalorder %s17, 0
    %p107 = por %p105, %p106
    %s109 = sadd.s32 %s108, 1
    %p112 = scmp.eq.s32.totalorder %s11, 1
    %p113 = scmp.ne.s32.totalorder %s108, %s110
    %p114 = scmp.eq.s32.totalorder %s11, 0
    %p115 = por %p113, %p114
    %p116 = scmp.ne.s32.totalorder %s108, %s110
    %p117 = scmp.eq.s32.totalorder %s16, 1
    %p118 = por %p116, %p117
    %p119 = scmp.ne.s32.totalorder %s110, %s111
    %p120 = scmp.eq.s32.totalorder %s16, 0
    %p121 = por %p119, %p120
    %p122 = scmp.ne.s32.totalorder %s110, %s111
    %p123 = scmp.eq.s32.totalorder %s17, 1
    %p124 = por %p122, %p123
    %p126 = scmp.ne.s32.totalorder %s111, %s125
    %p127 = scmp.eq.s32.totalorder %s17, 0
    %p128 = por %p126, %p127
    %s129 = ssub.s32 %s11, %s18
    %p130 = scmp.eq.s32.totalorder %s129, 0
    %s132 = sadd.s32 %s131, 1
    %s133 = scalar_select %p130, %s131, %s132
    %p136 = pneg %p130
    %p137 = scmp.eq.s32.totalorder %s11, 1
    %p138 = por %p136, %p137
    %p139 = scmp.ne.s32.totalorder %s131, %s134
    %p140 = scmp.eq.s32.totalorder %s11, 0
    %p141 = por %p139, %p140
    %p142 = scmp.ne.s32.totalorder %s131, %s134
    %p143 = scmp.eq.s32.totalorder %s16, 1
    %p144 = por %p142, %p143
    %p145 = scmp.ne.s32.totalorder %s134, %s135
    %p146 = scmp.eq.s32.totalorder %s16, 0
    %p147 = por %p145, %p146
    %p148 = scmp.ne.s32.totalorder %s134, %s135
    %p149 = scmp.eq.s32.totalorder %s17, 1
    %p150 = por %p148, %p149
    %p152 = scmp.ne.s32.totalorder %s135, %s151
    %p153 = scmp.eq.s32.totalorder %s17, 0
    %p154 = por %p152, %p153
    %p155 = scmp.le.s32.totalorder 1, %s11
    %p156 = scmp.lt.s32.totalorder %s11, 3
    %p157 = pnand %p155, %p156
    %p158 = pneg %p157
    // Predicated region
    $region9: #{basic_block_forward.1} parent=5 // pred_check
      _
    $region10: #{basic_block_forward.1} parent=5 // pred_check_branch
      %160 = sbr.rel (%p157) target = $region12
    $region11: #{basic_block_forward.1} parent=5 // pred_region
      %s161 = ssub.s32 %s11, 1
      // Predicated region
      $region13: #{basic_block_forward.1} parent=11 // pred_check
        %p162 = pneg %p58
      $region14: #{basic_block_forward.1} parent=11 // pred_check_branch
        %164 = sbr.rel (%p162) target = $region16
      $region15: #{basic_block_forward.1} parent=11 // pred_region
        _
      $region16: #{basic_block_forward.1} parent=11 // pred_fallthru
        _
      // Predicated region
      $region17: #{basic_block_forward.1} parent=11 // pred_check
        %p165 = pneg %p79
      $region18: #{basic_block_forward.1} parent=11 // pred_check_branch
        %167 = sbr.rel (%p165) target = $region20
      $region19: #{basic_block_forward.1} parent=11 // pred_region
        _
      $region20: #{basic_block_forward.1} parent=11 // pred_fallthru
        _
      // Predicated region
      $region21: #{basic_block_forward.1} parent=11 // pred_check
        %p168 = pneg %p100
      $region22: #{basic_block_forward.1} parent=11 // pred_check_branch
        %170 = sbr.rel (%p168) target = $region24
      $region23: #{basic_block_forward.1} parent=11 // pred_region
        _
      $region24: #{basic_block_forward.1} parent=11 // pred_fallthru
        _
      // Predicated region
      $region25: #{basic_block_forward.1} parent=11 // pred_check
        %p171 = pneg %p121
      $region26: #{basic_block_forward.1} parent=11 // pred_check_branch
        %173 = sbr.rel (%p171) target = $region28
      $region27: #{basic_block_forward.1} parent=11 // pred_region
        _
      $region28: #{basic_block_forward.1} parent=11 // pred_fallthru
        _
    $region12: #{basic_block_forward.1} parent=5 // pred_fallthru
      _
    %p174 = scmp.lt.s32.totalorder %s11, 2
    // Predicated region
    $region29: #{basic_block_forward.1} parent=5 // pred_check
      %p175 = pneg %p174
    $region30: #{basic_block_forward.1} parent=5 // pred_check_branch
      %177 = sbr.rel (%p175) target = $region32
    $region31: #{basic_block_forward.1} parent=5 // pred_region
      // Predicated region
      $region33: #{basic_block_forward.1} parent=31 // pred_check
        %p178 = pneg %p31
      $region34: #{basic_block_forward.1} parent=31 // pred_check_branch
        %180 = sbr.rel (%p178) target = $region36
      $region35: #{basic_block_forward.1} parent=31 // pred_region
        %p181 = scmp.lt.s32.totalorder %s11, 1
        %s182 = scalar_select %p181, %s11, 1
        %s183 = smul.addr %s182, 32
        %s184 = smul.addr %s183, 8
        %s185 = scalar_lea.vmem %s0, %s184
      $region36: #{basic_block_forward.1} parent=31 // pred_fallthru
        _
    $region32: #{basic_block_forward.1} parent=5 // pred_fallthru
      _
    %p186 = scmp.le.s32.totalorder 1, %s11
    %p187 = scmp.lt.s32.totalorder %s11, 3
    %p188 = pnand %p186, %p187
    %p189 = pneg %p188
    // Predicated region
    $region37: #{basic_block_forward.1} parent=5 // pred_check
      _
    $region38: #{basic_block_forward.1} parent=5 // pred_check_branch
      %191 = sbr.rel (%p188) target = $region40
    $region39: #{basic_block_forward.1} parent=5 // pred_region
      %s192 = ssub.s32 %s11, 1
      %p193 = scmp.lt.s32.totalorder %s16, 1
      %s194 = scalar_select %p193, %s16, 1
      %s195 = smul.addr %s194, 32
      %s196 = smul.addr %s195, 8
      %s197 = scalar_lea.vmem %s0, %s196
      %p198 = pneg %p37
      %p199 = pneg %p34
      %p200 = pneg %p58
      %p201 = pneg %p55
      %p202 = pneg %p79
      %p203 = pneg %p76
      %p204 = pneg %p100
      %p205 = pneg %p97
      %p206 = pneg %p121
      %p207 = pneg %p118
      %p208 = pneg %p147
      %p209 = pneg %p144
      %p210 = scmp.lt.s32.totalorder %s16, 1
      %s211 = scalar_select %p210, %s16, 1
      %s212 = smul.addr %s211, 32
      %s213 = smul.addr %s212, 8
      %s214 = scalar_lea.vmem %s5, %s213
      %p215 = scmp.lt.s32.totalorder %s16, 1
      %s216 = scalar_select %p215, %s16, 1
      %s217 = smul.addr %s216, 32
      %s218 = smul.addr %s217, 8
      %s219 = scalar_lea.vmem %s0, %s218
      %p220 = scmp.lt.s32.totalorder %s16, 1
      %s221 = scalar_select %p220, %s16, 1
      %s222 = smul.addr %s221, 32
      %s223 = smul.addr %s222, 8
      %s224 = scalar_lea.vmem %s5, %s223
      %226 = vst [vmem:[#allocation2] sm:$0xf] 0
      %227 = vst [vmem:[#allocation2 + $0x4] sm:$0xf] 0
      %228 = vst [vmem:[#allocation2 + $0x8] sm:$0xf] 0
      %s229 = scalar_lea.vmem [#allocation2], 204
      %230 = vst [vmem:[%s229] sm:$0xf] 0
      %231 = vst [vmem:[%s229 + $0x4] sm:$0xf] 0
      %232 = vst [vmem:[%s229 + $0x8] sm:$0xf] 0
      %vm233 = vcmask 1040384
      %vm234 = vsmask.f32 256
      %vm235 = vmand %vm233, %vm234
      %v236 = vld [vmem:[#allocation2] sm:$0x1]
      %v237 = vsel %vm235, 0, %v236
      %238 = vst [vmem:[#allocation2] sm:$0x1] %v237
      %v239 = vld [vmem:[#allocation2 + $0xc] sm:$0x1]
      %v240 = vsel %vm235, 0, %v239
      %241 = vst [vmem:[#allocation2 + $0xc] sm:$0x1] %v240
      %v242 = vld [vmem:[#allocation2 + $0x18] sm:$0x1]
      %v243 = vsel %vm235, 0, %v242
      %244 = vst [vmem:[#allocation2 + $0x18] sm:$0x1] %v243
      %v245 = vld [vmem:[#allocation2 + $0x24] sm:$0x1]
      %v246 = vsel %vm235, 0, %v245
      %247 = vst [vmem:[#allocation2 + $0x24] sm:$0x1] %v246
      %v248 = vld [vmem:[#allocation2 + $0x30] sm:$0x1]
      %v249 = vsel %vm235, 0, %v248
      %250 = vst [vmem:[#allocation2 + $0x30] sm:$0x1] %v249
      %v251 = vld [vmem:[#allocation2 + $0x3c] sm:$0x1]
      %v252 = vsel %vm235, 0, %v251
      %253 = vst [vmem:[#allocation2 + $0x3c] sm:$0x1] %v252
      %v254 = vld [vmem:[#allocation2 + $0x48] sm:$0x1]
      %v255 = vsel %vm235, 0, %v254
      %256 = vst [vmem:[#allocation2 + $0x48] sm:$0x1] %v255
      %v257 = vld [vmem:[#allocation2 + $0x54] sm:$0x1]
      %v258 = vsel %vm235, 0, %v257
      %259 = vst [vmem:[#allocation2 + $0x54] sm:$0x1] %v258
      %v260 = vld [vmem:[#allocation2 + $0x60] sm:$0x1]
      %v261 = vsel %vm235, 0, %v260
      %262 = vst [vmem:[#allocation2 + $0x60] sm:$0x1] %v261
      %v263 = vld [vmem:[#allocation2 + $0x6c] sm:$0x1]
      %v264 = vsel %vm235, 0, %v263
      %265 = vst [vmem:[#allocation2 + $0x6c] sm:$0x1] %v264
      %v266 = vld [vmem:[#allocation2 + $0x78] sm:$0x1]
      %v267 = vsel %vm235, 0, %v266
      %268 = vst [vmem:[#allocation2 + $0x78] sm:$0x1] %v267
      %v269 = vld [vmem:[#allocation2 + $0x84] sm:$0x1]
      %v270 = vsel %vm235, 0, %v269
      %271 = vst [vmem:[#allocation2 + $0x84] sm:$0x1] %v270
      %v272 = vld [vmem:[#allocation2 + $0x90] sm:$0x1]
      %v273 = vsel %vm235, 0, %v272
      %274 = vst [vmem:[#allocation2 + $0x90] sm:$0x1] %v273
      %v275 = vld [vmem:[#allocation2 + $0x9c] sm:$0x1]
      %v276 = vsel %vm235, 0, %v275
      %277 = vst [vmem:[#allocation2 + $0x9c] sm:$0x1] %v276
      %v278 = vld [vmem:[#allocation2 + $0xa8] sm:$0x1]
      %v279 = vsel %vm235, 0, %v278
      %280 = vst [vmem:[#allocation2 + $0xa8] sm:$0x1] %v279
      %v281 = vld [vmem:[#allocation2 + $0xb4] sm:$0x1]
      %v282 = vsel %vm235, 0, %v281
      %283 = vst [vmem:[#allocation2 + $0xb4] sm:$0x1] %v282
      %v284 = vld [vmem:[#allocation2 + $0xc0] sm:$0x1]
      %v285 = vsel %vm235, 0, %v284
      %286 = vst [vmem:[#allocation2 + $0xc0] sm:$0x1] %v285
      %v287 = vld [vmem:[#allocation2 + $0xcc] sm:$0x1]
      %v288 = vsel %vm235, 0, %v287
      %289 = vst [vmem:[#allocation2 + $0xcc] sm:$0x1] %v288
      %vm290 = vsmask.f32 7938
      %vm291 = vmand %vm233, %vm290
      %v292 = vld [vmem:[#allocation2 + $0x8] sm:$0x1]
      %v293 = vsel %vm291, 0, %v292
      %294 = vst [vmem:[#allocation2 + $0x8] sm:$0x1] %v293
      %v295 = vld [vmem:[#allocation2 + $0x14] sm:$0x1]
      %v296 = vsel %vm291, 0, %v295
      %297 = vst [vmem:[#allocation2 + $0x14] sm:$0x1] %v296
      %v298 = vld [vmem:[#allocation2 + $0x20] sm:$0x1]
      %v299 = vsel %vm291, 0, %v298
      %300 = vst [vmem:[#allocation2 + $0x20] sm:$0x1] %v299
      %v301 = vld [vmem:[#allocation2 + $0x2c] sm:$0x1]
      %v302 = vsel %vm291, 0, %v301
      %303 = vst [vmem:[#allocation2 + $0x2c] sm:$0x1] %v302
      %v304 = vld [vmem:[#allocation2 + $0x38] sm:$0x1]
      %v305 = vsel %vm291, 0, %v304
      %306 = vst [vmem:[#allocation2 + $0x38] sm:$0x1] %v305
      %v307 = vld [vmem:[#allocation2 + $0x44] sm:$0x1]
      %v308 = vsel %vm291, 0, %v307
      %309 = vst [vmem:[#allocation2 + $0x44] sm:$0x1] %v308
      %v310 = vld [vmem:[#allocation2 + $0x50] sm:$0x1]
      %v311 = vsel %vm291, 0, %v310
      %312 = vst [vmem:[#allocation2 + $0x50] sm:$0x1] %v311
      %v313 = vld [vmem:[#allocation2 + $0x5c] sm:$0x1]
      %v314 = vsel %vm291, 0, %v313
      %315 = vst [vmem:[#allocation2 + $0x5c] sm:$0x1] %v314
      %v316 = vld [vmem:[#allocation2 + $0x68] sm:$0x1]
      %v317 = vsel %vm291, 0, %v316
      %318 = vst [vmem:[#allocation2 + $0x68] sm:$0x1] %v317
      %v319 = vld [vmem:[#allocation2 + $0x74] sm:$0x1]
      %v320 = vsel %vm291, 0, %v319
      %321 = vst [vmem:[#allocation2 + $0x74] sm:$0x1] %v320
      %v322 = vld [vmem:[#allocation2 + $0x80] sm:$0x1]
      %v323 = vsel %vm291, 0, %v322
      %324 = vst [vmem:[#allocation2 + $0x80] sm:$0x1] %v323
      %v325 = vld [vmem:[#allocation2 + $0x8c] sm:$0x1]
      %v326 = vsel %vm291, 0, %v325
      %327 = vst [vmem:[#allocation2 + $0x8c] sm:$0x1] %v326
      %v328 = vld [vmem:[#allocation2 + $0x98] sm:$0x1]
      %v329 = vsel %vm291, 0, %v328
      %330 = vst [vmem:[#allocation2 + $0x98] sm:$0x1] %v329
      %v331 = vld [vmem:[#allocation2 + $0xa4] sm:$0x1]
      %v332 = vsel %vm291, 0, %v331
      %333 = vst [vmem:[#allocation2 + $0xa4] sm:$0x1] %v332
      %v334 = vld [vmem:[#allocation2 + $0xb0] sm:$0x1]
      %v335 = vsel %vm291, 0, %v334
      %336 = vst [vmem:[#allocation2 + $0xb0] sm:$0x1] %v335
      %v337 = vld [vmem:[#allocation2 + $0xbc] sm:$0x1]
      %v338 = vsel %vm291, 0, %v337
      %339 = vst [vmem:[#allocation2 + $0xbc] sm:$0x1] %v338
      %v340 = vld [vmem:[#allocation2 + $0xc8] sm:$0x1]
      %v341 = vsel %vm291, 0, %v340
      %342 = vst [vmem:[#allocation2 + $0xc8] sm:$0x1] %v341
      %v343 = vld [vmem:[#allocation2 + $0xd4] sm:$0x1]
      %v344 = vsel %vm291, 0, %v343
      %345 = vst [vmem:[#allocation2 + $0xd4] sm:$0x1] %v344
      %346 = vst [vmem:[#allocation3] sm:$0xf] 0
      %347 = vst [vmem:[#allocation3 + $0x4] sm:$0xf] 0
      %348 = vst [vmem:[#allocation3 + $0x8] sm:$0xf] 0
      %s349 = scalar_lea.vmem [#allocation3], 204
      %350 = vst [vmem:[%s349] sm:$0xf] 0
      %351 = vst [vmem:[%s349 + $0x4] sm:$0xf] 0
      %352 = vst [vmem:[%s349 + $0x8] sm:$0xf] 0
      %v353 = vld [vmem:[#allocation3] sm:$0x1]
      %v354 = vsel %vm235, 0, %v353
      %355 = vst [vmem:[#allocation3] sm:$0x1] %v354
      %v356 = vld [vmem:[#allocation3 + $0xc] sm:$0x1]
      %v357 = vsel %vm235, 0, %v356
      %358 = vst [vmem:[#allocation3 + $0xc] sm:$0x1] %v357
      %v359 = vld [vmem:[#allocation3 + $0x18] sm:$0x1]
      %v360 = vsel %vm235, 0, %v359
      %361 = vst [vmem:[#allocation3 + $0x18] sm:$0x1] %v360
      %v362 = vld [vmem:[#allocation3 + $0x24] sm:$0x1]
      %v363 = vsel %vm235, 0, %v362
      %364 = vst [vmem:[#allocation3 + $0x24] sm:$0x1] %v363
      %v365 = vld [vmem:[#allocation3 + $0x30] sm:$0x1]
      %v366 = vsel %vm235, 0, %v365
      %367 = vst [vmem:[#allocation3 + $0x30] sm:$0x1] %v366
      %v368 = vld [vmem:[#allocation3 + $0x3c] sm:$0x1]
      %v369 = vsel %vm235, 0, %v368
      %370 = vst [vmem:[#allocation3 + $0x3c] sm:$0x1] %v369
      %v371 = vld [vmem:[#allocation3 + $0x48] sm:$0x1]
      %v372 = vsel %vm235, 0, %v371
      %373 = vst [vmem:[#allocation3 + $0x48] sm:$0x1] %v372
      %v374 = vld [vmem:[#allocation3 + $0x54] sm:$0x1]
      %v375 = vsel %vm235, 0, %v374
      %376 = vst [vmem:[#allocation3 + $0x54] sm:$0x1] %v375
      %v377 = vld [vmem:[#allocation3 + $0x60] sm:$0x1]
      %v378 = vsel %vm235, 0, %v377
      %379 = vst [vmem:[#allocation3 + $0x60] sm:$0x1] %v378
      %v380 = vld [vmem:[#allocation3 + $0x6c] sm:$0x1]
      %v381 = vsel %vm235, 0, %v380
      %382 = vst [vmem:[#allocation3 + $0x6c] sm:$0x1] %v381
      %v383 = vld [vmem:[#allocation3 + $0x78] sm:$0x1]
      %v384 = vsel %vm235, 0, %v383
      %385 = vst [vmem:[#allocation3 + $0x78] sm:$0x1] %v384
      %v386 = vld [vmem:[#allocation3 + $0x84] sm:$0x1]
      %v387 = vsel %vm235, 0, %v386
      %388 = vst [vmem:[#allocation3 + $0x84] sm:$0x1] %v387
      %v389 = vld [vmem:[#allocation3 + $0x90] sm:$0x1]
      %v390 = vsel %vm235, 0, %v389
      %391 = vst [vmem:[#allocation3 + $0x90] sm:$0x1] %v390
      %v392 = vld [vmem:[#allocation3 + $0x9c] sm:$0x1]
      %v393 = vsel %vm235, 0, %v392
      %394 = vst [vmem:[#allocation3 + $0x9c] sm:$0x1] %v393
      %v395 = vld [vmem:[#allocation3 + $0xa8] sm:$0x1]
      %v396 = vsel %vm235, 0, %v395
      %397 = vst [vmem:[#allocation3 + $0xa8] sm:$0x1] %v396
      %v398 = vld [vmem:[#allocation3 + $0xb4] sm:$0x1]
      %v399 = vsel %vm235, 0, %v398
      %400 = vst [vmem:[#allocation3 + $0xb4] sm:$0x1] %v399
      %v401 = vld [vmem:[#allocation3 + $0xc0] sm:$0x1]
      %v402 = vsel %vm235, 0, %v401
      %403 = vst [vmem:[#allocation3 + $0xc0] sm:$0x1] %v402
      %v404 = vld [vmem:[#allocation3 + $0xcc] sm:$0x1]
      %v405 = vsel %vm235, 0, %v404
      %406 = vst [vmem:[#allocation3 + $0xcc] sm:$0x1] %v405
      %v407 = vld [vmem:[#allocation3 + $0x8] sm:$0x1]
      %v408 = vsel %vm291, 0, %v407
      %409 = vst [vmem:[#allocation3 + $0x8] sm:$0x1] %v408
      %v410 = vld [vmem:[#allocation3 + $0x14] sm:$0x1]
      %v411 = vsel %vm291, 0, %v410
      %412 = vst [vmem:[#allocation3 + $0x14] sm:$0x1] %v411
      %v413 = vld [vmem:[#allocation3 + $0x20] sm:$0x1]
      %v414 = vsel %vm291, 0, %v413
      %415 = vst [vmem:[#allocation3 + $0x20] sm:$0x1] %v414
      %v416 = vld [vmem:[#allocation3 + $0x2c] sm:$0x1]
      %v417 = vsel %vm291, 0, %v416
      %418 = vst [vmem:[#allocation3 + $0x2c] sm:$0x1] %v417
      %v419 = vld [vmem:[#allocation3 + $0x38] sm:$0x1]
      %v420 = vsel %vm291, 0, %v419
      %421 = vst [vmem:[#allocation3 + $0x38] sm:$0x1] %v420
      %v422 = vld [vmem:[#allocation3 + $0x44] sm:$0x1]
      %v423 = vsel %vm291, 0, %v422
      %424 = vst [vmem:[#allocation3 + $0x44] sm:$0x1] %v423
      %v425 = vld [vmem:[#allocation3 + $0x50] sm:$0x1]
      %v426 = vsel %vm291, 0, %v425
      %427 = vst [vmem:[#allocation3 + $0x50] sm:$0x1] %v426
      %v428 = vld [vmem:[#allocation3 + $0x5c] sm:$0x1]
      %v429 = vsel %vm291, 0, %v428
      %430 = vst [vmem:[#allocation3 + $0x5c] sm:$0x1] %v429
      %v431 = vld [vmem:[#allocation3 + $0x68] sm:$0x1]
      %v432 = vsel %vm291, 0, %v431
      %433 = vst [vmem:[#allocation3 + $0x68] sm:$0x1] %v432
      %v434 = vld [vmem:[#allocation3 + $0x74] sm:$0x1]
      %v435 = vsel %vm291, 0, %v434
      %436 = vst [vmem:[#allocation3 + $0x74] sm:$0x1] %v435
      %v437 = vld [vmem:[#allocation3 + $0x80] sm:$0x1]
      %v438 = vsel %vm291, 0, %v437
      %439 = vst [vmem:[#allocation3 + $0x80] sm:$0x1] %v438
      %v440 = vld [vmem:[#allocation3 + $0x8c] sm:$0x1]
      %v441 = vsel %vm291, 0, %v440
      %442 = vst [vmem:[#allocation3 + $0x8c] sm:$0x1] %v441
      %v443 = vld [vmem:[#allocation3 + $0x98] sm:$0x1]
      %v444 = vsel %vm291, 0, %v443
      %445 = vst [vmem:[#allocation3 + $0x98] sm:$0x1] %v444
      %v446 = vld [vmem:[#allocation3 + $0xa4] sm:$0x1]
      %v447 = vsel %vm291, 0, %v446
      %448 = vst [vmem:[#allocation3 + $0xa4] sm:$0x1] %v447
      %v449 = vld [vmem:[#allocation3 + $0xb0] sm:$0x1]
      %v450 = vsel %vm291, 0, %v449
      %451 = vst [vmem:[#allocation3 + $0xb0] sm:$0x1] %v450
      %v452 = vld [vmem:[#allocation3 + $0xbc] sm:$0x1]
      %v453 = vsel %vm291, 0, %v452
      %454 = vst [vmem:[#allocation3 + $0xbc] sm:$0x1] %v453
      %v455 = vld [vmem:[#allocation3 + $0xc8] sm:$0x1]
      %v456 = vsel %vm291, 0, %v455
      %457 = vst [vmem:[#allocation3 + $0xc8] sm:$0x1] %v456
      %v458 = vld [vmem:[#allocation3 + $0xd4] sm:$0x1]
      %v459 = vsel %vm291, 0, %v458
      %460 = vst [vmem:[#allocation3 + $0xd4] sm:$0x1] %v459
      %v461 = vld [vmem:[%s219] sm:$0xff]
      %v462 = vld [vmem:[%s219 + $0x8] sm:$0xff]
      %v463 = vld [vmem:[%s219 + $0x10] sm:$0xff]
      %v464 = vld [vmem:[%s219 + $0x18] sm:$0xff]
      %v465 = vld [vmem:[%s219 + $0x20] sm:$0xff]
      %v466 = vld [vmem:[%s219 + $0x28] sm:$0xff]
      %v467 = vld [vmem:[%s219 + $0x30] sm:$0xff]
      %v468 = vld [vmem:[%s219 + $0x38] sm:$0xff]
      %v469 = vld [vmem:[%s219 + $0x40] sm:$0xff]
      %v470 = vld [vmem:[%s219 + $0x48] sm:$0xff]
      %v471 = vld [vmem:[%s219 + $0x50] sm:$0xff]
      %v472 = vld [vmem:[%s219 + $0x58] sm:$0xff]
      %v473 = vld [vmem:[%s219 + $0x60] sm:$0xff]
      %v474 = vld [vmem:[%s219 + $0x68] sm:$0xff]
      %v475 = vld [vmem:[%s219 + $0x70] sm:$0xff]
      %v476 = vld [vmem:[%s219 + $0x78] sm:$0xff]
      %v477 = vld [vmem:[%s219 + $0x80] sm:$0xff]
      %v478 = vld [vmem:[%s219 + $0x88] sm:$0xff]
      %v479 = vld [vmem:[%s219 + $0x90] sm:$0xff]
      %v480 = vld [vmem:[%s219 + $0x98] sm:$0xff]
      %v481 = vld [vmem:[%s219 + $0xa0] sm:$0xff]
      %v482 = vld [vmem:[%s219 + $0xa8] sm:$0xff]
      %v483 = vld [vmem:[%s219 + $0xb0] sm:$0xff]
      %v484 = vld [vmem:[%s219 + $0xb8] sm:$0xff]
      %v485 = vld [vmem:[%s219 + $0xc0] sm:$0xff]
      %v486 = vld [vmem:[%s219 + $0xc8] sm:$0xff]
      %v487 = vld [vmem:[%s219 + $0xd0] sm:$0xff]
      %v488 = vld [vmem:[%s219 + $0xd8] sm:$0xff]
      %v489 = vld [vmem:[%s219 + $0xe0] sm:$0xff]
      %v490 = vld [vmem:[%s219 + $0xe8] sm:$0xff]
      %v491 = vld [vmem:[%s219 + $0xf0] sm:$0xff]
      %v492 = vld [vmem:[%s219 + $0xf8] sm:$0xff]
      %v493 = vpack.c.bf16 %v461, %v461
      %v494 = vpack.c.bf16 %v462, %v462
      %v495 = vpack.c.bf16 %v463, %v463
      %v496 = vpack.c.bf16 %v464, %v464
      %v497 = vpack.c.bf16 %v465, %v465
      %v498 = vpack.c.bf16 %v466, %v466
      %v499 = vpack.c.bf16 %v467, %v467
      %v500 = vpack.c.bf16 %v468, %v468
      %v501 = vpack.c.bf16 %v469, %v469
      %v502 = vpack.c.bf16 %v470, %v470
      %v503 = vpack.c.bf16 %v471, %v471
      %v504 = vpack.c.bf16 %v472, %v472
      %v505 = vpack.c.bf16 %v473, %v473
      %v506 = vpack.c.bf16 %v474, %v474
      %v507 = vpack.c.bf16 %v475, %v475
      %v508 = vpack.c.bf16 %v476, %v476
      %v509 = vpack.c.bf16 %v477, %v477
      %v510 = vpack.c.bf16 %v478, %v478
      %v511 = vpack.c.bf16 %v479, %v479
      %v512 = vpack.c.bf16 %v480, %v480
      %v513 = vpack.c.bf16 %v481, %v481
      %v514 = vpack.c.bf16 %v482, %v482
      %v515 = vpack.c.bf16 %v483, %v483
      %v516 = vpack.c.bf16 %v484, %v484
      %v517 = vpack.c.bf16 %v485, %v485
      %v518 = vpack.c.bf16 %v486, %v486
      %v519 = vpack.c.bf16 %v487, %v487
      %v520 = vpack.c.bf16 %v488, %v488
      %v521 = vpack.c.bf16 %v489, %v489
      %v522 = vpack.c.bf16 %v490, %v490
      %v523 = vpack.c.bf16 %v491, %v491
      %v524 = vpack.c.bf16 %v492, %v492
      %vm525 = vsmask.f32 4368
      %vm526 = vmor %vm234, %vm525
      %v528 = vshrl.u32 %v493, 16
      %v530 = vrot.slane %v528, 7
      %v531 = vshll.u32 %v493, 16
      %v533 = vor.u32 %v530, %v531
      %v534 = vrot.slane %v530, 4
      %v536 = vshrl.u32 %v494, 16
      %v538 = vrot.slane %v536, 7
      %v539 = vshll.u32 %v494, 16
      %v541 = vor.u32 %v538, %v539
      %v542 = vsel %vm526, %v534, %v541
      %v543 = vrot.slane %v538, 4
      %v545 = vshrl.u32 %v495, 16
      %v547 = vrot.slane %v545, 7
      %v548 = vshll.u32 %v495, 16
      %v550 = vor.u32 %v547, %v548
      %v551 = vrot.slane %v547, 4
      %v553 = vshrl.u32 %v496, 16
      %v555 = vrot.slane %v553, 7
      %v556 = vshll.u32 %v496, 16
      %v558 = vor.u32 %v555, %v556
      %v559 = vsel %vm526, %v551, %v558
      %v560 = vrot.slane %v555, 4
      %v562 = vshrl.u32 %v497, 16
      %v564 = vrot.slane %v562, 7
      %v565 = vshll.u32 %v497, 16
      %v567 = vor.u32 %v564, %v565
      %v568 = vrot.slane %v564, 4
      %v570 = vshrl.u32 %v498, 16
      %v572 = vrot.slane %v570, 7
      %v573 = vshll.u32 %v498, 16
      %v575 = vor.u32 %v572, %v573
      %v576 = vsel %vm526, %v568, %v575
      %v577 = vrot.slane %v572, 4
      %v579 = vshrl.u32 %v499, 16
      %v581 = vrot.slane %v579, 7
      %v582 = vshll.u32 %v499, 16
      %v584 = vor.u32 %v581, %v582
      %v585 = vrot.slane %v581, 4
      %v587 = vshrl.u32 %v500, 16
      %v589 = vrot.slane %v587, 7
      %v590 = vshll.u32 %v500, 16
      %v592 = vor.u32 %v589, %v590
      %v593 = vsel %vm526, %v585, %v592
      %v594 = vrot.slane %v589, 4
      %v596 = vshrl.u32 %v501, 16
      %v598 = vrot.slane %v596, 7
      %v599 = vshll.u32 %v501, 16
      %v601 = vor.u32 %v598, %v599
      %v602 = vrot.slane %v598, 4
      %v604 = vshrl.u32 %v502, 16
      %v606 = vrot.slane %v604, 7
      %v607 = vshll.u32 %v502, 16
      %v609 = vor.u32 %v606, %v607
      %v610 = vsel %vm526, %v602, %v609
      %v611 = vrot.slane %v606, 4
      %v613 = vshrl.u32 %v503, 16
      %v615 = vrot.slane %v613, 7
      %v616 = vshll.u32 %v503, 16
      %v618 = vor.u32 %v615, %v616
      %v619 = vrot.slane %v615, 4
      %v621 = vshrl.u32 %v504, 16
      %v623 = vrot.slane %v621, 7
      %v624 = vshll.u32 %v504, 16
      %v626 = vor.u32 %v623, %v624
      %v627 = vsel %vm526, %v619, %v626
      %v628 = vrot.slane %v623, 4
      %v630 = vshrl.u32 %v505, 16
      %v632 = vrot.slane %v630, 7
      %v633 = vshll.u32 %v505, 16
      %v635 = vor.u32 %v632, %v633
      %v636 = vrot.slane %v632, 4
      %v638 = vshrl.u32 %v506, 16
      %v640 = vrot.slane %v638, 7
      %v641 = vshll.u32 %v506, 16
      %v643 = vor.u32 %v640, %v641
      %v644 = vsel %vm526, %v636, %v643
      %v645 = vrot.slane %v640, 4
      %v647 = vshrl.u32 %v507, 16
      %v649 = vrot.slane %v647, 7
      %v650 = vshll.u32 %v507, 16
      %v652 = vor.u32 %v649, %v650
      %v653 = vrot.slane %v649, 4
      %v655 = vshrl.u32 %v508, 16
      %v657 = vrot.slane %v655, 7
      %v658 = vshll.u32 %v508, 16
      %v660 = vor.u32 %v657, %v658
      %v661 = vsel %vm526, %v653, %v660
      %v662 = vrot.slane %v657, 4
      %v664 = vshrl.u32 %v509, 16
      %v666 = vrot.slane %v664, 7
      %v667 = vshll.u32 %v509, 16
      %v669 = vor.u32 %v666, %v667
      %v670 = vrot.slane %v666, 4
      %v672 = vshrl.u32 %v510, 16
      %v674 = vrot.slane %v672, 7
      %v675 = vshll.u32 %v510, 16
      %v677 = vor.u32 %v674, %v675
      %v678 = vsel %vm526, %v670, %v677
      %v679 = vrot.slane %v674, 4
      %v681 = vshrl.u32 %v511, 16
      %v683 = vrot.slane %v681, 7
      %v684 = vshll.u32 %v511, 16
      %v686 = vor.u32 %v683, %v684
      %v687 = vrot.slane %v683, 4
      %v689 = vshrl.u32 %v512, 16
      %v691 = vrot.slane %v689, 7
      %v692 = vshll.u32 %v512, 16
      %v694 = vor.u32 %v691, %v692
      %v695 = vsel %vm526, %v687, %v694
      %v696 = vrot.slane %v691, 4
      %v698 = vshrl.u32 %v513, 16
      %v700 = vrot.slane %v698, 7
      %v701 = vshll.u32 %v513, 16
      %v703 = vor.u32 %v700, %v701
      %v704 = vrot.slane %v700, 4
      %v706 = vshrl.u32 %v514, 16
      %v708 = vrot.slane %v706, 7
      %v709 = vshll.u32 %v514, 16
      %v711 = vor.u32 %v708, %v709
      %v712 = vsel %vm526, %v704, %v711
      %v713 = vrot.slane %v708, 4
      %v715 = vshrl.u32 %v515, 16
      %v717 = vrot.slane %v715, 7
      %v718 = vshll.u32 %v515, 16
      %v720 = vor.u32 %v717, %v718
      %v721 = vrot.slane %v717, 4
      %v723 = vshrl.u32 %v516, 16
      %v725 = vrot.slane %v723, 7
      %v726 = vshll.u32 %v516, 16
      %v728 = vor.u32 %v725, %v726
      %v729 = vsel %vm526, %v721, %v728
      %v730 = vrot.slane %v725, 4
      %v732 = vshrl.u32 %v517, 16
      %v734 = vrot.slane %v732, 7
      %v735 = vshll.u32 %v517, 16
      %v737 = vor.u32 %v734, %v735
      %v738 = vrot.slane %v734, 4
      %v740 = vshrl.u32 %v518, 16
      %v742 = vrot.slane %v740, 7
      %v743 = vshll.u32 %v518, 16
      %v745 = vor.u32 %v742, %v743
      %v746 = vsel %vm526, %v738, %v745
      %v747 = vrot.slane %v742, 4
      %v749 = vshrl.u32 %v519, 16
      %v751 = vrot.slane %v749, 7
      %v752 = vshll.u32 %v519, 16
      %v754 = vor.u32 %v751, %v752
      %v755 = vrot.slane %v751, 4
      %v757 = vshrl.u32 %v520, 16
      %v759 = vrot.slane %v757, 7
      %v760 = vshll.u32 %v520, 16
      %v762 = vor.u32 %v759, %v760
      %v763 = vsel %vm526, %v755, %v762
      %v764 = vrot.slane %v759, 4
      %v766 = vshrl.u32 %v521, 16
      %v768 = vrot.slane %v766, 7
      %v769 = vshll.u32 %v521, 16
      %v771 = vor.u32 %v768, %v769
      %v772 = vrot.slane %v768, 4
      %v774 = vshrl.u32 %v522, 16
      %v776 = vrot.slane %v774, 7
      %v777 = vshll.u32 %v522, 16
      %v779 = vor.u32 %v776, %v777
      %v780 = vsel %vm526, %v772, %v779
      %v781 = vrot.slane %v776, 4
      %v783 = vshrl.u32 %v523, 16
      %v785 = vrot.slane %v783, 7
      %v786 = vshll.u32 %v523, 16
      %v788 = vor.u32 %v785, %v786
      %v789 = vrot.slane %v785, 4
      %v791 = vshrl.u32 %v524, 16
      %v793 = vrot.slane %v791, 7
      %v794 = vshll.u32 %v524, 16
      %v796 = vor.u32 %v793, %v794
      %v797 = vsel %vm526, %v789, %v796
      %v798 = vrot.slane %v793, 4
      %s847 = scalar_lea.vmem [#allocation2], 12
      %vm848 = vcmask 1043456
      %vm849 = vmand %vm848, %vm290
      %v850 = vld [vmem:[%s847] sm:$0xf]
      %v851 = vsel %vm849, %v533, %v850
      %852 = vst [vmem:[%s847] sm:$0xf] %v851
      %853 = vst [vmem:[%s847 + $0x4] sm:$0xf] %v542
      %v854 = vld [vmem:[%s847 + $0x8] sm:$0x1]
      %v855 = vsel %vm235, %v543, %v854
      %856 = vst [vmem:[%s847 + $0x8] sm:$0x1] %v855
      %v857 = vld [vmem:[%s847 + $0xc] sm:$0xf]
      %v858 = vsel %vm849, %v550, %v857
      %859 = vst [vmem:[%s847 + $0xc] sm:$0xf] %v858
      %860 = vst [vmem:[%s847 + $0x10] sm:$0xf] %v559
      %v861 = vld [vmem:[%s847 + $0x14] sm:$0x1]
      %v862 = vsel %vm235, %v560, %v861
      %863 = vst [vmem:[%s847 + $0x14] sm:$0x1] %v862
      %v864 = vld [vmem:[%s847 + $0x18] sm:$0xf]
      %v865 = vsel %vm849, %v567, %v864
      %866 = vst [vmem:[%s847 + $0x18] sm:$0xf] %v865
      %867 = vst [vmem:[%s847 + $0x1c] sm:$0xf] %v576
      %v868 = vld [vmem:[%s847 + $0x20] sm:$0x1]
      %v869 = vsel %vm235, %v577, %v868
      %870 = vst [vmem:[%s847 + $0x20] sm:$0x1] %v869
      %v871 = vld [vmem:[%s847 + $0x24] sm:$0xf]
      %v872 = vsel %vm849, %v584, %v871
      %873 = vst [vmem:[%s847 + $0x24] sm:$0xf] %v872
      %874 = vst [vmem:[%s847 + $0x28] sm:$0xf] %v593
      %v875 = vld [vmem:[%s847 + $0x2c] sm:$0x1]
      %v876 = vsel %vm235, %v594, %v875
      %877 = vst [vmem:[%s847 + $0x2c] sm:$0x1] %v876
      %v878 = vld [vmem:[%s847 + $0x30] sm:$0xf]
      %v879 = vsel %vm849, %v601, %v878
      %880 = vst [vmem:[%s847 + $0x30] sm:$0xf] %v879
      %881 = vst [vmem:[%s847 + $0x34] sm:$0xf] %v610
      %v882 = vld [vmem:[%s847 + $0x38] sm:$0x1]
      %v883 = vsel %vm235, %v611, %v882
      %884 = vst [vmem:[%s847 + $0x38] sm:$0x1] %v883
      %v885 = vld [vmem:[%s847 + $0x3c] sm:$0xf]
      %v886 = vsel %vm849, %v618, %v885
      %887 = vst [vmem:[%s847 + $0x3c] sm:$0xf] %v886
      %888 = vst [vmem:[%s847 + $0x40] sm:$0xf] %v627
      %v889 = vld [vmem:[%s847 + $0x44] sm:$0x1]
      %v890 = vsel %vm235, %v628, %v889
      %891 = vst [vmem:[%s847 + $0x44] sm:$0x1] %v890
      %v892 = vld [vmem:[%s847 + $0x48] sm:$0xf]
      %v893 = vsel %vm849, %v635, %v892
      %894 = vst [vmem:[%s847 + $0x48] sm:$0xf] %v893
      %895 = vst [vmem:[%s847 + $0x4c] sm:$0xf] %v644
      %v896 = vld [vmem:[%s847 + $0x50] sm:$0x1]
      %v897 = vsel %vm235, %v645, %v896
      %898 = vst [vmem:[%s847 + $0x50] sm:$0x1] %v897
      %v899 = vld [vmem:[%s847 + $0x54] sm:$0xf]
      %v900 = vsel %vm849, %v652, %v899
      %901 = vst [vmem:[%s847 + $0x54] sm:$0xf] %v900
      %902 = vst [vmem:[%s847 + $0x58] sm:$0xf] %v661
      %v903 = vld [vmem:[%s847 + $0x5c] sm:$0x1]
      %v904 = vsel %vm235, %v662, %v903
      %905 = vst [vmem:[%s847 + $0x5c] sm:$0x1] %v904
      %v906 = vld [vmem:[%s847 + $0x60] sm:$0xf]
      %v907 = vsel %vm849, %v669, %v906
      %908 = vst [vmem:[%s847 + $0x60] sm:$0xf] %v907
      %909 = vst [vmem:[%s847 + $0x64] sm:$0xf] %v678
      %v910 = vld [vmem:[%s847 + $0x68] sm:$0x1]
      %v911 = vsel %vm235, %v679, %v910
      %912 = vst [vmem:[%s847 + $0x68] sm:$0x1] %v911
      %v913 = vld [vmem:[%s847 + $0x6c] sm:$0xf]
      %v914 = vsel %vm849, %v686, %v913
      %915 = vst [vmem:[%s847 + $0x6c] sm:$0xf] %v914
      %916 = vst [vmem:[%s847 + $0x70] sm:$0xf] %v695
      %v917 = vld [vmem:[%s847 + $0x74] sm:$0x1]
      %v918 = vsel %vm235, %v696, %v917
      %919 = vst [vmem:[%s847 + $0x74] sm:$0x1] %v918
      %v920 = vld [vmem:[%s847 + $0x78] sm:$0xf]
      %v921 = vsel %vm849, %v703, %v920
      %922 = vst [vmem:[%s847 + $0x78] sm:$0xf] %v921
      %923 = vst [vmem:[%s847 + $0x7c] sm:$0xf] %v712
      %v924 = vld [vmem:[%s847 + $0x80] sm:$0x1]
      %v925 = vsel %vm235, %v713, %v924
      %926 = vst [vmem:[%s847 + $0x80] sm:$0x1] %v925
      %v927 = vld [vmem:[%s847 + $0x84] sm:$0xf]
      %v928 = vsel %vm849, %v720, %v927
      %929 = vst [vmem:[%s847 + $0x84] sm:$0xf] %v928
      %930 = vst [vmem:[%s847 + $0x88] sm:$0xf] %v729
      %v931 = vld [vmem:[%s847 + $0x8c] sm:$0x1]
      %v932 = vsel %vm235, %v730, %v931
      %933 = vst [vmem:[%s847 + $0x8c] sm:$0x1] %v932
      %v934 = vld [vmem:[%s847 + $0x90] sm:$0xf]
      %v935 = vsel %vm849, %v737, %v934
      %936 = vst [vmem:[%s847 + $0x90] sm:$0xf] %v935
      %937 = vst [vmem:[%s847 + $0x94] sm:$0xf] %v746
      %v938 = vld [vmem:[%s847 + $0x98] sm:$0x1]
      %v939 = vsel %vm235, %v747, %v938
      %940 = vst [vmem:[%s847 + $0x98] sm:$0x1] %v939
      %v941 = vld [vmem:[%s847 + $0x9c] sm:$0xf]
      %v942 = vsel %vm849, %v754, %v941
      %943 = vst [vmem:[%s847 + $0x9c] sm:$0xf] %v942
      %944 = vst [vmem:[%s847 + $0xa0] sm:$0xf] %v763
      %v945 = vld [vmem:[%s847 + $0xa4] sm:$0x1]
      %v946 = vsel %vm235, %v764, %v945
      %947 = vst [vmem:[%s847 + $0xa4] sm:$0x1] %v946
      %v948 = vld [vmem:[%s847 + $0xa8] sm:$0xf]
      %v949 = vsel %vm849, %v771, %v948
      %950 = vst [vmem:[%s847 + $0xa8] sm:$0xf] %v949
      %951 = vst [vmem:[%s847 + $0xac] sm:$0xf] %v780
      %v952 = vld [vmem:[%s847 + $0xb0] sm:$0x1]
      %v953 = vsel %vm235, %v781, %v952
      %954 = vst [vmem:[%s847 + $0xb0] sm:$0x1] %v953
      %v955 = vld [vmem:[%s847 + $0xb4] sm:$0xf]
      %v956 = vsel %vm849, %v788, %v955
      %957 = vst [vmem:[%s847 + $0xb4] sm:$0xf] %v956
      %958 = vst [vmem:[%s847 + $0xb8] sm:$0xf] %v797
      %v959 = vld [vmem:[%s847 + $0xbc] sm:$0x1]
      %v960 = vsel %vm235, %v798, %v959
      %961 = vst [vmem:[%s847 + $0xbc] sm:$0x1] %v960
      %v962 = vld [vmem:[#allocation2] sm:$0xf]
      %v963 = vld [vmem:[#allocation2 + $0x4] sm:$0xf]
      %v964 = vld [vmem:[#allocation2 + $0xc] sm:$0xf]
      %v965 = vld [vmem:[#allocation2 + $0x10] sm:$0xf]
      %v966 = vld [vmem:[#allocation2 + $0x18] sm:$0xf]
      %v967 = vld [vmem:[#allocation2 + $0x1c] sm:$0xf]
      %v968 = vld [vmem:[#allocation2 + $0x24] sm:$0xf]
      %v969 = vld [vmem:[#allocation2 + $0x28] sm:$0xf]
      %v970 = vld [vmem:[#allocation2 + $0x30] sm:$0xf]
      %v971 = vld [vmem:[#allocation2 + $0x34] sm:$0xf]
      %v972 = vld [vmem:[#allocation2 + $0x3c] sm:$0xf]
      %v973 = vld [vmem:[#allocation2 + $0x40] sm:$0xf]
      %v974 = vld [vmem:[#allocation2 + $0x48] sm:$0xf]
      %v975 = vld [vmem:[#allocation2 + $0x4c] sm:$0xf]
      %v976 = vld [vmem:[#allocation2 + $0x54] sm:$0xf]
      %v977 = vld [vmem:[#allocation2 + $0x58] sm:$0xf]
      %v978 = vld [vmem:[#allocation2 + $0x60] sm:$0xf]
      %v979 = vld [vmem:[#allocation2 + $0x64] sm:$0xf]
      %v980 = vld [vmem:[#allocation2 + $0x6c] sm:$0xf]
      %v981 = vld [vmem:[#allocation2 + $0x70] sm:$0xf]
      %v982 = vld [vmem:[#allocation2 + $0x78] sm:$0xf]
      %v983 = vld [vmem:[#allocation2 + $0x7c] sm:$0xf]
      %v984 = vld [vmem:[#allocation2 + $0x84] sm:$0xf]
      %v985 = vld [vmem:[#allocation2 + $0x88] sm:$0xf]
      %v986 = vld [vmem:[#allocation2 + $0x90] sm:$0xf]
      %v987 = vld [vmem:[#allocation2 + $0x94] sm:$0xf]
      %v988 = vld [vmem:[#allocation2 + $0x9c] sm:$0xf]
      %v989 = vld [vmem:[#allocation2 + $0xa0] sm:$0xf]
      %v990 = vld [vmem:[#allocation2 + $0xa8] sm:$0xf]
      %v991 = vld [vmem:[#allocation2 + $0xac] sm:$0xf]
      %v992 = vld [vmem:[#allocation2 + $0xb4] sm:$0xf]
      %v993 = vld [vmem:[#allocation2 + $0xb8] sm:$0xf]
      %v994 = vld [vmem:[%s1] sm:$0xf]
      %v995 = vld [vmem:[%s1 + $0x4] sm:$0xf]
      %v996 = vld [vmem:[%s1 + $0x8] sm:$0xf]
      %v997 = vld [vmem:[%s1 + $0xc] sm:$0xf]
      %v998 = vld [vmem:[%s1 + $0x10] sm:$0xf]
      %v999 = vld [vmem:[%s1 + $0x14] sm:$0xf]
      %v1000 = vld [vmem:[%s1 + $0x18] sm:$0xf]
      %v1001 = vld [vmem:[%s1 + $0x1c] sm:$0xf]
      %v1002 = vld [vmem:[%s1 + $0x20] sm:$0xf]
      %v1003 = vld [vmem:[%s1 + $0x24] sm:$0xf]
      %v1004 = vld [vmem:[%s1 + $0x28] sm:$0xf]
      %v1005 = vld [vmem:[%s1 + $0x2c] sm:$0xf]
      %v1006 = vld [vmem:[%s1 + $0x30] sm:$0xf]
      %v1007 = vld [vmem:[%s1 + $0x34] sm:$0xf]
      %v1008 = vld [vmem:[%s1 + $0x38] sm:$0xf]
      %v1009 = vld [vmem:[%s1 + $0x3c] sm:$0xf]
      %v1042 = vunpack.c.l.b16 %v962
      %v1043 = vunpack.c.l.b16 %v963
      %v1044 = vunpack.c.l.b16 %v964
      %v1045 = vunpack.c.l.b16 %v965
      %v1046 = vunpack.c.l.b16 %v966
      %v1047 = vunpack.c.l.b16 %v967
      %v1048 = vunpack.c.l.b16 %v968
      %v1049 = vunpack.c.l.b16 %v969
      %v1050 = vunpack.c.l.b16 %v970
      %v1051 = vunpack.c.l.b16 %v971
      %v1052 = vunpack.c.l.b16 %v972
      %v1053 = vunpack.c.l.b16 %v973
      %v1054 = vunpack.c.l.b16 %v974
      %v1055 = vunpack.c.l.b16 %v975
      %v1056 = vunpack.c.l.b16 %v976
      %v1057 = vunpack.c.l.b16 %v977
      %v1058 = vunpack.c.l.b16 %v978
      %v1059 = vunpack.c.l.b16 %v979
      %v1060 = vunpack.c.l.b16 %v980
      %v1061 = vunpack.c.l.b16 %v981
      %v1062 = vunpack.c.l.b16 %v982
      %v1063 = vunpack.c.l.b16 %v983
      %v1064 = vunpack.c.l.b16 %v984
      %v1065 = vunpack.c.l.b16 %v985
      %v1066 = vunpack.c.l.b16 %v986
      %v1067 = vunpack.c.l.b16 %v987
      %v1068 = vunpack.c.l.b16 %v988
      %v1069 = vunpack.c.l.b16 %v989
      %v1070 = vunpack.c.l.b16 %v990
      %v1071 = vunpack.c.l.b16 %v991
      %v1072 = vunpack.c.l.b16 %v992
      %v1073 = vunpack.c.l.b16 %v993
      %v1074 = vpack.c.b16 %v1043, %v1042
      %v1075 = vpack.c.b16 %v1045, %v1044
      %v1076 = vpack.c.b16 %v1047, %v1046
      %v1077 = vpack.c.b16 %v1049, %v1048
      %v1078 = vpack.c.b16 %v1051, %v1050
      %v1079 = vpack.c.b16 %v1053, %v1052
      %v1080 = vpack.c.b16 %v1055, %v1054
      %v1081 = vpack.c.b16 %v1057, %v1056
      %v1082 = vpack.c.b16 %v1059, %v1058
      %v1083 = vpack.c.b16 %v1061, %v1060
      %v1084 = vpack.c.b16 %v1063, %v1062
      %v1085 = vpack.c.b16 %v1065, %v1064
      %v1086 = vpack.c.b16 %v1067, %v1066
      %v1087 = vpack.c.b16 %v1069, %v1068
      %v1088 = vpack.c.b16 %v1071, %v1070
      %v1089 = vpack.c.b16 %v1073, %v1072
      %v1122 = vunpack.c.l.b16 %v994
      %v1123 = vunpack.c.l.b16 %v995
      %v1124 = vunpack.c.l.b16 %v996
      %v1125 = vunpack.c.l.b16 %v997
      %v1126 = vunpack.c.l.b16 %v998
      %v1127 = vunpack.c.l.b16 %v999
      %v1128 = vunpack.c.l.b16 %v1000
      %v1129 = vunpack.c.l.b16 %v1001
      %v1130 = vunpack.c.l.b16 %v1002
      %v1131 = vunpack.c.l.b16 %v1003
      %v1132 = vunpack.c.l.b16 %v1004
      %v1133 = vunpack.c.l.b16 %v1005
      %v1134 = vunpack.c.l.b16 %v1006
      %v1135 = vunpack.c.l.b16 %v1007
      %v1136 = vunpack.c.l.b16 %v1008
      %v1137 = vunpack.c.l.b16 %v1009
      %v1138 = vpack.c.b16 %v1123, %v1122
      %v1139 = vpack.c.b16 %v1125, %v1124
      %v1140 = vpack.c.b16 %v1127, %v1126
      %v1141 = vpack.c.b16 %v1129, %v1128
      %v1142 = vpack.c.b16 %v1131, %v1130
      %v1143 = vpack.c.b16 %v1133, %v1132
      %v1144 = vpack.c.b16 %v1135, %v1134
      %v1145 = vpack.c.b16 %v1137, %v1136
      %1154 = vmatpush.bf16.msra.mxu0 %v1145
      %1155 = vmatpush.bf16.msra.mxu0 %v1144
      %1156 = vmatpush.bf16.msra.mxu0 %v1143
      %1157 = vmatpush.bf16.msra.mxu0 %v1142
      %1158 = vmatpush.bf16.msra.mxu0 %v1141
      %1159 = vmatpush.bf16.msra.mxu0 %v1140
      %1160 = vmatpush.bf16.msra.mxu0 %v1139
      %1161 = vmatpush.bf16.msra.mxu0 %v1138
      %1162 = vmatmul.bf16.gmra.mxu0 %v1074
      %v1163 = vpop.f32.mrf.mxu0
      %v1164 = vadd.f32 0.0, %v1163
      %v1165 = vpop.f32.mrf.mxu0
      %v1166 = vadd.f32 0.0, %v1165
      %1167 = vmatmul.bf16.gmra.mxu0 %v1075
      %v1168 = vpop.f32.mrf.mxu0
      %v1169 = vadd.f32 0.0, %v1168
      %v1170 = vpop.f32.mrf.mxu0
      %v1171 = vadd.f32 0.0, %v1170
      %1172 = vmatmul.bf16.gmra.mxu0 %v1076
      %v1173 = vpop.f32.mrf.mxu0
      %v1174 = vadd.f32 0.0, %v1173
      %v1175 = vpop.f32.mrf.mxu0
      %v1176 = vadd.f32 0.0, %v1175
      %1177 = vmatmul.bf16.gmra.mxu0 %v1077
      %v1178 = vpop.f32.mrf.mxu0
      %v1179 = vadd.f32 0.0, %v1178
      %v1180 = vpop.f32.mrf.mxu0
      %v1181 = vadd.f32 0.0, %v1180
      %1182 = vmatmul.bf16.gmra.mxu0 %v1078
      %v1183 = vpop.f32.mrf.mxu0
      %v1184 = vadd.f32 0.0, %v1183
      %v1185 = vpop.f32.mrf.mxu0
      %v1186 = vadd.f32 0.0, %v1185
      %1187 = vmatmul.bf16.gmra.mxu0 %v1079
      %v1188 = vpop.f32.mrf.mxu0
      %v1189 = vadd.f32 0.0, %v1188
      %v1190 = vpop.f32.mrf.mxu0
      %v1191 = vadd.f32 0.0, %v1190
      %1192 = vmatmul.bf16.gmra.mxu0 %v1080
      %v1193 = vpop.f32.mrf.mxu0
      %v1194 = vadd.f32 0.0, %v1193
      %v1195 = vpop.f32.mrf.mxu0
      %v1196 = vadd.f32 0.0, %v1195
      %1197 = vmatmul.bf16.gmra.mxu0 %v1081
      %v1198 = vpop.f32.mrf.mxu0
      %v1199 = vadd.f32 0.0, %v1198
      %v1200 = vpop.f32.mrf.mxu0
      %v1201 = vadd.f32 0.0, %v1200
      %1202 = vmatmul.bf16.gmra.mxu0 %v1082
      %v1203 = vpop.f32.mrf.mxu0
      %v1204 = vadd.f32 0.0, %v1203
      %v1205 = vpop.f32.mrf.mxu0
      %v1206 = vadd.f32 0.0, %v1205
      %1207 = vmatmul.bf16.gmra.mxu0 %v1083
      %v1208 = vpop.f32.mrf.mxu0
      %v1209 = vadd.f32 0.0, %v1208
      %v1210 = vpop.f32.mrf.mxu0
      %v1211 = vadd.f32 0.0, %v1210
      %1212 = vmatmul.bf16.gmra.mxu0 %v1084
      %v1213 = vpop.f32.mrf.mxu0
      %v1214 = vadd.f32 0.0, %v1213
      %v1215 = vpop.f32.mrf.mxu0
      %v1216 = vadd.f32 0.0, %v1215
      %1217 = vmatmul.bf16.gmra.mxu0 %v1085
      %v1218 = vpop.f32.mrf.mxu0
      %v1219 = vadd.f32 0.0, %v1218
      %v1220 = vpop.f32.mrf.mxu0
      %v1221 = vadd.f32 0.0, %v1220
      %1222 = vmatmul.bf16.gmra.mxu0 %v1086
      %v1223 = vpop.f32.mrf.mxu0
      %v1224 = vadd.f32 0.0, %v1223
      %v1225 = vpop.f32.mrf.mxu0
      %v1226 = vadd.f32 0.0, %v1225
      %1227 = vmatmul.bf16.gmra.mxu0 %v1087
      %v1228 = vpop.f32.mrf.mxu0
      %v1229 = vadd.f32 0.0, %v1228
      %v1230 = vpop.f32.mrf.mxu0
      %v1231 = vadd.f32 0.0, %v1230
      %1232 = vmatmul.bf16.gmra.mxu0 %v1088
      %v1233 = vpop.f32.mrf.mxu0
      %v1234 = vadd.f32 0.0, %v1233
      %v1235 = vpop.f32.mrf.mxu0
      %v1236 = vadd.f32 0.0, %v1235
      %1237 = vmatmul.bf16.gmra.mxu0 %v1089
      %v1238 = vpop.f32.mrf.mxu0
      %v1239 = vadd.f32 0.0, %v1238
      %v1240 = vpop.f32.mrf.mxu0
      %v1241 = vadd.f32 0.0, %v1240
      %1242 = vdwg.mxu0
      %1243 = vst [vmem:[#allocation4] sm:$0xff] %v1164
      %1244 = vst [vmem:[#allocation4 + $0x8] sm:$0xff] %v1166
      %1245 = vst [vmem:[#allocation4 + $0x10] sm:$0xff] %v1169
      %1246 = vst [vmem:[#allocation4 + $0x18] sm:$0xff] %v1171
      %1247 = vst [vmem:[#allocation4 + $0x20] sm:$0xff] %v1174
      %1248 = vst [vmem:[#allocation4 + $0x28] sm:$0xff] %v1176
      %1249 = vst [vmem:[#allocation4 + $0x30] sm:$0xff] %v1179
      %1250 = vst [vmem:[#allocation4 + $0x38] sm:$0xff] %v1181
      %1251 = vst [vmem:[#allocation4 + $0x40] sm:$0xff] %v1184
      %1252 = vst [vmem:[#allocation4 + $0x48] sm:$0xff] %v1186
      %1253 = vst [vmem:[#allocation4 + $0x50] sm:$0xff] %v1189
      %1254 = vst [vmem:[#allocation4 + $0x58] sm:$0xff] %v1191
      %1255 = vst [vmem:[#allocation4 + $0x60] sm:$0xff] %v1194
      %1256 = vst [vmem:[#allocation4 + $0x68] sm:$0xff] %v1196
      %1257 = vst [vmem:[#allocation4 + $0x70] sm:$0xff] %v1199
      %1258 = vst [vmem:[#allocation4 + $0x78] sm:$0xff] %v1201
      %1259 = vst [vmem:[#allocation4 + $0x80] sm:$0xff] %v1204
      %1260 = vst [vmem:[#allocation4 + $0x88] sm:$0xff] %v1206
      %1261 = vst [vmem:[#allocation4 + $0x90] sm:$0xff] %v1209
      %1262 = vst [vmem:[#allocation4 + $0x98] sm:$0xff] %v1211
      %1263 = vst [vmem:[#allocation4 + $0xa0] sm:$0xff] %v1214
      %1264 = vst [vmem:[#allocation4 + $0xa8] sm:$0xff] %v1216
      %1265 = vst [vmem:[#allocation4 + $0xb0] sm:$0xff] %v1219
      %1266 = vst [vmem:[#allocation4 + $0xb8] sm:$0xff] %v1221
      %1267 = vst [vmem:[#allocation4 + $0xc0] sm:$0xff] %v1224
      %1268 = vst [vmem:[#allocation4 + $0xc8] sm:$0xff] %v1226
      %1269 = vst [vmem:[#allocation4 + $0xd0] sm:$0xff] %v1229
      %1270 = vst [vmem:[#allocation4 + $0xd8] sm:$0xff] %v1231
      %1271 = vst [vmem:[#allocation4 + $0xe0] sm:$0xff] %v1234
      %1272 = vst [vmem:[#allocation4 + $0xe8] sm:$0xff] %v1236
      %1273 = vst [vmem:[#allocation4 + $0xf0] sm:$0xff] %v1239
      %1274 = vst [vmem:[#allocation4 + $0xf8] sm:$0xff] %v1241
      %v1275 = vld [vmem:[#allocation2] sm:$0xf]
      %v1276 = vld [vmem:[#allocation2 + $0x4] sm:$0xf]
      %v1277 = vld [vmem:[#allocation2 + $0x8] sm:$0x1]
      %v1278 = vld [vmem:[#allocation2 + $0xc] sm:$0xf]
      %v1279 = vld [vmem:[#allocation2 + $0x10] sm:$0xf]
      %v1280 = vld [vmem:[#allocation2 + $0x14] sm:$0x1]
      %v1281 = vld [vmem:[#allocation2 + $0x18] sm:$0xf]
      %v1282 = vld [vmem:[#allocation2 + $0x1c] sm:$0xf]
      %v1283 = vld [vmem:[#allocation2 + $0x20] sm:$0x1]
      %v1284 = vld [vmem:[#allocation2 + $0x24] sm:$0xf]
      %v1285 = vld [vmem:[#allocation2 + $0x28] sm:$0xf]
      %v1286 = vld [vmem:[#allocation2 + $0x2c] sm:$0x1]
      %v1287 = vld [vmem:[#allocation2 + $0x30] sm:$0xf]
      %v1288 = vld [vmem:[#allocation2 + $0x34] sm:$0xf]
      %v1289 = vld [vmem:[#allocation2 + $0x38] sm:$0x1]
      %v1290 = vld [vmem:[#allocation2 + $0x3c] sm:$0xf]
      %v1291 = vld [vmem:[#allocation2 + $0x40] sm:$0xf]
      %v1292 = vld [vmem:[#allocation2 + $0x44] sm:$0x1]
      %v1293 = vld [vmem:[#allocation2 + $0x48] sm:$0xf]
      %v1294 = vld [vmem:[#allocation2 + $0x4c] sm:$0xf]
      %v1295 = vld [vmem:[#allocation2 + $0x50] sm:$0x1]
      %v1296 = vld [vmem:[#allocation2 + $0x54] sm:$0xf]
      %v1297 = vld [vmem:[#allocation2 + $0x58] sm:$0xf]
      %v1298 = vld [vmem:[#allocation2 + $0x5c] sm:$0x1]
      %v1299 = vld [vmem:[#allocation2 + $0x60] sm:$0xf]
      %v1300 = vld [vmem:[#allocation2 + $0x64] sm:$0xf]
      %v1301 = vld [vmem:[#allocation2 + $0x68] sm:$0x1]
      %v1302 = vld [vmem:[#allocation2 + $0x6c] sm:$0xf]
      %v1303 = vld [vmem:[#allocation2 + $0x70] sm:$0xf]
      %v1304 = vld [vmem:[#allocation2 + $0x74] sm:$0x1]
      %v1305 = vld [vmem:[#allocation2 + $0x78] sm:$0xf]
      %v1306 = vld [vmem:[#allocation2 + $0x7c] sm:$0xf]
      %v1307 = vld [vmem:[#allocation2 + $0x80] sm:$0x1]
      %v1308 = vld [vmem:[#allocation2 + $0x84] sm:$0xf]
      %v1309 = vld [vmem:[#allocation2 + $0x88] sm:$0xf]
      %v1310 = vld [vmem:[#allocation2 + $0x8c] sm:$0x1]
      %v1311 = vld [vmem:[#allocation2 + $0x90] sm:$0xf]
      %v1312 = vld [vmem:[#allocation2 + $0x94] sm:$0xf]
      %v1313 = vld [vmem:[#allocation2 + $0x98] sm:$0x1]
      %v1314 = vld [vmem:[#allocation2 + $0x9c] sm:$0xf]
      %v1315 = vld [vmem:[#allocation2 + $0xa0] sm:$0xf]
      %v1316 = vld [vmem:[#allocation2 + $0xa4] sm:$0x1]
      %v1317 = vld [vmem:[#allocation2 + $0xa8] sm:$0xf]
      %v1318 = vld [vmem:[#allocation2 + $0xac] sm:$0xf]
      %v1319 = vld [vmem:[#allocation2 + $0xb0] sm:$0x1]
      %v1320 = vld [vmem:[#allocation2 + $0xb4] sm:$0xf]
      %v1321 = vld [vmem:[#allocation2 + $0xb8] sm:$0xf]
      %v1322 = vld [vmem:[#allocation2 + $0xbc] sm:$0x1]
      %vm1323 = vsmask.f32 3328
      %vm1324 = vsmask.f32 7440
      %vm1325 = vmor %vm1323, %vm1324
      %v1327 = vshrl.u32 %v1275, 16
      %v1329 = vrot.slane %v1327, 4
      %v1330 = vshll.u32 %v1275, 16
      %v1332 = vrot.slane %v1330, 5
      %v1333 = vor.u32 %v1329, %v1332
      %v1334 = vrot.slane %v1333, 4
      %v1336 = vshll.u32 %v1276, 16
      %v1338 = vrot.slane %v1336, 5
      %v1339 = vsel %vm1325, %v1334, %v1338
      %v1340 = vshrl.u32 %v1276, 16
      %v1342 = vrot.slane %v1340, 4
      %v1343 = vor.u32 %v1342, %v1338
      %v1344 = vrot.slane %v1343, 4
      %v1346 = vshll.u32 %v1277, 16
      %v1348 = vrot.slane %v1346, 5
      %v1349 = vsel %vm1325, %v1344, %v1348
      %v1351 = vshrl.u32 %v1278, 16
      %v1353 = vrot.slane %v1351, 4
      %v1354 = vshll.u32 %v1278, 16
      %v1356 = vrot.slane %v1354, 5
      %v1357 = vor.u32 %v1353, %v1356
      %v1358 = vrot.slane %v1357, 4
      %v1360 = vshll.u32 %v1279, 16
      %v1362 = vrot.slane %v1360, 5
      %v1363 = vsel %vm1325, %v1358, %v1362
      %v1364 = vshrl.u32 %v1279, 16
      %v1366 = vrot.slane %v1364, 4
      %v1367 = vor.u32 %v1366, %v1362
      %v1368 = vrot.slane %v1367, 4
      %v1370 = vshll.u32 %v1280, 16
      %v1372 = vrot.slane %v1370, 5
      %v1373 = vsel %vm1325, %v1368, %v1372
      %v1375 = vshrl.u32 %v1281, 16
      %v1377 = vrot.slane %v1375, 4
      %v1378 = vshll.u32 %v1281, 16
      %v1380 = vrot.slane %v1378, 5
      %v1381 = vor.u32 %v1377, %v1380
      %v1382 = vrot.slane %v1381, 4
      %v1384 = vshll.u32 %v1282, 16
      %v1386 = vrot.slane %v1384, 5
      %v1387 = vsel %vm1325, %v1382, %v1386
      %v1388 = vshrl.u32 %v1282, 16
      %v1390 = vrot.slane %v1388, 4
      %v1391 = vor.u32 %v1390, %v1386
      %v1392 = vrot.slane %v1391, 4
      %v1394 = vshll.u32 %v1283, 16
      %v1396 = vrot.slane %v1394, 5
      %v1397 = vsel %vm1325, %v1392, %v1396
      %v1399 = vshrl.u32 %v1284, 16
      %v1401 = vrot.slane %v1399, 4
      %v1402 = vshll.u32 %v1284, 16
      %v1404 = vrot.slane %v1402, 5
      %v1405 = vor.u32 %v1401, %v1404
      %v1406 = vrot.slane %v1405, 4
      %v1408 = vshll.u32 %v1285, 16
      %v1410 = vrot.slane %v1408, 5
      %v1411 = vsel %vm1325, %v1406, %v1410
      %v1412 = vshrl.u32 %v1285, 16
      %v1414 = vrot.slane %v1412, 4
      %v1415 = vor.u32 %v1414, %v1410
      %v1416 = vrot.slane %v1415, 4
      %v1418 = vshll.u32 %v1286, 16
      %v1420 = vrot.slane %v1418, 5
      %v1421 = vsel %vm1325, %v1416, %v1420
      %v1423 = vshrl.u32 %v1287, 16
      %v1425 = vrot.slane %v1423, 4
      %v1426 = vshll.u32 %v1287, 16
      %v1428 = vrot.slane %v1426, 5
      %v1429 = vor.u32 %v1425, %v1428
      %v1430 = vrot.slane %v1429, 4
      %v1432 = vshll.u32 %v1288, 16
      %v1434 = vrot.slane %v1432, 5
      %v1435 = vsel %vm1325, %v1430, %v1434
      %v1436 = vshrl.u32 %v1288, 16
      %v1438 = vrot.slane %v1436, 4
      %v1439 = vor.u32 %v1438, %v1434
      %v1440 = vrot.slane %v1439, 4
      %v1442 = vshll.u32 %v1289, 16
      %v1444 = vrot.slane %v1442, 5
      %v1445 = vsel %vm1325, %v1440, %v1444
      %v1447 = vshrl.u32 %v1290, 16
      %v1449 = vrot.slane %v1447, 4
      %v1450 = vshll.u32 %v1290, 16
      %v1452 = vrot.slane %v1450, 5
      %v1453 = vor.u32 %v1449, %v1452
      %v1454 = vrot.slane %v1453, 4
      %v1456 = vshll.u32 %v1291, 16
      %v1458 = vrot.slane %v1456, 5
      %v1459 = vsel %vm1325, %v1454, %v1458
      %v1460 = vshrl.u32 %v1291, 16
      %v1462 = vrot.slane %v1460, 4
      %v1463 = vor.u32 %v1462, %v1458
      %v1464 = vrot.slane %v1463, 4
      %v1466 = vshll.u32 %v1292, 16
      %v1468 = vrot.slane %v1466, 5
      %v1469 = vsel %vm1325, %v1464, %v1468
      %v1471 = vshrl.u32 %v1293, 16
      %v1473 = vrot.slane %v1471, 4
      %v1474 = vshll.u32 %v1293, 16
      %v1476 = vrot.slane %v1474, 5
      %v1477 = vor.u32 %v1473, %v1476
      %v1478 = vrot.slane %v1477, 4
      %v1480 = vshll.u32 %v1294, 16
      %v1482 = vrot.slane %v1480, 5
      %v1483 = vsel %vm1325, %v1478, %v1482
      %v1484 = vshrl.u32 %v1294, 16
      %v1486 = vrot.slane %v1484, 4
      %v1487 = vor.u32 %v1486, %v1482
      %v1488 = vrot.slane %v1487, 4
      %v1490 = vshll.u32 %v1295, 16
      %v1492 = vrot.slane %v1490, 5
      %v1493 = vsel %vm1325, %v1488, %v1492
      %v1495 = vshrl.u32 %v1296, 16
      %v1497 = vrot.slane %v1495, 4
      %v1498 = vshll.u32 %v1296, 16
      %v1500 = vrot.slane %v1498, 5
      %v1501 = vor.u32 %v1497, %v1500
      %v1502 = vrot.slane %v1501, 4
      %v1504 = vshll.u32 %v1297, 16
      %v1506 = vrot.slane %v1504, 5
      %v1507 = vsel %vm1325, %v1502, %v1506
      %v1508 = vshrl.u32 %v1297, 16
      %v1510 = vrot.slane %v1508, 4
      %v1511 = vor.u32 %v1510, %v1506
      %v1512 = vrot.slane %v1511, 4
      %v1514 = vshll.u32 %v1298, 16
      %v1516 = vrot.slane %v1514, 5
      %v1517 = vsel %vm1325, %v1512, %v1516
      %v1519 = vshrl.u32 %v1299, 16
      %v1521 = vrot.slane %v1519, 4
      %v1522 = vshll.u32 %v1299, 16
      %v1524 = vrot.slane %v1522, 5
      %v1525 = vor.u32 %v1521, %v1524
      %v1526 = vrot.slane %v1525, 4
      %v1528 = vshll.u32 %v1300, 16
      %v1530 = vrot.slane %v1528, 5
      %v1531 = vsel %vm1325, %v1526, %v1530
      %v1532 = vshrl.u32 %v1300, 16
      %v1534 = vrot.slane %v1532, 4
      %v1535 = vor.u32 %v1534, %v1530
      %v1536 = vrot.slane %v1535, 4
      %v1538 = vshll.u32 %v1301, 16
      %v1540 = vrot.slane %v1538, 5
      %v1541 = vsel %vm1325, %v1536, %v1540
      %v1543 = vshrl.u32 %v1302, 16
      %v1545 = vrot.slane %v1543, 4
      %v1546 = vshll.u32 %v1302, 16
      %v1548 = vrot.slane %v1546, 5
      %v1549 = vor.u32 %v1545, %v1548
      %v1550 = vrot.slane %v1549, 4
      %v1552 = vshll.u32 %v1303, 16
      %v1554 = vrot.slane %v1552, 5
      %v1555 = vsel %vm1325, %v1550, %v1554
      %v1556 = vshrl.u32 %v1303, 16
      %v1558 = vrot.slane %v1556, 4
      %v1559 = vor.u32 %v1558, %v1554
      %v1560 = vrot.slane %v1559, 4
      %v1562 = vshll.u32 %v1304, 16
      %v1564 = vrot.slane %v1562, 5
      %v1565 = vsel %vm1325, %v1560, %v1564
      %v1567 = vshrl.u32 %v1305, 16
      %v1569 = vrot.slane %v1567, 4
      %v1570 = vshll.u32 %v1305, 16
      %v1572 = vrot.slane %v1570, 5
      %v1573 = vor.u32 %v1569, %v1572
      %v1574 = vrot.slane %v1573, 4
      %v1576 = vshll.u32 %v1306, 16
      %v1578 = vrot.slane %v1576, 5
      %v1579 = vsel %vm1325, %v1574, %v1578
      %v1580 = vshrl.u32 %v1306, 16
      %v1582 = vrot.slane %v1580, 4
      %v1583 = vor.u32 %v1582, %v1578
      %v1584 = vrot.slane %v1583, 4
      %v1586 = vshll.u32 %v1307, 16
      %v1588 = vrot.slane %v1586, 5
      %v1589 = vsel %vm1325, %v1584, %v1588
      %v1591 = vshrl.u32 %v1308, 16
      %v1593 = vrot.slane %v1591, 4
      %v1594 = vshll.u32 %v1308, 16
      %v1596 = vrot.slane %v1594, 5
      %v1597 = vor.u32 %v1593, %v1596
      %v1598 = vrot.slane %v1597, 4
      %v1600 = vshll.u32 %v1309, 16
      %v1602 = vrot.slane %v1600, 5
      %v1603 = vsel %vm1325, %v1598, %v1602
      %v1604 = vshrl.u32 %v1309, 16
      %v1606 = vrot.slane %v1604, 4
      %v1607 = vor.u32 %v1606, %v1602
      %v1608 = vrot.slane %v1607, 4
      %v1610 = vshll.u32 %v1310, 16
      %v1612 = vrot.slane %v1610, 5
      %v1613 = vsel %vm1325, %v1608, %v1612
      %v1615 = vshrl.u32 %v1311, 16
      %v1617 = vrot.slane %v1615, 4
      %v1618 = vshll.u32 %v1311, 16
      %v1620 = vrot.slane %v1618, 5
      %v1621 = vor.u32 %v1617, %v1620
      %v1622 = vrot.slane %v1621, 4
      %v1624 = vshll.u32 %v1312, 16
      %v1626 = vrot.slane %v1624, 5
      %v1627 = vsel %vm1325, %v1622, %v1626
      %v1628 = vshrl.u32 %v1312, 16
      %v1630 = vrot.slane %v1628, 4
      %v1631 = vor.u32 %v1630, %v1626
      %v1632 = vrot.slane %v1631, 4
      %v1634 = vshll.u32 %v1313, 16
      %v1636 = vrot.slane %v1634, 5
      %v1637 = vsel %vm1325, %v1632, %v1636
      %v1639 = vshrl.u32 %v1314, 16
      %v1641 = vrot.slane %v1639, 4
      %v1642 = vshll.u32 %v1314, 16
      %v1644 = vrot.slane %v1642, 5
      %v1645 = vor.u32 %v1641, %v1644
      %v1646 = vrot.slane %v1645, 4
      %v1648 = vshll.u32 %v1315, 16
      %v1650 = vrot.slane %v1648, 5
      %v1651 = vsel %vm1325, %v1646, %v1650
      %v1652 = vshrl.u32 %v1315, 16
      %v1654 = vrot.slane %v1652, 4
      %v1655 = vor.u32 %v1654, %v1650
      %v1656 = vrot.slane %v1655, 4
      %v1658 = vshll.u32 %v1316, 16
      %v1660 = vrot.slane %v1658, 5
      %v1661 = vsel %vm1325, %v1656, %v1660
      %v1663 = vshrl.u32 %v1317, 16
      %v1665 = vrot.slane %v1663, 4
      %v1666 = vshll.u32 %v1317, 16
      %v1668 = vrot.slane %v1666, 5
      %v1669 = vor.u32 %v1665, %v1668
      %v1670 = vrot.slane %v1669, 4
      %v1672 = vshll.u32 %v1318, 16
      %v1674 = vrot.slane %v1672, 5
      %v1675 = vsel %vm1325, %v1670, %v1674
      %v1676 = vshrl.u32 %v1318, 16
      %v1678 = vrot.slane %v1676, 4
      %v1679 = vor.u32 %v1678, %v1674
      %v1680 = vrot.slane %v1679, 4
      %v1682 = vshll.u32 %v1319, 16
      %v1684 = vrot.slane %v1682, 5
      %v1685 = vsel %vm1325, %v1680, %v1684
      %v1687 = vshrl.u32 %v1320, 16
      %v1689 = vrot.slane %v1687, 4
      %v1690 = vshll.u32 %v1320, 16
      %v1692 = vrot.slane %v1690, 5
      %v1693 = vor.u32 %v1689, %v1692
      %v1694 = vrot.slane %v1693, 4
      %v1696 = vshll.u32 %v1321, 16
      %v1698 = vrot.slane %v1696, 5
      %v1699 = vsel %vm1325, %v1694, %v1698
      %v1700 = vshrl.u32 %v1321, 16
      %v1702 = vrot.slane %v1700, 4
      %v1703 = vor.u32 %v1702, %v1698
      %v1704 = vrot.slane %v1703, 4
      %v1706 = vshll.u32 %v1322, 16
      %v1708 = vrot.slane %v1706, 5
      %v1709 = vsel %vm1325, %v1704, %v1708
      %s1710 = scalar_lea.vmem %s1, 64
      %v1711 = vld [vmem:[%s1710] sm:$0xf]
      %v1712 = vld [vmem:[%s1710 + $0x4] sm:$0xf]
      %v1713 = vld [vmem:[%s1710 + $0x8] sm:$0xf]
      %v1714 = vld [vmem:[%s1710 + $0xc] sm:$0xf]
      %v1715 = vld [vmem:[%s1710 + $0x10] sm:$0xf]
      %v1716 = vld [vmem:[%s1710 + $0x14] sm:$0xf]
      %v1717 = vld [vmem:[%s1710 + $0x18] sm:$0xf]
      %v1718 = vld [vmem:[%s1710 + $0x1c] sm:$0xf]
      %v1719 = vld [vmem:[%s1710 + $0x20] sm:$0xf]
      %v1720 = vld [vmem:[%s1710 + $0x24] sm:$0xf]
      %v1721 = vld [vmem:[%s1710 + $0x28] sm:$0xf]
      %v1722 = vld [vmem:[%s1710 + $0x2c] sm:$0xf]
      %v1723 = vld [vmem:[%s1710 + $0x30] sm:$0xf]
      %v1724 = vld [vmem:[%s1710 + $0x34] sm:$0xf]
      %v1725 = vld [vmem:[%s1710 + $0x38] sm:$0xf]
      %v1726 = vld [vmem:[%s1710 + $0x3c] sm:$0xf]
      %v1727 = vunpack.c.l.b16 %v1339
      %v1728 = vunpack.c.l.b16 %v1349
      %v1729 = vunpack.c.l.b16 %v1363
      %v1730 = vunpack.c.l.b16 %v1373
      %v1731 = vunpack.c.l.b16 %v1387
      %v1732 = vunpack.c.l.b16 %v1397
      %v1733 = vunpack.c.l.b16 %v1411
      %v1734 = vunpack.c.l.b16 %v1421
      %v1735 = vunpack.c.l.b16 %v1435
      %v1736 = vunpack.c.l.b16 %v1445
      %v1737 = vunpack.c.l.b16 %v1459
      %v1738 = vunpack.c.l.b16 %v1469
      %v1739 = vunpack.c.l.b16 %v1483
      %v1740 = vunpack.c.l.b16 %v1493
      %v1741 = vunpack.c.l.b16 %v1507
      %v1742 = vunpack.c.l.b16 %v1517
      %v1743 = vunpack.c.l.b16 %v1531
      %v1744 = vunpack.c.l.b16 %v1541
      %v1745 = vunpack.c.l.b16 %v1555
      %v1746 = vunpack.c.l.b16 %v1565
      %v1747 = vunpack.c.l.b16 %v1579
      %v1748 = vunpack.c.l.b16 %v1589
      %v1749 = vunpack.c.l.b16 %v1603
      %v1750 = vunpack.c.l.b16 %v1613
      %v1751 = vunpack.c.l.b16 %v1627
      %v1752 = vunpack.c.l.b16 %v1637
      %v1753 = vunpack.c.l.b16 %v1651
      %v1754 = vunpack.c.l.b16 %v1661
      %v1755 = vunpack.c.l.b16 %v1675
      %v1756 = vunpack.c.l.b16 %v1685
      %v1757 = vunpack.c.l.b16 %v1699
      %v1758 = vunpack.c.l.b16 %v1709
      %v1759 = vpack.c.b16 %v1728, %v1727
      %v1760 = vpack.c.b16 %v1730, %v1729
      %v1761 = vpack.c.b16 %v1732, %v1731
      %v1762 = vpack.c.b16 %v1734, %v1733
      %v1763 = vpack.c.b16 %v1736, %v1735
      %v1764 = vpack.c.b16 %v1738, %v1737
      %v1765 = vpack.c.b16 %v1740, %v1739
      %v1766 = vpack.c.b16 %v1742, %v1741
      %v1767 = vpack.c.b16 %v1744, %v1743
      %v1768 = vpack.c.b16 %v1746, %v1745
      %v1769 = vpack.c.b16 %v1748, %v1747
      %v1770 = vpack.c.b16 %v1750, %v1749
      %v1771 = vpack.c.b16 %v1752, %v1751
      %v1772 = vpack.c.b16 %v1754, %v1753
      %v1773 = vpack.c.b16 %v1756, %v1755
      %v1774 = vpack.c.b16 %v1758, %v1757
      %v1807 = vunpack.c.l.b16 %v1711
      %v1808 = vunpack.c.l.b16 %v1712
      %v1809 = vunpack.c.l.b16 %v1713
      %v1810 = vunpack.c.l.b16 %v1714
      %v1811 = vunpack.c.l.b16 %v1715
      %v1812 = vunpack.c.l.b16 %v1716
      %v1813 = vunpack.c.l.b16 %v1717
      %v1814 = vunpack.c.l.b16 %v1718
      %v1815 = vunpack.c.l.b16 %v1719
      %v1816 = vunpack.c.l.b16 %v1720
      %v1817 = vunpack.c.l.b16 %v1721
      %v1818 = vunpack.c.l.b16 %v1722
      %v1819 = vunpack.c.l.b16 %v1723
      %v1820 = vunpack.c.l.b16 %v1724
      %v1821 = vunpack.c.l.b16 %v1725
      %v1822 = vunpack.c.l.b16 %v1726
      %v1823 = vpack.c.b16 %v1808, %v1807
      %v1824 = vpack.c.b16 %v1810, %v1809
      %v1825 = vpack.c.b16 %v1812, %v1811
      %v1826 = vpack.c.b16 %v1814, %v1813
      %v1827 = vpack.c.b16 %v1816, %v1815
      %v1828 = vpack.c.b16 %v1818, %v1817
      %v1829 = vpack.c.b16 %v1820, %v1819
      %v1830 = vpack.c.b16 %v1822, %v1821
      %1839 = vmatpush.bf16.msra.mxu0 %v1830
      %1840 = vmatpush.bf16.msra.mxu0 %v1829
      %1841 = vmatpush.bf16.msra.mxu0 %v1828
      %1842 = vmatpush.bf16.msra.mxu0 %v1827
      %1843 = vmatpush.bf16.msra.mxu0 %v1826
      %1844 = vmatpush.bf16.msra.mxu0 %v1825
      %1845 = vmatpush.bf16.msra.mxu0 %v1824
      %1846 = vmatpush.bf16.msra.mxu0 %v1823
      %1847 = vmatmul.bf16.gmra.mxu0 %v1759
      %v1848 = vpop.f32.mrf.mxu0
      %v1849 = vadd.f32 0.0, %v1848
      %v1850 = vpop.f32.mrf.mxu0
      %v1851 = vadd.f32 0.0, %v1850
      %1852 = vmatmul.bf16.gmra.mxu0 %v1760
      %v1853 = vpop.f32.mrf.mxu0
      %v1854 = vadd.f32 0.0, %v1853
      %v1855 = vpop.f32.mrf.mxu0
      %v1856 = vadd.f32 0.0, %v1855
      %1857 = vmatmul.bf16.gmra.mxu0 %v1761
      %v1858 = vpop.f32.mrf.mxu0
      %v1859 = vadd.f32 0.0, %v1858
      %v1860 = vpop.f32.mrf.mxu0
      %v1861 = vadd.f32 0.0, %v1860
      %1862 = vmatmul.bf16.gmra.mxu0 %v1762
      %v1863 = vpop.f32.mrf.mxu0
      %v1864 = vadd.f32 0.0, %v1863
      %v1865 = vpop.f32.mrf.mxu0
      %v1866 = vadd.f32 0.0, %v1865
      %1867 = vmatmul.bf16.gmra.mxu0 %v1763
      %v1868 = vpop.f32.mrf.mxu0
      %v1869 = vadd.f32 0.0, %v1868
      %v1870 = vpop.f32.mrf.mxu0
      %v1871 = vadd.f32 0.0, %v1870
      %1872 = vmatmul.bf16.gmra.mxu0 %v1764
      %v1873 = vpop.f32.mrf.mxu0
      %v1874 = vadd.f32 0.0, %v1873
      %v1875 = vpop.f32.mrf.mxu0
      %v1876 = vadd.f32 0.0, %v1875
      %1877 = vmatmul.bf16.gmra.mxu0 %v1765
      %v1878 = vpop.f32.mrf.mxu0
      %v1879 = vadd.f32 0.0, %v1878
      %v1880 = vpop.f32.mrf.mxu0
      %v1881 = vadd.f32 0.0, %v1880
      %1882 = vmatmul.bf16.gmra.mxu0 %v1766
      %v1883 = vpop.f32.mrf.mxu0
      %v1884 = vadd.f32 0.0, %v1883
      %v1885 = vpop.f32.mrf.mxu0
      %v1886 = vadd.f32 0.0, %v1885
      %1887 = vmatmul.bf16.gmra.mxu0 %v1767
      %v1888 = vpop.f32.mrf.mxu0
      %v1889 = vadd.f32 0.0, %v1888
      %v1890 = vpop.f32.mrf.mxu0
      %v1891 = vadd.f32 0.0, %v1890
      %1892 = vmatmul.bf16.gmra.mxu0 %v1768
      %v1893 = vpop.f32.mrf.mxu0
      %v1894 = vadd.f32 0.0, %v1893
      %v1895 = vpop.f32.mrf.mxu0
      %v1896 = vadd.f32 0.0, %v1895
      %1897 = vmatmul.bf16.gmra.mxu0 %v1769
      %v1898 = vpop.f32.mrf.mxu0
      %v1899 = vadd.f32 0.0, %v1898
      %v1900 = vpop.f32.mrf.mxu0
      %v1901 = vadd.f32 0.0, %v1900
      %1902 = vmatmul.bf16.gmra.mxu0 %v1770
      %v1903 = vpop.f32.mrf.mxu0
      %v1904 = vadd.f32 0.0, %v1903
      %v1905 = vpop.f32.mrf.mxu0
      %v1906 = vadd.f32 0.0, %v1905
      %1907 = vmatmul.bf16.gmra.mxu0 %v1771
      %v1908 = vpop.f32.mrf.mxu0
      %v1909 = vadd.f32 0.0, %v1908
      %v1910 = vpop.f32.mrf.mxu0
      %v1911 = vadd.f32 0.0, %v1910
      %1912 = vmatmul.bf16.gmra.mxu0 %v1772
      %v1913 = vpop.f32.mrf.mxu0
      %v1914 = vadd.f32 0.0, %v1913
      %v1915 = vpop.f32.mrf.mxu0
      %v1916 = vadd.f32 0.0, %v1915
      %1917 = vmatmul.bf16.gmra.mxu0 %v1773
      %v1918 = vpop.f32.mrf.mxu0
      %v1919 = vadd.f32 0.0, %v1918
      %v1920 = vpop.f32.mrf.mxu0
      %v1921 = vadd.f32 0.0, %v1920
      %1922 = vmatmul.bf16.gmra.mxu0 %v1774
      %v1923 = vpop.f32.mrf.mxu0
      %v1924 = vadd.f32 0.0, %v1923
      %v1925 = vpop.f32.mrf.mxu0
      %v1926 = vadd.f32 0.0, %v1925
      %1927 = vdwg.mxu0
      %v1928 = vld [vmem:[#allocation4] sm:$0xff]
      %v1929 = vld [vmem:[#allocation4 + $0x8] sm:$0xff]
      %v1930 = vld [vmem:[#allocation4 + $0x10] sm:$0xff]
      %v1931 = vld [vmem:[#allocation4 + $0x18] sm:$0xff]
      %v1932 = vld [vmem:[#allocation4 + $0x20] sm:$0xff]
      %v1933 = vld [vmem:[#allocation4 + $0x28] sm:$0xff]
      %v1934 = vld [vmem:[#allocation4 + $0x30] sm:$0xff]
      %v1935 = vld [vmem:[#allocation4 + $0x38] sm:$0xff]
      %v1936 = vld [vmem:[#allocation4 + $0x40] sm:$0xff]
      %v1937 = vld [vmem:[#allocation4 + $0x48] sm:$0xff]
      %v1938 = vld [vmem:[#allocation4 + $0x50] sm:$0xff]
      %v1939 = vld [vmem:[#allocation4 + $0x58] sm:$0xff]
      %v1940 = vld [vmem:[#allocation4 + $0x60] sm:$0xff]
      %v1941 = vld [vmem:[#allocation4 + $0x68] sm:$0xff]
      %v1942 = vld [vmem:[#allocation4 + $0x70] sm:$0xff]
      %v1943 = vld [vmem:[#allocation4 + $0x78] sm:$0xff]
      %v1944 = vld [vmem:[#allocation4 + $0x80] sm:$0xff]
      %v1945 = vld [vmem:[#allocation4 + $0x88] sm:$0xff]
      %v1946 = vld [vmem:[#allocation4 + $0x90] sm:$0xff]
      %v1947 = vld [vmem:[#allocation4 + $0x98] sm:$0xff]
      %v1948 = vld [vmem:[#allocation4 + $0xa0] sm:$0xff]
      %v1949 = vld [vmem:[#allocation4 + $0xa8] sm:$0xff]
      %v1950 = vld [vmem:[#allocation4 + $0xb0] sm:$0xff]
      %v1951 = vld [vmem:[#allocation4 + $0xb8] sm:$0xff]
      %v1952 = vld [vmem:[#allocation4 + $0xc0] sm:$0xff]
      %v1953 = vld [vmem:[#allocation4 + $0xc8] sm:$0xff]
      %v1954 = vld [vmem:[#allocation4 + $0xd0] sm:$0xff]
      %v1955 = vld [vmem:[#allocation4 + $0xd8] sm:$0xff]
      %v1956 = vld [vmem:[#allocation4 + $0xe0] sm:$0xff]
      %v1957 = vld [vmem:[#allocation4 + $0xe8] sm:$0xff]
      %v1958 = vld [vmem:[#allocation4 + $0xf0] sm:$0xff]
      %v1959 = vld [vmem:[#allocation4 + $0xf8] sm:$0xff]
      %v1960 = vadd.f32 %v1928, %v1849
      %v1961 = vadd.f32 %v1929, %v1851
      %v1962 = vadd.f32 %v1930, %v1854
      %v1963 = vadd.f32 %v1931, %v1856
      %v1964 = vadd.f32 %v1932, %v1859
      %v1965 = vadd.f32 %v1933, %v1861
      %v1966 = vadd.f32 %v1934, %v1864
      %v1967 = vadd.f32 %v1935, %v1866
      %v1968 = vadd.f32 %v1936, %v1869
      %v1969 = vadd.f32 %v1937, %v1871
      %v1970 = vadd.f32 %v1938, %v1874
      %v1971 = vadd.f32 %v1939, %v1876
      %v1972 = vadd.f32 %v1940, %v1879
      %v1973 = vadd.f32 %v1941, %v1881
      %v1974 = vadd.f32 %v1942, %v1884
      %v1975 = vadd.f32 %v1943, %v1886
      %v1976 = vadd.f32 %v1944, %v1889
      %v1977 = vadd.f32 %v1945, %v1891
      %v1978 = vadd.f32 %v1946, %v1894
      %v1979 = vadd.f32 %v1947, %v1896
      %v1980 = vadd.f32 %v1948, %v1899
      %v1981 = vadd.f32 %v1949, %v1901
      %v1982 = vadd.f32 %v1950, %v1904
      %v1983 = vadd.f32 %v1951, %v1906
      %v1984 = vadd.f32 %v1952, %v1909
      %v1985 = vadd.f32 %v1953, %v1911
      %v1986 = vadd.f32 %v1954, %v1914
      %v1987 = vadd.f32 %v1955, %v1916
      %v1988 = vadd.f32 %v1956, %v1919
      %v1989 = vadd.f32 %v1957, %v1921
      %v1990 = vadd.f32 %v1958, %v1924
      %v1991 = vadd.f32 %v1959, %v1926
      %1992 = vst [vmem:[#allocation4] sm:$0xff] %v1960
      %1993 = vst [vmem:[#allocation4 + $0x8] sm:$0xff] %v1961
      %1994 = vst [vmem:[#allocation4 + $0x10] sm:$0xff] %v1962
      %1995 = vst [vmem:[#allocation4 + $0x18] sm:$0xff] %v1963
      %1996 = vst [vmem:[#allocation4 + $0x20] sm:$0xff] %v1964
      %1997 = vst [vmem:[#allocation4 + $0x28] sm:$0xff] %v1965
      %1998 = vst [vmem:[#allocation4 + $0x30] sm:$0xff] %v1966
      %1999 = vst [vmem:[#allocation4 + $0x38] sm:$0xff] %v1967
      %2000 = vst [vmem:[#allocation4 + $0x40] sm:$0xff] %v1968
      %2001 = vst [vmem:[#allocation4 + $0x48] sm:$0xff] %v1969
      %2002 = vst [vmem:[#allocation4 + $0x50] sm:$0xff] %v1970
      %2003 = vst [vmem:[#allocation4 + $0x58] sm:$0xff] %v1971
      %2004 = vst [vmem:[#allocation4 + $0x60] sm:$0xff] %v1972
      %2005 = vst [vmem:[#allocation4 + $0x68] sm:$0xff] %v1973
      %2006 = vst [vmem:[#allocation4 + $0x70] sm:$0xff] %v1974
      %2007 = vst [vmem:[#allocation4 + $0x78] sm:$0xff] %v1975
      %2008 = vst [vmem:[#allocation4 + $0x80] sm:$0xff] %v1976
      %2009 = vst [vmem:[#allocation4 + $0x88] sm:$0xff] %v1977
      %2010 = vst [vmem:[#allocation4 + $0x90] sm:$0xff] %v1978
      %2011 = vst [vmem:[#allocation4 + $0x98] sm:$0xff] %v1979
      %2012 = vst [vmem:[#allocation4 + $0xa0] sm:$0xff] %v1980
      %2013 = vst [vmem:[#allocation4 + $0xa8] sm:$0xff] %v1981
      %2014 = vst [vmem:[#allocation4 + $0xb0] sm:$0xff] %v1982
      %2015 = vst [vmem:[#allocation4 + $0xb8] sm:$0xff] %v1983
      %2016 = vst [vmem:[#allocation4 + $0xc0] sm:$0xff] %v1984
      %2017 = vst [vmem:[#allocation4 + $0xc8] sm:$0xff] %v1985
      %2018 = vst [vmem:[#allocation4 + $0xd0] sm:$0xff] %v1986
      %2019 = vst [vmem:[#allocation4 + $0xd8] sm:$0xff] %v1987
      %2020 = vst [vmem:[#allocation4 + $0xe0] sm:$0xff] %v1988
      %2021 = vst [vmem:[#allocation4 + $0xe8] sm:$0xff] %v1989
      %2022 = vst [vmem:[#allocation4 + $0xf0] sm:$0xff] %v1990
      %2023 = vst [vmem:[#allocation4 + $0xf8] sm:$0xff] %v1991
      %v2024 = vld [vmem:[#allocation2] sm:$0xe]
      %v2025 = vld [vmem:[#allocation2 + $0x4] sm:$0xf]
      %v2026 = vld [vmem:[#allocation2 + $0x8] sm:$0x1]
      %v2027 = vld [vmem:[#allocation2 + $0xc] sm:$0xe]
      %v2028 = vld [vmem:[#allocation2 + $0x10] sm:$0xf]
      %v2029 = vld [vmem:[#allocation2 + $0x14] sm:$0x1]
      %v2030 = vld [vmem:[#allocation2 + $0x18] sm:$0xe]
      %v2031 = vld [vmem:[#allocation2 + $0x1c] sm:$0xf]
      %v2032 = vld [vmem:[#allocation2 + $0x20] sm:$0x1]
      %v2033 = vld [vmem:[#allocation2 + $0x24] sm:$0xe]
      %v2034 = vld [vmem:[#allocation2 + $0x28] sm:$0xf]
      %v2035 = vld [vmem:[#allocation2 + $0x2c] sm:$0x1]
      %v2036 = vld [vmem:[#allocation2 + $0x30] sm:$0xe]
      %v2037 = vld [vmem:[#allocation2 + $0x34] sm:$0xf]
      %v2038 = vld [vmem:[#allocation2 + $0x38] sm:$0x1]
      %v2039 = vld [vmem:[#allocation2 + $0x3c] sm:$0xe]
      %v2040 = vld [vmem:[#allocation2 + $0x40] sm:$0xf]
      %v2041 = vld [vmem:[#allocation2 + $0x44] sm:$0x1]
      %v2042 = vld [vmem:[#allocation2 + $0x48] sm:$0xe]
      %v2043 = vld [vmem:[#allocation2 + $0x4c] sm:$0xf]
      %v2044 = vld [vmem:[#allocation2 + $0x50] sm:$0x1]
      %v2045 = vld [vmem:[#allocation2 + $0x54] sm:$0xe]
      %v2046 = vld [vmem:[#allocation2 + $0x58] sm:$0xf]
      %v2047 = vld [vmem:[#allocation2 + $0x5c] sm:$0x1]
      %v2048 = vld [vmem:[#allocation2 + $0x60] sm:$0xe]
      %v2049 = vld [vmem:[#allocation2 + $0x64] sm:$0xf]
      %v2050 = vld [vmem:[#allocation2 + $0x68] sm:$0x1]
      %v2051 = vld [vmem:[#allocation2 + $0x6c] sm:$0xe]
      %v2052 = vld [vmem:[#allocation2 + $0x70] sm:$0xf]
      %v2053 = vld [vmem:[#allocation2 + $0x74] sm:$0x1]
      %v2054 = vld [vmem:[#allocation2 + $0x78] sm:$0xe]
      %v2055 = vld [vmem:[#allocation2 + $0x7c] sm:$0xf]
      %v2056 = vld [vmem:[#allocation2 + $0x80] sm:$0x1]
      %v2057 = vld [vmem:[#allocation2 + $0x84] sm:$0xe]
      %v2058 = vld [vmem:[#allocation2 + $0x88] sm:$0xf]
      %v2059 = vld [vmem:[#allocation2 + $0x8c] sm:$0x1]
      %v2060 = vld [vmem:[#allocation2 + $0x90] sm:$0xe]
      %v2061 = vld [vmem:[#allocation2 + $0x94] sm:$0xf]
      %v2062 = vld [vmem:[#allocation2 + $0x98] sm:$0x1]
      %v2063 = vld [vmem:[#allocation2 + $0x9c] sm:$0xe]
      %v2064 = vld [vmem:[#allocation2 + $0xa0] sm:$0xf]
      %v2065 = vld [vmem:[#allocation2 + $0xa4] sm:$0x1]
      %v2066 = vld [vmem:[#allocation2 + $0xa8] sm:$0xe]
      %v2067 = vld [vmem:[#allocation2 + $0xac] sm:$0xf]
      %v2068 = vld [vmem:[#allocation2 + $0xb0] sm:$0x1]
      %v2069 = vld [vmem:[#allocation2 + $0xb4] sm:$0xe]
      %v2070 = vld [vmem:[#allocation2 + $0xb8] sm:$0xf]
      %v2071 = vld [vmem:[#allocation2 + $0xbc] sm:$0x1]
      %vm2120 = vcmask 1042432
      %vm2121 = vcmask 1046532
      %vm2122 = vmor %vm2120, %vm2121
      %v2123 = vrot.slane %v2024, 5
      %v2124 = vrot.slane %v2123, 4
      %v2125 = vrot.slane %v2025, 5
      %v2126 = vsel %vm2122, %v2124, %v2125
      %v2127 = vrot.slane %v2125, 4
      %v2128 = vrot.slane %v2026, 5
      %v2129 = vsel %vm2122, %v2127, %v2128
      %v2130 = vrot.slane %v2027, 5
      %v2131 = vrot.slane %v2130, 4
      %v2132 = vrot.slane %v2028, 5
      %v2133 = vsel %vm2122, %v2131, %v2132
      %v2134 = vrot.slane %v2132, 4
      %v2135 = vrot.slane %v2029, 5
      %v2136 = vsel %vm2122, %v2134, %v2135
      %v2137 = vrot.slane %v2030, 5
      %v2138 = vrot.slane %v2137, 4
      %v2139 = vrot.slane %v2031, 5
      %v2140 = vsel %vm2122, %v2138, %v2139
      %v2141 = vrot.slane %v2139, 4
      %v2142 = vrot.slane %v2032, 5
      %v2143 = vsel %vm2122, %v2141, %v2142
      %v2144 = vrot.slane %v2033, 5
      %v2145 = vrot.slane %v2144, 4
      %v2146 = vrot.slane %v2034, 5
      %v2147 = vsel %vm2122, %v2145, %v2146
      %v2148 = vrot.slane %v2146, 4
      %v2149 = vrot.slane %v2035, 5
      %v2150 = vsel %vm2122, %v2148, %v2149
      %v2151 = vrot.slane %v2036, 5
      %v2152 = vrot.slane %v2151, 4
      %v2153 = vrot.slane %v2037, 5
      %v2154 = vsel %vm2122, %v2152, %v2153
      %v2155 = vrot.slane %v2153, 4
      %v2156 = vrot.slane %v2038, 5
      %v2157 = vsel %vm2122, %v2155, %v2156
      %v2158 = vrot.slane %v2039, 5
      %v2159 = vrot.slane %v2158, 4
      %v2160 = vrot.slane %v2040, 5
      %v2161 = vsel %vm2122, %v2159, %v2160
      %v2162 = vrot.slane %v2160, 4
      %v2163 = vrot.slane %v2041, 5
      %v2164 = vsel %vm2122, %v2162, %v2163
      %v2165 = vrot.slane %v2042, 5
      %v2166 = vrot.slane %v2165, 4
      %v2167 = vrot.slane %v2043, 5
      %v2168 = vsel %vm2122, %v2166, %v2167
      %v2169 = vrot.slane %v2167, 4
      %v2170 = vrot.slane %v2044, 5
      %v2171 = vsel %vm2122, %v2169, %v2170
      %v2172 = vrot.slane %v2045, 5
      %v2173 = vrot.slane %v2172, 4
      %v2174 = vrot.slane %v2046, 5
      %v2175 = vsel %vm2122, %v2173, %v2174
      %v2176 = vrot.slane %v2174, 4
      %v2177 = vrot.slane %v2047, 5
      %v2178 = vsel %vm2122, %v2176, %v2177
      %v2179 = vrot.slane %v2048, 5
      %v2180 = vrot.slane %v2179, 4
      %v2181 = vrot.slane %v2049, 5
      %v2182 = vsel %vm2122, %v2180, %v2181
      %v2183 = vrot.slane %v2181, 4
      %v2184 = vrot.slane %v2050, 5
      %v2185 = vsel %vm2122, %v2183, %v2184
      %v2186 = vrot.slane %v2051, 5
      %v2187 = vrot.slane %v2186, 4
      %v2188 = vrot.slane %v2052, 5
      %v2189 = vsel %vm2122, %v2187, %v2188
      %v2190 = vrot.slane %v2188, 4
      %v2191 = vrot.slane %v2053, 5
      %v2192 = vsel %vm2122, %v2190, %v2191
      %v2193 = vrot.slane %v2054, 5
      %v2194 = vrot.slane %v2193, 4
      %v2195 = vrot.slane %v2055, 5
      %v2196 = vsel %vm2122, %v2194, %v2195
      %v2197 = vrot.slane %v2195, 4
      %v2198 = vrot.slane %v2056, 5
      %v2199 = vsel %vm2122, %v2197, %v2198
      %v2200 = vrot.slane %v2057, 5
      %v2201 = vrot.slane %v2200, 4
      %v2202 = vrot.slane %v2058, 5
      %v2203 = vsel %vm2122, %v2201, %v2202
      %v2204 = vrot.slane %v2202, 4
      %v2205 = vrot.slane %v2059, 5
      %v2206 = vsel %vm2122, %v2204, %v2205
      %v2207 = vrot.slane %v2060, 5
      %v2208 = vrot.slane %v2207, 4
      %v2209 = vrot.slane %v2061, 5
      %v2210 = vsel %vm2122, %v2208, %v2209
      %v2211 = vrot.slane %v2209, 4
      %v2212 = vrot.slane %v2062, 5
      %v2213 = vsel %vm2122, %v2211, %v2212
      %v2214 = vrot.slane %v2063, 5
      %v2215 = vrot.slane %v2214, 4
      %v2216 = vrot.slane %v2064, 5
      %v2217 = vsel %vm2122, %v2215, %v2216
      %v2218 = vrot.slane %v2216, 4
      %v2219 = vrot.slane %v2065, 5
      %v2220 = vsel %vm2122, %v2218, %v2219
      %v2221 = vrot.slane %v2066, 5
      %v2222 = vrot.slane %v2221, 4
      %v2223 = vrot.slane %v2067, 5
      %v2224 = vsel %vm2122, %v2222, %v2223
      %v2225 = vrot.slane %v2223, 4
      %v2226 = vrot.slane %v2068, 5
      %v2227 = vsel %vm2122, %v2225, %v2226
      %v2228 = vrot.slane %v2069, 5
      %v2229 = vrot.slane %v2228, 4
      %v2230 = vrot.slane %v2070, 5
      %v2231 = vsel %vm2122, %v2229, %v2230
      %v2232 = vrot.slane %v2230, 4
      %v2233 = vrot.slane %v2071, 5
      %v2234 = vsel %vm2122, %v2232, %v2233
      %s2235 = scalar_lea.vmem %s1, 128
      %v2236 = vld [vmem:[%s2235] sm:$0xf]
      %v2237 = vld [vmem:[%s2235 + $0x4] sm:$0xf]
      %v2238 = vld [vmem:[%s2235 + $0x8] sm:$0xf]
      %v2239 = vld [vmem:[%s2235 + $0xc] sm:$0xf]
      %v2240 = vld [vmem:[%s2235 + $0x10] sm:$0xf]
      %v2241 = vld [vmem:[%s2235 + $0x14] sm:$0xf]
      %v2242 = vld [vmem:[%s2235 + $0x18] sm:$0xf]
      %v2243 = vld [vmem:[%s2235 + $0x1c] sm:$0xf]
      %v2244 = vld [vmem:[%s2235 + $0x20] sm:$0xf]
      %v2245 = vld [vmem:[%s2235 + $0x24] sm:$0xf]
      %v2246 = vld [vmem:[%s2235 + $0x28] sm:$0xf]
      %v2247 = vld [vmem:[%s2235 + $0x2c] sm:$0xf]
      %v2248 = vld [vmem:[%s2235 + $0x30] sm:$0xf]
      %v2249 = vld [vmem:[%s2235 + $0x34] sm:$0xf]
      %v2250 = vld [vmem:[%s2235 + $0x38] sm:$0xf]
      %v2251 = vld [vmem:[%s2235 + $0x3c] sm:$0xf]
      %v2252 = vunpack.c.l.b16 %v2126
      %v2253 = vunpack.c.l.b16 %v2129
      %v2254 = vunpack.c.l.b16 %v2133
      %v2255 = vunpack.c.l.b16 %v2136
      %v2256 = vunpack.c.l.b16 %v2140
      %v2257 = vunpack.c.l.b16 %v2143
      %v2258 = vunpack.c.l.b16 %v2147
      %v2259 = vunpack.c.l.b16 %v2150
      %v2260 = vunpack.c.l.b16 %v2154
      %v2261 = vunpack.c.l.b16 %v2157
      %v2262 = vunpack.c.l.b16 %v2161
      %v2263 = vunpack.c.l.b16 %v2164
      %v2264 = vunpack.c.l.b16 %v2168
      %v2265 = vunpack.c.l.b16 %v2171
      %v2266 = vunpack.c.l.b16 %v2175
      %v2267 = vunpack.c.l.b16 %v2178
      %v2268 = vunpack.c.l.b16 %v2182
      %v2269 = vunpack.c.l.b16 %v2185
      %v2270 = vunpack.c.l.b16 %v2189
      %v2271 = vunpack.c.l.b16 %v2192
      %v2272 = vunpack.c.l.b16 %v2196
      %v2273 = vunpack.c.l.b16 %v2199
      %v2274 = vunpack.c.l.b16 %v2203
      %v2275 = vunpack.c.l.b16 %v2206
      %v2276 = vunpack.c.l.b16 %v2210
      %v2277 = vunpack.c.l.b16 %v2213
      %v2278 = vunpack.c.l.b16 %v2217
      %v2279 = vunpack.c.l.b16 %v2220
      %v2280 = vunpack.c.l.b16 %v2224
      %v2281 = vunpack.c.l.b16 %v2227
      %v2282 = vunpack.c.l.b16 %v2231
      %v2283 = vunpack.c.l.b16 %v2234
      %v2284 = vpack.c.b16 %v2253, %v2252
      %v2285 = vpack.c.b16 %v2255, %v2254
      %v2286 = vpack.c.b16 %v2257, %v2256
      %v2287 = vpack.c.b16 %v2259, %v2258
      %v2288 = vpack.c.b16 %v2261, %v2260
      %v2289 = vpack.c.b16 %v2263, %v2262
      %v2290 = vpack.c.b16 %v2265, %v2264
      %v2291 = vpack.c.b16 %v2267, %v2266
      %v2292 = vpack.c.b16 %v2269, %v2268
      %v2293 = vpack.c.b16 %v2271, %v2270
      %v2294 = vpack.c.b16 %v2273, %v2272
      %v2295 = vpack.c.b16 %v2275, %v2274
      %v2296 = vpack.c.b16 %v2277, %v2276
      %v2297 = vpack.c.b16 %v2279, %v2278
      %v2298 = vpack.c.b16 %v2281, %v2280
      %v2299 = vpack.c.b16 %v2283, %v2282
      %v2332 = vunpack.c.l.b16 %v2236
      %v2333 = vunpack.c.l.b16 %v2237
      %v2334 = vunpack.c.l.b16 %v2238
      %v2335 = vunpack.c.l.b16 %v2239
      %v2336 = vunpack.c.l.b16 %v2240
      %v2337 = vunpack.c.l.b16 %v2241
      %v2338 = vunpack.c.l.b16 %v2242
      %v2339 = vunpack.c.l.b16 %v2243
      %v2340 = vunpack.c.l.b16 %v2244
      %v2341 = vunpack.c.l.b16 %v2245
      %v2342 = vunpack.c.l.b16 %v2246
      %v2343 = vunpack.c.l.b16 %v2247
      %v2344 = vunpack.c.l.b16 %v2248
      %v2345 = vunpack.c.l.b16 %v2249
      %v2346 = vunpack.c.l.b16 %v2250
      %v2347 = vunpack.c.l.b16 %v2251
      %v2348 = vpack.c.b16 %v2333, %v2332
      %v2349 = vpack.c.b16 %v2335, %v2334
      %v2350 = vpack.c.b16 %v2337, %v2336
      %v2351 = vpack.c.b16 %v2339, %v2338
      %v2352 = vpack.c.b16 %v2341, %v2340
      %v2353 = vpack.c.b16 %v2343, %v2342
      %v2354 = vpack.c.b16 %v2345, %v2344
      %v2355 = vpack.c.b16 %v2347, %v2346
      %2364 = vmatpush.bf16.msra.mxu0 %v2355
      %2365 = vmatpush.bf16.msra.mxu0 %v2354
      %2366 = vmatpush.bf16.msra.mxu0 %v2353
      %2367 = vmatpush.bf16.msra.mxu0 %v2352
      %2368 = vmatpush.bf16.msra.mxu0 %v2351
      %2369 = vmatpush.bf16.msra.mxu0 %v2350
      %2370 = vmatpush.bf16.msra.mxu0 %v2349
      %2371 = vmatpush.bf16.msra.mxu0 %v2348
      %2372 = vmatmul.bf16.gmra.mxu0 %v2284
      %v2373 = vpop.f32.mrf.mxu0
      %v2374 = vadd.f32 0.0, %v2373
      %v2375 = vpop.f32.mrf.mxu0
      %v2376 = vadd.f32 0.0, %v2375
      %2377 = vmatmul.bf16.gmra.mxu0 %v2285
      %v2378 = vpop.f32.mrf.mxu0
      %v2379 = vadd.f32 0.0, %v2378
      %v2380 = vpop.f32.mrf.mxu0
      %v2381 = vadd.f32 0.0, %v2380
      %2382 = vmatmul.bf16.gmra.mxu0 %v2286
      %v2383 = vpop.f32.mrf.mxu0
      %v2384 = vadd.f32 0.0, %v2383
      %v2385 = vpop.f32.mrf.mxu0
      %v2386 = vadd.f32 0.0, %v2385
      %2387 = vmatmul.bf16.gmra.mxu0 %v2287
      %v2388 = vpop.f32.mrf.mxu0
      %v2389 = vadd.f32 0.0, %v2388
      %v2390 = vpop.f32.mrf.mxu0
      %v2391 = vadd.f32 0.0, %v2390
      %2392 = vmatmul.bf16.gmra.mxu0 %v2288
      %v2393 = vpop.f32.mrf.mxu0
      %v2394 = vadd.f32 0.0, %v2393
      %v2395 = vpop.f32.mrf.mxu0
      %v2396 = vadd.f32 0.0, %v2395
      %2397 = vmatmul.bf16.gmra.mxu0 %v2289
      %v2398 = vpop.f32.mrf.mxu0
      %v2399 = vadd.f32 0.0, %v2398
      %v2400 = vpop.f32.mrf.mxu0
      %v2401 = vadd.f32 0.0, %v2400
      %2402 = vmatmul.bf16.gmra.mxu0 %v2290
      %v2403 = vpop.f32.mrf.mxu0
      %v2404 = vadd.f32 0.0, %v2403
      %v2405 = vpop.f32.mrf.mxu0
      %v2406 = vadd.f32 0.0, %v2405
      %2407 = vmatmul.bf16.gmra.mxu0 %v2291
      %v2408 = vpop.f32.mrf.mxu0
      %v2409 = vadd.f32 0.0, %v2408
      %v2410 = vpop.f32.mrf.mxu0
      %v2411 = vadd.f32 0.0, %v2410
      %2412 = vmatmul.bf16.gmra.mxu0 %v2292
      %v2413 = vpop.f32.mrf.mxu0
      %v2414 = vadd.f32 0.0, %v2413
      %v2415 = vpop.f32.mrf.mxu0
      %v2416 = vadd.f32 0.0, %v2415
      %2417 = vmatmul.bf16.gmra.mxu0 %v2293
      %v2418 = vpop.f32.mrf.mxu0
      %v2419 = vadd.f32 0.0, %v2418
      %v2420 = vpop.f32.mrf.mxu0
      %v2421 = vadd.f32 0.0, %v2420
      %2422 = vmatmul.bf16.gmra.mxu0 %v2294
      %v2423 = vpop.f32.mrf.mxu0
      %v2424 = vadd.f32 0.0, %v2423
      %v2425 = vpop.f32.mrf.mxu0
      %v2426 = vadd.f32 0.0, %v2425
      %2427 = vmatmul.bf16.gmra.mxu0 %v2295
      %v2428 = vpop.f32.mrf.mxu0
      %v2429 = vadd.f32 0.0, %v2428
      %v2430 = vpop.f32.mrf.mxu0
      %v2431 = vadd.f32 0.0, %v2430
      %2432 = vmatmul.bf16.gmra.mxu0 %v2296
      %v2433 = vpop.f32.mrf.mxu0
      %v2434 = vadd.f32 0.0, %v2433
      %v2435 = vpop.f32.mrf.mxu0
      %v2436 = vadd.f32 0.0, %v2435
      %2437 = vmatmul.bf16.gmra.mxu0 %v2297
      %v2438 = vpop.f32.mrf.mxu0
      %v2439 = vadd.f32 0.0, %v2438
      %v2440 = vpop.f32.mrf.mxu0
      %v2441 = vadd.f32 0.0, %v2440
      %2442 = vmatmul.bf16.gmra.mxu0 %v2298
      %v2443 = vpop.f32.mrf.mxu0
      %v2444 = vadd.f32 0.0, %v2443
      %v2445 = vpop.f32.mrf.mxu0
      %v2446 = vadd.f32 0.0, %v2445
      %2447 = vmatmul.bf16.gmra.mxu0 %v2299
      %v2448 = vpop.f32.mrf.mxu0
      %v2449 = vadd.f32 0.0, %v2448
      %v2450 = vpop.f32.mrf.mxu0
      %v2451 = vadd.f32 0.0, %v2450
      %2452 = vdwg.mxu0
      %v2453 = vld [vmem:[#allocation4] sm:$0xff]
      %v2454 = vld [vmem:[#allocation4 + $0x8] sm:$0xff]
      %v2455 = vld [vmem:[#allocation4 + $0x10] sm:$0xff]
      %v2456 = vld [vmem:[#allocation4 + $0x18] sm:$0xff]
      %v2457 = vld [vmem:[#allocation4 + $0x20] sm:$0xff]
      %v2458 = vld [vmem:[#allocation4 + $0x28] sm:$0xff]
      %v2459 = vld [vmem:[#allocation4 + $0x30] sm:$0xff]
      %v2460 = vld [vmem:[#allocation4 + $0x38] sm:$0xff]
      %v2461 = vld [vmem:[#allocation4 + $0x40] sm:$0xff]
      %v2462 = vld [vmem:[#allocation4 + $0x48] sm:$0xff]
      %v2463 = vld [vmem:[#allocation4 + $0x50] sm:$0xff]
      %v2464 = vld [vmem:[#allocation4 + $0x58] sm:$0xff]
      %v2465 = vld [vmem:[#allocation4 + $0x60] sm:$0xff]
      %v2466 = vld [vmem:[#allocation4 + $0x68] sm:$0xff]
      %v2467 = vld [vmem:[#allocation4 + $0x70] sm:$0xff]
      %v2468 = vld [vmem:[#allocation4 + $0x78] sm:$0xff]
      %v2469 = vld [vmem:[#allocation4 + $0x80] sm:$0xff]
      %v2470 = vld [vmem:[#allocation4 + $0x88] sm:$0xff]
      %v2471 = vld [vmem:[#allocation4 + $0x90] sm:$0xff]
      %v2472 = vld [vmem:[#allocation4 + $0x98] sm:$0xff]
      %v2473 = vld [vmem:[#allocation4 + $0xa0] sm:$0xff]
      %v2474 = vld [vmem:[#allocation4 + $0xa8] sm:$0xff]
      %v2475 = vld [vmem:[#allocation4 + $0xb0] sm:$0xff]
      %v2476 = vld [vmem:[#allocation4 + $0xb8] sm:$0xff]
      %v2477 = vld [vmem:[#allocation4 + $0xc0] sm:$0xff]
      %v2478 = vld [vmem:[#allocation4 + $0xc8] sm:$0xff]
      %v2479 = vld [vmem:[#allocation4 + $0xd0] sm:$0xff]
      %v2480 = vld [vmem:[#allocation4 + $0xd8] sm:$0xff]
      %v2481 = vld [vmem:[#allocation4 + $0xe0] sm:$0xff]
      %v2482 = vld [vmem:[#allocation4 + $0xe8] sm:$0xff]
      %v2483 = vld [vmem:[#allocation4 + $0xf0] sm:$0xff]
      %v2484 = vld [vmem:[#allocation4 + $0xf8] sm:$0xff]
      %v2485 = vadd.f32 %v2453, %v2374
      %v2486 = vadd.f32 %v2454, %v2376
      %v2487 = vadd.f32 %v2455, %v2379
      %v2488 = vadd.f32 %v2456, %v2381
      %v2489 = vadd.f32 %v2457, %v2384
      %v2490 = vadd.f32 %v2458, %v2386
      %v2491 = vadd.f32 %v2459, %v2389
      %v2492 = vadd.f32 %v2460, %v2391
      %v2493 = vadd.f32 %v2461, %v2394
      %v2494 = vadd.f32 %v2462, %v2396
      %v2495 = vadd.f32 %v2463, %v2399
      %v2496 = vadd.f32 %v2464, %v2401
      %v2497 = vadd.f32 %v2465, %v2404
      %v2498 = vadd.f32 %v2466, %v2406
      %v2499 = vadd.f32 %v2467, %v2409
      %v2500 = vadd.f32 %v2468, %v2411
      %v2501 = vadd.f32 %v2469, %v2414
      %v2502 = vadd.f32 %v2470, %v2416
      %v2503 = vadd.f32 %v2471, %v2419
      %v2504 = vadd.f32 %v2472, %v2421
      %v2505 = vadd.f32 %v2473, %v2424
      %v2506 = vadd.f32 %v2474, %v2426
      %v2507 = vadd.f32 %v2475, %v2429
      %v2508 = vadd.f32 %v2476, %v2431
      %v2509 = vadd.f32 %v2477, %v2434
      %v2510 = vadd.f32 %v2478, %v2436
      %v2511 = vadd.f32 %v2479, %v2439
      %v2512 = vadd.f32 %v2480, %v2441
      %v2513 = vadd.f32 %v2481, %v2444
      %v2514 = vadd.f32 %v2482, %v2446
      %v2515 = vadd.f32 %v2483, %v2449
      %v2516 = vadd.f32 %v2484, %v2451
      %2517 = vst [vmem:[#allocation4] sm:$0xff] %v2485
      %2518 = vst [vmem:[#allocation4 + $0x8] sm:$0xff] %v2486
      %2519 = vst [vmem:[#allocation4 + $0x10] sm:$0xff] %v2487
      %2520 = vst [vmem:[#allocation4 + $0x18] sm:$0xff] %v2488
      %2521 = vst [vmem:[#allocation4 + $0x20] sm:$0xff] %v2489
      %2522 = vst [vmem:[#allocation4 + $0x28] sm:$0xff] %v2490
      %2523 = vst [vmem:[#allocation4 + $0x30] sm:$0xff] %v2491
      %2524 = vst [vmem:[#allocation4 + $0x38] sm:$0xff] %v2492
      %2525 = vst [vmem:[#allocation4 + $0x40] sm:$0xff] %v2493
      %2526 = vst [vmem:[#allocation4 + $0x48] sm:$0xff] %v2494
      %2527 = vst [vmem:[#allocation4 + $0x50] sm:$0xff] %v2495
      %2528 = vst [vmem:[#allocation4 + $0x58] sm:$0xff] %v2496
      %2529 = vst [vmem:[#allocation4 + $0x60] sm:$0xff] %v2497
      %2530 = vst [vmem:[#allocation4 + $0x68] sm:$0xff] %v2498
      %2531 = vst [vmem:[#allocation4 + $0x70] sm:$0xff] %v2499
      %2532 = vst [vmem:[#allocation4 + $0x78] sm:$0xff] %v2500
      %2533 = vst [vmem:[#allocation4 + $0x80] sm:$0xff] %v2501
      %2534 = vst [vmem:[#allocation4 + $0x88] sm:$0xff] %v2502
      %2535 = vst [vmem:[#allocation4 + $0x90] sm:$0xff] %v2503
      %2536 = vst [vmem:[#allocation4 + $0x98] sm:$0xff] %v2504
      %2537 = vst [vmem:[#allocation4 + $0xa0] sm:$0xff] %v2505
      %2538 = vst [vmem:[#allocation4 + $0xa8] sm:$0xff] %v2506
      %2539 = vst [vmem:[#allocation4 + $0xb0] sm:$0xff] %v2507
      %2540 = vst [vmem:[#allocation4 + $0xb8] sm:$0xff] %v2508
      %2541 = vst [vmem:[#allocation4 + $0xc0] sm:$0xff] %v2509
      %2542 = vst [vmem:[#allocation4 + $0xc8] sm:$0xff] %v2510
      %2543 = vst [vmem:[#allocation4 + $0xd0] sm:$0xff] %v2511
      %2544 = vst [vmem:[#allocation4 + $0xd8] sm:$0xff] %v2512
      %2545 = vst [vmem:[#allocation4 + $0xe0] sm:$0xff] %v2513
      %2546 = vst [vmem:[#allocation4 + $0xe8] sm:$0xff] %v2514
      %2547 = vst [vmem:[#allocation4 + $0xf0] sm:$0xff] %v2515
      %2548 = vst [vmem:[#allocation4 + $0xf8] sm:$0xff] %v2516
      %v2549 = vld [vmem:[%s847] sm:$0xf]
      %v2550 = vld [vmem:[%s847 + $0x4] sm:$0xf]
      %v2551 = vld [vmem:[%s847 + $0xc] sm:$0xf]
      %v2552 = vld [vmem:[%s847 + $0x10] sm:$0xf]
      %v2553 = vld [vmem:[%s847 + $0x18] sm:$0xf]
      %v2554 = vld [vmem:[%s847 + $0x1c] sm:$0xf]
      %v2555 = vld [vmem:[%s847 + $0x24] sm:$0xf]
      %v2556 = vld [vmem:[%s847 + $0x28] sm:$0xf]
      %v2557 = vld [vmem:[%s847 + $0x30] sm:$0xf]
      %v2558 = vld [vmem:[%s847 + $0x34] sm:$0xf]
      %v2559 = vld [vmem:[%s847 + $0x3c] sm:$0xf]
      %v2560 = vld [vmem:[%s847 + $0x40] sm:$0xf]
      %v2561 = vld [vmem:[%s847 + $0x48] sm:$0xf]
      %v2562 = vld [vmem:[%s847 + $0x4c] sm:$0xf]
      %v2563 = vld [vmem:[%s847 + $0x54] sm:$0xf]
      %v2564 = vld [vmem:[%s847 + $0x58] sm:$0xf]
      %v2565 = vld [vmem:[%s847 + $0x60] sm:$0xf]
      %v2566 = vld [vmem:[%s847 + $0x64] sm:$0xf]
      %v2567 = vld [vmem:[%s847 + $0x6c] sm:$0xf]
      %v2568 = vld [vmem:[%s847 + $0x70] sm:$0xf]
      %v2569 = vld [vmem:[%s847 + $0x78] sm:$0xf]
      %v2570 = vld [vmem:[%s847 + $0x7c] sm:$0xf]
      %v2571 = vld [vmem:[%s847 + $0x84] sm:$0xf]
      %v2572 = vld [vmem:[%s847 + $0x88] sm:$0xf]
      %v2573 = vld [vmem:[%s847 + $0x90] sm:$0xf]
      %v2574 = vld [vmem:[%s847 + $0x94] sm:$0xf]
      %v2575 = vld [vmem:[%s847 + $0x9c] sm:$0xf]
      %v2576 = vld [vmem:[%s847 + $0xa0] sm:$0xf]
      %v2577 = vld [vmem:[%s847 + $0xa8] sm:$0xf]
      %v2578 = vld [vmem:[%s847 + $0xac] sm:$0xf]
      %v2579 = vld [vmem:[%s847 + $0xb4] sm:$0xf]
      %v2580 = vld [vmem:[%s847 + $0xb8] sm:$0xf]
      %s2581 = scalar_lea.vmem %s1, 192
      %v2582 = vld [vmem:[%s2581] sm:$0xf]
      %v2583 = vld [vmem:[%s2581 + $0x4] sm:$0xf]
      %v2584 = vld [vmem:[%s2581 + $0x8] sm:$0xf]
      %v2585 = vld [vmem:[%s2581 + $0xc] sm:$0xf]
      %v2586 = vld [vmem:[%s2581 + $0x10] sm:$0xf]
      %v2587 = vld [vmem:[%s2581 + $0x14] sm:$0xf]
      %v2588 = vld [vmem:[%s2581 + $0x18] sm:$0xf]
      %v2589 = vld [vmem:[%s2581 + $0x1c] sm:$0xf]
      %v2590 = vld [vmem:[%s2581 + $0x20] sm:$0xf]
      %v2591 = vld [vmem:[%s2581 + $0x24] sm:$0xf]
      %v2592 = vld [vmem:[%s2581 + $0x28] sm:$0xf]
      %v2593 = vld [vmem:[%s2581 + $0x2c] sm:$0xf]
      %v2594 = vld [vmem:[%s2581 + $0x30] sm:$0xf]
      %v2595 = vld [vmem:[%s2581 + $0x34] sm:$0xf]
      %v2596 = vld [vmem:[%s2581 + $0x38] sm:$0xf]
      %v2597 = vld [vmem:[%s2581 + $0x3c] sm:$0xf]
      %v2630 = vunpack.c.l.b16 %v2549
      %v2631 = vunpack.c.l.b16 %v2550
      %v2632 = vunpack.c.l.b16 %v2551
      %v2633 = vunpack.c.l.b16 %v2552
      %v2634 = vunpack.c.l.b16 %v2553
      %v2635 = vunpack.c.l.b16 %v2554
      %v2636 = vunpack.c.l.b16 %v2555
      %v2637 = vunpack.c.l.b16 %v2556
      %v2638 = vunpack.c.l.b16 %v2557
      %v2639 = vunpack.c.l.b16 %v2558
      %v2640 = vunpack.c.l.b16 %v2559
      %v2641 = vunpack.c.l.b16 %v2560
      %v2642 = vunpack.c.l.b16 %v2561
      %v2643 = vunpack.c.l.b16 %v2562
      %v2644 = vunpack.c.l.b16 %v2563
      %v2645 = vunpack.c.l.b16 %v2564
      %v2646 = vunpack.c.l.b16 %v2565
      %v2647 = vunpack.c.l.b16 %v2566
      %v2648 = vunpack.c.l.b16 %v2567
      %v2649 = vunpack.c.l.b16 %v2568
      %v2650 = vunpack.c.l.b16 %v2569
      %v2651 = vunpack.c.l.b16 %v2570
      %v2652 = vunpack.c.l.b16 %v2571
      %v2653 = vunpack.c.l.b16 %v2572
      %v2654 = vunpack.c.l.b16 %v2573
      %v2655 = vunpack.c.l.b16 %v2574
      %v2656 = vunpack.c.l.b16 %v2575
      %v2657 = vunpack.c.l.b16 %v2576
      %v2658 = vunpack.c.l.b16 %v2577
      %v2659 = vunpack.c.l.b16 %v2578
      %v2660 = vunpack.c.l.b16 %v2579
      %v2661 = vunpack.c.l.b16 %v2580
      %v2662 = vpack.c.b16 %v2631, %v2630
      %v2663 = vpack.c.b16 %v2633, %v2632
      %v2664 = vpack.c.b16 %v2635, %v2634
      %v2665 = vpack.c.b16 %v2637, %v2636
      %v2666 = vpack.c.b16 %v2639, %v2638
      %v2667 = vpack.c.b16 %v2641, %v2640
      %v2668 = vpack.c.b16 %v2643, %v2642
      %v2669 = vpack.c.b16 %v2645, %v2644
      %v2670 = vpack.c.b16 %v2647, %v2646
      %v2671 = vpack.c.b16 %v2649, %v2648
      %v2672 = vpack.c.b16 %v2651, %v2650
      %v2673 = vpack.c.b16 %v2653, %v2652
      %v2674 = vpack.c.b16 %v2655, %v2654
      %v2675 = vpack.c.b16 %v2657, %v2656
      %v2676 = vpack.c.b16 %v2659, %v2658
      %v2677 = vpack.c.b16 %v2661, %v2660
      %v2710 = vunpack.c.l.b16 %v2582
      %v2711 = vunpack.c.l.b16 %v2583
      %v2712 = vunpack.c.l.b16 %v2584
      %v2713 = vunpack.c.l.b16 %v2585
      %v2714 = vunpack.c.l.b16 %v2586
      %v2715 = vunpack.c.l.b16 %v2587
      %v2716 = vunpack.c.l.b16 %v2588
      %v2717 = vunpack.c.l.b16 %v2589
      %v2718 = vunpack.c.l.b16 %v2590
      %v2719 = vunpack.c.l.b16 %v2591
      %v2720 = vunpack.c.l.b16 %v2592
      %v2721 = vunpack.c.l.b16 %v2593
      %v2722 = vunpack.c.l.b16 %v2594
      %v2723 = vunpack.c.l.b16 %v2595
      %v2724 = vunpack.c.l.b16 %v2596
      %v2725 = vunpack.c.l.b16 %v2597
      %v2726 = vpack.c.b16 %v2711, %v2710
      %v2727 = vpack.c.b16 %v2713, %v2712
      %v2728 = vpack.c.b16 %v2715, %v2714
      %v2729 = vpack.c.b16 %v2717, %v2716
      %v2730 = vpack.c.b16 %v2719, %v2718
      %v2731 = vpack.c.b16 %v2721, %v2720
      %v2732 = vpack.c.b16 %v2723, %v2722
      %v2733 = vpack.c.b16 %v2725, %v2724
      %2742 = vmatpush.bf16.msra.mxu0 %v2733
      %2743 = vmatpush.bf16.msra.mxu0 %v2732
      %2744 = vmatpush.bf16.msra.mxu0 %v2731
      %2745 = vmatpush.bf16.msra.mxu0 %v2730
      %2746 = vmatpush.bf16.msra.mxu0 %v2729
      %2747 = vmatpush.bf16.msra.mxu0 %v2728
      %2748 = vmatpush.bf16.msra.mxu0 %v2727
      %2749 = vmatpush.bf16.msra.mxu0 %v2726
      %2750 = vmatmul.bf16.gmra.mxu0 %v2662
      %v2751 = vpop.f32.mrf.mxu0
      %v2752 = vadd.f32 0.0, %v2751
      %v2753 = vpop.f32.mrf.mxu0
      %v2754 = vadd.f32 0.0, %v2753
      %2755 = vmatmul.bf16.gmra.mxu0 %v2663
      %v2756 = vpop.f32.mrf.mxu0
      %v2757 = vadd.f32 0.0, %v2756
      %v2758 = vpop.f32.mrf.mxu0
      %v2759 = vadd.f32 0.0, %v2758
      %2760 = vmatmul.bf16.gmra.mxu0 %v2664
      %v2761 = vpop.f32.mrf.mxu0
      %v2762 = vadd.f32 0.0, %v2761
      %v2763 = vpop.f32.mrf.mxu0
      %v2764 = vadd.f32 0.0, %v2763
      %2765 = vmatmul.bf16.gmra.mxu0 %v2665
      %v2766 = vpop.f32.mrf.mxu0
      %v2767 = vadd.f32 0.0, %v2766
      %v2768 = vpop.f32.mrf.mxu0
      %v2769 = vadd.f32 0.0, %v2768
      %2770 = vmatmul.bf16.gmra.mxu0 %v2666
      %v2771 = vpop.f32.mrf.mxu0
      %v2772 = vadd.f32 0.0, %v2771
      %v2773 = vpop.f32.mrf.mxu0
      %v2774 = vadd.f32 0.0, %v2773
      %2775 = vmatmul.bf16.gmra.mxu0 %v2667
      %v2776 = vpop.f32.mrf.mxu0
      %v2777 = vadd.f32 0.0, %v2776
      %v2778 = vpop.f32.mrf.mxu0
      %v2779 = vadd.f32 0.0, %v2778
      %2780 = vmatmul.bf16.gmra.mxu0 %v2668
      %v2781 = vpop.f32.mrf.mxu0
      %v2782 = vadd.f32 0.0, %v2781
      %v2783 = vpop.f32.mrf.mxu0
      %v2784 = vadd.f32 0.0, %v2783
      %2785 = vmatmul.bf16.gmra.mxu0 %v2669
      %v2786 = vpop.f32.mrf.mxu0
      %v2787 = vadd.f32 0.0, %v2786
      %v2788 = vpop.f32.mrf.mxu0
      %v2789 = vadd.f32 0.0, %v2788
      %2790 = vmatmul.bf16.gmra.mxu0 %v2670
      %v2791 = vpop.f32.mrf.mxu0
      %v2792 = vadd.f32 0.0, %v2791
      %v2793 = vpop.f32.mrf.mxu0
      %v2794 = vadd.f32 0.0, %v2793
      %2795 = vmatmul.bf16.gmra.mxu0 %v2671
      %v2796 = vpop.f32.mrf.mxu0
      %v2797 = vadd.f32 0.0, %v2796
      %v2798 = vpop.f32.mrf.mxu0
      %v2799 = vadd.f32 0.0, %v2798
      %2800 = vmatmul.bf16.gmra.mxu0 %v2672
      %v2801 = vpop.f32.mrf.mxu0
      %v2802 = vadd.f32 0.0, %v2801
      %v2803 = vpop.f32.mrf.mxu0
      %v2804 = vadd.f32 0.0, %v2803
      %2805 = vmatmul.bf16.gmra.mxu0 %v2673
      %v2806 = vpop.f32.mrf.mxu0
      %v2807 = vadd.f32 0.0, %v2806
      %v2808 = vpop.f32.mrf.mxu0
      %v2809 = vadd.f32 0.0, %v2808
      %2810 = vmatmul.bf16.gmra.mxu0 %v2674
      %v2811 = vpop.f32.mrf.mxu0
      %v2812 = vadd.f32 0.0, %v2811
      %v2813 = vpop.f32.mrf.mxu0
      %v2814 = vadd.f32 0.0, %v2813
      %2815 = vmatmul.bf16.gmra.mxu0 %v2675
      %v2816 = vpop.f32.mrf.mxu0
      %v2817 = vadd.f32 0.0, %v2816
      %v2818 = vpop.f32.mrf.mxu0
      %v2819 = vadd.f32 0.0, %v2818
      %2820 = vmatmul.bf16.gmra.mxu0 %v2676
      %v2821 = vpop.f32.mrf.mxu0
      %v2822 = vadd.f32 0.0, %v2821
      %v2823 = vpop.f32.mrf.mxu0
      %v2824 = vadd.f32 0.0, %v2823
      %2825 = vmatmul.bf16.gmra.mxu0 %v2677
      %v2826 = vpop.f32.mrf.mxu0
      %v2827 = vadd.f32 0.0, %v2826
      %v2828 = vpop.f32.mrf.mxu0
      %v2829 = vadd.f32 0.0, %v2828
      %2830 = vdwg.mxu0
      %v2831 = vld [vmem:[#allocation4] sm:$0xff]
      %v2832 = vld [vmem:[#allocation4 + $0x8] sm:$0xff]
      %v2833 = vld [vmem:[#allocation4 + $0x10] sm:$0xff]
      %v2834 = vld [vmem:[#allocation4 + $0x18] sm:$0xff]
      %v2835 = vld [vmem:[#allocation4 + $0x20] sm:$0xff]
      %v2836 = vld [vmem:[#allocation4 + $0x28] sm:$0xff]
      %v2837 = vld [vmem:[#allocation4 + $0x30] sm:$0xff]
      %v2838 = vld [vmem:[#allocation4 + $0x38] sm:$0xff]
      %v2839 = vld [vmem:[#allocation4 + $0x40] sm:$0xff]
      %v2840 = vld [vmem:[#allocation4 + $0x48] sm:$0xff]
      %v2841 = vld [vmem:[#allocation4 + $0x50] sm:$0xff]
      %v2842 = vld [vmem:[#allocation4 + $0x58] sm:$0xff]
      %v2843 = vld [vmem:[#allocation4 + $0x60] sm:$0xff]
      %v2844 = vld [vmem:[#allocation4 + $0x68] sm:$0xff]
      %v2845 = vld [vmem:[#allocation4 + $0x70] sm:$0xff]
      %v2846 = vld [vmem:[#allocation4 + $0x78] sm:$0xff]
      %v2847 = vld [vmem:[#allocation4 + $0x80] sm:$0xff]
      %v2848 = vld [vmem:[#allocation4 + $0x88] sm:$0xff]
      %v2849 = vld [vmem:[#allocation4 + $0x90] sm:$0xff]
      %v2850 = vld [vmem:[#allocation4 + $0x98] sm:$0xff]
      %v2851 = vld [vmem:[#allocation4 + $0xa0] sm:$0xff]
      %v2852 = vld [vmem:[#allocation4 + $0xa8] sm:$0xff]
      %v2853 = vld [vmem:[#allocation4 + $0xb0] sm:$0xff]
      %v2854 = vld [vmem:[#allocation4 + $0xb8] sm:$0xff]
      %v2855 = vld [vmem:[#allocation4 + $0xc0] sm:$0xff]
      %v2856 = vld [vmem:[#allocation4 + $0xc8] sm:$0xff]
      %v2857 = vld [vmem:[#allocation4 + $0xd0] sm:$0xff]
      %v2858 = vld [vmem:[#allocation4 + $0xd8] sm:$0xff]
      %v2859 = vld [vmem:[#allocation4 + $0xe0] sm:$0xff]
      %v2860 = vld [vmem:[#allocation4 + $0xe8] sm:$0xff]
      %v2861 = vld [vmem:[#allocation4 + $0xf0] sm:$0xff]
      %v2862 = vld [vmem:[#allocation4 + $0xf8] sm:$0xff]
      %v2863 = vadd.f32 %v2831, %v2752
      %v2864 = vadd.f32 %v2832, %v2754
      %v2865 = vadd.f32 %v2833, %v2757
      %v2866 = vadd.f32 %v2834, %v2759
      %v2867 = vadd.f32 %v2835, %v2762
      %v2868 = vadd.f32 %v2836, %v2764
      %v2869 = vadd.f32 %v2837, %v2767
      %v2870 = vadd.f32 %v2838, %v2769
      %v2871 = vadd.f32 %v2839, %v2772
      %v2872 = vadd.f32 %v2840, %v2774
      %v2873 = vadd.f32 %v2841, %v2777
      %v2874 = vadd.f32 %v2842, %v2779
      %v2875 = vadd.f32 %v2843, %v2782
      %v2876 = vadd.f32 %v2844, %v2784
      %v2877 = vadd.f32 %v2845, %v2787
      %v2878 = vadd.f32 %v2846, %v2789
      %v2879 = vadd.f32 %v2847, %v2792
      %v2880 = vadd.f32 %v2848, %v2794
      %v2881 = vadd.f32 %v2849, %v2797
      %v2882 = vadd.f32 %v2850, %v2799
      %v2883 = vadd.f32 %v2851, %v2802
      %v2884 = vadd.f32 %v2852, %v2804
      %v2885 = vadd.f32 %v2853, %v2807
      %v2886 = vadd.f32 %v2854, %v2809
      %v2887 = vadd.f32 %v2855, %v2812
      %v2888 = vadd.f32 %v2856, %v2814
      %v2889 = vadd.f32 %v2857, %v2817
      %v2890 = vadd.f32 %v2858, %v2819
      %v2891 = vadd.f32 %v2859, %v2822
      %v2892 = vadd.f32 %v2860, %v2824
      %v2893 = vadd.f32 %v2861, %v2827
      %v2894 = vadd.f32 %v2862, %v2829
      %2895 = vst [vmem:[#allocation4] sm:$0xff] %v2863
      %2896 = vst [vmem:[#allocation4 + $0x8] sm:$0xff] %v2864
      %2897 = vst [vmem:[#allocation4 + $0x10] sm:$0xff] %v2865
      %2898 = vst [vmem:[#allocation4 + $0x18] sm:$0xff] %v2866
      %2899 = vst [vmem:[#allocation4 + $0x20] sm:$0xff] %v2867
      %2900 = vst [vmem:[#allocation4 + $0x28] sm:$0xff] %v2868
      %2901 = vst [vmem:[#allocation4 + $0x30] sm:$0xff] %v2869
      %2902 = vst [vmem:[#allocation4 + $0x38] sm:$0xff] %v2870
      %2903 = vst [vmem:[#allocation4 + $0x40] sm:$0xff] %v2871
      %2904 = vst [vmem:[#allocation4 + $0x48] sm:$0xff] %v2872
      %2905 = vst [vmem:[#allocation4 + $0x50] sm:$0xff] %v2873
      %2906 = vst [vmem:[#allocation4 + $0x58] sm:$0xff] %v2874
      %2907 = vst [vmem:[#allocation4 + $0x60] sm:$0xff] %v2875
      %2908 = vst [vmem:[#allocation4 + $0x68] sm:$0xff] %v2876
      %2909 = vst [vmem:[#allocation4 + $0x70] sm:$0xff] %v2877
      %2910 = vst [vmem:[#allocation4 + $0x78] sm:$0xff] %v2878
      %2911 = vst [vmem:[#allocation4 + $0x80] sm:$0xff] %v2879
      %2912 = vst [vmem:[#allocation4 + $0x88] sm:$0xff] %v2880
      %2913 = vst [vmem:[#allocation4 + $0x90] sm:$0xff] %v2881
      %2914 = vst [vmem:[#allocation4 + $0x98] sm:$0xff] %v2882
      %2915 = vst [vmem:[#allocation4 + $0xa0] sm:$0xff] %v2883
      %2916 = vst [vmem:[#allocation4 + $0xa8] sm:$0xff] %v2884
      %2917 = vst [vmem:[#allocation4 + $0xb0] sm:$0xff] %v2885
      %2918 = vst [vmem:[#allocation4 + $0xb8] sm:$0xff] %v2886
      %2919 = vst [vmem:[#allocation4 + $0xc0] sm:$0xff] %v2887
      %2920 = vst [vmem:[#allocation4 + $0xc8] sm:$0xff] %v2888
      %2921 = vst [vmem:[#allocation4 + $0xd0] sm:$0xff] %v2889
      %2922 = vst [vmem:[#allocation4 + $0xd8] sm:$0xff] %v2890
      %2923 = vst [vmem:[#allocation4 + $0xe0] sm:$0xff] %v2891
      %2924 = vst [vmem:[#allocation4 + $0xe8] sm:$0xff] %v2892
      %2925 = vst [vmem:[#allocation4 + $0xf0] sm:$0xff] %v2893
      %2926 = vst [vmem:[#allocation4 + $0xf8] sm:$0xff] %v2894
      %v2927 = vld [vmem:[%s847] sm:$0xf]
      %v2928 = vld [vmem:[%s847 + $0x4] sm:$0xf]
      %v2929 = vld [vmem:[%s847 + $0x8] sm:$0x1]
      %v2930 = vld [vmem:[%s847 + $0xc] sm:$0xf]
      %v2931 = vld [vmem:[%s847 + $0x10] sm:$0xf]
      %v2932 = vld [vmem:[%s847 + $0x14] sm:$0x1]
      %v2933 = vld [vmem:[%s847 + $0x18] sm:$0xf]
      %v2934 = vld [vmem:[%s847 + $0x1c] sm:$0xf]
      %v2935 = vld [vmem:[%s847 + $0x20] sm:$0x1]
      %v2936 = vld [vmem:[%s847 + $0x24] sm:$0xf]
      %v2937 = vld [vmem:[%s847 + $0x28] sm:$0xf]
      %v2938 = vld [vmem:[%s847 + $0x2c] sm:$0x1]
      %v2939 = vld [vmem:[%s847 + $0x30] sm:$0xf]
      %v2940 = vld [vmem:[%s847 + $0x34] sm:$0xf]
      %v2941 = vld [vmem:[%s847 + $0x38] sm:$0x1]
      %v2942 = vld [vmem:[%s847 + $0x3c] sm:$0xf]
      %v2943 = vld [vmem:[%s847 + $0x40] sm:$0xf]
      %v2944 = vld [vmem:[%s847 + $0x44] sm:$0x1]
      %v2945 = vld [vmem:[%s847 + $0x48] sm:$0xf]
      %v2946 = vld [vmem:[%s847 + $0x4c] sm:$0xf]
      %v2947 = vld [vmem:[%s847 + $0x50] sm:$0x1]
      %v2948 = vld [vmem:[%s847 + $0x54] sm:$0xf]
      %v2949 = vld [vmem:[%s847 + $0x58] sm:$0xf]
      %v2950 = vld [vmem:[%s847 + $0x5c] sm:$0x1]
      %v2951 = vld [vmem:[%s847 + $0x60] sm:$0xf]
      %v2952 = vld [vmem:[%s847 + $0x64] sm:$0xf]
      %v2953 = vld [vmem:[%s847 + $0x68] sm:$0x1]
      %v2954 = vld [vmem:[%s847 + $0x6c] sm:$0xf]
      %v2955 = vld [vmem:[%s847 + $0x70] sm:$0xf]
      %v2956 = vld [vmem:[%s847 + $0x74] sm:$0x1]
      %v2957 = vld [vmem:[%s847 + $0x78] sm:$0xf]
      %v2958 = vld [vmem:[%s847 + $0x7c] sm:$0xf]
      %v2959 = vld [vmem:[%s847 + $0x80] sm:$0x1]
      %v2960 = vld [vmem:[%s847 + $0x84] sm:$0xf]
      %v2961 = vld [vmem:[%s847 + $0x88] sm:$0xf]
      %v2962 = vld [vmem:[%s847 + $0x8c] sm:$0x1]
      %v2963 = vld [vmem:[%s847 + $0x90] sm:$0xf]
      %v2964 = vld [vmem:[%s847 + $0x94] sm:$0xf]
      %v2965 = vld [vmem:[%s847 + $0x98] sm:$0x1]
      %v2966 = vld [vmem:[%s847 + $0x9c] sm:$0xf]
      %v2967 = vld [vmem:[%s847 + $0xa0] sm:$0xf]
      %v2968 = vld [vmem:[%s847 + $0xa4] sm:$0x1]
      %v2969 = vld [vmem:[%s847 + $0xa8] sm:$0xf]
      %v2970 = vld [vmem:[%s847 + $0xac] sm:$0xf]
      %v2971 = vld [vmem:[%s847 + $0xb0] sm:$0x1]
      %v2972 = vld [vmem:[%s847 + $0xb4] sm:$0xf]
      %v2973 = vld [vmem:[%s847 + $0xb8] sm:$0xf]
      %v2974 = vld [vmem:[%s847 + $0xbc] sm:$0x1]
      %v2976 = vshrl.u32 %v2927, 16
      %v2978 = vrot.slane %v2976, 4
      %v2979 = vshll.u32 %v2927, 16
      %v2981 = vrot.slane %v2979, 5
      %v2982 = vor.u32 %v2978, %v2981
      %v2983 = vrot.slane %v2982, 4
      %v2985 = vshll.u32 %v2928, 16
      %v2987 = vrot.slane %v2985, 5
      %v2988 = vsel %vm1325, %v2983, %v2987
      %v2989 = vshrl.u32 %v2928, 16
      %v2991 = vrot.slane %v2989, 4
      %v2992 = vor.u32 %v2991, %v2987
      %v2993 = vrot.slane %v2992, 4
      %v2995 = vshll.u32 %v2929, 16
      %v2997 = vrot.slane %v2995, 5
      %v2998 = vsel %vm1325, %v2993, %v2997
      %v3000 = vshrl.u32 %v2930, 16
      %v3002 = vrot.slane %v3000, 4
      %v3003 = vshll.u32 %v2930, 16
      %v3005 = vrot.slane %v3003, 5
      %v3006 = vor.u32 %v3002, %v3005
      %v3007 = vrot.slane %v3006, 4
      %v3009 = vshll.u32 %v2931, 16
      %v3011 = vrot.slane %v3009, 5
      %v3012 = vsel %vm1325, %v3007, %v3011
      %v3013 = vshrl.u32 %v2931, 16
      %v3015 = vrot.slane %v3013, 4
      %v3016 = vor.u32 %v3015, %v3011
      %v3017 = vrot.slane %v3016, 4
      %v3019 = vshll.u32 %v2932, 16
      %v3021 = vrot.slane %v3019, 5
      %v3022 = vsel %vm1325, %v3017, %v3021
      %v3024 = vshrl.u32 %v2933, 16
      %v3026 = vrot.slane %v3024, 4
      %v3027 = vshll.u32 %v2933, 16
      %v3029 = vrot.slane %v3027, 5
      %v3030 = vor.u32 %v3026, %v3029
      %v3031 = vrot.slane %v3030, 4
      %v3033 = vshll.u32 %v2934, 16
      %v3035 = vrot.slane %v3033, 5
      %v3036 = vsel %vm1325, %v3031, %v3035
      %v3037 = vshrl.u32 %v2934, 16
      %v3039 = vrot.slane %v3037, 4
      %v3040 = vor.u32 %v3039, %v3035
      %v3041 = vrot.slane %v3040, 4
      %v3043 = vshll.u32 %v2935, 16
      %v3045 = vrot.slane %v3043, 5
      %v3046 = vsel %vm1325, %v3041, %v3045
      %v3048 = vshrl.u32 %v2936, 16
      %v3050 = vrot.slane %v3048, 4
      %v3051 = vshll.u32 %v2936, 16
      %v3053 = vrot.slane %v3051, 5
      %v3054 = vor.u32 %v3050, %v3053
      %v3055 = vrot.slane %v3054, 4
      %v3057 = vshll.u32 %v2937, 16
      %v3059 = vrot.slane %v3057, 5
      %v3060 = vsel %vm1325, %v3055, %v3059
      %v3061 = vshrl.u32 %v2937, 16
      %v3063 = vrot.slane %v3061, 4
      %v3064 = vor.u32 %v3063, %v3059
      %v3065 = vrot.slane %v3064, 4
      %v3067 = vshll.u32 %v2938, 16
      %v3069 = vrot.slane %v3067, 5
      %v3070 = vsel %vm1325, %v3065, %v3069
      %v3072 = vshrl.u32 %v2939, 16
      %v3074 = vrot.slane %v3072, 4
      %v3075 = vshll.u32 %v2939, 16
      %v3077 = vrot.slane %v3075, 5
      %v3078 = vor.u32 %v3074, %v3077
      %v3079 = vrot.slane %v3078, 4
      %v3081 = vshll.u32 %v2940, 16
      %v3083 = vrot.slane %v3081, 5
      %v3084 = vsel %vm1325, %v3079, %v3083
      %v3085 = vshrl.u32 %v2940, 16
      %v3087 = vrot.slane %v3085, 4
      %v3088 = vor.u32 %v3087, %v3083
      %v3089 = vrot.slane %v3088, 4
      %v3091 = vshll.u32 %v2941, 16
      %v3093 = vrot.slane %v3091, 5
      %v3094 = vsel %vm1325, %v3089, %v3093
      %v3096 = vshrl.u32 %v2942, 16
      %v3098 = vrot.slane %v3096, 4
      %v3099 = vshll.u32 %v2942, 16
      %v3101 = vrot.slane %v3099, 5
      %v3102 = vor.u32 %v3098, %v3101
      %v3103 = vrot.slane %v3102, 4
      %v3105 = vshll.u32 %v2943, 16
      %v3107 = vrot.slane %v3105, 5
      %v3108 = vsel %vm1325, %v3103, %v3107
      %v3109 = vshrl.u32 %v2943, 16
      %v3111 = vrot.slane %v3109, 4
      %v3112 = vor.u32 %v3111, %v3107
      %v3113 = vrot.slane %v3112, 4
      %v3115 = vshll.u32 %v2944, 16
      %v3117 = vrot.slane %v3115, 5
      %v3118 = vsel %vm1325, %v3113, %v3117
      %v3120 = vshrl.u32 %v2945, 16
      %v3122 = vrot.slane %v3120, 4
      %v3123 = vshll.u32 %v2945, 16
      %v3125 = vrot.slane %v3123, 5
      %v3126 = vor.u32 %v3122, %v3125
      %v3127 = vrot.slane %v3126, 4
      %v3129 = vshll.u32 %v2946, 16
      %v3131 = vrot.slane %v3129, 5
      %v3132 = vsel %vm1325, %v3127, %v3131
      %v3133 = vshrl.u32 %v2946, 16
      %v3135 = vrot.slane %v3133, 4
      %v3136 = vor.u32 %v3135, %v3131
      %v3137 = vrot.slane %v3136, 4
      %v3139 = vshll.u32 %v2947, 16
      %v3141 = vrot.slane %v3139, 5
      %v3142 = vsel %vm1325, %v3137, %v3141
      %v3144 = vshrl.u32 %v2948, 16
      %v3146 = vrot.slane %v3144, 4
      %v3147 = vshll.u32 %v2948, 16
      %v3149 = vrot.slane %v3147, 5
      %v3150 = vor.u32 %v3146, %v3149
      %v3151 = vrot.slane %v3150, 4
      %v3153 = vshll.u32 %v2949, 16
      %v3155 = vrot.slane %v3153, 5
      %v3156 = vsel %vm1325, %v3151, %v3155
      %v3157 = vshrl.u32 %v2949, 16
      %v3159 = vrot.slane %v3157, 4
      %v3160 = vor.u32 %v3159, %v3155
      %v3161 = vrot.slane %v3160, 4
      %v3163 = vshll.u32 %v2950, 16
      %v3165 = vrot.slane %v3163, 5
      %v3166 = vsel %vm1325, %v3161, %v3165
      %v3168 = vshrl.u32 %v2951, 16
      %v3170 = vrot.slane %v3168, 4
      %v3171 = vshll.u32 %v2951, 16
      %v3173 = vrot.slane %v3171, 5
      %v3174 = vor.u32 %v3170, %v3173
      %v3175 = vrot.slane %v3174, 4
      %v3177 = vshll.u32 %v2952, 16
      %v3179 = vrot.slane %v3177, 5
      %v3180 = vsel %vm1325, %v3175, %v3179
      %v3181 = vshrl.u32 %v2952, 16
      %v3183 = vrot.slane %v3181, 4
      %v3184 = vor.u32 %v3183, %v3179
      %v3185 = vrot.slane %v3184, 4
      %v3187 = vshll.u32 %v2953, 16
      %v3189 = vrot.slane %v3187, 5
      %v3190 = vsel %vm1325, %v3185, %v3189
      %v3192 = vshrl.u32 %v2954, 16
      %v3194 = vrot.slane %v3192, 4
      %v3195 = vshll.u32 %v2954, 16
      %v3197 = vrot.slane %v3195, 5
      %v3198 = vor.u32 %v3194, %v3197
      %v3199 = vrot.slane %v3198, 4
      %v3201 = vshll.u32 %v2955, 16
      %v3203 = vrot.slane %v3201, 5
      %v3204 = vsel %vm1325, %v3199, %v3203
      %v3205 = vshrl.u32 %v2955, 16
      %v3207 = vrot.slane %v3205, 4
      %v3208 = vor.u32 %v3207, %v3203
      %v3209 = vrot.slane %v3208, 4
      %v3211 = vshll.u32 %v2956, 16
      %v3213 = vrot.slane %v3211, 5
      %v3214 = vsel %vm1325, %v3209, %v3213
      %v3216 = vshrl.u32 %v2957, 16
      %v3218 = vrot.slane %v3216, 4
      %v3219 = vshll.u32 %v2957, 16
      %v3221 = vrot.slane %v3219, 5
      %v3222 = vor.u32 %v3218, %v3221
      %v3223 = vrot.slane %v3222, 4
      %v3225 = vshll.u32 %v2958, 16
      %v3227 = vrot.slane %v3225, 5
      %v3228 = vsel %vm1325, %v3223, %v3227
      %v3229 = vshrl.u32 %v2958, 16
      %v3231 = vrot.slane %v3229, 4
      %v3232 = vor.u32 %v3231, %v3227
      %v3233 = vrot.slane %v3232, 4
      %v3235 = vshll.u32 %v2959, 16
      %v3237 = vrot.slane %v3235, 5
      %v3238 = vsel %vm1325, %v3233, %v3237
      %v3240 = vshrl.u32 %v2960, 16
      %v3242 = vrot.slane %v3240, 4
      %v3243 = vshll.u32 %v2960, 16
      %v3245 = vrot.slane %v3243, 5
      %v3246 = vor.u32 %v3242, %v3245
      %v3247 = vrot.slane %v3246, 4
      %v3249 = vshll.u32 %v2961, 16
      %v3251 = vrot.slane %v3249, 5
      %v3252 = vsel %vm1325, %v3247, %v3251
      %v3253 = vshrl.u32 %v2961, 16
      %v3255 = vrot.slane %v3253, 4
      %v3256 = vor.u32 %v3255, %v3251
      %v3257 = vrot.slane %v3256, 4
      %v3259 = vshll.u32 %v2962, 16
      %v3261 = vrot.slane %v3259, 5
      %v3262 = vsel %vm1325, %v3257, %v3261
      %v3264 = vshrl.u32 %v2963, 16
      %v3266 = vrot.slane %v3264, 4
      %v3267 = vshll.u32 %v2963, 16
      %v3269 = vrot.slane %v3267, 5
      %v3270 = vor.u32 %v3266, %v3269
      %v3271 = vrot.slane %v3270, 4
      %v3273 = vshll.u32 %v2964, 16
      %v3275 = vrot.slane %v3273, 5
      %v3276 = vsel %vm1325, %v3271, %v3275
      %v3277 = vshrl.u32 %v2964, 16
      %v3279 = vrot.slane %v3277, 4
      %v3280 = vor.u32 %v3279, %v3275
      %v3281 = vrot.slane %v3280, 4
      %v3283 = vshll.u32 %v2965, 16
      %v3285 = vrot.slane %v3283, 5
      %v3286 = vsel %vm1325, %v3281, %v3285
      %v3288 = vshrl.u32 %v2966, 16
      %v3290 = vrot.slane %v3288, 4
      %v3291 = vshll.u32 %v2966, 16
      %v3293 = vrot.slane %v3291, 5
      %v3294 = vor.u32 %v3290, %v3293
      %v3295 = vrot.slane %v3294, 4
      %v3297 = vshll.u32 %v2967, 16
      %v3299 = vrot.slane %v3297, 5
      %v3300 = vsel %vm1325, %v3295, %v3299
      %v3301 = vshrl.u32 %v2967, 16
      %v3303 = vrot.slane %v3301, 4
      %v3304 = vor.u32 %v3303, %v3299
      %v3305 = vrot.slane %v3304, 4
      %v3307 = vshll.u32 %v2968, 16
      %v3309 = vrot.slane %v3307, 5
      %v3310 = vsel %vm1325, %v3305, %v3309
      %v3312 = vshrl.u32 %v2969, 16
      %v3314 = vrot.slane %v3312, 4
      %v3315 = vshll.u32 %v2969, 16
      %v3317 = vrot.slane %v3315, 5
      %v3318 = vor.u32 %v3314, %v3317
      %v3319 = vrot.slane %v3318, 4
      %v3321 = vshll.u32 %v2970, 16
      %v3323 = vrot.slane %v3321, 5
      %v3324 = vsel %vm1325, %v3319, %v3323
      %v3325 = vshrl.u32 %v2970, 16
      %v3327 = vrot.slane %v3325, 4
      %v3328 = vor.u32 %v3327, %v3323
      %v3329 = vrot.slane %v3328, 4
      %v3331 = vshll.u32 %v2971, 16
      %v3333 = vrot.slane %v3331, 5
      %v3334 = vsel %vm1325, %v3329, %v3333
      %v3336 = vshrl.u32 %v2972, 16
      %v3338 = vrot.slane %v3336, 4
      %v3339 = vshll.u32 %v2972, 16
      %v3341 = vrot.slane %v3339, 5
      %v3342 = vor.u32 %v3338, %v3341
      %v3343 = vrot.slane %v3342, 4
      %v3345 = vshll.u32 %v2973, 16
      %v3347 = vrot.slane %v3345, 5
      %v3348 = vsel %vm1325, %v3343, %v3347
      %v3349 = vshrl.u32 %v2973, 16
      %v3351 = vrot.slane %v3349, 4
      %v3352 = vor.u32 %v3351, %v3347
      %v3353 = vrot.slane %v3352, 4
      %v3355 = vshll.u32 %v2974, 16
      %v3357 = vrot.slane %v3355, 5
      %v3358 = vsel %vm1325, %v3353, %v3357
      %s3359 = scalar_lea.vmem %s1, 256
      %v3360 = vld [vmem:[%s3359] sm:$0xf]
      %v3361 = vld [vmem:[%s3359 + $0x4] sm:$0xf]
      %v3362 = vld [vmem:[%s3359 + $0x8] sm:$0xf]
      %v3363 = vld [vmem:[%s3359 + $0xc] sm:$0xf]
      %v3364 = vld [vmem:[%s3359 + $0x10] sm:$0xf]
      %v3365 = vld [vmem:[%s3359 + $0x14] sm:$0xf]
      %v3366 = vld [vmem:[%s3359 + $0x18] sm:$0xf]
      %v3367 = vld [vmem:[%s3359 + $0x1c] sm:$0xf]
      %v3368 = vld [vmem:[%s3359 + $0x20] sm:$0xf]
      %v3369 = vld [vmem:[%s3359 + $0x24] sm:$0xf]
      %v3370 = vld [vmem:[%s3359 + $0x28] sm:$0xf]
      %v3371 = vld [vmem:[%s3359 + $0x2c] sm:$0xf]
      %v3372 = vld [vmem:[%s3359 + $0x30] sm:$0xf]
      %v3373 = vld [vmem:[%s3359 + $0x34] sm:$0xf]
      %v3374 = vld [vmem:[%s3359 + $0x38] sm:$0xf]
      %v3375 = vld [vmem:[%s3359 + $0x3c] sm:$0xf]
      %v3376 = vunpack.c.l.b16 %v2988
      %v3377 = vunpack.c.l.b16 %v2998
      %v3378 = vunpack.c.l.b16 %v3012
      %v3379 = vunpack.c.l.b16 %v3022
      %v3380 = vunpack.c.l.b16 %v3036
      %v3381 = vunpack.c.l.b16 %v3046
      %v3382 = vunpack.c.l.b16 %v3060
      %v3383 = vunpack.c.l.b16 %v3070
      %v3384 = vunpack.c.l.b16 %v3084
      %v3385 = vunpack.c.l.b16 %v3094
      %v3386 = vunpack.c.l.b16 %v3108
      %v3387 = vunpack.c.l.b16 %v3118
      %v3388 = vunpack.c.l.b16 %v3132
      %v3389 = vunpack.c.l.b16 %v3142
      %v3390 = vunpack.c.l.b16 %v3156
      %v3391 = vunpack.c.l.b16 %v3166
      %v3392 = vunpack.c.l.b16 %v3180
      %v3393 = vunpack.c.l.b16 %v3190
      %v3394 = vunpack.c.l.b16 %v3204
      %v3395 = vunpack.c.l.b16 %v3214
      %v3396 = vunpack.c.l.b16 %v3228
      %v3397 = vunpack.c.l.b16 %v3238
      %v3398 = vunpack.c.l.b16 %v3252
      %v3399 = vunpack.c.l.b16 %v3262
      %v3400 = vunpack.c.l.b16 %v3276
      %v3401 = vunpack.c.l.b16 %v3286
      %v3402 = vunpack.c.l.b16 %v3300
      %v3403 = vunpack.c.l.b16 %v3310
      %v3404 = vunpack.c.l.b16 %v3324
      %v3405 = vunpack.c.l.b16 %v3334
      %v3406 = vunpack.c.l.b16 %v3348
      %v3407 = vunpack.c.l.b16 %v3358
      %v3408 = vpack.c.b16 %v3377, %v3376
      %v3409 = vpack.c.b16 %v3379, %v3378
      %v3410 = vpack.c.b16 %v3381, %v3380
      %v3411 = vpack.c.b16 %v3383, %v3382
      %v3412 = vpack.c.b16 %v3385, %v3384
      %v3413 = vpack.c.b16 %v3387, %v3386
      %v3414 = vpack.c.b16 %v3389, %v3388
      %v3415 = vpack.c.b16 %v3391, %v3390
      %v3416 = vpack.c.b16 %v3393, %v3392
      %v3417 = vpack.c.b16 %v3395, %v3394
      %v3418 = vpack.c.b16 %v3397, %v3396
      %v3419 = vpack.c.b16 %v3399, %v3398
      %v3420 = vpack.c.b16 %v3401, %v3400
      %v3421 = vpack.c.b16 %v3403, %v3402
      %v3422 = vpack.c.b16 %v3405, %v3404
      %v3423 = vpack.c.b16 %v3407, %v3406
      %v3456 = vunpack.c.l.b16 %v3360
      %v3457 = vunpack.c.l.b16 %v3361
      %v3458 = vunpack.c.l.b16 %v3362
      %v3459 = vunpack.c.l.b16 %v3363
      %v3460 = vunpack.c.l.b16 %v3364
      %v3461 = vunpack.c.l.b16 %v3365
      %v3462 = vunpack.c.l.b16 %v3366
      %v3463 = vunpack.c.l.b16 %v3367
      %v3464 = vunpack.c.l.b16 %v3368
      %v3465 = vunpack.c.l.b16 %v3369
      %v3466 = vunpack.c.l.b16 %v3370
      %v3467 = vunpack.c.l.b16 %v3371
      %v3468 = vunpack.c.l.b16 %v3372
      %v3469 = vunpack.c.l.b16 %v3373
      %v3470 = vunpack.c.l.b16 %v3374
      %v3471 = vunpack.c.l.b16 %v3375
      %v3472 = vpack.c.b16 %v3457, %v3456
      %v3473 = vpack.c.b16 %v3459, %v3458
      %v3474 = vpack.c.b16 %v3461, %v3460
      %v3475 = vpack.c.b16 %v3463, %v3462
      %v3476 = vpack.c.b16 %v3465, %v3464
      %v3477 = vpack.c.b16 %v3467, %v3466
      %v3478 = vpack.c.b16 %v3469, %v3468
      %v3479 = vpack.c.b16 %v3471, %v3470
      %3488 = vmatpush.bf16.msra.mxu0 %v3479
      %3489 = vmatpush.bf16.msra.mxu0 %v3478
      %3490 = vmatpush.bf16.msra.mxu0 %v3477
      %3491 = vmatpush.bf16.msra.mxu0 %v3476
      %3492 = vmatpush.bf16.msra.mxu0 %v3475
      %3493 = vmatpush.bf16.msra.mxu0 %v3474
      %3494 = vmatpush.bf16.msra.mxu0 %v3473
      %3495 = vmatpush.bf16.msra.mxu0 %v3472
      %3496 = vmatmul.bf16.gmra.mxu0 %v3408
      %v3497 = vpop.f32.mrf.mxu0
      %v3498 = vadd.f32 0.0, %v3497
      %v3499 = vpop.f32.mrf.mxu0
      %v3500 = vadd.f32 0.0, %v3499
      %3501 = vmatmul.bf16.gmra.mxu0 %v3409
      %v3502 = vpop.f32.mrf.mxu0
      %v3503 = vadd.f32 0.0, %v3502
      %v3504 = vpop.f32.mrf.mxu0
      %v3505 = vadd.f32 0.0, %v3504
      %3506 = vmatmul.bf16.gmra.mxu0 %v3410
      %v3507 = vpop.f32.mrf.mxu0
      %v3508 = vadd.f32 0.0, %v3507
      %v3509 = vpop.f32.mrf.mxu0
      %v3510 = vadd.f32 0.0, %v3509
      %3511 = vmatmul.bf16.gmra.mxu0 %v3411
      %v3512 = vpop.f32.mrf.mxu0
      %v3513 = vadd.f32 0.0, %v3512
      %v3514 = vpop.f32.mrf.mxu0
      %v3515 = vadd.f32 0.0, %v3514
      %3516 = vmatmul.bf16.gmra.mxu0 %v3412
      %v3517 = vpop.f32.mrf.mxu0
      %v3518 = vadd.f32 0.0, %v3517
      %v3519 = vpop.f32.mrf.mxu0
      %v3520 = vadd.f32 0.0, %v3519
      %3521 = vmatmul.bf16.gmra.mxu0 %v3413
      %v3522 = vpop.f32.mrf.mxu0
      %v3523 = vadd.f32 0.0, %v3522
      %v3524 = vpop.f32.mrf.mxu0
      %v3525 = vadd.f32 0.0, %v3524
      %3526 = vmatmul.bf16.gmra.mxu0 %v3414
      %v3527 = vpop.f32.mrf.mxu0
      %v3528 = vadd.f32 0.0, %v3527
      %v3529 = vpop.f32.mrf.mxu0
      %v3530 = vadd.f32 0.0, %v3529
      %3531 = vmatmul.bf16.gmra.mxu0 %v3415
      %v3532 = vpop.f32.mrf.mxu0
      %v3533 = vadd.f32 0.0, %v3532
      %v3534 = vpop.f32.mrf.mxu0
      %v3535 = vadd.f32 0.0, %v3534
      %3536 = vmatmul.bf16.gmra.mxu0 %v3416
      %v3537 = vpop.f32.mrf.mxu0
      %v3538 = vadd.f32 0.0, %v3537
      %v3539 = vpop.f32.mrf.mxu0
      %v3540 = vadd.f32 0.0, %v3539
      %3541 = vmatmul.bf16.gmra.mxu0 %v3417
      %v3542 = vpop.f32.mrf.mxu0
      %v3543 = vadd.f32 0.0, %v3542
      %v3544 = vpop.f32.mrf.mxu0
      %v3545 = vadd.f32 0.0, %v3544
      %3546 = vmatmul.bf16.gmra.mxu0 %v3418
      %v3547 = vpop.f32.mrf.mxu0
      %v3548 = vadd.f32 0.0, %v3547
      %v3549 = vpop.f32.mrf.mxu0
      %v3550 = vadd.f32 0.0, %v3549
      %3551 = vmatmul.bf16.gmra.mxu0 %v3419
      %v3552 = vpop.f32.mrf.mxu0
      %v3553 = vadd.f32 0.0, %v3552
      %v3554 = vpop.f32.mrf.mxu0
      %v3555 = vadd.f32 0.0, %v3554
      %3556 = vmatmul.bf16.gmra.mxu0 %v3420
      %v3557 = vpop.f32.mrf.mxu0
      %v3558 = vadd.f32 0.0, %v3557
      %v3559 = vpop.f32.mrf.mxu0
      %v3560 = vadd.f32 0.0, %v3559
      %3561 = vmatmul.bf16.gmra.mxu0 %v3421
      %v3562 = vpop.f32.mrf.mxu0
      %v3563 = vadd.f32 0.0, %v3562
      %v3564 = vpop.f32.mrf.mxu0
      %v3565 = vadd.f32 0.0, %v3564
      %3566 = vmatmul.bf16.gmra.mxu0 %v3422
      %v3567 = vpop.f32.mrf.mxu0
      %v3568 = vadd.f32 0.0, %v3567
      %v3569 = vpop.f32.mrf.mxu0
      %v3570 = vadd.f32 0.0, %v3569
      %3571 = vmatmul.bf16.gmra.mxu0 %v3423
      %v3572 = vpop.f32.mrf.mxu0
      %v3573 = vadd.f32 0.0, %v3572
      %v3574 = vpop.f32.mrf.mxu0
      %v3575 = vadd.f32 0.0, %v3574
      %3576 = vdwg.mxu0
      %v3577 = vld [vmem:[#allocation4] sm:$0xff]
      %v3578 = vld [vmem:[#allocation4 + $0x8] sm:$0xff]
      %v3579 = vld [vmem:[#allocation4 + $0x10] sm:$0xff]
      %v3580 = vld [vmem:[#allocation4 + $0x18] sm:$0xff]
      %v3581 = vld [vmem:[#allocation4 + $0x20] sm:$0xff]
      %v3582 = vld [vmem:[#allocation4 + $0x28] sm:$0xff]
      %v3583 = vld [vmem:[#allocation4 + $0x30] sm:$0xff]
      %v3584 = vld [vmem:[#allocation4 + $0x38] sm:$0xff]
      %v3585 = vld [vmem:[#allocation4 + $0x40] sm:$0xff]
      %v3586 = vld [vmem:[#allocation4 + $0x48] sm:$0xff]
      %v3587 = vld [vmem:[#allocation4 + $0x50] sm:$0xff]
      %v3588 = vld [vmem:[#allocation4 + $0x58] sm:$0xff]
      %v3589 = vld [vmem:[#allocation4 + $0x60] sm:$0xff]
      %v3590 = vld [vmem:[#allocation4 + $0x68] sm:$0xff]
      %v3591 = vld [vmem:[#allocation4 + $0x70] sm:$0xff]
      %v3592 = vld [vmem:[#allocation4 + $0x78] sm:$0xff]
      %v3593 = vld [vmem:[#allocation4 + $0x80] sm:$0xff]
      %v3594 = vld [vmem:[#allocation4 + $0x88] sm:$0xff]
      %v3595 = vld [vmem:[#allocation4 + $0x90] sm:$0xff]
      %v3596 = vld [vmem:[#allocation4 + $0x98] sm:$0xff]
      %v3597 = vld [vmem:[#allocation4 + $0xa0] sm:$0xff]
      %v3598 = vld [vmem:[#allocation4 + $0xa8] sm:$0xff]
      %v3599 = vld [vmem:[#allocation4 + $0xb0] sm:$0xff]
      %v3600 = vld [vmem:[#allocation4 + $0xb8] sm:$0xff]
      %v3601 = vld [vmem:[#allocation4 + $0xc0] sm:$0xff]
      %v3602 = vld [vmem:[#allocation4 + $0xc8] sm:$0xff]
      %v3603 = vld [vmem:[#allocation4 + $0xd0] sm:$0xff]
      %v3604 = vld [vmem:[#allocation4 + $0xd8] sm:$0xff]
      %v3605 = vld [vmem:[#allocation4 + $0xe0] sm:$0xff]
      %v3606 = vld [vmem:[#allocation4 + $0xe8] sm:$0xff]
      %v3607 = vld [vmem:[#allocation4 + $0xf0] sm:$0xff]
      %v3608 = vld [vmem:[#allocation4 + $0xf8] sm:$0xff]
      %v3609 = vadd.f32 %v3577, %v3498
      %v3610 = vadd.f32 %v3578, %v3500
      %v3611 = vadd.f32 %v3579, %v3503
      %v3612 = vadd.f32 %v3580, %v3505
      %v3613 = vadd.f32 %v3581, %v3508
      %v3614 = vadd.f32 %v3582, %v3510
      %v3615 = vadd.f32 %v3583, %v3513
      %v3616 = vadd.f32 %v3584, %v3515
      %v3617 = vadd.f32 %v3585, %v3518
      %v3618 = vadd.f32 %v3586, %v3520
      %v3619 = vadd.f32 %v3587, %v3523
      %v3620 = vadd.f32 %v3588, %v3525
      %v3621 = vadd.f32 %v3589, %v3528
      %v3622 = vadd.f32 %v3590, %v3530
      %v3623 = vadd.f32 %v3591, %v3533
      %v3624 = vadd.f32 %v3592, %v3535
      %v3625 = vadd.f32 %v3593, %v3538
      %v3626 = vadd.f32 %v3594, %v3540
      %v3627 = vadd.f32 %v3595, %v3543
      %v3628 = vadd.f32 %v3596, %v3545
      %v3629 = vadd.f32 %v3597, %v3548
      %v3630 = vadd.f32 %v3598, %v3550
      %v3631 = vadd.f32 %v3599, %v3553
      %v3632 = vadd.f32 %v3600, %v3555
      %v3633 = vadd.f32 %v3601, %v3558
      %v3634 = vadd.f32 %v3602, %v3560
      %v3635 = vadd.f32 %v3603, %v3563
      %v3636 = vadd.f32 %v3604, %v3565
      %v3637 = vadd.f32 %v3605, %v3568
      %v3638 = vadd.f32 %v3606, %v3570
      %v3639 = vadd.f32 %v3607, %v3573
      %v3640 = vadd.f32 %v3608, %v3575
      %3641 = vst [vmem:[#allocation4] sm:$0xff] %v3609
      %3642 = vst [vmem:[#allocation4 + $0x8] sm:$0xff] %v3610
      %3643 = vst [vmem:[#allocation4 + $0x10] sm:$0xff] %v3611
      %3644 = vst [vmem:[#allocation4 + $0x18] sm:$0xff] %v3612
      %3645 = vst [vmem:[#allocation4 + $0x20] sm:$0xff] %v3613
      %3646 = vst [vmem:[#allocation4 + $0x28] sm:$0xff] %v3614
      %3647 = vst [vmem:[#allocation4 + $0x30] sm:$0xff] %v3615
      %3648 = vst [vmem:[#allocation4 + $0x38] sm:$0xff] %v3616
      %3649 = vst [vmem:[#allocation4 + $0x40] sm:$0xff] %v3617
      %3650 = vst [vmem:[#allocation4 + $0x48] sm:$0xff] %v3618
      %3651 = vst [vmem:[#allocation4 + $0x50] sm:$0xff] %v3619
      %3652 = vst [vmem:[#allocation4 + $0x58] sm:$0xff] %v3620
      %3653 = vst [vmem:[#allocation4 + $0x60] sm:$0xff] %v3621
      %3654 = vst [vmem:[#allocation4 + $0x68] sm:$0xff] %v3622
      %3655 = vst [vmem:[#allocation4 + $0x70] sm:$0xff] %v3623
      %3656 = vst [vmem:[#allocation4 + $0x78] sm:$0xff] %v3624
      %3657 = vst [vmem:[#allocation4 + $0x80] sm:$0xff] %v3625
      %3658 = vst [vmem:[#allocation4 + $0x88] sm:$0xff] %v3626
      %3659 = vst [vmem:[#allocation4 + $0x90] sm:$0xff] %v3627
      %3660 = vst [vmem:[#allocation4 + $0x98] sm:$0xff] %v3628
      %3661 = vst [vmem:[#allocation4 + $0xa0] sm:$0xff] %v3629
      %3662 = vst [vmem:[#allocation4 + $0xa8] sm:$0xff] %v3630
      %3663 = vst [vmem:[#allocation4 + $0xb0] sm:$0xff] %v3631
      %3664 = vst [vmem:[#allocation4 + $0xb8] sm:$0xff] %v3632
      %3665 = vst [vmem:[#allocation4 + $0xc0] sm:$0xff] %v3633
      %3666 = vst [vmem:[#allocation4 + $0xc8] sm:$0xff] %v3634
      %3667 = vst [vmem:[#allocation4 + $0xd0] sm:$0xff] %v3635
      %3668 = vst [vmem:[#allocation4 + $0xd8] sm:$0xff] %v3636
      %3669 = vst [vmem:[#allocation4 + $0xe0] sm:$0xff] %v3637
      %3670 = vst [vmem:[#allocation4 + $0xe8] sm:$0xff] %v3638
      %3671 = vst [vmem:[#allocation4 + $0xf0] sm:$0xff] %v3639
      %3672 = vst [vmem:[#allocation4 + $0xf8] sm:$0xff] %v3640
      %v3673 = vld [vmem:[%s847] sm:$0xe]
      %v3674 = vld [vmem:[%s847 + $0x4] sm:$0xf]
      %v3675 = vld [vmem:[%s847 + $0x8] sm:$0x1]
      %v3676 = vld [vmem:[%s847 + $0xc] sm:$0xe]
      %v3677 = vld [vmem:[%s847 + $0x10] sm:$0xf]
      %v3678 = vld [vmem:[%s847 + $0x14] sm:$0x1]
      %v3679 = vld [vmem:[%s847 + $0x18] sm:$0xe]
      %v3680 = vld [vmem:[%s847 + $0x1c] sm:$0xf]
      %v3681 = vld [vmem:[%s847 + $0x20] sm:$0x1]
      %v3682 = vld [vmem:[%s847 + $0x24] sm:$0xe]
      %v3683 = vld [vmem:[%s847 + $0x28] sm:$0xf]
      %v3684 = vld [vmem:[%s847 + $0x2c] sm:$0x1]
      %v3685 = vld [vmem:[%s847 + $0x30] sm:$0xe]
      %v3686 = vld [vmem:[%s847 + $0x34] sm:$0xf]
      %v3687 = vld [vmem:[%s847 + $0x38] sm:$0x1]
      %v3688 = vld [vmem:[%s847 + $0x3c] sm:$0xe]
      %v3689 = vld [vmem:[%s847 + $0x40] sm:$0xf]
      %v3690 = vld [vmem:[%s847 + $0x44] sm:$0x1]
      %v3691 = vld [vmem:[%s847 + $0x48] sm:$0xe]
      %v3692 = vld [vmem:[%s847 + $0x4c] sm:$0xf]
      %v3693 = vld [vmem:[%s847 + $0x50] sm:$0x1]
      %v3694 = vld [vmem:[%s847 + $0x54] sm:$0xe]
      %v3695 = vld [vmem:[%s847 + $0x58] sm:$0xf]
      %v3696 = vld [vmem:[%s847 + $0x5c] sm:$0x1]
      %v3697 = vld [vmem:[%s847 + $0x60] sm:$0xe]
      %v3698 = vld [vmem:[%s847 + $0x64] sm:$0xf]
      %v3699 = vld [vmem:[%s847 + $0x68] sm:$0x1]
      %v3700 = vld [vmem:[%s847 + $0x6c] sm:$0xe]
      %v3701 = vld [vmem:[%s847 + $0x70] sm:$0xf]
      %v3702 = vld [vmem:[%s847 + $0x74] sm:$0x1]
      %v3703 = vld [vmem:[%s847 + $0x78] sm:$0xe]
      %v3704 = vld [vmem:[%s847 + $0x7c] sm:$0xf]
      %v3705 = vld [vmem:[%s847 + $0x80] sm:$0x1]
      %v3706 = vld [vmem:[%s847 + $0x84] sm:$0xe]
      %v3707 = vld [vmem:[%s847 + $0x88] sm:$0xf]
      %v3708 = vld [vmem:[%s847 + $0x8c] sm:$0x1]
      %v3709 = vld [vmem:[%s847 + $0x90] sm:$0xe]
      %v3710 = vld [vmem:[%s847 + $0x94] sm:$0xf]
      %v3711 = vld [vmem:[%s847 + $0x98] sm:$0x1]
      %v3712 = vld [vmem:[%s847 + $0x9c] sm:$0xe]
      %v3713 = vld [vmem:[%s847 + $0xa0] sm:$0xf]
      %v3714 = vld [vmem:[%s847 + $0xa4] sm:$0x1]
      %v3715 = vld [vmem:[%s847 + $0xa8] sm:$0xe]
      %v3716 = vld [vmem:[%s847 + $0xac] sm:$0xf]
      %v3717 = vld [vmem:[%s847 + $0xb0] sm:$0x1]
      %v3718 = vld [vmem:[%s847 + $0xb4] sm:$0xe]
      %v3719 = vld [vmem:[%s847 + $0xb8] sm:$0xf]
      %v3720 = vld [vmem:[%s847 + $0xbc] sm:$0x1]
      %v3769 = vrot.slane %v3673, 5
      %v3770 = vrot.slane %v3769, 4
      %v3771 = vrot.slane %v3674, 5
      %v3772 = vsel %vm2122, %v3770, %v3771
      %v3773 = vrot.slane %v3771, 4
      %v3774 = vrot.slane %v3675, 5
      %v3775 = vsel %vm2122, %v3773, %v3774
      %v3776 = vrot.slane %v3676, 5
      %v3777 = vrot.slane %v3776, 4
      %v3778 = vrot.slane %v3677, 5
      %v3779 = vsel %vm2122, %v3777, %v3778
      %v3780 = vrot.slane %v3778, 4
      %v3781 = vrot.slane %v3678, 5
      %v3782 = vsel %vm2122, %v3780, %v3781
      %v3783 = vrot.slane %v3679, 5
      %v3784 = vrot.slane %v3783, 4
      %v3785 = vrot.slane %v3680, 5
      %v3786 = vsel %vm2122, %v3784, %v3785
      %v3787 = vrot.slane %v3785, 4
      %v3788 = vrot.slane %v3681, 5
      %v3789 = vsel %vm2122, %v3787, %v3788
      %v3790 = vrot.slane %v3682, 5
      %v3791 = vrot.slane %v3790, 4
      %v3792 = vrot.slane %v3683, 5
      %v3793 = vsel %vm2122, %v3791, %v3792
      %v3794 = vrot.slane %v3792, 4
      %v3795 = vrot.slane %v3684, 5
      %v3796 = vsel %vm2122, %v3794, %v3795
      %v3797 = vrot.slane %v3685, 5
      %v3798 = vrot.slane %v3797, 4
      %v3799 = vrot.slane %v3686, 5
      %v3800 = vsel %vm2122, %v3798, %v3799
      %v3801 = vrot.slane %v3799, 4
      %v3802 = vrot.slane %v3687, 5
      %v3803 = vsel %vm2122, %v3801, %v3802
      %v3804 = vrot.slane %v3688, 5
      %v3805 = vrot.slane %v3804, 4
      %v3806 = vrot.slane %v3689, 5
      %v3807 = vsel %vm2122, %v3805, %v3806
      %v3808 = vrot.slane %v3806, 4
      %v3809 = vrot.slane %v3690, 5
      %v3810 = vsel %vm2122, %v3808, %v3809
      %v3811 = vrot.slane %v3691, 5
      %v3812 = vrot.slane %v3811, 4
      %v3813 = vrot.slane %v3692, 5
      %v3814 = vsel %vm2122, %v3812, %v3813
      %v3815 = vrot.slane %v3813, 4
      %v3816 = vrot.slane %v3693, 5
      %v3817 = vsel %vm2122, %v3815, %v3816
      %v3818 = vrot.slane %v3694, 5
      %v3819 = vrot.slane %v3818, 4
      %v3820 = vrot.slane %v3695, 5
      %v3821 = vsel %vm2122, %v3819, %v3820
      %v3822 = vrot.slane %v3820, 4
      %v3823 = vrot.slane %v3696, 5
      %v3824 = vsel %vm2122, %v3822, %v3823
      %v3825 = vrot.slane %v3697, 5
      %v3826 = vrot.slane %v3825, 4
      %v3827 = vrot.slane %v3698, 5
      %v3828 = vsel %vm2122, %v3826, %v3827
      %v3829 = vrot.slane %v3827, 4
      %v3830 = vrot.slane %v3699, 5
      %v3831 = vsel %vm2122, %v3829, %v3830
      %v3832 = vrot.slane %v3700, 5
      %v3833 = vrot.slane %v3832, 4
      %v3834 = vrot.slane %v3701, 5
      %v3835 = vsel %vm2122, %v3833, %v3834
      %v3836 = vrot.slane %v3834, 4
      %v3837 = vrot.slane %v3702, 5
      %v3838 = vsel %vm2122, %v3836, %v3837
      %v3839 = vrot.slane %v3703, 5
      %v3840 = vrot.slane %v3839, 4
      %v3841 = vrot.slane %v3704, 5
      %v3842 = vsel %vm2122, %v3840, %v3841
      %v3843 = vrot.slane %v3841, 4
      %v3844 = vrot.slane %v3705, 5
      %v3845 = vsel %vm2122, %v3843, %v3844
      %v3846 = vrot.slane %v3706, 5
      %v3847 = vrot.slane %v3846, 4
      %v3848 = vrot.slane %v3707, 5
      %v3849 = vsel %vm2122, %v3847, %v3848
      %v3850 = vrot.slane %v3848, 4
      %v3851 = vrot.slane %v3708, 5
      %v3852 = vsel %vm2122, %v3850, %v3851
      %v3853 = vrot.slane %v3709, 5
      %v3854 = vrot.slane %v3853, 4
      %v3855 = vrot.slane %v3710, 5
      %v3856 = vsel %vm2122, %v3854, %v3855
      %v3857 = vrot.slane %v3855, 4
      %v3858 = vrot.slane %v3711, 5
      %v3859 = vsel %vm2122, %v3857, %v3858
      %v3860 = vrot.slane %v3712, 5
      %v3861 = vrot.slane %v3860, 4
      %v3862 = vrot.slane %v3713, 5
      %v3863 = vsel %vm2122, %v3861, %v3862
      %v3864 = vrot.slane %v3862, 4
      %v3865 = vrot.slane %v3714, 5
      %v3866 = vsel %vm2122, %v3864, %v3865
      %v3867 = vrot.slane %v3715, 5
      %v3868 = vrot.slane %v3867, 4
      %v3869 = vrot.slane %v3716, 5
      %v3870 = vsel %vm2122, %v3868, %v3869
      %v3871 = vrot.slane %v3869, 4
      %v3872 = vrot.slane %v3717, 5
      %v3873 = vsel %vm2122, %v3871, %v3872
      %v3874 = vrot.slane %v3718, 5
      %v3875 = vrot.slane %v3874, 4
      %v3876 = vrot.slane %v3719, 5
      %v3877 = vsel %vm2122, %v3875, %v3876
      %v3878 = vrot.slane %v3876, 4
      %v3879 = vrot.slane %v3720, 5
      %v3880 = vsel %vm2122, %v3878, %v3879
      %s3881 = scalar_lea.vmem %s1, 320
      %v3882 = vld [vmem:[%s3881] sm:$0xf]
      %v3883 = vld [vmem:[%s3881 + $0x4] sm:$0xf]
      %v3884 = vld [vmem:[%s3881 + $0x8] sm:$0xf]
      %v3885 = vld [vmem:[%s3881 + $0xc] sm:$0xf]
      %v3886 = vld [vmem:[%s3881 + $0x10] sm:$0xf]
      %v3887 = vld [vmem:[%s3881 + $0x14] sm:$0xf]
      %v3888 = vld [vmem:[%s3881 + $0x18] sm:$0xf]
      %v3889 = vld [vmem:[%s3881 + $0x1c] sm:$0xf]
      %v3890 = vld [vmem:[%s3881 + $0x20] sm:$0xf]
      %v3891 = vld [vmem:[%s3881 + $0x24] sm:$0xf]
      %v3892 = vld [vmem:[%s3881 + $0x28] sm:$0xf]
      %v3893 = vld [vmem:[%s3881 + $0x2c] sm:$0xf]
      %v3894 = vld [vmem:[%s3881 + $0x30] sm:$0xf]
      %v3895 = vld [vmem:[%s3881 + $0x34] sm:$0xf]
      %v3896 = vld [vmem:[%s3881 + $0x38] sm:$0xf]
      %v3897 = vld [vmem:[%s3881 + $0x3c] sm:$0xf]
      %v3898 = vunpack.c.l.b16 %v3772
      %v3899 = vunpack.c.l.b16 %v3775
      %v3900 = vunpack.c.l.b16 %v3779
      %v3901 = vunpack.c.l.b16 %v3782
      %v3902 = vunpack.c.l.b16 %v3786
      %v3903 = vunpack.c.l.b16 %v3789
      %v3904 = vunpack.c.l.b16 %v3793
      %v3905 = vunpack.c.l.b16 %v3796
      %v3906 = vunpack.c.l.b16 %v3800
      %v3907 = vunpack.c.l.b16 %v3803
      %v3908 = vunpack.c.l.b16 %v3807
      %v3909 = vunpack.c.l.b16 %v3810
      %v3910 = vunpack.c.l.b16 %v3814
      %v3911 = vunpack.c.l.b16 %v3817
      %v3912 = vunpack.c.l.b16 %v3821
      %v3913 = vunpack.c.l.b16 %v3824
      %v3914 = vunpack.c.l.b16 %v3828
      %v3915 = vunpack.c.l.b16 %v3831
      %v3916 = vunpack.c.l.b16 %v3835
      %v3917 = vunpack.c.l.b16 %v3838
      %v3918 = vunpack.c.l.b16 %v3842
      %v3919 = vunpack.c.l.b16 %v3845
      %v3920 = vunpack.c.l.b16 %v3849
      %v3921 = vunpack.c.l.b16 %v3852
      %v3922 = vunpack.c.l.b16 %v3856
      %v3923 = vunpack.c.l.b16 %v3859
      %v3924 = vunpack.c.l.b16 %v3863
      %v3925 = vunpack.c.l.b16 %v3866
      %v3926 = vunpack.c.l.b16 %v3870
      %v3927 = vunpack.c.l.b16 %v3873
      %v3928 = vunpack.c.l.b16 %v3877
      %v3929 = vunpack.c.l.b16 %v3880
      %v3930 = vpack.c.b16 %v3899, %v3898
      %v3931 = vpack.c.b16 %v3901, %v3900
      %v3932 = vpack.c.b16 %v3903, %v3902
      %v3933 = vpack.c.b16 %v3905, %v3904
      %v3934 = vpack.c.b16 %v3907, %v3906
      %v3935 = vpack.c.b16 %v3909, %v3908
      %v3936 = vpack.c.b16 %v3911, %v3910
      %v3937 = vpack.c.b16 %v3913, %v3912
      %v3938 = vpack.c.b16 %v3915, %v3914
      %v3939 = vpack.c.b16 %v3917, %v3916
      %v3940 = vpack.c.b16 %v3919, %v3918
      %v3941 = vpack.c.b16 %v3921, %v3920
      %v3942 = vpack.c.b16 %v3923, %v3922
      %v3943 = vpack.c.b16 %v3925, %v3924
      %v3944 = vpack.c.b16 %v3927, %v3926
      %v3945 = vpack.c.b16 %v3929, %v3928
      %v3978 = vunpack.c.l.b16 %v3882
      %v3979 = vunpack.c.l.b16 %v3883
      %v3980 = vunpack.c.l.b16 %v3884
      %v3981 = vunpack.c.l.b16 %v3885
      %v3982 = vunpack.c.l.b16 %v3886
      %v3983 = vunpack.c.l.b16 %v3887
      %v3984 = vunpack.c.l.b16 %v3888
      %v3985 = vunpack.c.l.b16 %v3889
      %v3986 = vunpack.c.l.b16 %v3890
      %v3987 = vunpack.c.l.b16 %v3891
      %v3988 = vunpack.c.l.b16 %v3892
      %v3989 = vunpack.c.l.b16 %v3893
      %v3990 = vunpack.c.l.b16 %v3894
      %v3991 = vunpack.c.l.b16 %v3895
      %v3992 = vunpack.c.l.b16 %v3896
      %v3993 = vunpack.c.l.b16 %v3897
      %v3994 = vpack.c.b16 %v3979, %v3978
      %v3995 = vpack.c.b16 %v3981, %v3980
      %v3996 = vpack.c.b16 %v3983, %v3982
      %v3997 = vpack.c.b16 %v3985, %v3984
      %v3998 = vpack.c.b16 %v3987, %v3986
      %v3999 = vpack.c.b16 %v3989, %v3988
      %v4000 = vpack.c.b16 %v3991, %v3990
      %v4001 = vpack.c.b16 %v3993, %v3992
      %4010 = vmatpush.bf16.msra.mxu0 %v4001
      %4011 = vmatpush.bf16.msra.mxu0 %v4000
      %4012 = vmatpush.bf16.msra.mxu0 %v3999
      %4013 = vmatpush.bf16.msra.mxu0 %v3998
      %4014 = vmatpush.bf16.msra.mxu0 %v3997
      %4015 = vmatpush.bf16.msra.mxu0 %v3996
      %4016 = vmatpush.bf16.msra.mxu0 %v3995
      %4017 = vmatpush.bf16.msra.mxu0 %v3994
      %4018 = vmatmul.bf16.gmra.mxu0 %v3930
      %v4019 = vpop.f32.mrf.mxu0
      %v4020 = vadd.f32 0.0, %v4019
      %v4021 = vpop.f32.mrf.mxu0
      %v4022 = vadd.f32 0.0, %v4021
      %4023 = vmatmul.bf16.gmra.mxu0 %v3931
      %v4024 = vpop.f32.mrf.mxu0
      %v4025 = vadd.f32 0.0, %v4024
      %v4026 = vpop.f32.mrf.mxu0
      %v4027 = vadd.f32 0.0, %v4026
      %4028 = vmatmul.bf16.gmra.mxu0 %v3932
      %v4029 = vpop.f32.mrf.mxu0
      %v4030 = vadd.f32 0.0, %v4029
      %v4031 = vpop.f32.mrf.mxu0
      %v4032 = vadd.f32 0.0, %v4031
      %4033 = vmatmul.bf16.gmra.mxu0 %v3933
      %v4034 = vpop.f32.mrf.mxu0
      %v4035 = vadd.f32 0.0, %v4034
      %v4036 = vpop.f32.mrf.mxu0
      %v4037 = vadd.f32 0.0, %v4036
      %4038 = vmatmul.bf16.gmra.mxu0 %v3934
      %v4039 = vpop.f32.mrf.mxu0
      %v4040 = vadd.f32 0.0, %v4039
      %v4041 = vpop.f32.mrf.mxu0
      %v4042 = vadd.f32 0.0, %v4041
      %4043 = vmatmul.bf16.gmra.mxu0 %v3935
      %v4044 = vpop.f32.mrf.mxu0
      %v4045 = vadd.f32 0.0, %v4044
      %v4046 = vpop.f32.mrf.mxu0
      %v4047 = vadd.f32 0.0, %v4046
      %4048 = vmatmul.bf16.gmra.mxu0 %v3936
      %v4049 = vpop.f32.mrf.mxu0
      %v4050 = vadd.f32 0.0, %v4049
      %v4051 = vpop.f32.mrf.mxu0
      %v4052 = vadd.f32 0.0, %v4051
      %4053 = vmatmul.bf16.gmra.mxu0 %v3937
      %v4054 = vpop.f32.mrf.mxu0
      %v4055 = vadd.f32 0.0, %v4054
      %v4056 = vpop.f32.mrf.mxu0
      %v4057 = vadd.f32 0.0, %v4056
      %4058 = vmatmul.bf16.gmra.mxu0 %v3938
      %v4059 = vpop.f32.mrf.mxu0
      %v4060 = vadd.f32 0.0, %v4059
      %v4061 = vpop.f32.mrf.mxu0
      %v4062 = vadd.f32 0.0, %v4061
      %4063 = vmatmul.bf16.gmra.mxu0 %v3939
      %v4064 = vpop.f32.mrf.mxu0
      %v4065 = vadd.f32 0.0, %v4064
      %v4066 = vpop.f32.mrf.mxu0
      %v4067 = vadd.f32 0.0, %v4066
      %4068 = vmatmul.bf16.gmra.mxu0 %v3940
      %v4069 = vpop.f32.mrf.mxu0
      %v4070 = vadd.f32 0.0, %v4069
      %v4071 = vpop.f32.mrf.mxu0
      %v4072 = vadd.f32 0.0, %v4071
      %4073 = vmatmul.bf16.gmra.mxu0 %v3941
      %v4074 = vpop.f32.mrf.mxu0
      %v4075 = vadd.f32 0.0, %v4074
      %v4076 = vpop.f32.mrf.mxu0
      %v4077 = vadd.f32 0.0, %v4076
      %4078 = vmatmul.bf16.gmra.mxu0 %v3942
      %v4079 = vpop.f32.mrf.mxu0
      %v4080 = vadd.f32 0.0, %v4079
      %v4081 = vpop.f32.mrf.mxu0
      %v4082 = vadd.f32 0.0, %v4081
      %4083 = vmatmul.bf16.gmra.mxu0 %v3943
      %v4084 = vpop.f32.mrf.mxu0
      %v4085 = vadd.f32 0.0, %v4084
      %v4086 = vpop.f32.mrf.mxu0
      %v4087 = vadd.f32 0.0, %v4086
      %4088 = vmatmul.bf16.gmra.mxu0 %v3944
      %v4089 = vpop.f32.mrf.mxu0
      %v4090 = vadd.f32 0.0, %v4089
      %v4091 = vpop.f32.mrf.mxu0
      %v4092 = vadd.f32 0.0, %v4091
      %4093 = vmatmul.bf16.gmra.mxu0 %v3945
      %v4094 = vpop.f32.mrf.mxu0
      %v4095 = vadd.f32 0.0, %v4094
      %v4096 = vpop.f32.mrf.mxu0
      %v4097 = vadd.f32 0.0, %v4096
      %4098 = vdwg.mxu0
      %v4099 = vld [vmem:[#allocation4] sm:$0xff]
      %v4100 = vld [vmem:[#allocation4 + $0x8] sm:$0xff]
      %v4101 = vld [vmem:[#allocation4 + $0x10] sm:$0xff]
      %v4102 = vld [vmem:[#allocation4 + $0x18] sm:$0xff]
      %v4103 = vld [vmem:[#allocation4 + $0x20] sm:$0xff]
      %v4104 = vld [vmem:[#allocation4 + $0x28] sm:$0xff]
      %v4105 = vld [vmem:[#allocation4 + $0x30] sm:$0xff]
      %v4106 = vld [vmem:[#allocation4 + $0x38] sm:$0xff]
      %v4107 = vld [vmem:[#allocation4 + $0x40] sm:$0xff]
      %v4108 = vld [vmem:[#allocation4 + $0x48] sm:$0xff]
      %v4109 = vld [vmem:[#allocation4 + $0x50] sm:$0xff]
      %v4110 = vld [vmem:[#allocation4 + $0x58] sm:$0xff]
      %v4111 = vld [vmem:[#allocation4 + $0x60] sm:$0xff]
      %v4112 = vld [vmem:[#allocation4 + $0x68] sm:$0xff]
      %v4113 = vld [vmem:[#allocation4 + $0x70] sm:$0xff]
      %v4114 = vld [vmem:[#allocation4 + $0x78] sm:$0xff]
      %v4115 = vld [vmem:[#allocation4 + $0x80] sm:$0xff]
      %v4116 = vld [vmem:[#allocation4 + $0x88] sm:$0xff]
      %v4117 = vld [vmem:[#allocation4 + $0x90] sm:$0xff]
      %v4118 = vld [vmem:[#allocation4 + $0x98] sm:$0xff]
      %v4119 = vld [vmem:[#allocation4 + $0xa0] sm:$0xff]
      %v4120 = vld [vmem:[#allocation4 + $0xa8] sm:$0xff]
      %v4121 = vld [vmem:[#allocation4 + $0xb0] sm:$0xff]
      %v4122 = vld [vmem:[#allocation4 + $0xb8] sm:$0xff]
      %v4123 = vld [vmem:[#allocation4 + $0xc0] sm:$0xff]
      %v4124 = vld [vmem:[#allocation4 + $0xc8] sm:$0xff]
      %v4125 = vld [vmem:[#allocation4 + $0xd0] sm:$0xff]
      %v4126 = vld [vmem:[#allocation4 + $0xd8] sm:$0xff]
      %v4127 = vld [vmem:[#allocation4 + $0xe0] sm:$0xff]
      %v4128 = vld [vmem:[#allocation4 + $0xe8] sm:$0xff]
      %v4129 = vld [vmem:[#allocation4 + $0xf0] sm:$0xff]
      %v4130 = vld [vmem:[#allocation4 + $0xf8] sm:$0xff]
      %v4131 = vadd.f32 %v4099, %v4020
      %v4132 = vadd.f32 %v4100, %v4022
      %v4133 = vadd.f32 %v4101, %v4025
      %v4134 = vadd.f32 %v4102, %v4027
      %v4135 = vadd.f32 %v4103, %v4030
      %v4136 = vadd.f32 %v4104, %v4032
      %v4137 = vadd.f32 %v4105, %v4035
      %v4138 = vadd.f32 %v4106, %v4037
      %v4139 = vadd.f32 %v4107, %v4040
      %v4140 = vadd.f32 %v4108, %v4042
      %v4141 = vadd.f32 %v4109, %v4045
      %v4142 = vadd.f32 %v4110, %v4047
      %v4143 = vadd.f32 %v4111, %v4050
      %v4144 = vadd.f32 %v4112, %v4052
      %v4145 = vadd.f32 %v4113, %v4055
      %v4146 = vadd.f32 %v4114, %v4057
      %v4147 = vadd.f32 %v4115, %v4060
      %v4148 = vadd.f32 %v4116, %v4062
      %v4149 = vadd.f32 %v4117, %v4065
      %v4150 = vadd.f32 %v4118, %v4067
      %v4151 = vadd.f32 %v4119, %v4070
      %v4152 = vadd.f32 %v4120, %v4072
      %v4153 = vadd.f32 %v4121, %v4075
      %v4154 = vadd.f32 %v4122, %v4077
      %v4155 = vadd.f32 %v4123, %v4080
      %v4156 = vadd.f32 %v4124, %v4082
      %v4157 = vadd.f32 %v4125, %v4085
      %v4158 = vadd.f32 %v4126, %v4087
      %v4159 = vadd.f32 %v4127, %v4090
      %v4160 = vadd.f32 %v4128, %v4092
      %v4161 = vadd.f32 %v4129, %v4095
      %v4162 = vadd.f32 %v4130, %v4097
      %4163 = vst [vmem:[#allocation4] sm:$0xff] %v4131
      %4164 = vst [vmem:[#allocation4 + $0x8] sm:$0xff] %v4132
      %4165 = vst [vmem:[#allocation4 + $0x10] sm:$0xff] %v4133
      %4166 = vst [vmem:[#allocation4 + $0x18] sm:$0xff] %v4134
      %4167 = vst [vmem:[#allocation4 + $0x20] sm:$0xff] %v4135
      %4168 = vst [vmem:[#allocation4 + $0x28] sm:$0xff] %v4136
      %4169 = vst [vmem:[#allocation4 + $0x30] sm:$0xff] %v4137
      %4170 = vst [vmem:[#allocation4 + $0x38] sm:$0xff] %v4138
      %4171 = vst [vmem:[#allocation4 + $0x40] sm:$0xff] %v4139
      %4172 = vst [vmem:[#allocation4 + $0x48] sm:$0xff] %v4140
      %4173 = vst [vmem:[#allocation4 + $0x50] sm:$0xff] %v4141
      %4174 = vst [vmem:[#allocation4 + $0x58] sm:$0xff] %v4142
      %4175 = vst [vmem:[#allocation4 + $0x60] sm:$0xff] %v4143
      %4176 = vst [vmem:[#allocation4 + $0x68] sm:$0xff] %v4144
      %4177 = vst [vmem:[#allocation4 + $0x70] sm:$0xff] %v4145
      %4178 = vst [vmem:[#allocation4 + $0x78] sm:$0xff] %v4146
      %4179 = vst [vmem:[#allocation4 + $0x80] sm:$0xff] %v4147
      %4180 = vst [vmem:[#allocation4 + $0x88] sm:$0xff] %v4148
      %4181 = vst [vmem:[#allocation4 + $0x90] sm:$0xff] %v4149
      %4182 = vst [vmem:[#allocation4 + $0x98] sm:$0xff] %v4150
      %4183 = vst [vmem:[#allocation4 + $0xa0] sm:$0xff] %v4151
      %4184 = vst [vmem:[#allocation4 + $0xa8] sm:$0xff] %v4152
      %4185 = vst [vmem:[#allocation4 + $0xb0] sm:$0xff] %v4153
      %4186 = vst [vmem:[#allocation4 + $0xb8] sm:$0xff] %v4154
      %4187 = vst [vmem:[#allocation4 + $0xc0] sm:$0xff] %v4155
      %4188 = vst [vmem:[#allocation4 + $0xc8] sm:$0xff] %v4156
      %4189 = vst [vmem:[#allocation4 + $0xd0] sm:$0xff] %v4157
      %4190 = vst [vmem:[#allocation4 + $0xd8] sm:$0xff] %v4158
      %4191 = vst [vmem:[#allocation4 + $0xe0] sm:$0xff] %v4159
      %4192 = vst [vmem:[#allocation4 + $0xe8] sm:$0xff] %v4160
      %4193 = vst [vmem:[#allocation4 + $0xf0] sm:$0xff] %v4161
      %4194 = vst [vmem:[#allocation4 + $0xf8] sm:$0xff] %v4162
      %s4195 = scalar_lea.vmem [#allocation2], 24
      %v4196 = vld [vmem:[%s4195] sm:$0xf]
      %v4197 = vld [vmem:[%s4195 + $0x4] sm:$0xf]
      %v4198 = vld [vmem:[%s4195 + $0xc] sm:$0xf]
      %v4199 = vld [vmem:[%s4195 + $0x10] sm:$0xf]
      %v4200 = vld [vmem:[%s4195 + $0x18] sm:$0xf]
      %v4201 = vld [vmem:[%s4195 + $0x1c] sm:$0xf]
      %v4202 = vld [vmem:[%s4195 + $0x24] sm:$0xf]
      %v4203 = vld [vmem:[%s4195 + $0x28] sm:$0xf]
      %v4204 = vld [vmem:[%s4195 + $0x30] sm:$0xf]
      %v4205 = vld [vmem:[%s4195 + $0x34] sm:$0xf]
      %v4206 = vld [vmem:[%s4195 + $0x3c] sm:$0xf]
      %v4207 = vld [vmem:[%s4195 + $0x40] sm:$0xf]
      %v4208 = vld [vmem:[%s4195 + $0x48] sm:$0xf]
      %v4209 = vld [vmem:[%s4195 + $0x4c] sm:$0xf]
      %v4210 = vld [vmem:[%s4195 + $0x54] sm:$0xf]
      %v4211 = vld [vmem:[%s4195 + $0x58] sm:$0xf]
      %v4212 = vld [vmem:[%s4195 + $0x60] sm:$0xf]
      %v4213 = vld [vmem:[%s4195 + $0x64] sm:$0xf]
      %v4214 = vld [vmem:[%s4195 + $0x6c] sm:$0xf]
      %v4215 = vld [vmem:[%s4195 + $0x70] sm:$0xf]
      %v4216 = vld [vmem:[%s4195 + $0x78] sm:$0xf]
      %v4217 = vld [vmem:[%s4195 + $0x7c] sm:$0xf]
      %v4218 = vld [vmem:[%s4195 + $0x84] sm:$0xf]
      %v4219 = vld [vmem:[%s4195 + $0x88] sm:$0xf]
      %v4220 = vld [vmem:[%s4195 + $0x90] sm:$0xf]
      %v4221 = vld [vmem:[%s4195 + $0x94] sm:$0xf]
      %v4222 = vld [vmem:[%s4195 + $0x9c] sm:$0xf]
      %v4223 = vld [vmem:[%s4195 + $0xa0] sm:$0xf]
      %v4224 = vld [vmem:[%s4195 + $0xa8] sm:$0xf]
      %v4225 = vld [vmem:[%s4195 + $0xac] sm:$0xf]
      %v4226 = vld [vmem:[%s4195 + $0xb4] sm:$0xf]
      %v4227 = vld [vmem:[%s4195 + $0xb8] sm:$0xf]
      %s4228 = scalar_lea.vmem %s1, 384
      %v4229 = vld [vmem:[%s4228] sm:$0xf]
      %v4230 = vld [vmem:[%s4228 + $0x4] sm:$0xf]
      %v4231 = vld [vmem:[%s4228 + $0x8] sm:$0xf]
      %v4232 = vld [vmem:[%s4228 + $0xc] sm:$0xf]
      %v4233 = vld [vmem:[%s4228 + $0x10] sm:$0xf]
      %v4234 = vld [vmem:[%s4228 + $0x14] sm:$0xf]
      %v4235 = vld [vmem:[%s4228 + $0x18] sm:$0xf]
      %v4236 = vld [vmem:[%s4228 + $0x1c] sm:$0xf]
      %v4237 = vld [vmem:[%s4228 + $0x20] sm:$0xf]
      %v4238 = vld [vmem:[%s4228 + $0x24] sm:$0xf]
      %v4239 = vld [vmem:[%s4228 + $0x28] sm:$0xf]
      %v4240 = vld [vmem:[%s4228 + $0x2c] sm:$0xf]
      %v4241 = vld [vmem:[%s4228 + $0x30] sm:$0xf]
      %v4242 = vld [vmem:[%s4228 + $0x34] sm:$0xf]
      %v4243 = vld [vmem:[%s4228 + $0x38] sm:$0xf]
      %v4244 = vld [vmem:[%s4228 + $0x3c] sm:$0xf]
      %v4277 = vunpack.c.l.b16 %v4196
      %v4278 = vunpack.c.l.b16 %v4197
      %v4279 = vunpack.c.l.b16 %v4198
      %v4280 = vunpack.c.l.b16 %v4199
      %v4281 = vunpack.c.l.b16 %v4200
      %v4282 = vunpack.c.l.b16 %v4201
      %v4283 = vunpack.c.l.b16 %v4202
      %v4284 = vunpack.c.l.b16 %v4203
      %v4285 = vunpack.c.l.b16 %v4204
      %v4286 = vunpack.c.l.b16 %v4205
      %v4287 = vunpack.c.l.b16 %v4206
      %v4288 = vunpack.c.l.b16 %v4207
      %v4289 = vunpack.c.l.b16 %v4208
      %v4290 = vunpack.c.l.b16 %v4209
      %v4291 = vunpack.c.l.b16 %v4210
      %v4292 = vunpack.c.l.b16 %v4211
      %v4293 = vunpack.c.l.b16 %v4212
      %v4294 = vunpack.c.l.b16 %v4213
      %v4295 = vunpack.c.l.b16 %v4214
      %v4296 = vunpack.c.l.b16 %v4215
      %v4297 = vunpack.c.l.b16 %v4216
      %v4298 = vunpack.c.l.b16 %v4217
      %v4299 = vunpack.c.l.b16 %v4218
      %v4300 = vunpack.c.l.b16 %v4219
      %v4301 = vunpack.c.l.b16 %v4220
      %v4302 = vunpack.c.l.b16 %v4221
      %v4303 = vunpack.c.l.b16 %v4222
      %v4304 = vunpack.c.l.b16 %v4223
      %v4305 = vunpack.c.l.b16 %v4224
      %v4306 = vunpack.c.l.b16 %v4225
      %v4307 = vunpack.c.l.b16 %v4226
      %v4308 = vunpack.c.l.b16 %v4227
      %v4309 = vpack.c.b16 %v4278, %v4277
      %v4310 = vpack.c.b16 %v4280, %v4279
      %v4311 = vpack.c.b16 %v4282, %v4281
      %v4312 = vpack.c.b16 %v4284, %v4283
      %v4313 = vpack.c.b16 %v4286, %v4285
      %v4314 = vpack.c.b16 %v4288, %v4287
      %v4315 = vpack.c.b16 %v4290, %v4289
      %v4316 = vpack.c.b16 %v4292, %v4291
      %v4317 = vpack.c.b16 %v4294, %v4293
      %v4318 = vpack.c.b16 %v4296, %v4295
      %v4319 = vpack.c.b16 %v4298, %v4297
      %v4320 = vpack.c.b16 %v4300, %v4299
      %v4321 = vpack.c.b16 %v4302, %v4301
      %v4322 = vpack.c.b16 %v4304, %v4303
      %v4323 = vpack.c.b16 %v4306, %v4305
      %v4324 = vpack.c.b16 %v4308, %v4307
      %v4357 = vunpack.c.l.b16 %v4229
      %v4358 = vunpack.c.l.b16 %v4230
      %v4359 = vunpack.c.l.b16 %v4231
      %v4360 = vunpack.c.l.b16 %v4232
      %v4361 = vunpack.c.l.b16 %v4233
      %v4362 = vunpack.c.l.b16 %v4234
      %v4363 = vunpack.c.l.b16 %v4235
      %v4364 = vunpack.c.l.b16 %v4236
      %v4365 = vunpack.c.l.b16 %v4237
      %v4366 = vunpack.c.l.b16 %v4238
      %v4367 = vunpack.c.l.b16 %v4239
      %v4368 = vunpack.c.l.b16 %v4240
      %v4369 = vunpack.c.l.b16 %v4241
      %v4370 = vunpack.c.l.b16 %v4242
      %v4371 = vunpack.c.l.b16 %v4243
      %v4372 = vunpack.c.l.b16 %v4244
      %v4373 = vpack.c.b16 %v4358, %v4357
      %v4374 = vpack.c.b16 %v4360, %v4359
      %v4375 = vpack.c.b16 %v4362, %v4361
      %v4376 = vpack.c.b16 %v4364, %v4363
      %v4377 = vpack.c.b16 %v4366, %v4365
      %v4378 = vpack.c.b16 %v4368, %v4367
      %v4379 = vpack.c.b16 %v4370, %v4369
      %v4380 = vpack.c.b16 %v4372, %v4371
      %4389 = vmatpush.bf16.msra.mxu0 %v4380
      %4390 = vmatpush.bf16.msra.mxu0 %v4379
      %4391 = vmatpush.bf16.msra.mxu0 %v4378
      %4392 = vmatpush.bf16.msra.mxu0 %v4377
      %4393 = vmatpush.bf16.msra.mxu0 %v4376
      %4394 = vmatpush.bf16.msra.mxu0 %v4375
      %4395 = vmatpush.bf16.msra.mxu0 %v4374
      %4396 = vmatpush.bf16.msra.mxu0 %v4373
      %4397 = vmatmul.bf16.gmra.mxu0 %v4309
      %v4398 = vpop.f32.mrf.mxu0
      %v4399 = vadd.f32 0.0, %v4398
      %v4400 = vpop.f32.mrf.mxu0
      %v4401 = vadd.f32 0.0, %v4400
      %4402 = vmatmul.bf16.gmra.mxu0 %v4310
      %v4403 = vpop.f32.mrf.mxu0
      %v4404 = vadd.f32 0.0, %v4403
      %v4405 = vpop.f32.mrf.mxu0
      %v4406 = vadd.f32 0.0, %v4405
      %4407 = vmatmul.bf16.gmra.mxu0 %v4311
      %v4408 = vpop.f32.mrf.mxu0
      %v4409 = vadd.f32 0.0, %v4408
      %v4410 = vpop.f32.mrf.mxu0
      %v4411 = vadd.f32 0.0, %v4410
      %4412 = vmatmul.bf16.gmra.mxu0 %v4312
      %v4413 = vpop.f32.mrf.mxu0
      %v4414 = vadd.f32 0.0, %v4413
      %v4415 = vpop.f32.mrf.mxu0
      %v4416 = vadd.f32 0.0, %v4415
      %4417 = vmatmul.bf16.gmra.mxu0 %v4313
      %v4418 = vpop.f32.mrf.mxu0
      %v4419 = vadd.f32 0.0, %v4418
      %v4420 = vpop.f32.mrf.mxu0
      %v4421 = vadd.f32 0.0, %v4420
      %4422 = vmatmul.bf16.gmra.mxu0 %v4314
      %v4423 = vpop.f32.mrf.mxu0
      %v4424 = vadd.f32 0.0, %v4423
      %v4425 = vpop.f32.mrf.mxu0
      %v4426 = vadd.f32 0.0, %v4425
      %4427 = vmatmul.bf16.gmra.mxu0 %v4315
      %v4428 = vpop.f32.mrf.mxu0
      %v4429 = vadd.f32 0.0, %v4428
      %v4430 = vpop.f32.mrf.mxu0
      %v4431 = vadd.f32 0.0, %v4430
      %4432 = vmatmul.bf16.gmra.mxu0 %v4316
      %v4433 = vpop.f32.mrf.mxu0
      %v4434 = vadd.f32 0.0, %v4433
      %v4435 = vpop.f32.mrf.mxu0
      %v4436 = vadd.f32 0.0, %v4435
      %4437 = vmatmul.bf16.gmra.mxu0 %v4317
      %v4438 = vpop.f32.mrf.mxu0
      %v4439 = vadd.f32 0.0, %v4438
      %v4440 = vpop.f32.mrf.mxu0
      %v4441 = vadd.f32 0.0, %v4440
      %4442 = vmatmul.bf16.gmra.mxu0 %v4318
      %v4443 = vpop.f32.mrf.mxu0
      %v4444 = vadd.f32 0.0, %v4443
      %v4445 = vpop.f32.mrf.mxu0
      %v4446 = vadd.f32 0.0, %v4445
      %4447 = vmatmul.bf16.gmra.mxu0 %v4319
      %v4448 = vpop.f32.mrf.mxu0
      %v4449 = vadd.f32 0.0, %v4448
      %v4450 = vpop.f32.mrf.mxu0
      %v4451 = vadd.f32 0.0, %v4450
      %4452 = vmatmul.bf16.gmra.mxu0 %v4320
      %v4453 = vpop.f32.mrf.mxu0
      %v4454 = vadd.f32 0.0, %v4453
      %v4455 = vpop.f32.mrf.mxu0
      %v4456 = vadd.f32 0.0, %v4455
      %4457 = vmatmul.bf16.gmra.mxu0 %v4321
      %v4458 = vpop.f32.mrf.mxu0
      %v4459 = vadd.f32 0.0, %v4458
      %v4460 = vpop.f32.mrf.mxu0
      %v4461 = vadd.f32 0.0, %v4460
      %4462 = vmatmul.bf16.gmra.mxu0 %v4322
      %v4463 = vpop.f32.mrf.mxu0
      %v4464 = vadd.f32 0.0, %v4463
      %v4465 = vpop.f32.mrf.mxu0
      %v4466 = vadd.f32 0.0, %v4465
      %4467 = vmatmul.bf16.gmra.mxu0 %v4323
      %v4468 = vpop.f32.mrf.mxu0
      %v4469 = vadd.f32 0.0, %v4468
      %v4470 = vpop.f32.mrf.mxu0
      %v4471 = vadd.f32 0.0, %v4470
      %4472 = vmatmul.bf16.gmra.mxu0 %v4324
      %v4473 = vpop.f32.mrf.mxu0
      %v4474 = vadd.f32 0.0, %v4473
      %v4475 = vpop.f32.mrf.mxu0
      %v4476 = vadd.f32 0.0, %v4475
      %4477 = vdwg.mxu0
      %v4478 = vld [vmem:[#allocation4] sm:$0xff]
      %v4479 = vld [vmem:[#allocation4 + $0x8] sm:$0xff]
      %v4480 = vld [vmem:[#allocation4 + $0x10] sm:$0xff]
      %v4481 = vld [vmem:[#allocation4 + $0x18] sm:$0xff]
      %v4482 = vld [vmem:[#allocation4 + $0x20] sm:$0xff]
      %v4483 = vld [vmem:[#allocation4 + $0x28] sm:$0xff]
      %v4484 = vld [vmem:[#allocation4 + $0x30] sm:$0xff]
      %v4485 = vld [vmem:[#allocation4 + $0x38] sm:$0xff]
      %v4486 = vld [vmem:[#allocation4 + $0x40] sm:$0xff]
      %v4487 = vld [vmem:[#allocation4 + $0x48] sm:$0xff]
      %v4488 = vld [vmem:[#allocation4 + $0x50] sm:$0xff]
      %v4489 = vld [vmem:[#allocation4 + $0x58] sm:$0xff]
      %v4490 = vld [vmem:[#allocation4 + $0x60] sm:$0xff]
      %v4491 = vld [vmem:[#allocation4 + $0x68] sm:$0xff]
      %v4492 = vld [vmem:[#allocation4 + $0x70] sm:$0xff]
      %v4493 = vld [vmem:[#allocation4 + $0x78] sm:$0xff]
      %v4494 = vld [vmem:[#allocation4 + $0x80] sm:$0xff]
      %v4495 = vld [vmem:[#allocation4 + $0x88] sm:$0xff]
      %v4496 = vld [vmem:[#allocation4 + $0x90] sm:$0xff]
      %v4497 = vld [vmem:[#allocation4 + $0x98] sm:$0xff]
      %v4498 = vld [vmem:[#allocation4 + $0xa0] sm:$0xff]
      %v4499 = vld [vmem:[#allocation4 + $0xa8] sm:$0xff]
      %v4500 = vld [vmem:[#allocation4 + $0xb0] sm:$0xff]
      %v4501 = vld [vmem:[#allocation4 + $0xb8] sm:$0xff]
      %v4502 = vld [vmem:[#allocation4 + $0xc0] sm:$0xff]
      %v4503 = vld [vmem:[#allocation4 + $0xc8] sm:$0xff]
      %v4504 = vld [vmem:[#allocation4 + $0xd0] sm:$0xff]
      %v4505 = vld [vmem:[#allocation4 + $0xd8] sm:$0xff]
      %v4506 = vld [vmem:[#allocation4 + $0xe0] sm:$0xff]
      %v4507 = vld [vmem:[#allocation4 + $0xe8] sm:$0xff]
      %v4508 = vld [vmem:[#allocation4 + $0xf0] sm:$0xff]
      %v4509 = vld [vmem:[#allocation4 + $0xf8] sm:$0xff]
      %v4510 = vadd.f32 %v4478, %v4399
      %v4511 = vadd.f32 %v4479, %v4401
      %v4512 = vadd.f32 %v4480, %v4404
      %v4513 = vadd.f32 %v4481, %v4406
      %v4514 = vadd.f32 %v4482, %v4409
      %v4515 = vadd.f32 %v4483, %v4411
      %v4516 = vadd.f32 %v4484, %v4414
      %v4517 = vadd.f32 %v4485, %v4416
      %v4518 = vadd.f32 %v4486, %v4419
      %v4519 = vadd.f32 %v4487, %v4421
      %v4520 = vadd.f32 %v4488, %v4424
      %v4521 = vadd.f32 %v4489, %v4426
      %v4522 = vadd.f32 %v4490, %v4429
      %v4523 = vadd.f32 %v4491, %v4431
      %v4524 = vadd.f32 %v4492, %v4434
      %v4525 = vadd.f32 %v4493, %v4436
      %v4526 = vadd.f32 %v4494, %v4439
      %v4527 = vadd.f32 %v4495, %v4441
      %v4528 = vadd.f32 %v4496, %v4444
      %v4529 = vadd.f32 %v4497, %v4446
      %v4530 = vadd.f32 %v4498, %v4449
      %v4531 = vadd.f32 %v4499, %v4451
      %v4532 = vadd.f32 %v4500, %v4454
      %v4533 = vadd.f32 %v4501, %v4456
      %v4534 = vadd.f32 %v4502, %v4459
      %v4535 = vadd.f32 %v4503, %v4461
      %v4536 = vadd.f32 %v4504, %v4464
      %v4537 = vadd.f32 %v4505, %v4466
      %v4538 = vadd.f32 %v4506, %v4469
      %v4539 = vadd.f32 %v4507, %v4471
      %v4540 = vadd.f32 %v4508, %v4474
      %v4541 = vadd.f32 %v4509, %v4476
      %4542 = vst [vmem:[#allocation4] sm:$0xff] %v4510
      %4543 = vst [vmem:[#allocation4 + $0x8] sm:$0xff] %v4511
      %4544 = vst [vmem:[#allocation4 + $0x10] sm:$0xff] %v4512
      %4545 = vst [vmem:[#allocation4 + $0x18] sm:$0xff] %v4513
      %4546 = vst [vmem:[#allocation4 + $0x20] sm:$0xff] %v4514
      %4547 = vst [vmem:[#allocation4 + $0x28] sm:$0xff] %v4515
      %4548 = vst [vmem:[#allocation4 + $0x30] sm:$0xff] %v4516
      %4549 = vst [vmem:[#allocation4 + $0x38] sm:$0xff] %v4517
      %4550 = vst [vmem:[#allocation4 + $0x40] sm:$0xff] %v4518
      %4551 = vst [vmem:[#allocation4 + $0x48] sm:$0xff] %v4519
      %4552 = vst [vmem:[#allocation4 + $0x50] sm:$0xff] %v4520
      %4553 = vst [vmem:[#allocation4 + $0x58] sm:$0xff] %v4521
      %4554 = vst [vmem:[#allocation4 + $0x60] sm:$0xff] %v4522
      %4555 = vst [vmem:[#allocation4 + $0x68] sm:$0xff] %v4523
      %4556 = vst [vmem:[#allocation4 + $0x70] sm:$0xff] %v4524
      %4557 = vst [vmem:[#allocation4 + $0x78] sm:$0xff] %v4525
      %4558 = vst [vmem:[#allocation4 + $0x80] sm:$0xff] %v4526
      %4559 = vst [vmem:[#allocation4 + $0x88] sm:$0xff] %v4527
      %4560 = vst [vmem:[#allocation4 + $0x90] sm:$0xff] %v4528
      %4561 = vst [vmem:[#allocation4 + $0x98] sm:$0xff] %v4529
      %4562 = vst [vmem:[#allocation4 + $0xa0] sm:$0xff] %v4530
      %4563 = vst [vmem:[#allocation4 + $0xa8] sm:$0xff] %v4531
      %4564 = vst [vmem:[#allocation4 + $0xb0] sm:$0xff] %v4532
      %4565 = vst [vmem:[#allocation4 + $0xb8] sm:$0xff] %v4533
      %4566 = vst [vmem:[#allocation4 + $0xc0] sm:$0xff] %v4534
      %4567 = vst [vmem:[#allocation4 + $0xc8] sm:$0xff] %v4535
      %4568 = vst [vmem:[#allocation4 + $0xd0] sm:$0xff] %v4536
      %4569 = vst [vmem:[#allocation4 + $0xd8] sm:$0xff] %v4537
      %4570 = vst [vmem:[#allocation4 + $0xe0] sm:$0xff] %v4538
      %4571 = vst [vmem:[#allocation4 + $0xe8] sm:$0xff] %v4539
      %4572 = vst [vmem:[#allocation4 + $0xf0] sm:$0xff] %v4540
      %4573 = vst [vmem:[#allocation4 + $0xf8] sm:$0xff] %v4541
      %v4574 = vld [vmem:[%s4195] sm:$0xf]
      %v4575 = vld [vmem:[%s4195 + $0x4] sm:$0xf]
      %v4576 = vld [vmem:[%s4195 + $0x8] sm:$0x1]
      %v4577 = vld [vmem:[%s4195 + $0xc] sm:$0xf]
      %v4578 = vld [vmem:[%s4195 + $0x10] sm:$0xf]
      %v4579 = vld [vmem:[%s4195 + $0x14] sm:$0x1]
      %v4580 = vld [vmem:[%s4195 + $0x18] sm:$0xf]
      %v4581 = vld [vmem:[%s4195 + $0x1c] sm:$0xf]
      %v4582 = vld [vmem:[%s4195 + $0x20] sm:$0x1]
      %v4583 = vld [vmem:[%s4195 + $0x24] sm:$0xf]
      %v4584 = vld [vmem:[%s4195 + $0x28] sm:$0xf]
      %v4585 = vld [vmem:[%s4195 + $0x2c] sm:$0x1]
      %v4586 = vld [vmem:[%s4195 + $0x30] sm:$0xf]
      %v4587 = vld [vmem:[%s4195 + $0x34] sm:$0xf]
      %v4588 = vld [vmem:[%s4195 + $0x38] sm:$0x1]
      %v4589 = vld [vmem:[%s4195 + $0x3c] sm:$0xf]
      %v4590 = vld [vmem:[%s4195 + $0x40] sm:$0xf]
      %v4591 = vld [vmem:[%s4195 + $0x44] sm:$0x1]
      %v4592 = vld [vmem:[%s4195 + $0x48] sm:$0xf]
      %v4593 = vld [vmem:[%s4195 + $0x4c] sm:$0xf]
      %v4594 = vld [vmem:[%s4195 + $0x50] sm:$0x1]
      %v4595 = vld [vmem:[%s4195 + $0x54] sm:$0xf]
      %v4596 = vld [vmem:[%s4195 + $0x58] sm:$0xf]
      %v4597 = vld [vmem:[%s4195 + $0x5c] sm:$0x1]
      %v4598 = vld [vmem:[%s4195 + $0x60] sm:$0xf]
      %v4599 = vld [vmem:[%s4195 + $0x64] sm:$0xf]
      %v4600 = vld [vmem:[%s4195 + $0x68] sm:$0x1]
      %v4601 = vld [vmem:[%s4195 + $0x6c] sm:$0xf]
      %v4602 = vld [vmem:[%s4195 + $0x70] sm:$0xf]
      %v4603 = vld [vmem:[%s4195 + $0x74] sm:$0x1]
      %v4604 = vld [vmem:[%s4195 + $0x78] sm:$0xf]
      %v4605 = vld [vmem:[%s4195 + $0x7c] sm:$0xf]
      %v4606 = vld [vmem:[%s4195 + $0x80] sm:$0x1]
      %v4607 = vld [vmem:[%s4195 + $0x84] sm:$0xf]
      %v4608 = vld [vmem:[%s4195 + $0x88] sm:$0xf]
      %v4609 = vld [vmem:[%s4195 + $0x8c] sm:$0x1]
      %v4610 = vld [vmem:[%s4195 + $0x90] sm:$0xf]
      %v4611 = vld [vmem:[%s4195 + $0x94] sm:$0xf]
      %v4612 = vld [vmem:[%s4195 + $0x98] sm:$0x1]
      %v4613 = vld [vmem:[%s4195 + $0x9c] sm:$0xf]
      %v4614 = vld [vmem:[%s4195 + $0xa0] sm:$0xf]
      %v4615 = vld [vmem:[%s4195 + $0xa4] sm:$0x1]
      %v4616 = vld [vmem:[%s4195 + $0xa8] sm:$0xf]
      %v4617 = vld [vmem:[%s4195 + $0xac] sm:$0xf]
      %v4618 = vld [vmem:[%s4195 + $0xb0] sm:$0x1]
      %v4619 = vld [vmem:[%s4195 + $0xb4] sm:$0xf]
      %v4620 = vld [vmem:[%s4195 + $0xb8] sm:$0xf]
      %v4621 = vld [vmem:[%s4195 + $0xbc] sm:$0x1]
      %v4623 = vshrl.u32 %v4574, 16
      %v4625 = vrot.slane %v4623, 4
      %v4626 = vshll.u32 %v4574, 16
      %v4628 = vrot.slane %v4626, 5
      %v4629 = vor.u32 %v4625, %v4628
      %v4630 = vrot.slane %v4629, 4
      %v4632 = vshll.u32 %v4575, 16
      %v4634 = vrot.slane %v4632, 5
      %v4635 = vsel %vm1325, %v4630, %v4634
      %v4636 = vshrl.u32 %v4575, 16
      %v4638 = vrot.slane %v4636, 4
      %v4639 = vor.u32 %v4638, %v4634
      %v4640 = vrot.slane %v4639, 4
      %v4642 = vshll.u32 %v4576, 16
      %v4644 = vrot.slane %v4642, 5
      %v4645 = vsel %vm1325, %v4640, %v4644
      %v4647 = vshrl.u32 %v4577, 16
      %v4649 = vrot.slane %v4647, 4
      %v4650 = vshll.u32 %v4577, 16
      %v4652 = vrot.slane %v4650, 5
      %v4653 = vor.u32 %v4649, %v4652
      %v4654 = vrot.slane %v4653, 4
      %v4656 = vshll.u32 %v4578, 16
      %v4658 = vrot.slane %v4656, 5
      %v4659 = vsel %vm1325, %v4654, %v4658
      %v4660 = vshrl.u32 %v4578, 16
      %v4662 = vrot.slane %v4660, 4
      %v4663 = vor.u32 %v4662, %v4658
      %v4664 = vrot.slane %v4663, 4
      %v4666 = vshll.u32 %v4579, 16
      %v4668 = vrot.slane %v4666, 5
      %v4669 = vsel %vm1325, %v4664, %v4668
      %v4671 = vshrl.u32 %v4580, 16
      %v4673 = vrot.slane %v4671, 4
      %v4674 = vshll.u32 %v4580, 16
      %v4676 = vrot.slane %v4674, 5
      %v4677 = vor.u32 %v4673, %v4676
      %v4678 = vrot.slane %v4677, 4
      %v4680 = vshll.u32 %v4581, 16
      %v4682 = vrot.slane %v4680, 5
      %v4683 = vsel %vm1325, %v4678, %v4682
      %v4684 = vshrl.u32 %v4581, 16
      %v4686 = vrot.slane %v4684, 4
      %v4687 = vor.u32 %v4686, %v4682
      %v4688 = vrot.slane %v4687, 4
      %v4690 = vshll.u32 %v4582, 16
      %v4692 = vrot.slane %v4690, 5
      %v4693 = vsel %vm1325, %v4688, %v4692
      %v4695 = vshrl.u32 %v4583, 16
      %v4697 = vrot.slane %v4695, 4
      %v4698 = vshll.u32 %v4583, 16
      %v4700 = vrot.slane %v4698, 5
      %v4701 = vor.u32 %v4697, %v4700
      %v4702 = vrot.slane %v4701, 4
      %v4704 = vshll.u32 %v4584, 16
      %v4706 = vrot.slane %v4704, 5
      %v4707 = vsel %vm1325, %v4702, %v4706
      %v4708 = vshrl.u32 %v4584, 16
      %v4710 = vrot.slane %v4708, 4
      %v4711 = vor.u32 %v4710, %v4706
      %v4712 = vrot.slane %v4711, 4
      %v4714 = vshll.u32 %v4585, 16
      %v4716 = vrot.slane %v4714, 5
      %v4717 = vsel %vm1325, %v4712, %v4716
      %v4719 = vshrl.u32 %v4586, 16
      %v4721 = vrot.slane %v4719, 4
      %v4722 = vshll.u32 %v4586, 16
      %v4724 = vrot.slane %v4722, 5
      %v4725 = vor.u32 %v4721, %v4724
      %v4726 = vrot.slane %v4725, 4
      %v4728 = vshll.u32 %v4587, 16
      %v4730 = vrot.slane %v4728, 5
      %v4731 = vsel %vm1325, %v4726, %v4730
      %v4732 = vshrl.u32 %v4587, 16
      %v4734 = vrot.slane %v4732, 4
      %v4735 = vor.u32 %v4734, %v4730
      %v4736 = vrot.slane %v4735, 4
      %v4738 = vshll.u32 %v4588, 16
      %v4740 = vrot.slane %v4738, 5
      %v4741 = vsel %vm1325, %v4736, %v4740
      %v4743 = vshrl.u32 %v4589, 16
      %v4745 = vrot.slane %v4743, 4
      %v4746 = vshll.u32 %v4589, 16
      %v4748 = vrot.slane %v4746, 5
      %v4749 = vor.u32 %v4745, %v4748
      %v4750 = vrot.slane %v4749, 4
      %v4752 = vshll.u32 %v4590, 16
      %v4754 = vrot.slane %v4752, 5
      %v4755 = vsel %vm1325, %v4750, %v4754
      %v4756 = vshrl.u32 %v4590, 16
      %v4758 = vrot.slane %v4756, 4
      %v4759 = vor.u32 %v4758, %v4754
      %v4760 = vrot.slane %v4759, 4
      %v4762 = vshll.u32 %v4591, 16
      %v4764 = vrot.slane %v4762, 5
      %v4765 = vsel %vm1325, %v4760, %v4764
      %v4767 = vshrl.u32 %v4592, 16
      %v4769 = vrot.slane %v4767, 4
      %v4770 = vshll.u32 %v4592, 16
      %v4772 = vrot.slane %v4770, 5
      %v4773 = vor.u32 %v4769, %v4772
      %v4774 = vrot.slane %v4773, 4
      %v4776 = vshll.u32 %v4593, 16
      %v4778 = vrot.slane %v4776, 5
      %v4779 = vsel %vm1325, %v4774, %v4778
      %v4780 = vshrl.u32 %v4593, 16
      %v4782 = vrot.slane %v4780, 4
      %v4783 = vor.u32 %v4782, %v4778
      %v4784 = vrot.slane %v4783, 4
      %v4786 = vshll.u32 %v4594, 16
      %v4788 = vrot.slane %v4786, 5
      %v4789 = vsel %vm1325, %v4784, %v4788
      %v4791 = vshrl.u32 %v4595, 16
      %v4793 = vrot.slane %v4791, 4
      %v4794 = vshll.u32 %v4595, 16
      %v4796 = vrot.slane %v4794, 5
      %v4797 = vor.u32 %v4793, %v4796
      %v4798 = vrot.slane %v4797, 4
      %v4800 = vshll.u32 %v4596, 16
      %v4802 = vrot.slane %v4800, 5
      %v4803 = vsel %vm1325, %v4798, %v4802
      %v4804 = vshrl.u32 %v4596, 16
      %v4806 = vrot.slane %v4804, 4
      %v4807 = vor.u32 %v4806, %v4802
      %v4808 = vrot.slane %v4807, 4
      %v4810 = vshll.u32 %v4597, 16
      %v4812 = vrot.slane %v4810, 5
      %v4813 = vsel %vm1325, %v4808, %v4812
      %v4815 = vshrl.u32 %v4598, 16
      %v4817 = vrot.slane %v4815, 4
      %v4818 = vshll.u32 %v4598, 16
      %v4820 = vrot.slane %v4818, 5
      %v4821 = vor.u32 %v4817, %v4820
      %v4822 = vrot.slane %v4821, 4
      %v4824 = vshll.u32 %v4599, 16
      %v4826 = vrot.slane %v4824, 5
      %v4827 = vsel %vm1325, %v4822, %v4826
      %v4828 = vshrl.u32 %v4599, 16
      %v4830 = vrot.slane %v4828, 4
      %v4831 = vor.u32 %v4830, %v4826
      %v4832 = vrot.slane %v4831, 4
      %v4834 = vshll.u32 %v4600, 16
      %v4836 = vrot.slane %v4834, 5
      %v4837 = vsel %vm1325, %v4832, %v4836
      %v4839 = vshrl.u32 %v4601, 16
      %v4841 = vrot.slane %v4839, 4
      %v4842 = vshll.u32 %v4601, 16
      %v4844 = vrot.slane %v4842, 5
      %v4845 = vor.u32 %v4841, %v4844
      %v4846 = vrot.slane %v4845, 4
      %v4848 = vshll.u32 %v4602, 16
      %v4850 = vrot.slane %v4848, 5
      %v4851 = vsel %vm1325, %v4846, %v4850
      %v4852 = vshrl.u32 %v4602, 16
      %v4854 = vrot.slane %v4852, 4
      %v4855 = vor.u32 %v4854, %v4850
      %v4856 = vrot.slane %v4855, 4
      %v4858 = vshll.u32 %v4603, 16
      %v4860 = vrot.slane %v4858, 5
      %v4861 = vsel %vm1325, %v4856, %v4860
      %v4863 = vshrl.u32 %v4604, 16
      %v4865 = vrot.slane %v4863, 4
      %v4866 = vshll.u32 %v4604, 16
      %v4868 = vrot.slane %v4866, 5
      %v4869 = vor.u32 %v4865, %v4868
      %v4870 = vrot.slane %v4869, 4
      %v4872 = vshll.u32 %v4605, 16
      %v4874 = vrot.slane %v4872, 5
      %v4875 = vsel %vm1325, %v4870, %v4874
      %v4876 = vshrl.u32 %v4605, 16
      %v4878 = vrot.slane %v4876, 4
      %v4879 = vor.u32 %v4878, %v4874
      %v4880 = vrot.slane %v4879, 4
      %v4882 = vshll.u32 %v4606, 16
      %v4884 = vrot.slane %v4882, 5
      %v4885 = vsel %vm1325, %v4880, %v4884
      %v4887 = vshrl.u32 %v4607, 16
      %v4889 = vrot.slane %v4887, 4
      %v4890 = vshll.u32 %v4607, 16
      %v4892 = vrot.slane %v4890, 5
      %v4893 = vor.u32 %v4889, %v4892
      %v4894 = vrot.slane %v4893, 4
      %v4896 = vshll.u32 %v4608, 16
      %v4898 = vrot.slane %v4896, 5
      %v4899 = vsel %vm1325, %v4894, %v4898
      %v4900 = vshrl.u32 %v4608, 16
      %v4902 = vrot.slane %v4900, 4
      %v4903 = vor.u32 %v4902, %v4898
      %v4904 = vrot.slane %v4903, 4
      %v4906 = vshll.u32 %v4609, 16
      %v4908 = vrot.slane %v4906, 5
      %v4909 = vsel %vm1325, %v4904, %v4908
      %v4911 = vshrl.u32 %v4610, 16
      %v4913 = vrot.slane %v4911, 4
      %v4914 = vshll.u32 %v4610, 16
      %v4916 = vrot.slane %v4914, 5
      %v4917 = vor.u32 %v4913, %v4916
      %v4918 = vrot.slane %v4917, 4
      %v4920 = vshll.u32 %v4611, 16
      %v4922 = vrot.slane %v4920, 5
      %v4923 = vsel %vm1325, %v4918, %v4922
      %v4924 = vshrl.u32 %v4611, 16
      %v4926 = vrot.slane %v4924, 4
      %v4927 = vor.u32 %v4926, %v4922
      %v4928 = vrot.slane %v4927, 4
      %v4930 = vshll.u32 %v4612, 16
      %v4932 = vrot.slane %v4930, 5
      %v4933 = vsel %vm1325, %v4928, %v4932
      %v4935 = vshrl.u32 %v4613, 16
      %v4937 = vrot.slane %v4935, 4
      %v4938 = vshll.u32 %v4613, 16
      %v4940 = vrot.slane %v4938, 5
      %v4941 = vor.u32 %v4937, %v4940
      %v4942 = vrot.slane %v4941, 4
      %v4944 = vshll.u32 %v4614, 16
      %v4946 = vrot.slane %v4944, 5
      %v4947 = vsel %vm1325, %v4942, %v4946
      %v4948 = vshrl.u32 %v4614, 16
      %v4950 = vrot.slane %v4948, 4
      %v4951 = vor.u32 %v4950, %v4946
      %v4952 = vrot.slane %v4951, 4
      %v4954 = vshll.u32 %v4615, 16
      %v4956 = vrot.slane %v4954, 5
      %v4957 = vsel %vm1325, %v4952, %v4956
      %v4959 = vshrl.u32 %v4616, 16
      %v4961 = vrot.slane %v4959, 4
      %v4962 = vshll.u32 %v4616, 16
      %v4964 = vrot.slane %v4962, 5
      %v4965 = vor.u32 %v4961, %v4964
      %v4966 = vrot.slane %v4965, 4
      %v4968 = vshll.u32 %v4617, 16
      %v4970 = vrot.slane %v4968, 5
      %v4971 = vsel %vm1325, %v4966, %v4970
      %v4972 = vshrl.u32 %v4617, 16
      %v4974 = vrot.slane %v4972, 4
      %v4975 = vor.u32 %v4974, %v4970
      %v4976 = vrot.slane %v4975, 4
      %v4978 = vshll.u32 %v4618, 16
      %v4980 = vrot.slane %v4978, 5
      %v4981 = vsel %vm1325, %v4976, %v4980
      %v4983 = vshrl.u32 %v4619, 16
      %v4985 = vrot.slane %v4983, 4
      %v4986 = vshll.u32 %v4619, 16
      %v4988 = vrot.slane %v4986, 5
      %v4989 = vor.u32 %v4985, %v4988
      %v4990 = vrot.slane %v4989, 4
      %v4992 = vshll.u32 %v4620, 16
      %v4994 = vrot.slane %v4992, 5
      %v4995 = vsel %vm1325, %v4990, %v4994
      %v4996 = vshrl.u32 %v4620, 16
      %v4998 = vrot.slane %v4996, 4
      %v4999 = vor.u32 %v4998, %v4994
      %v5000 = vrot.slane %v4999, 4
      %v5002 = vshll.u32 %v4621, 16
      %v5004 = vrot.slane %v5002, 5
      %v5005 = vsel %vm1325, %v5000, %v5004
      %s5006 = scalar_lea.vmem %s1, 448
      %v5007 = vld [vmem:[%s5006] sm:$0xf]
      %v5008 = vld [vmem:[%s5006 + $0x4] sm:$0xf]
      %v5009 = vld [vmem:[%s5006 + $0x8] sm:$0xf]
      %v5010 = vld [vmem:[%s5006 + $0xc] sm:$0xf]
      %v5011 = vld [vmem:[%s5006 + $0x10] sm:$0xf]
      %v5012 = vld [vmem:[%s5006 + $0x14] sm:$0xf]
      %v5013 = vld [vmem:[%s5006 + $0x18] sm:$0xf]
      %v5014 = vld [vmem:[%s5006 + $0x1c] sm:$0xf]
      %v5015 = vld [vmem:[%s5006 + $0x20] sm:$0xf]
      %v5016 = vld [vmem:[%s5006 + $0x24] sm:$0xf]
      %v5017 = vld [vmem:[%s5006 + $0x28] sm:$0xf]
      %v5018 = vld [vmem:[%s5006 + $0x2c] sm:$0xf]
      %v5019 = vld [vmem:[%s5006 + $0x30] sm:$0xf]
      %v5020 = vld [vmem:[%s5006 + $0x34] sm:$0xf]
      %v5021 = vld [vmem:[%s5006 + $0x38] sm:$0xf]
      %v5022 = vld [vmem:[%s5006 + $0x3c] sm:$0xf]
      %v5023 = vunpack.c.l.b16 %v4635
      %v5024 = vunpack.c.l.b16 %v4645
      %v5025 = vunpack.c.l.b16 %v4659
      %v5026 = vunpack.c.l.b16 %v4669
      %v5027 = vunpack.c.l.b16 %v4683
      %v5028 = vunpack.c.l.b16 %v4693
      %v5029 = vunpack.c.l.b16 %v4707
      %v5030 = vunpack.c.l.b16 %v4717
      %v5031 = vunpack.c.l.b16 %v4731
      %v5032 = vunpack.c.l.b16 %v4741
      %v5033 = vunpack.c.l.b16 %v4755
      %v5034 = vunpack.c.l.b16 %v4765
      %v5035 = vunpack.c.l.b16 %v4779
      %v5036 = vunpack.c.l.b16 %v4789
      %v5037 = vunpack.c.l.b16 %v4803
      %v5038 = vunpack.c.l.b16 %v4813
      %v5039 = vunpack.c.l.b16 %v4827
      %v5040 = vunpack.c.l.b16 %v4837
      %v5041 = vunpack.c.l.b16 %v4851
      %v5042 = vunpack.c.l.b16 %v4861
      %v5043 = vunpack.c.l.b16 %v4875
      %v5044 = vunpack.c.l.b16 %v4885
      %v5045 = vunpack.c.l.b16 %v4899
      %v5046 = vunpack.c.l.b16 %v4909
      %v5047 = vunpack.c.l.b16 %v4923
      %v5048 = vunpack.c.l.b16 %v4933
      %v5049 = vunpack.c.l.b16 %v4947
      %v5050 = vunpack.c.l.b16 %v4957
      %v5051 = vunpack.c.l.b16 %v4971
      %v5052 = vunpack.c.l.b16 %v4981
      %v5053 = vunpack.c.l.b16 %v4995
      %v5054 = vunpack.c.l.b16 %v5005
      %v5055 = vpack.c.b16 %v5024, %v5023
      %v5056 = vpack.c.b16 %v5026, %v5025
      %v5057 = vpack.c.b16 %v5028, %v5027
      %v5058 = vpack.c.b16 %v5030, %v5029
      %v5059 = vpack.c.b16 %v5032, %v5031
      %v5060 = vpack.c.b16 %v5034, %v5033
      %v5061 = vpack.c.b16 %v5036, %v5035
      %v5062 = vpack.c.b16 %v5038, %v5037
      %v5063 = vpack.c.b16 %v5040, %v5039
      %v5064 = vpack.c.b16 %v5042, %v5041
      %v5065 = vpack.c.b16 %v5044, %v5043
      %v5066 = vpack.c.b16 %v5046, %v5045
      %v5067 = vpack.c.b16 %v5048, %v5047
      %v5068 = vpack.c.b16 %v5050, %v5049
      %v5069 = vpack.c.b16 %v5052, %v5051
      %v5070 = vpack.c.b16 %v5054, %v5053
      %v5103 = vunpack.c.l.b16 %v5007
      %v5104 = vunpack.c.l.b16 %v5008
      %v5105 = vunpack.c.l.b16 %v5009
      %v5106 = vunpack.c.l.b16 %v5010
      %v5107 = vunpack.c.l.b16 %v5011
      %v5108 = vunpack.c.l.b16 %v5012
      %v5109 = vunpack.c.l.b16 %v5013
      %v5110 = vunpack.c.l.b16 %v5014
      %v5111 = vunpack.c.l.b16 %v5015
      %v5112 = vunpack.c.l.b16 %v5016
      %v5113 = vunpack.c.l.b16 %v5017
      %v5114 = vunpack.c.l.b16 %v5018
      %v5115 = vunpack.c.l.b16 %v5019
      %v5116 = vunpack.c.l.b16 %v5020
      %v5117 = vunpack.c.l.b16 %v5021
      %v5118 = vunpack.c.l.b16 %v5022
      %v5119 = vpack.c.b16 %v5104, %v5103
      %v5120 = vpack.c.b16 %v5106, %v5105
      %v5121 = vpack.c.b16 %v5108, %v5107
      %v5122 = vpack.c.b16 %v5110, %v5109
      %v5123 = vpack.c.b16 %v5112, %v5111
      %v5124 = vpack.c.b16 %v5114, %v5113
      %v5125 = vpack.c.b16 %v5116, %v5115
      %v5126 = vpack.c.b16 %v5118, %v5117
      %5135 = vmatpush.bf16.msra.mxu0 %v5126
      %5136 = vmatpush.bf16.msra.mxu0 %v5125
      %5137 = vmatpush.bf16.msra.mxu0 %v5124
      %5138 = vmatpush.bf16.msra.mxu0 %v5123
      %5139 = vmatpush.bf16.msra.mxu0 %v5122
      %5140 = vmatpush.bf16.msra.mxu0 %v5121
      %5141 = vmatpush.bf16.msra.mxu0 %v5120
      %5142 = vmatpush.bf16.msra.mxu0 %v5119
      %5143 = vmatmul.bf16.gmra.mxu0 %v5055
      %v5144 = vpop.f32.mrf.mxu0
      %v5145 = vadd.f32 0.0, %v5144
      %v5146 = vpop.f32.mrf.mxu0
      %v5147 = vadd.f32 0.0, %v5146
      %5148 = vmatmul.bf16.gmra.mxu0 %v5056
      %v5149 = vpop.f32.mrf.mxu0
      %v5150 = vadd.f32 0.0, %v5149
      %v5151 = vpop.f32.mrf.mxu0
      %v5152 = vadd.f32 0.0, %v5151
      %5153 = vmatmul.bf16.gmra.mxu0 %v5057
      %v5154 = vpop.f32.mrf.mxu0
      %v5155 = vadd.f32 0.0, %v5154
      %v5156 = vpop.f32.mrf.mxu0
      %v5157 = vadd.f32 0.0, %v5156
      %5158 = vmatmul.bf16.gmra.mxu0 %v5058
      %v5159 = vpop.f32.mrf.mxu0
      %v5160 = vadd.f32 0.0, %v5159
      %v5161 = vpop.f32.mrf.mxu0
      %v5162 = vadd.f32 0.0, %v5161
      %5163 = vmatmul.bf16.gmra.mxu0 %v5059
      %v5164 = vpop.f32.mrf.mxu0
      %v5165 = vadd.f32 0.0, %v5164
      %v5166 = vpop.f32.mrf.mxu0
      %v5167 = vadd.f32 0.0, %v5166
      %5168 = vmatmul.bf16.gmra.mxu0 %v5060
      %v5169 = vpop.f32.mrf.mxu0
      %v5170 = vadd.f32 0.0, %v5169
      %v5171 = vpop.f32.mrf.mxu0
      %v5172 = vadd.f32 0.0, %v5171
      %5173 = vmatmul.bf16.gmra.mxu0 %v5061
      %v5174 = vpop.f32.mrf.mxu0
      %v5175 = vadd.f32 0.0, %v5174
      %v5176 = vpop.f32.mrf.mxu0
      %v5177 = vadd.f32 0.0, %v5176
      %5178 = vmatmul.bf16.gmra.mxu0 %v5062
      %v5179 = vpop.f32.mrf.mxu0
      %v5180 = vadd.f32 0.0, %v5179
      %v5181 = vpop.f32.mrf.mxu0
      %v5182 = vadd.f32 0.0, %v5181
      %5183 = vmatmul.bf16.gmra.mxu0 %v5063
      %v5184 = vpop.f32.mrf.mxu0
      %v5185 = vadd.f32 0.0, %v5184
      %v5186 = vpop.f32.mrf.mxu0
      %v5187 = vadd.f32 0.0, %v5186
      %5188 = vmatmul.bf16.gmra.mxu0 %v5064
      %v5189 = vpop.f32.mrf.mxu0
      %v5190 = vadd.f32 0.0, %v5189
      %v5191 = vpop.f32.mrf.mxu0
      %v5192 = vadd.f32 0.0, %v5191
      %5193 = vmatmul.bf16.gmra.mxu0 %v5065
      %v5194 = vpop.f32.mrf.mxu0
      %v5195 = vadd.f32 0.0, %v5194
      %v5196 = vpop.f32.mrf.mxu0
      %v5197 = vadd.f32 0.0, %v5196
      %5198 = vmatmul.bf16.gmra.mxu0 %v5066
      %v5199 = vpop.f32.mrf.mxu0
      %v5200 = vadd.f32 0.0, %v5199
      %v5201 = vpop.f32.mrf.mxu0
      %v5202 = vadd.f32 0.0, %v5201
      %5203 = vmatmul.bf16.gmra.mxu0 %v5067
      %v5204 = vpop.f32.mrf.mxu0
      %v5205 = vadd.f32 0.0, %v5204
      %v5206 = vpop.f32.mrf.mxu0
      %v5207 = vadd.f32 0.0, %v5206
      %5208 = vmatmul.bf16.gmra.mxu0 %v5068
      %v5209 = vpop.f32.mrf.mxu0
      %v5210 = vadd.f32 0.0, %v5209
      %v5211 = vpop.f32.mrf.mxu0
      %v5212 = vadd.f32 0.0, %v5211
      %5213 = vmatmul.bf16.gmra.mxu0 %v5069
      %v5214 = vpop.f32.mrf.mxu0
      %v5215 = vadd.f32 0.0, %v5214
      %v5216 = vpop.f32.mrf.mxu0
      %v5217 = vadd.f32 0.0, %v5216
      %5218 = vmatmul.bf16.gmra.mxu0 %v5070
      %v5219 = vpop.f32.mrf.mxu0
      %v5220 = vadd.f32 0.0, %v5219
      %v5221 = vpop.f32.mrf.mxu0
      %v5222 = vadd.f32 0.0, %v5221
      %5223 = vdwg.mxu0
      %v5224 = vld [vmem:[#allocation4] sm:$0xff]
      %v5225 = vld [vmem:[#allocation4 + $0x8] sm:$0xff]
      %v5226 = vld [vmem:[#allocation4 + $0x10] sm:$0xff]
      %v5227 = vld [vmem:[#allocation4 + $0x18] sm:$0xff]
      %v5228 = vld [vmem:[#allocation4 + $0x20] sm:$0xff]
      %v5229 = vld [vmem:[#allocation4 + $0x28] sm:$0xff]
      %v5230 = vld [vmem:[#allocation4 + $0x30] sm:$0xff]
      %v5231 = vld [vmem:[#allocation4 + $0x38] sm:$0xff]
      %v5232 = vld [vmem:[#allocation4 + $0x40] sm:$0xff]
      %v5233 = vld [vmem:[#allocation4 + $0x48] sm:$0xff]
      %v5234 = vld [vmem:[#allocation4 + $0x50] sm:$0xff]
      %v5235 = vld [vmem:[#allocation4 + $0x58] sm:$0xff]
      %v5236 = vld [vmem:[#allocation4 + $0x60] sm:$0xff]
      %v5237 = vld [vmem:[#allocation4 + $0x68] sm:$0xff]
      %v5238 = vld [vmem:[#allocation4 + $0x70] sm:$0xff]
      %v5239 = vld [vmem:[#allocation4 + $0x78] sm:$0xff]
      %v5240 = vld [vmem:[#allocation4 + $0x80] sm:$0xff]
      %v5241 = vld [vmem:[#allocation4 + $0x88] sm:$0xff]
      %v5242 = vld [vmem:[#allocation4 + $0x90] sm:$0xff]
      %v5243 = vld [vmem:[#allocation4 + $0x98] sm:$0xff]
      %v5244 = vld [vmem:[#allocation4 + $0xa0] sm:$0xff]
      %v5245 = vld [vmem:[#allocation4 + $0xa8] sm:$0xff]
      %v5246 = vld [vmem:[#allocation4 + $0xb0] sm:$0xff]
      %v5247 = vld [vmem:[#allocation4 + $0xb8] sm:$0xff]
      %v5248 = vld [vmem:[#allocation4 + $0xc0] sm:$0xff]
      %v5249 = vld [vmem:[#allocation4 + $0xc8] sm:$0xff]
      %v5250 = vld [vmem:[#allocation4 + $0xd0] sm:$0xff]
      %v5251 = vld [vmem:[#allocation4 + $0xd8] sm:$0xff]
      %v5252 = vld [vmem:[#allocation4 + $0xe0] sm:$0xff]
      %v5253 = vld [vmem:[#allocation4 + $0xe8] sm:$0xff]
      %v5254 = vld [vmem:[#allocation4 + $0xf0] sm:$0xff]
      %v5255 = vld [vmem:[#allocation4 + $0xf8] sm:$0xff]
      %v5256 = vadd.f32 %v5224, %v5145
      %v5257 = vadd.f32 %v5225, %v5147
      %v5258 = vadd.f32 %v5226, %v5150
      %v5259 = vadd.f32 %v5227, %v5152
      %v5260 = vadd.f32 %v5228, %v5155
      %v5261 = vadd.f32 %v5229, %v5157
      %v5262 = vadd.f32 %v5230, %v5160
      %v5263 = vadd.f32 %v5231, %v5162
      %v5264 = vadd.f32 %v5232, %v5165
      %v5265 = vadd.f32 %v5233, %v5167
      %v5266 = vadd.f32 %v5234, %v5170
      %v5267 = vadd.f32 %v5235, %v5172
      %v5268 = vadd.f32 %v5236, %v5175
      %v5269 = vadd.f32 %v5237, %v5177
      %v5270 = vadd.f32 %v5238, %v5180
      %v5271 = vadd.f32 %v5239, %v5182
      %v5272 = vadd.f32 %v5240, %v5185
      %v5273 = vadd.f32 %v5241, %v5187
      %v5274 = vadd.f32 %v5242, %v5190
      %v5275 = vadd.f32 %v5243, %v5192
      %v5276 = vadd.f32 %v5244, %v5195
      %v5277 = vadd.f32 %v5245, %v5197
      %v5278 = vadd.f32 %v5246, %v5200
      %v5279 = vadd.f32 %v5247, %v5202
      %v5280 = vadd.f32 %v5248, %v5205
      %v5281 = vadd.f32 %v5249, %v5207
      %v5282 = vadd.f32 %v5250, %v5210
      %v5283 = vadd.f32 %v5251, %v5212
      %v5284 = vadd.f32 %v5252, %v5215
      %v5285 = vadd.f32 %v5253, %v5217
      %v5286 = vadd.f32 %v5254, %v5220
      %v5287 = vadd.f32 %v5255, %v5222
      %5288 = vst [vmem:[#allocation4] sm:$0xff] %v5256
      %5289 = vst [vmem:[#allocation4 + $0x8] sm:$0xff] %v5257
      %5290 = vst [vmem:[#allocation4 + $0x10] sm:$0xff] %v5258
      %5291 = vst [vmem:[#allocation4 + $0x18] sm:$0xff] %v5259
      %5292 = vst [vmem:[#allocation4 + $0x20] sm:$0xff] %v5260
      %5293 = vst [vmem:[#allocation4 + $0x28] sm:$0xff] %v5261
      %5294 = vst [vmem:[#allocation4 + $0x30] sm:$0xff] %v5262
      %5295 = vst [vmem:[#allocation4 + $0x38] sm:$0xff] %v5263
      %5296 = vst [vmem:[#allocation4 + $0x40] sm:$0xff] %v5264
      %5297 = vst [vmem:[#allocation4 + $0x48] sm:$0xff] %v5265
      %5298 = vst [vmem:[#allocation4 + $0x50] sm:$0xff] %v5266
      %5299 = vst [vmem:[#allocation4 + $0x58] sm:$0xff] %v5267
      %5300 = vst [vmem:[#allocation4 + $0x60] sm:$0xff] %v5268
      %5301 = vst [vmem:[#allocation4 + $0x68] sm:$0xff] %v5269
      %5302 = vst [vmem:[#allocation4 + $0x70] sm:$0xff] %v5270
      %5303 = vst [vmem:[#allocation4 + $0x78] sm:$0xff] %v5271
      %5304 = vst [vmem:[#allocation4 + $0x80] sm:$0xff] %v5272
      %5305 = vst [vmem:[#allocation4 + $0x88] sm:$0xff] %v5273
      %5306 = vst [vmem:[#allocation4 + $0x90] sm:$0xff] %v5274
      %5307 = vst [vmem:[#allocation4 + $0x98] sm:$0xff] %v5275
      %5308 = vst [vmem:[#allocation4 + $0xa0] sm:$0xff] %v5276
      %5309 = vst [vmem:[#allocation4 + $0xa8] sm:$0xff] %v5277
      %5310 = vst [vmem:[#allocation4 + $0xb0] sm:$0xff] %v5278
      %5311 = vst [vmem:[#allocation4 + $0xb8] sm:$0xff] %v5279
      %5312 = vst [vmem:[#allocation4 + $0xc0] sm:$0xff] %v5280
      %5313 = vst [vmem:[#allocation4 + $0xc8] sm:$0xff] %v5281
      %5314 = vst [vmem:[#allocation4 + $0xd0] sm:$0xff] %v5282
      %5315 = vst [vmem:[#allocation4 + $0xd8] sm:$0xff] %v5283
      %5316 = vst [vmem:[#allocation4 + $0xe0] sm:$0xff] %v5284
      %5317 = vst [vmem:[#allocation4 + $0xe8] sm:$0xff] %v5285
      %5318 = vst [vmem:[#allocation4 + $0xf0] sm:$0xff] %v5286
      %5319 = vst [vmem:[#allocation4 + $0xf8] sm:$0xff] %v5287
      %v5320 = vld [vmem:[%s4195] sm:$0xe]
      %v5321 = vld [vmem:[%s4195 + $0x4] sm:$0xf]
      %v5322 = vld [vmem:[%s4195 + $0x8] sm:$0x1]
      %v5323 = vld [vmem:[%s4195 + $0xc] sm:$0xe]
      %v5324 = vld [vmem:[%s4195 + $0x10] sm:$0xf]
      %v5325 = vld [vmem:[%s4195 + $0x14] sm:$0x1]
      %v5326 = vld [vmem:[%s4195 + $0x18] sm:$0xe]
      %v5327 = vld [vmem:[%s4195 + $0x1c] sm:$0xf]
      %v5328 = vld [vmem:[%s4195 + $0x20] sm:$0x1]
      %v5329 = vld [vmem:[%s4195 + $0x24] sm:$0xe]
      %v5330 = vld [vmem:[%s4195 + $0x28] sm:$0xf]
      %v5331 = vld [vmem:[%s4195 + $0x2c] sm:$0x1]
      %v5332 = vld [vmem:[%s4195 + $0x30] sm:$0xe]
      %v5333 = vld [vmem:[%s4195 + $0x34] sm:$0xf]
      %v5334 = vld [vmem:[%s4195 + $0x38] sm:$0x1]
      %v5335 = vld [vmem:[%s4195 + $0x3c] sm:$0xe]
      %v5336 = vld [vmem:[%s4195 + $0x40] sm:$0xf]
      %v5337 = vld [vmem:[%s4195 + $0x44] sm:$0x1]
      %v5338 = vld [vmem:[%s4195 + $0x48] sm:$0xe]
      %v5339 = vld [vmem:[%s4195 + $0x4c] sm:$0xf]
      %v5340 = vld [vmem:[%s4195 + $0x50] sm:$0x1]
      %v5341 = vld [vmem:[%s4195 + $0x54] sm:$0xe]
      %v5342 = vld [vmem:[%s4195 + $0x58] sm:$0xf]
      %v5343 = vld [vmem:[%s4195 + $0x5c] sm:$0x1]
      %v5344 = vld [vmem:[%s4195 + $0x60] sm:$0xe]
      %v5345 = vld [vmem:[%s4195 + $0x64] sm:$0xf]
      %v5346 = vld [vmem:[%s4195 + $0x68] sm:$0x1]
      %v5347 = vld [vmem:[%s4195 + $0x6c] sm:$0xe]
      %v5348 = vld [vmem:[%s4195 + $0x70] sm:$0xf]
      %v5349 = vld [vmem:[%s4195 + $0x74] sm:$0x1]
      %v5350 = vld [vmem:[%s4195 + $0x78] sm:$0xe]
      %v5351 = vld [vmem:[%s4195 + $0x7c] sm:$0xf]
      %v5352 = vld [vmem:[%s4195 + $0x80] sm:$0x1]
      %v5353 = vld [vmem:[%s4195 + $0x84] sm:$0xe]
      %v5354 = vld [vmem:[%s4195 + $0x88] sm:$0xf]
      %v5355 = vld [vmem:[%s4195 + $0x8c] sm:$0x1]
      %v5356 = vld [vmem:[%s4195 + $0x90] sm:$0xe]
      %v5357 = vld [vmem:[%s4195 + $0x94] sm:$0xf]
      %v5358 = vld [vmem:[%s4195 + $0x98] sm:$0x1]
      %v5359 = vld [vmem:[%s4195 + $0x9c] sm:$0xe]
      %v5360 = vld [vmem:[%s4195 + $0xa0] sm:$0xf]
      %v5361 = vld [vmem:[%s4195 + $0xa4] sm:$0x1]
      %v5362 = vld [vmem:[%s4195 + $0xa8] sm:$0xe]
      %v5363 = vld [vmem:[%s4195 + $0xac] sm:$0xf]
      %v5364 = vld [vmem:[%s4195 + $0xb0] sm:$0x1]
      %v5365 = vld [vmem:[%s4195 + $0xb4] sm:$0xe]
      %v5366 = vld [vmem:[%s4195 + $0xb8] sm:$0xf]
      %v5367 = vld [vmem:[%s4195 + $0xbc] sm:$0x1]
      %v5416 = vrot.slane %v5320, 5
      %v5417 = vrot.slane %v5416, 4
      %v5418 = vrot.slane %v5321, 5
      %v5419 = vsel %vm2122, %v5417, %v5418
      %v5420 = vrot.slane %v5418, 4
      %v5421 = vrot.slane %v5322, 5
      %v5422 = vsel %vm2122, %v5420, %v5421
      %v5423 = vrot.slane %v5323, 5
      %v5424 = vrot.slane %v5423, 4
      %v5425 = vrot.slane %v5324, 5
      %v5426 = vsel %vm2122, %v5424, %v5425
      %v5427 = vrot.slane %v5425, 4
      %v5428 = vrot.slane %v5325, 5
      %v5429 = vsel %vm2122, %v5427, %v5428
      %v5430 = vrot.slane %v5326, 5
      %v5431 = vrot.slane %v5430, 4
      %v5432 = vrot.slane %v5327, 5
      %v5433 = vsel %vm2122, %v5431, %v5432
      %v5434 = vrot.slane %v5432, 4
      %v5435 = vrot.slane %v5328, 5
      %v5436 = vsel %vm2122, %v5434, %v5435
      %v5437 = vrot.slane %v5329, 5
      %v5438 = vrot.slane %v5437, 4
      %v5439 = vrot.slane %v5330, 5
      %v5440 = vsel %vm2122, %v5438, %v5439
      %v5441 = vrot.slane %v5439, 4
      %v5442 = vrot.slane %v5331, 5
      %v5443 = vsel %vm2122, %v5441, %v5442
      %v5444 = vrot.slane %v5332, 5
      %v5445 = vrot.slane %v5444, 4
      %v5446 = vrot.slane %v5333, 5
      %v5447 = vsel %vm2122, %v5445, %v5446
      %v5448 = vrot.slane %v5446, 4
      %v5449 = vrot.slane %v5334, 5
      %v5450 = vsel %vm2122, %v5448, %v5449
      %v5451 = vrot.slane %v5335, 5
      %v5452 = vrot.slane %v5451, 4
      %v5453 = vrot.slane %v5336, 5
      %v5454 = vsel %vm2122, %v5452, %v5453
      %v5455 = vrot.slane %v5453, 4
      %v5456 = vrot.slane %v5337, 5
      %v5457 = vsel %vm2122, %v5455, %v5456
      %v5458 = vrot.slane %v5338, 5
      %v5459 = vrot.slane %v5458, 4
      %v5460 = vrot.slane %v5339, 5
      %v5461 = vsel %vm2122, %v5459, %v5460
      %v5462 = vrot.slane %v5460, 4
      %v5463 = vrot.slane %v5340, 5
      %v5464 = vsel %vm2122, %v5462, %v5463
      %v5465 = vrot.slane %v5341, 5
      %v5466 = vrot.slane %v5465, 4
      %v5467 = vrot.slane %v5342, 5
      %v5468 = vsel %vm2122, %v5466, %v5467
      %v5469 = vrot.slane %v5467, 4
      %v5470 = vrot.slane %v5343, 5
      %v5471 = vsel %vm2122, %v5469, %v5470
      %v5472 = vrot.slane %v5344, 5
      %v5473 = vrot.slane %v5472, 4
      %v5474 = vrot.slane %v5345, 5
      %v5475 = vsel %vm2122, %v5473, %v5474
      %v5476 = vrot.slane %v5474, 4
      %v5477 = vrot.slane %v5346, 5
      %v5478 = vsel %vm2122, %v5476, %v5477
      %v5479 = vrot.slane %v5347, 5
      %v5480 = vrot.slane %v5479, 4
      %v5481 = vrot.slane %v5348, 5
      %v5482 = vsel %vm2122, %v5480, %v5481
      %v5483 = vrot.slane %v5481, 4
      %v5484 = vrot.slane %v5349, 5
      %v5485 = vsel %vm2122, %v5483, %v5484
      %v5486 = vrot.slane %v5350, 5
      %v5487 = vrot.slane %v5486, 4
      %v5488 = vrot.slane %v5351, 5
      %v5489 = vsel %vm2122, %v5487, %v5488
      %v5490 = vrot.slane %v5488, 4
      %v5491 = vrot.slane %v5352, 5
      %v5492 = vsel %vm2122, %v5490, %v5491
      %v5493 = vrot.slane %v5353, 5
      %v5494 = vrot.slane %v5493, 4
      %v5495 = vrot.slane %v5354, 5
      %v5496 = vsel %vm2122, %v5494, %v5495
      %v5497 = vrot.slane %v5495, 4
      %v5498 = vrot.slane %v5355, 5
      %v5499 = vsel %vm2122, %v5497, %v5498
      %v5500 = vrot.slane %v5356, 5
      %v5501 = vrot.slane %v5500, 4
      %v5502 = vrot.slane %v5357, 5
      %v5503 = vsel %vm2122, %v5501, %v5502
      %v5504 = vrot.slane %v5502, 4
      %v5505 = vrot.slane %v5358, 5
      %v5506 = vsel %vm2122, %v5504, %v5505
      %v5507 = vrot.slane %v5359, 5
      %v5508 = vrot.slane %v5507, 4
      %v5509 = vrot.slane %v5360, 5
      %v5510 = vsel %vm2122, %v5508, %v5509
      %v5511 = vrot.slane %v5509, 4
      %v5512 = vrot.slane %v5361, 5
      %v5513 = vsel %vm2122, %v5511, %v5512
      %v5514 = vrot.slane %v5362, 5
      %v5515 = vrot.slane %v5514, 4
      %v5516 = vrot.slane %v5363, 5
      %v5517 = vsel %vm2122, %v5515, %v5516
      %v5518 = vrot.slane %v5516, 4
      %v5519 = vrot.slane %v5364, 5
      %v5520 = vsel %vm2122, %v5518, %v5519
      %v5521 = vrot.slane %v5365, 5
      %v5522 = vrot.slane %v5521, 4
      %v5523 = vrot.slane %v5366, 5
      %v5524 = vsel %vm2122, %v5522, %v5523
      %v5525 = vrot.slane %v5523, 4
      %v5526 = vrot.slane %v5367, 5
      %v5527 = vsel %vm2122, %v5525, %v5526
      %s5528 = scalar_lea.vmem %s1, 512
      %v5529 = vld [vmem:[%s5528] sm:$0xf]
      %v5530 = vld [vmem:[%s5528 + $0x4] sm:$0xf]
      %v5531 = vld [vmem:[%s5528 + $0x8] sm:$0xf]
      %v5532 = vld [vmem:[%s5528 + $0xc] sm:$0xf]
      %v5533 = vld [vmem:[%s5528 + $0x10] sm:$0xf]
      %v5534 = vld [vmem:[%s5528 + $0x14] sm:$0xf]
      %v5535 = vld [vmem:[%s5528 + $0x18] sm:$0xf]
      %v5536 = vld [vmem:[%s5528 + $0x1c] sm:$0xf]
      %v5537 = vld [vmem:[%s5528 + $0x20] sm:$0xf]
      %v5538 = vld [vmem:[%s5528 + $0x24] sm:$0xf]
      %v5539 = vld [vmem:[%s5528 + $0x28] sm:$0xf]
      %v5540 = vld [vmem:[%s5528 + $0x2c] sm:$0xf]
      %v5541 = vld [vmem:[%s5528 + $0x30] sm:$0xf]
      %v5542 = vld [vmem:[%s5528 + $0x34] sm:$0xf]
      %v5543 = vld [vmem:[%s5528 + $0x38] sm:$0xf]
      %v5544 = vld [vmem:[%s5528 + $0x3c] sm:$0xf]
      %v5545 = vunpack.c.l.b16 %v5419
      %v5546 = vunpack.c.l.b16 %v5422
      %v5547 = vunpack.c.l.b16 %v5426
      %v5548 = vunpack.c.l.b16 %v5429
      %v5549 = vunpack.c.l.b16 %v5433
      %v5550 = vunpack.c.l.b16 %v5436
      %v5551 = vunpack.c.l.b16 %v5440
      %v5552 = vunpack.c.l.b16 %v5443
      %v5553 = vunpack.c.l.b16 %v5447
      %v5554 = vunpack.c.l.b16 %v5450
      %v5555 = vunpack.c.l.b16 %v5454
      %v5556 = vunpack.c.l.b16 %v5457
      %v5557 = vunpack.c.l.b16 %v5461
      %v5558 = vunpack.c.l.b16 %v5464
      %v5559 = vunpack.c.l.b16 %v5468
      %v5560 = vunpack.c.l.b16 %v5471
      %v5561 = vunpack.c.l.b16 %v5475
      %v5562 = vunpack.c.l.b16 %v5478
      %v5563 = vunpack.c.l.b16 %v5482
      %v5564 = vunpack.c.l.b16 %v5485
      %v5565 = vunpack.c.l.b16 %v5489
      %v5566 = vunpack.c.l.b16 %v5492
      %v5567 = vunpack.c.l.b16 %v5496
      %v5568 = vunpack.c.l.b16 %v5499
      %v5569 = vunpack.c.l.b16 %v5503
      %v5570 = vunpack.c.l.b16 %v5506
      %v5571 = vunpack.c.l.b16 %v5510
      %v5572 = vunpack.c.l.b16 %v5513
      %v5573 = vunpack.c.l.b16 %v5517
      %v5574 = vunpack.c.l.b16 %v5520
      %v5575 = vunpack.c.l.b16 %v5524
      %v5576 = vunpack.c.l.b16 %v5527
      %v5577 = vpack.c.b16 %v5546, %v5545
      %v5578 = vpack.c.b16 %v5548, %v5547
      %v5579 = vpack.c.b16 %v5550, %v5549
      %v5580 = vpack.c.b16 %v5552, %v5551
      %v5581 = vpack.c.b16 %v5554, %v5553
      %v5582 = vpack.c.b16 %v5556, %v5555
      %v5583 = vpack.c.b16 %v5558, %v5557
      %v5584 = vpack.c.b16 %v5560, %v5559
      %v5585 = vpack.c.b16 %v5562, %v5561
      %v5586 = vpack.c.b16 %v5564, %v5563
      %v5587 = vpack.c.b16 %v5566, %v5565
      %v5588 = vpack.c.b16 %v5568, %v5567
      %v5589 = vpack.c.b16 %v5570, %v5569
      %v5590 = vpack.c.b16 %v5572, %v5571
      %v5591 = vpack.c.b16 %v5574, %v5573
      %v5592 = vpack.c.b16 %v5576, %v5575
      %v5625 = vunpack.c.l.b16 %v5529
      %v5626 = vunpack.c.l.b16 %v5530
      %v5627 = vunpack.c.l.b16 %v5531
      %v5628 = vunpack.c.l.b16 %v5532
      %v5629 = vunpack.c.l.b16 %v5533
      %v5630 = vunpack.c.l.b16 %v5534
      %v5631 = vunpack.c.l.b16 %v5535
      %v5632 = vunpack.c.l.b16 %v5536
      %v5633 = vunpack.c.l.b16 %v5537
      %v5634 = vunpack.c.l.b16 %v5538
      %v5635 = vunpack.c.l.b16 %v5539
      %v5636 = vunpack.c.l.b16 %v5540
      %v5637 = vunpack.c.l.b16 %v5541
      %v5638 = vunpack.c.l.b16 %v5542
      %v5639 = vunpack.c.l.b16 %v5543
      %v5640 = vunpack.c.l.b16 %v5544
      %v5641 = vpack.c.b16 %v5626, %v5625
      %v5642 = vpack.c.b16 %v5628, %v5627
      %v5643 = vpack.c.b16 %v5630, %v5629
      %v5644 = vpack.c.b16 %v5632, %v5631
      %v5645 = vpack.c.b16 %v5634, %v5633
      %v5646 = vpack.c.b16 %v5636, %v5635
      %v5647 = vpack.c.b16 %v5638, %v5637
      %v5648 = vpack.c.b16 %v5640, %v5639
      %5657 = vmatpush.bf16.msra.mxu0 %v5648
      %5658 = vmatpush.bf16.msra.mxu0 %v5647
      %5659 = vmatpush.bf16.msra.mxu0 %v5646
      %5660 = vmatpush.bf16.msra.mxu0 %v5645
      %5661 = vmatpush.bf16.msra.mxu0 %v5644
      %5662 = vmatpush.bf16.msra.mxu0 %v5643
      %5663 = vmatpush.bf16.msra.mxu0 %v5642
      %5664 = vmatpush.bf16.msra.mxu0 %v5641
      %5665 = vmatmul.bf16.gmra.mxu0 %v5577
      %v5666 = vpop.f32.mrf.mxu0
      %v5667 = vadd.f32 0.0, %v5666
      %v5668 = vpop.f32.mrf.mxu0
      %v5669 = vadd.f32 0.0, %v5668
      %5670 = vmatmul.bf16.gmra.mxu0 %v5578
      %v5671 = vpop.f32.mrf.mxu0
      %v5672 = vadd.f32 0.0, %v5671
      %v5673 = vpop.f32.mrf.mxu0
      %v5674 = vadd.f32 0.0, %v5673
      %5675 = vmatmul.bf16.gmra.mxu0 %v5579
      %v5676 = vpop.f32.mrf.mxu0
      %v5677 = vadd.f32 0.0, %v5676
      %v5678 = vpop.f32.mrf.mxu0
      %v5679 = vadd.f32 0.0, %v5678
      %5680 = vmatmul.bf16.gmra.mxu0 %v5580
      %v5681 = vpop.f32.mrf.mxu0
      %v5682 = vadd.f32 0.0, %v5681
      %v5683 = vpop.f32.mrf.mxu0
      %v5684 = vadd.f32 0.0, %v5683
      %5685 = vmatmul.bf16.gmra.mxu0 %v5581
      %v5686 = vpop.f32.mrf.mxu0
      %v5687 = vadd.f32 0.0, %v5686
      %v5688 = vpop.f32.mrf.mxu0
      %v5689 = vadd.f32 0.0, %v5688
      %5690 = vmatmul.bf16.gmra.mxu0 %v5582
      %v5691 = vpop.f32.mrf.mxu0
      %v5692 = vadd.f32 0.0, %v5691
      %v5693 = vpop.f32.mrf.mxu0
      %v5694 = vadd.f32 0.0, %v5693
      %5695 = vmatmul.bf16.gmra.mxu0 %v5583
      %v5696 = vpop.f32.mrf.mxu0
      %v5697 = vadd.f32 0.0, %v5696
      %v5698 = vpop.f32.mrf.mxu0
      %v5699 = vadd.f32 0.0, %v5698
      %5700 = vmatmul.bf16.gmra.mxu0 %v5584
      %v5701 = vpop.f32.mrf.mxu0
      %v5702 = vadd.f32 0.0, %v5701
      %v5703 = vpop.f32.mrf.mxu0
      %v5704 = vadd.f32 0.0, %v5703
      %5705 = vmatmul.bf16.gmra.mxu0 %v5585
      %v5706 = vpop.f32.mrf.mxu0
      %v5707 = vadd.f32 0.0, %v5706
      %v5708 = vpop.f32.mrf.mxu0
      %v5709 = vadd.f32 0.0, %v5708
      %5710 = vmatmul.bf16.gmra.mxu0 %v5586
      %v5711 = vpop.f32.mrf.mxu0
      %v5712 = vadd.f32 0.0, %v5711
      %v5713 = vpop.f32.mrf.mxu0
      %v5714 = vadd.f32 0.0, %v5713
      %5715 = vmatmul.bf16.gmra.mxu0 %v5587
      %v5716 = vpop.f32.mrf.mxu0
      %v5717 = vadd.f32 0.0, %v5716
      %v5718 = vpop.f32.mrf.mxu0
      %v5719 = vadd.f32 0.0, %v5718
      %5720 = vmatmul.bf16.gmra.mxu0 %v5588
      %v5721 = vpop.f32.mrf.mxu0
      %v5722 = vadd.f32 0.0, %v5721
      %v5723 = vpop.f32.mrf.mxu0
      %v5724 = vadd.f32 0.0, %v5723
      %5725 = vmatmul.bf16.gmra.mxu0 %v5589
      %v5726 = vpop.f32.mrf.mxu0
      %v5727 = vadd.f32 0.0, %v5726
      %v5728 = vpop.f32.mrf.mxu0
      %v5729 = vadd.f32 0.0, %v5728
      %5730 = vmatmul.bf16.gmra.mxu0 %v5590
      %v5731 = vpop.f32.mrf.mxu0
      %v5732 = vadd.f32 0.0, %v5731
      %v5733 = vpop.f32.mrf.mxu0
      %v5734 = vadd.f32 0.0, %v5733
      %5735 = vmatmul.bf16.gmra.mxu0 %v5591
      %v5736 = vpop.f32.mrf.mxu0
      %v5737 = vadd.f32 0.0, %v5736
      %v5738 = vpop.f32.mrf.mxu0
      %v5739 = vadd.f32 0.0, %v5738
      %5740 = vmatmul.bf16.gmra.mxu0 %v5592
      %v5741 = vpop.f32.mrf.mxu0
      %v5742 = vadd.f32 0.0, %v5741
      %v5743 = vpop.f32.mrf.mxu0
      %v5744 = vadd.f32 0.0, %v5743
      %5745 = vdwg.mxu0
      %v5746 = vld [vmem:[#allocation4] sm:$0xff]
      %v5747 = vld [vmem:[#allocation4 + $0x8] sm:$0xff]
      %v5748 = vld [vmem:[#allocation4 + $0x10] sm:$0xff]
      %v5749 = vld [vmem:[#allocation4 + $0x18] sm:$0xff]
      %v5750 = vld [vmem:[#allocation4 + $0x20] sm:$0xff]
      %v5751 = vld [vmem:[#allocation4 + $0x28] sm:$0xff]
      %v5752 = vld [vmem:[#allocation4 + $0x30] sm:$0xff]
      %v5753 = vld [vmem:[#allocation4 + $0x38] sm:$0xff]
      %v5754 = vld [vmem:[#allocation4 + $0x40] sm:$0xff]
      %v5755 = vld [vmem:[#allocation4 + $0x48] sm:$0xff]
      %v5756 = vld [vmem:[#allocation4 + $0x50] sm:$0xff]
      %v5757 = vld [vmem:[#allocation4 + $0x58] sm:$0xff]
      %v5758 = vld [vmem:[#allocation4 + $0x60] sm:$0xff]
      %v5759 = vld [vmem:[#allocation4 + $0x68] sm:$0xff]
      %v5760 = vld [vmem:[#allocation4 + $0x70] sm:$0xff]
      %v5761 = vld [vmem:[#allocation4 + $0x78] sm:$0xff]
      %v5762 = vld [vmem:[#allocation4 + $0x80] sm:$0xff]
      %v5763 = vld [vmem:[#allocation4 + $0x88] sm:$0xff]
      %v5764 = vld [vmem:[#allocation4 + $0x90] sm:$0xff]
      %v5765 = vld [vmem:[#allocation4 + $0x98] sm:$0xff]
      %v5766 = vld [vmem:[#allocation4 + $0xa0] sm:$0xff]
      %v5767 = vld [vmem:[#allocation4 + $0xa8] sm:$0xff]
      %v5768 = vld [vmem:[#allocation4 + $0xb0] sm:$0xff]
      %v5769 = vld [vmem:[#allocation4 + $0xb8] sm:$0xff]
      %v5770 = vld [vmem:[#allocation4 + $0xc0] sm:$0xff]
      %v5771 = vld [vmem:[#allocation4 + $0xc8] sm:$0xff]
      %v5772 = vld [vmem:[#allocation4 + $0xd0] sm:$0xff]
      %v5773 = vld [vmem:[#allocation4 + $0xd8] sm:$0xff]
      %v5774 = vld [vmem:[#allocation4 + $0xe0] sm:$0xff]
      %v5775 = vld [vmem:[#allocation4 + $0xe8] sm:$0xff]
      %v5776 = vld [vmem:[#allocation4 + $0xf0] sm:$0xff]
      %v5777 = vld [vmem:[#allocation4 + $0xf8] sm:$0xff]
      %v5778 = vadd.f32 %v5746, %v5667
      %v5779 = vadd.f32 %v5747, %v5669
      %v5780 = vadd.f32 %v5748, %v5672
      %v5781 = vadd.f32 %v5749, %v5674
      %v5782 = vadd.f32 %v5750, %v5677
      %v5783 = vadd.f32 %v5751, %v5679
      %v5784 = vadd.f32 %v5752, %v5682
      %v5785 = vadd.f32 %v5753, %v5684
      %v5786 = vadd.f32 %v5754, %v5687
      %v5787 = vadd.f32 %v5755, %v5689
      %v5788 = vadd.f32 %v5756, %v5692
      %v5789 = vadd.f32 %v5757, %v5694
      %v5790 = vadd.f32 %v5758, %v5697
      %v5791 = vadd.f32 %v5759, %v5699
      %v5792 = vadd.f32 %v5760, %v5702
      %v5793 = vadd.f32 %v5761, %v5704
      %v5794 = vadd.f32 %v5762, %v5707
      %v5795 = vadd.f32 %v5763, %v5709
      %v5796 = vadd.f32 %v5764, %v5712
      %v5797 = vadd.f32 %v5765, %v5714
      %v5798 = vadd.f32 %v5766, %v5717
      %v5799 = vadd.f32 %v5767, %v5719
      %v5800 = vadd.f32 %v5768, %v5722
      %v5801 = vadd.f32 %v5769, %v5724
      %v5802 = vadd.f32 %v5770, %v5727
      %v5803 = vadd.f32 %v5771, %v5729
      %v5804 = vadd.f32 %v5772, %v5732
      %v5805 = vadd.f32 %v5773, %v5734
      %v5806 = vadd.f32 %v5774, %v5737
      %v5807 = vadd.f32 %v5775, %v5739
      %v5808 = vadd.f32 %v5776, %v5742
      %v5809 = vadd.f32 %v5777, %v5744
      %5810 = vst [vmem:[#allocation4] sm:$0xff] %v5778
      %5811 = vst [vmem:[#allocation4 + $0x8] sm:$0xff] %v5779
      %5812 = vst [vmem:[#allocation4 + $0x10] sm:$0xff] %v5780
      %5813 = vst [vmem:[#allocation4 + $0x18] sm:$0xff] %v5781
      %5814 = vst [vmem:[#allocation4 + $0x20] sm:$0xff] %v5782
      %5815 = vst [vmem:[#allocation4 + $0x28] sm:$0xff] %v5783
      %5816 = vst [vmem:[#allocation4 + $0x30] sm:$0xff] %v5784
      %5817 = vst [vmem:[#allocation4 + $0x38] sm:$0xff] %v5785
      %5818 = vst [vmem:[#allocation4 + $0x40] sm:$0xff] %v5786
      %5819 = vst [vmem:[#allocation4 + $0x48] sm:$0xff] %v5787
      %5820 = vst [vmem:[#allocation4 + $0x50] sm:$0xff] %v5788
      %5821 = vst [vmem:[#allocation4 + $0x58] sm:$0xff] %v5789
      %5822 = vst [vmem:[#allocation4 + $0x60] sm:$0xff] %v5790
      %5823 = vst [vmem:[#allocation4 + $0x68] sm:$0xff] %v5791
      %5824 = vst [vmem:[#allocation4 + $0x70] sm:$0xff] %v5792
      %5825 = vst [vmem:[#allocation4 + $0x78] sm:$0xff] %v5793
      %5826 = vst [vmem:[#allocation4 + $0x80] sm:$0xff] %v5794
      %5827 = vst [vmem:[#allocation4 + $0x88] sm:$0xff] %v5795
      %5828 = vst [vmem:[#allocation4 + $0x90] sm:$0xff] %v5796
      %5829 = vst [vmem:[#allocation4 + $0x98] sm:$0xff] %v5797
      %5830 = vst [vmem:[#allocation4 + $0xa0] sm:$0xff] %v5798
      %5831 = vst [vmem:[#allocation4 + $0xa8] sm:$0xff] %v5799
      %5832 = vst [vmem:[#allocation4 + $0xb0] sm:$0xff] %v5800
      %5833 = vst [vmem:[#allocation4 + $0xb8] sm:$0xff] %v5801
      %5834 = vst [vmem:[#allocation4 + $0xc0] sm:$0xff] %v5802
      %5835 = vst [vmem:[#allocation4 + $0xc8] sm:$0xff] %v5803
      %5836 = vst [vmem:[#allocation4 + $0xd0] sm:$0xff] %v5804
      %5837 = vst [vmem:[#allocation4 + $0xd8] sm:$0xff] %v5805
      %5838 = vst [vmem:[#allocation4 + $0xe0] sm:$0xff] %v5806
      %5839 = vst [vmem:[#allocation4 + $0xe8] sm:$0xff] %v5807
      %5840 = vst [vmem:[#allocation4 + $0xf0] sm:$0xff] %v5808
      %5841 = vst [vmem:[#allocation4 + $0xf8] sm:$0xff] %v5809
      %v5842 = vld [vmem:[#allocation4] sm:$0xff]
      %v5843 = vld [vmem:[#allocation4 + $0x8] sm:$0xff]
      %v5844 = vld [vmem:[#allocation4 + $0x10] sm:$0xff]
      %v5845 = vld [vmem:[#allocation4 + $0x18] sm:$0xff]
      %v5846 = vld [vmem:[#allocation4 + $0x20] sm:$0xff]
      %v5847 = vld [vmem:[#allocation4 + $0x28] sm:$0xff]
      %v5848 = vld [vmem:[#allocation4 + $0x30] sm:$0xff]
      %v5849 = vld [vmem:[#allocation4 + $0x38] sm:$0xff]
      %v5850 = vld [vmem:[#allocation4 + $0x40] sm:$0xff]
      %v5851 = vld [vmem:[#allocation4 + $0x48] sm:$0xff]
      %v5852 = vld [vmem:[#allocation4 + $0x50] sm:$0xff]
      %v5853 = vld [vmem:[#allocation4 + $0x58] sm:$0xff]
      %v5854 = vld [vmem:[#allocation4 + $0x60] sm:$0xff]
      %v5855 = vld [vmem:[#allocation4 + $0x68] sm:$0xff]
      %v5856 = vld [vmem:[#allocation4 + $0x70] sm:$0xff]
      %v5857 = vld [vmem:[#allocation4 + $0x78] sm:$0xff]
      %v5858 = vld [vmem:[#allocation4 + $0x80] sm:$0xff]
      %v5859 = vld [vmem:[#allocation4 + $0x88] sm:$0xff]
      %v5860 = vld [vmem:[#allocation4 + $0x90] sm:$0xff]
      %v5861 = vld [vmem:[#allocation4 + $0x98] sm:$0xff]
      %v5862 = vld [vmem:[#allocation4 + $0xa0] sm:$0xff]
      %v5863 = vld [vmem:[#allocation4 + $0xa8] sm:$0xff]
      %v5864 = vld [vmem:[#allocation4 + $0xb0] sm:$0xff]
      %v5865 = vld [vmem:[#allocation4 + $0xb8] sm:$0xff]
      %v5866 = vld [vmem:[#allocation4 + $0xc0] sm:$0xff]
      %v5867 = vld [vmem:[#allocation4 + $0xc8] sm:$0xff]
      %v5868 = vld [vmem:[#allocation4 + $0xd0] sm:$0xff]
      %v5869 = vld [vmem:[#allocation4 + $0xd8] sm:$0xff]
      %v5870 = vld [vmem:[#allocation4 + $0xe0] sm:$0xff]
      %v5871 = vld [vmem:[#allocation4 + $0xe8] sm:$0xff]
      %v5872 = vld [vmem:[#allocation4 + $0xf0] sm:$0xff]
      %v5873 = vld [vmem:[#allocation4 + $0xf8] sm:$0xff]
      %v5874 = vld [vmem:[%s2] sm:$0x1]
      %v5876 = vperm.slane %v5874, 0
      %v5878 = vadd.f32 %v5842, %v5876
      %v5879 = vadd.f32 %v5843, %v5876
      %v5880 = vadd.f32 %v5844, %v5876
      %v5881 = vadd.f32 %v5845, %v5876
      %v5882 = vadd.f32 %v5846, %v5876
      %v5883 = vadd.f32 %v5847, %v5876
      %v5884 = vadd.f32 %v5848, %v5876
      %v5885 = vadd.f32 %v5849, %v5876
      %v5886 = vadd.f32 %v5850, %v5876
      %v5887 = vadd.f32 %v5851, %v5876
      %v5888 = vadd.f32 %v5852, %v5876
      %v5889 = vadd.f32 %v5853, %v5876
      %v5890 = vadd.f32 %v5854, %v5876
      %v5891 = vadd.f32 %v5855, %v5876
      %v5892 = vadd.f32 %v5856, %v5876
      %v5893 = vadd.f32 %v5857, %v5876
      %v5894 = vadd.f32 %v5858, %v5876
      %v5895 = vadd.f32 %v5859, %v5876
      %v5896 = vadd.f32 %v5860, %v5876
      %v5897 = vadd.f32 %v5861, %v5876
      %v5898 = vadd.f32 %v5862, %v5876
      %v5899 = vadd.f32 %v5863, %v5876
      %v5900 = vadd.f32 %v5864, %v5876
      %v5901 = vadd.f32 %v5865, %v5876
      %v5902 = vadd.f32 %v5866, %v5876
      %v5903 = vadd.f32 %v5867, %v5876
      %v5904 = vadd.f32 %v5868, %v5876
      %v5905 = vadd.f32 %v5869, %v5876
      %v5906 = vadd.f32 %v5870, %v5876
      %v5907 = vadd.f32 %v5871, %v5876
      %v5908 = vadd.f32 %v5872, %v5876
      %v5909 = vadd.f32 %v5873, %v5876
      %v5910 = vmax.f32 %v5878, 0.0
      %v5911 = vmax.f32 %v5879, 0.0
      %v5912 = vmax.f32 %v5880, 0.0
      %v5913 = vmax.f32 %v5881, 0.0
      %v5914 = vmax.f32 %v5882, 0.0
      %v5915 = vmax.f32 %v5883, 0.0
      %v5916 = vmax.f32 %v5884, 0.0
      %v5917 = vmax.f32 %v5885, 0.0
      %v5918 = vmax.f32 %v5886, 0.0
      %v5919 = vmax.f32 %v5887, 0.0
      %v5920 = vmax.f32 %v5888, 0.0
      %v5921 = vmax.f32 %v5889, 0.0
      %v5922 = vmax.f32 %v5890, 0.0
      %v5923 = vmax.f32 %v5891, 0.0
      %v5924 = vmax.f32 %v5892, 0.0
      %v5925 = vmax.f32 %v5893, 0.0
      %v5926 = vmax.f32 %v5894, 0.0
      %v5927 = vmax.f32 %v5895, 0.0
      %v5928 = vmax.f32 %v5896, 0.0
      %v5929 = vmax.f32 %v5897, 0.0
      %v5930 = vmax.f32 %v5898, 0.0
      %v5931 = vmax.f32 %v5899, 0.0
      %v5932 = vmax.f32 %v5900, 0.0
      %v5933 = vmax.f32 %v5901, 0.0
      %v5934 = vmax.f32 %v5902, 0.0
      %v5935 = vmax.f32 %v5903, 0.0
      %v5936 = vmax.f32 %v5904, 0.0
      %v5937 = vmax.f32 %v5905, 0.0
      %v5938 = vmax.f32 %v5906, 0.0
      %v5939 = vmax.f32 %v5907, 0.0
      %v5940 = vmax.f32 %v5908, 0.0
      %v5941 = vmax.f32 %v5909, 0.0
      %v5942 = vpack.c.bf16 %v5910, %v5910
      %v5943 = vpack.c.bf16 %v5911, %v5911
      %v5944 = vpack.c.bf16 %v5912, %v5912
      %v5945 = vpack.c.bf16 %v5913, %v5913
      %v5946 = vpack.c.bf16 %v5914, %v5914
      %v5947 = vpack.c.bf16 %v5915, %v5915
      %v5948 = vpack.c.bf16 %v5916, %v5916
      %v5949 = vpack.c.bf16 %v5917, %v5917
      %v5950 = vpack.c.bf16 %v5918, %v5918
      %v5951 = vpack.c.bf16 %v5919, %v5919
      %v5952 = vpack.c.bf16 %v5920, %v5920
      %v5953 = vpack.c.bf16 %v5921, %v5921
      %v5954 = vpack.c.bf16 %v5922, %v5922
      %v5955 = vpack.c.bf16 %v5923, %v5923
      %v5956 = vpack.c.bf16 %v5924, %v5924
      %v5957 = vpack.c.bf16 %v5925, %v5925
      %v5958 = vpack.c.bf16 %v5926, %v5926
      %v5959 = vpack.c.bf16 %v5927, %v5927
      %v5960 = vpack.c.bf16 %v5928, %v5928
      %v5961 = vpack.c.bf16 %v5929, %v5929
      %v5962 = vpack.c.bf16 %v5930, %v5930
      %v5963 = vpack.c.bf16 %v5931, %v5931
      %v5964 = vpack.c.bf16 %v5932, %v5932
      %v5965 = vpack.c.bf16 %v5933, %v5933
      %v5966 = vpack.c.bf16 %v5934, %v5934
      %v5967 = vpack.c.bf16 %v5935, %v5935
      %v5968 = vpack.c.bf16 %v5936, %v5936
      %v5969 = vpack.c.bf16 %v5937, %v5937
      %v5970 = vpack.c.bf16 %v5938, %v5938
      %v5971 = vpack.c.bf16 %v5939, %v5939
      %v5972 = vpack.c.bf16 %v5940, %v5940
      %v5973 = vpack.c.bf16 %v5941, %v5941
      %v5975 = vshrl.u32 %v5942, 16
      %v5977 = vrot.slane %v5975, 7
      %v5978 = vshll.u32 %v5942, 16
      %v5980 = vor.u32 %v5977, %v5978
      %v5981 = vrot.slane %v5977, 4
      %v5983 = vshrl.u32 %v5943, 16
      %v5985 = vrot.slane %v5983, 7
      %v5986 = vshll.u32 %v5943, 16
      %v5988 = vor.u32 %v5985, %v5986
      %v5989 = vsel %vm526, %v5981, %v5988
      %v5990 = vrot.slane %v5985, 4
      %v5992 = vshrl.u32 %v5944, 16
      %v5994 = vrot.slane %v5992, 7
      %v5995 = vshll.u32 %v5944, 16
      %v5997 = vor.u32 %v5994, %v5995
      %v5998 = vrot.slane %v5994, 4
      %v6000 = vshrl.u32 %v5945, 16
      %v6002 = vrot.slane %v6000, 7
      %v6003 = vshll.u32 %v5945, 16
      %v6005 = vor.u32 %v6002, %v6003
      %v6006 = vsel %vm526, %v5998, %v6005
      %v6007 = vrot.slane %v6002, 4
      %v6009 = vshrl.u32 %v5946, 16
      %v6011 = vrot.slane %v6009, 7
      %v6012 = vshll.u32 %v5946, 16
      %v6014 = vor.u32 %v6011, %v6012
      %v6015 = vrot.slane %v6011, 4
      %v6017 = vshrl.u32 %v5947, 16
      %v6019 = vrot.slane %v6017, 7
      %v6020 = vshll.u32 %v5947, 16
      %v6022 = vor.u32 %v6019, %v6020
      %v6023 = vsel %vm526, %v6015, %v6022
      %v6024 = vrot.slane %v6019, 4
      %v6026 = vshrl.u32 %v5948, 16
      %v6028 = vrot.slane %v6026, 7
      %v6029 = vshll.u32 %v5948, 16
      %v6031 = vor.u32 %v6028, %v6029
      %v6032 = vrot.slane %v6028, 4
      %v6034 = vshrl.u32 %v5949, 16
      %v6036 = vrot.slane %v6034, 7
      %v6037 = vshll.u32 %v5949, 16
      %v6039 = vor.u32 %v6036, %v6037
      %v6040 = vsel %vm526, %v6032, %v6039
      %v6041 = vrot.slane %v6036, 4
      %v6043 = vshrl.u32 %v5950, 16
      %v6045 = vrot.slane %v6043, 7
      %v6046 = vshll.u32 %v5950, 16
      %v6048 = vor.u32 %v6045, %v6046
      %v6049 = vrot.slane %v6045, 4
      %v6051 = vshrl.u32 %v5951, 16
      %v6053 = vrot.slane %v6051, 7
      %v6054 = vshll.u32 %v5951, 16
      %v6056 = vor.u32 %v6053, %v6054
      %v6057 = vsel %vm526, %v6049, %v6056
      %v6058 = vrot.slane %v6053, 4
      %v6060 = vshrl.u32 %v5952, 16
      %v6062 = vrot.slane %v6060, 7
      %v6063 = vshll.u32 %v5952, 16
      %v6065 = vor.u32 %v6062, %v6063
      %v6066 = vrot.slane %v6062, 4
      %v6068 = vshrl.u32 %v5953, 16
      %v6070 = vrot.slane %v6068, 7
      %v6071 = vshll.u32 %v5953, 16
      %v6073 = vor.u32 %v6070, %v6071
      %v6074 = vsel %vm526, %v6066, %v6073
      %v6075 = vrot.slane %v6070, 4
      %v6077 = vshrl.u32 %v5954, 16
      %v6079 = vrot.slane %v6077, 7
      %v6080 = vshll.u32 %v5954, 16
      %v6082 = vor.u32 %v6079, %v6080
      %v6083 = vrot.slane %v6079, 4
      %v6085 = vshrl.u32 %v5955, 16
      %v6087 = vrot.slane %v6085, 7
      %v6088 = vshll.u32 %v5955, 16
      %v6090 = vor.u32 %v6087, %v6088
      %v6091 = vsel %vm526, %v6083, %v6090
      %v6092 = vrot.slane %v6087, 4
      %v6094 = vshrl.u32 %v5956, 16
      %v6096 = vrot.slane %v6094, 7
      %v6097 = vshll.u32 %v5956, 16
      %v6099 = vor.u32 %v6096, %v6097
      %v6100 = vrot.slane %v6096, 4
      %v6102 = vshrl.u32 %v5957, 16
      %v6104 = vrot.slane %v6102, 7
      %v6105 = vshll.u32 %v5957, 16
      %v6107 = vor.u32 %v6104, %v6105
      %v6108 = vsel %vm526, %v6100, %v6107
      %v6109 = vrot.slane %v6104, 4
      %v6111 = vshrl.u32 %v5958, 16
      %v6113 = vrot.slane %v6111, 7
      %v6114 = vshll.u32 %v5958, 16
      %v6116 = vor.u32 %v6113, %v6114
      %v6117 = vrot.slane %v6113, 4
      %v6119 = vshrl.u32 %v5959, 16
      %v6121 = vrot.slane %v6119, 7
      %v6122 = vshll.u32 %v5959, 16
      %v6124 = vor.u32 %v6121, %v6122
      %v6125 = vsel %vm526, %v6117, %v6124
      %v6126 = vrot.slane %v6121, 4
      %v6128 = vshrl.u32 %v5960, 16
      %v6130 = vrot.slane %v6128, 7
      %v6131 = vshll.u32 %v5960, 16
      %v6133 = vor.u32 %v6130, %v6131
      %v6134 = vrot.slane %v6130, 4
      %v6136 = vshrl.u32 %v5961, 16
      %v6138 = vrot.slane %v6136, 7
      %v6139 = vshll.u32 %v5961, 16
      %v6141 = vor.u32 %v6138, %v6139
      %v6142 = vsel %vm526, %v6134, %v6141
      %v6143 = vrot.slane %v6138, 4
      %v6145 = vshrl.u32 %v5962, 16
      %v6147 = vrot.slane %v6145, 7
      %v6148 = vshll.u32 %v5962, 16
      %v6150 = vor.u32 %v6147, %v6148
      %v6151 = vrot.slane %v6147, 4
      %v6153 = vshrl.u32 %v5963, 16
      %v6155 = vrot.slane %v6153, 7
      %v6156 = vshll.u32 %v5963, 16
      %v6158 = vor.u32 %v6155, %v6156
      %v6159 = vsel %vm526, %v6151, %v6158
      %v6160 = vrot.slane %v6155, 4
      %v6162 = vshrl.u32 %v5964, 16
      %v6164 = vrot.slane %v6162, 7
      %v6165 = vshll.u32 %v5964, 16
      %v6167 = vor.u32 %v6164, %v6165
      %v6168 = vrot.slane %v6164, 4
      %v6170 = vshrl.u32 %v5965, 16
      %v6172 = vrot.slane %v6170, 7
      %v6173 = vshll.u32 %v5965, 16
      %v6175 = vor.u32 %v6172, %v6173
      %v6176 = vsel %vm526, %v6168, %v6175
      %v6177 = vrot.slane %v6172, 4
      %v6179 = vshrl.u32 %v5966, 16
      %v6181 = vrot.slane %v6179, 7
      %v6182 = vshll.u32 %v5966, 16
      %v6184 = vor.u32 %v6181, %v6182
      %v6185 = vrot.slane %v6181, 4
      %v6187 = vshrl.u32 %v5967, 16
      %v6189 = vrot.slane %v6187, 7
      %v6190 = vshll.u32 %v5967, 16
      %v6192 = vor.u32 %v6189, %v6190
      %v6193 = vsel %vm526, %v6185, %v6192
      %v6194 = vrot.slane %v6189, 4
      %v6196 = vshrl.u32 %v5968, 16
      %v6198 = vrot.slane %v6196, 7
      %v6199 = vshll.u32 %v5968, 16
      %v6201 = vor.u32 %v6198, %v6199
      %v6202 = vrot.slane %v6198, 4
      %v6204 = vshrl.u32 %v5969, 16
      %v6206 = vrot.slane %v6204, 7
      %v6207 = vshll.u32 %v5969, 16
      %v6209 = vor.u32 %v6206, %v6207
      %v6210 = vsel %vm526, %v6202, %v6209
      %v6211 = vrot.slane %v6206, 4
      %v6213 = vshrl.u32 %v5970, 16
      %v6215 = vrot.slane %v6213, 7
      %v6216 = vshll.u32 %v5970, 16
      %v6218 = vor.u32 %v6215, %v6216
      %v6219 = vrot.slane %v6215, 4
      %v6221 = vshrl.u32 %v5971, 16
      %v6223 = vrot.slane %v6221, 7
      %v6224 = vshll.u32 %v5971, 16
      %v6226 = vor.u32 %v6223, %v6224
      %v6227 = vsel %vm526, %v6219, %v6226
      %v6228 = vrot.slane %v6223, 4
      %v6230 = vshrl.u32 %v5972, 16
      %v6232 = vrot.slane %v6230, 7
      %v6233 = vshll.u32 %v5972, 16
      %v6235 = vor.u32 %v6232, %v6233
      %v6236 = vrot.slane %v6232, 4
      %v6238 = vshrl.u32 %v5973, 16
      %v6240 = vrot.slane %v6238, 7
      %v6241 = vshll.u32 %v5973, 16
      %v6243 = vor.u32 %v6240, %v6241
      %v6244 = vsel %vm526, %v6236, %v6243
      %v6245 = vrot.slane %v6240, 4
      %s6294 = scalar_lea.vmem [#allocation3], 12
      %v6295 = vld [vmem:[%s6294] sm:$0xf]
      %v6296 = vsel %vm849, %v5980, %v6295
      %6297 = vst [vmem:[%s6294] sm:$0xf] %v6296
      %6298 = vst [vmem:[%s6294 + $0x4] sm:$0xf] %v5989
      %v6299 = vld [vmem:[%s6294 + $0x8] sm:$0x1]
      %v6300 = vsel %vm235, %v5990, %v6299
      %6301 = vst [vmem:[%s6294 + $0x8] sm:$0x1] %v6300
      %v6302 = vld [vmem:[%s6294 + $0xc] sm:$0xf]
      %v6303 = vsel %vm849, %v5997, %v6302
      %6304 = vst [vmem:[%s6294 + $0xc] sm:$0xf] %v6303
      %6305 = vst [vmem:[%s6294 + $0x10] sm:$0xf] %v6006
      %v6306 = vld [vmem:[%s6294 + $0x14] sm:$0x1]
      %v6307 = vsel %vm235, %v6007, %v6306
      %6308 = vst [vmem:[%s6294 + $0x14] sm:$0x1] %v6307
      %v6309 = vld [vmem:[%s6294 + $0x18] sm:$0xf]
      %v6310 = vsel %vm849, %v6014, %v6309
      %6311 = vst [vmem:[%s6294 + $0x18] sm:$0xf] %v6310
      %6312 = vst [vmem:[%s6294 + $0x1c] sm:$0xf] %v6023
      %v6313 = vld [vmem:[%s6294 + $0x20] sm:$0x1]
      %v6314 = vsel %vm235, %v6024, %v6313
      %6315 = vst [vmem:[%s6294 + $0x20] sm:$0x1] %v6314
      %v6316 = vld [vmem:[%s6294 + $0x24] sm:$0xf]
      %v6317 = vsel %vm849, %v6031, %v6316
      %6318 = vst [vmem:[%s6294 + $0x24] sm:$0xf] %v6317
      %6319 = vst [vmem:[%s6294 + $0x28] sm:$0xf] %v6040
      %v6320 = vld [vmem:[%s6294 + $0x2c] sm:$0x1]
      %v6321 = vsel %vm235, %v6041, %v6320
      %6322 = vst [vmem:[%s6294 + $0x2c] sm:$0x1] %v6321
      %v6323 = vld [vmem:[%s6294 + $0x30] sm:$0xf]
      %v6324 = vsel %vm849, %v6048, %v6323
      %6325 = vst [vmem:[%s6294 + $0x30] sm:$0xf] %v6324
      %6326 = vst [vmem:[%s6294 + $0x34] sm:$0xf] %v6057
      %v6327 = vld [vmem:[%s6294 + $0x38] sm:$0x1]
      %v6328 = vsel %vm235, %v6058, %v6327
      %6329 = vst [vmem:[%s6294 + $0x38] sm:$0x1] %v6328
      %v6330 = vld [vmem:[%s6294 + $0x3c] sm:$0xf]
      %v6331 = vsel %vm849, %v6065, %v6330
      %6332 = vst [vmem:[%s6294 + $0x3c] sm:$0xf] %v6331
      %6333 = vst [vmem:[%s6294 + $0x40] sm:$0xf] %v6074
      %v6334 = vld [vmem:[%s6294 + $0x44] sm:$0x1]
      %v6335 = vsel %vm235, %v6075, %v6334
      %6336 = vst [vmem:[%s6294 + $0x44] sm:$0x1] %v6335
      %v6337 = vld [vmem:[%s6294 + $0x48] sm:$0xf]
      %v6338 = vsel %vm849, %v6082, %v6337
      %6339 = vst [vmem:[%s6294 + $0x48] sm:$0xf] %v6338
      %6340 = vst [vmem:[%s6294 + $0x4c] sm:$0xf] %v6091
      %v6341 = vld [vmem:[%s6294 + $0x50] sm:$0x1]
      %v6342 = vsel %vm235, %v6092, %v6341
      %6343 = vst [vmem:[%s6294 + $0x50] sm:$0x1] %v6342
      %v6344 = vld [vmem:[%s6294 + $0x54] sm:$0xf]
      %v6345 = vsel %vm849, %v6099, %v6344
      %6346 = vst [vmem:[%s6294 + $0x54] sm:$0xf] %v6345
      %6347 = vst [vmem:[%s6294 + $0x58] sm:$0xf] %v6108
      %v6348 = vld [vmem:[%s6294 + $0x5c] sm:$0x1]
      %v6349 = vsel %vm235, %v6109, %v6348
      %6350 = vst [vmem:[%s6294 + $0x5c] sm:$0x1] %v6349
      %v6351 = vld [vmem:[%s6294 + $0x60] sm:$0xf]
      %v6352 = vsel %vm849, %v6116, %v6351
      %6353 = vst [vmem:[%s6294 + $0x60] sm:$0xf] %v6352
      %6354 = vst [vmem:[%s6294 + $0x64] sm:$0xf] %v6125
      %v6355 = vld [vmem:[%s6294 + $0x68] sm:$0x1]
      %v6356 = vsel %vm235, %v6126, %v6355
      %6357 = vst [vmem:[%s6294 + $0x68] sm:$0x1] %v6356
      %v6358 = vld [vmem:[%s6294 + $0x6c] sm:$0xf]
      %v6359 = vsel %vm849, %v6133, %v6358
      %6360 = vst [vmem:[%s6294 + $0x6c] sm:$0xf] %v6359
      %6361 = vst [vmem:[%s6294 + $0x70] sm:$0xf] %v6142
      %v6362 = vld [vmem:[%s6294 + $0x74] sm:$0x1]
      %v6363 = vsel %vm235, %v6143, %v6362
      %6364 = vst [vmem:[%s6294 + $0x74] sm:$0x1] %v6363
      %v6365 = vld [vmem:[%s6294 + $0x78] sm:$0xf]
      %v6366 = vsel %vm849, %v6150, %v6365
      %6367 = vst [vmem:[%s6294 + $0x78] sm:$0xf] %v6366
      %6368 = vst [vmem:[%s6294 + $0x7c] sm:$0xf] %v6159
      %v6369 = vld [vmem:[%s6294 + $0x80] sm:$0x1]
      %v6370 = vsel %vm235, %v6160, %v6369
      %6371 = vst [vmem:[%s6294 + $0x80] sm:$0x1] %v6370
      %v6372 = vld [vmem:[%s6294 + $0x84] sm:$0xf]
      %v6373 = vsel %vm849, %v6167, %v6372
      %6374 = vst [vmem:[%s6294 + $0x84] sm:$0xf] %v6373
      %6375 = vst [vmem:[%s6294 + $0x88] sm:$0xf] %v6176
      %v6376 = vld [vmem:[%s6294 + $0x8c] sm:$0x1]
      %v6377 = vsel %vm235, %v6177, %v6376
      %6378 = vst [vmem:[%s6294 + $0x8c] sm:$0x1] %v6377
      %v6379 = vld [vmem:[%s6294 + $0x90] sm:$0xf]
      %v6380 = vsel %vm849, %v6184, %v6379
      %6381 = vst [vmem:[%s6294 + $0x90] sm:$0xf] %v6380
      %6382 = vst [vmem:[%s6294 + $0x94] sm:$0xf] %v6193
      %v6383 = vld [vmem:[%s6294 + $0x98] sm:$0x1]
      %v6384 = vsel %vm235, %v6194, %v6383
      %6385 = vst [vmem:[%s6294 + $0x98] sm:$0x1] %v6384
      %v6386 = vld [vmem:[%s6294 + $0x9c] sm:$0xf]
      %v6387 = vsel %vm849, %v6201, %v6386
      %6388 = vst [vmem:[%s6294 + $0x9c] sm:$0xf] %v6387
      %6389 = vst [vmem:[%s6294 + $0xa0] sm:$0xf] %v6210
      %v6390 = vld [vmem:[%s6294 + $0xa4] sm:$0x1]
      %v6391 = vsel %vm235, %v6211, %v6390
      %6392 = vst [vmem:[%s6294 + $0xa4] sm:$0x1] %v6391
      %v6393 = vld [vmem:[%s6294 + $0xa8] sm:$0xf]
      %v6394 = vsel %vm849, %v6218, %v6393
      %6395 = vst [vmem:[%s6294 + $0xa8] sm:$0xf] %v6394
      %6396 = vst [vmem:[%s6294 + $0xac] sm:$0xf] %v6227
      %v6397 = vld [vmem:[%s6294 + $0xb0] sm:$0x1]
      %v6398 = vsel %vm235, %v6228, %v6397
      %6399 = vst [vmem:[%s6294 + $0xb0] sm:$0x1] %v6398
      %v6400 = vld [vmem:[%s6294 + $0xb4] sm:$0xf]
      %v6401 = vsel %vm849, %v6235, %v6400
      %6402 = vst [vmem:[%s6294 + $0xb4] sm:$0xf] %v6401
      %6403 = vst [vmem:[%s6294 + $0xb8] sm:$0xf] %v6244
      %v6404 = vld [vmem:[%s6294 + $0xbc] sm:$0x1]
      %v6405 = vsel %vm235, %v6245, %v6404
      %6406 = vst [vmem:[%s6294 + $0xbc] sm:$0x1] %v6405
      %v6407 = vld [vmem:[#allocation3] sm:$0xf]
      %v6408 = vld [vmem:[#allocation3 + $0x4] sm:$0xf]
      %v6409 = vld [vmem:[#allocation3 + $0xc] sm:$0xf]
      %v6410 = vld [vmem:[#allocation3 + $0x10] sm:$0xf]
      %v6411 = vld [vmem:[#allocation3 + $0x18] sm:$0xf]
      %v6412 = vld [vmem:[#allocation3 + $0x1c] sm:$0xf]
      %v6413 = vld [vmem:[#allocation3 + $0x24] sm:$0xf]
      %v6414 = vld [vmem:[#allocation3 + $0x28] sm:$0xf]
      %v6415 = vld [vmem:[#allocation3 + $0x30] sm:$0xf]
      %v6416 = vld [vmem:[#allocation3 + $0x34] sm:$0xf]
      %v6417 = vld [vmem:[#allocation3 + $0x3c] sm:$0xf]
      %v6418 = vld [vmem:[#allocation3 + $0x40] sm:$0xf]
      %v6419 = vld [vmem:[#allocation3 + $0x48] sm:$0xf]
      %v6420 = vld [vmem:[#allocation3 + $0x4c] sm:$0xf]
      %v6421 = vld [vmem:[#allocation3 + $0x54] sm:$0xf]
      %v6422 = vld [vmem:[#allocation3 + $0x58] sm:$0xf]
      %v6423 = vld [vmem:[#allocation3 + $0x60] sm:$0xf]
      %v6424 = vld [vmem:[#allocation3 + $0x64] sm:$0xf]
      %v6425 = vld [vmem:[#allocation3 + $0x6c] sm:$0xf]
      %v6426 = vld [vmem:[#allocation3 + $0x70] sm:$0xf]
      %v6427 = vld [vmem:[#allocation3 + $0x78] sm:$0xf]
      %v6428 = vld [vmem:[#allocation3 + $0x7c] sm:$0xf]
      %v6429 = vld [vmem:[#allocation3 + $0x84] sm:$0xf]
      %v6430 = vld [vmem:[#allocation3 + $0x88] sm:$0xf]
      %v6431 = vld [vmem:[#allocation3 + $0x90] sm:$0xf]
      %v6432 = vld [vmem:[#allocation3 + $0x94] sm:$0xf]
      %v6433 = vld [vmem:[#allocation3 + $0x9c] sm:$0xf]
      %v6434 = vld [vmem:[#allocation3 + $0xa0] sm:$0xf]
      %v6435 = vld [vmem:[#allocation3 + $0xa8] sm:$0xf]
      %v6436 = vld [vmem:[#allocation3 + $0xac] sm:$0xf]
      %v6437 = vld [vmem:[#allocation3 + $0xb4] sm:$0xf]
      %v6438 = vld [vmem:[#allocation3 + $0xb8] sm:$0xf]
      %v6439 = vld [vmem:[%s3] sm:$0xf]
      %v6440 = vld [vmem:[%s3 + $0x4] sm:$0xf]
      %v6441 = vld [vmem:[%s3 + $0x8] sm:$0xf]
      %v6442 = vld [vmem:[%s3 + $0xc] sm:$0xf]
      %v6443 = vld [vmem:[%s3 + $0x10] sm:$0xf]
      %v6444 = vld [vmem:[%s3 + $0x14] sm:$0xf]
      %v6445 = vld [vmem:[%s3 + $0x18] sm:$0xf]
      %v6446 = vld [vmem:[%s3 + $0x1c] sm:$0xf]
      %v6447 = vld [vmem:[%s3 + $0x20] sm:$0xf]
      %v6448 = vld [vmem:[%s3 + $0x24] sm:$0xf]
      %v6449 = vld [vmem:[%s3 + $0x28] sm:$0xf]
      %v6450 = vld [vmem:[%s3 + $0x2c] sm:$0xf]
      %v6451 = vld [vmem:[%s3 + $0x30] sm:$0xf]
      %v6452 = vld [vmem:[%s3 + $0x34] sm:$0xf]
      %v6453 = vld [vmem:[%s3 + $0x38] sm:$0xf]
      %v6454 = vld [vmem:[%s3 + $0x3c] sm:$0xf]
      %v6487 = vunpack.c.l.b16 %v6407
      %v6488 = vunpack.c.l.b16 %v6408
      %v6489 = vunpack.c.l.b16 %v6409
      %v6490 = vunpack.c.l.b16 %v6410
      %v6491 = vunpack.c.l.b16 %v6411
      %v6492 = vunpack.c.l.b16 %v6412
      %v6493 = vunpack.c.l.b16 %v6413
      %v6494 = vunpack.c.l.b16 %v6414
      %v6495 = vunpack.c.l.b16 %v6415
      %v6496 = vunpack.c.l.b16 %v6416
      %v6497 = vunpack.c.l.b16 %v6417
      %v6498 = vunpack.c.l.b16 %v6418
      %v6499 = vunpack.c.l.b16 %v6419
      %v6500 = vunpack.c.l.b16 %v6420
      %v6501 = vunpack.c.l.b16 %v6421
      %v6502 = vunpack.c.l.b16 %v6422
      %v6503 = vunpack.c.l.b16 %v6423
      %v6504 = vunpack.c.l.b16 %v6424
      %v6505 = vunpack.c.l.b16 %v6425
      %v6506 = vunpack.c.l.b16 %v6426
      %v6507 = vunpack.c.l.b16 %v6427
      %v6508 = vunpack.c.l.b16 %v6428
      %v6509 = vunpack.c.l.b16 %v6429
      %v6510 = vunpack.c.l.b16 %v6430
      %v6511 = vunpack.c.l.b16 %v6431
      %v6512 = vunpack.c.l.b16 %v6432
      %v6513 = vunpack.c.l.b16 %v6433
      %v6514 = vunpack.c.l.b16 %v6434
      %v6515 = vunpack.c.l.b16 %v6435
      %v6516 = vunpack.c.l.b16 %v6436
      %v6517 = vunpack.c.l.b16 %v6437
      %v6518 = vunpack.c.l.b16 %v6438
      %v6519 = vpack.c.b16 %v6488, %v6487
      %v6520 = vpack.c.b16 %v6490, %v6489
      %v6521 = vpack.c.b16 %v6492, %v6491
      %v6522 = vpack.c.b16 %v6494, %v6493
      %v6523 = vpack.c.b16 %v6496, %v6495
      %v6524 = vpack.c.b16 %v6498, %v6497
      %v6525 = vpack.c.b16 %v6500, %v6499
      %v6526 = vpack.c.b16 %v6502, %v6501
      %v6527 = vpack.c.b16 %v6504, %v6503
      %v6528 = vpack.c.b16 %v6506, %v6505
      %v6529 = vpack.c.b16 %v6508, %v6507
      %v6530 = vpack.c.b16 %v6510, %v6509
      %v6531 = vpack.c.b16 %v6512, %v6511
      %v6532 = vpack.c.b16 %v6514, %v6513
      %v6533 = vpack.c.b16 %v6516, %v6515
      %v6534 = vpack.c.b16 %v6518, %v6517
      %v6567 = vunpack.c.l.b16 %v6439
      %v6568 = vunpack.c.l.b16 %v6440
      %v6569 = vunpack.c.l.b16 %v6441
      %v6570 = vunpack.c.l.b16 %v6442
      %v6571 = vunpack.c.l.b16 %v6443
      %v6572 = vunpack.c.l.b16 %v6444
      %v6573 = vunpack.c.l.b16 %v6445
      %v6574 = vunpack.c.l.b16 %v6446
      %v6575 = vunpack.c.l.b16 %v6447
      %v6576 = vunpack.c.l.b16 %v6448
      %v6577 = vunpack.c.l.b16 %v6449
      %v6578 = vunpack.c.l.b16 %v6450
      %v6579 = vunpack.c.l.b16 %v6451
      %v6580 = vunpack.c.l.b16 %v6452
      %v6581 = vunpack.c.l.b16 %v6453
      %v6582 = vunpack.c.l.b16 %v6454
      %v6583 = vpack.c.b16 %v6568, %v6567
      %v6584 = vpack.c.b16 %v6570, %v6569
      %v6585 = vpack.c.b16 %v6572, %v6571
      %v6586 = vpack.c.b16 %v6574, %v6573
      %v6587 = vpack.c.b16 %v6576, %v6575
      %v6588 = vpack.c.b16 %v6578, %v6577
      %v6589 = vpack.c.b16 %v6580, %v6579
      %v6590 = vpack.c.b16 %v6582, %v6581
      %6599 = vmatpush.bf16.msra.mxu0 %v6590
      %6600 = vmatpush.bf16.msra.mxu0 %v6589
      %6601 = vmatpush.bf16.msra.mxu0 %v6588
      %6602 = vmatpush.bf16.msra.mxu0 %v6587
      %6603 = vmatpush.bf16.msra.mxu0 %v6586
      %6604 = vmatpush.bf16.msra.mxu0 %v6585
      %6605 = vmatpush.bf16.msra.mxu0 %v6584
      %6606 = vmatpush.bf16.msra.mxu0 %v6583
      %6607 = vmatmul.bf16.gmra.mxu0 %v6519
      %v6608 = vpop.f32.mrf.mxu0
      %v6609 = vadd.f32 0.0, %v6608
      %v6610 = vpop.f32.mrf.mxu0
      %v6611 = vadd.f32 0.0, %v6610
      %6612 = vmatmul.bf16.gmra.mxu0 %v6520
      %v6613 = vpop.f32.mrf.mxu0
      %v6614 = vadd.f32 0.0, %v6613
      %v6615 = vpop.f32.mrf.mxu0
      %v6616 = vadd.f32 0.0, %v6615
      %6617 = vmatmul.bf16.gmra.mxu0 %v6521
      %v6618 = vpop.f32.mrf.mxu0
      %v6619 = vadd.f32 0.0, %v6618
      %v6620 = vpop.f32.mrf.mxu0
      %v6621 = vadd.f32 0.0, %v6620
      %6622 = vmatmul.bf16.gmra.mxu0 %v6522
      %v6623 = vpop.f32.mrf.mxu0
      %v6624 = vadd.f32 0.0, %v6623
      %v6625 = vpop.f32.mrf.mxu0
      %v6626 = vadd.f32 0.0, %v6625
      %6627 = vmatmul.bf16.gmra.mxu0 %v6523
      %v6628 = vpop.f32.mrf.mxu0
      %v6629 = vadd.f32 0.0, %v6628
      %v6630 = vpop.f32.mrf.mxu0
      %v6631 = vadd.f32 0.0, %v6630
      %6632 = vmatmul.bf16.gmra.mxu0 %v6524
      %v6633 = vpop.f32.mrf.mxu0
      %v6634 = vadd.f32 0.0, %v6633
      %v6635 = vpop.f32.mrf.mxu0
      %v6636 = vadd.f32 0.0, %v6635
      %6637 = vmatmul.bf16.gmra.mxu0 %v6525
      %v6638 = vpop.f32.mrf.mxu0
      %v6639 = vadd.f32 0.0, %v6638
      %v6640 = vpop.f32.mrf.mxu0
      %v6641 = vadd.f32 0.0, %v6640
      %6642 = vmatmul.bf16.gmra.mxu0 %v6526
      %v6643 = vpop.f32.mrf.mxu0
      %v6644 = vadd.f32 0.0, %v6643
      %v6645 = vpop.f32.mrf.mxu0
      %v6646 = vadd.f32 0.0, %v6645
      %6647 = vmatmul.bf16.gmra.mxu0 %v6527
      %v6648 = vpop.f32.mrf.mxu0
      %v6649 = vadd.f32 0.0, %v6648
      %v6650 = vpop.f32.mrf.mxu0
      %v6651 = vadd.f32 0.0, %v6650
      %6652 = vmatmul.bf16.gmra.mxu0 %v6528
      %v6653 = vpop.f32.mrf.mxu0
      %v6654 = vadd.f32 0.0, %v6653
      %v6655 = vpop.f32.mrf.mxu0
      %v6656 = vadd.f32 0.0, %v6655
      %6657 = vmatmul.bf16.gmra.mxu0 %v6529
      %v6658 = vpop.f32.mrf.mxu0
      %v6659 = vadd.f32 0.0, %v6658
      %v6660 = vpop.f32.mrf.mxu0
      %v6661 = vadd.f32 0.0, %v6660
      %6662 = vmatmul.bf16.gmra.mxu0 %v6530
      %v6663 = vpop.f32.mrf.mxu0
      %v6664 = vadd.f32 0.0, %v6663
      %v6665 = vpop.f32.mrf.mxu0
      %v6666 = vadd.f32 0.0, %v6665
      %6667 = vmatmul.bf16.gmra.mxu0 %v6531
      %v6668 = vpop.f32.mrf.mxu0
      %v6669 = vadd.f32 0.0, %v6668
      %v6670 = vpop.f32.mrf.mxu0
      %v6671 = vadd.f32 0.0, %v6670
      %6672 = vmatmul.bf16.gmra.mxu0 %v6532
      %v6673 = vpop.f32.mrf.mxu0
      %v6674 = vadd.f32 0.0, %v6673
      %v6675 = vpop.f32.mrf.mxu0
      %v6676 = vadd.f32 0.0, %v6675
      %6677 = vmatmul.bf16.gmra.mxu0 %v6533
      %v6678 = vpop.f32.mrf.mxu0
      %v6679 = vadd.f32 0.0, %v6678
      %v6680 = vpop.f32.mrf.mxu0
      %v6681 = vadd.f32 0.0, %v6680
      %6682 = vmatmul.bf16.gmra.mxu0 %v6534
      %v6683 = vpop.f32.mrf.mxu0
      %v6684 = vadd.f32 0.0, %v6683
      %v6685 = vpop.f32.mrf.mxu0
      %v6686 = vadd.f32 0.0, %v6685
      %6687 = vdwg.mxu0
      %6688 = vst [vmem:[#allocation4] sm:$0xff] %v6609
      %6689 = vst [vmem:[#allocation4 + $0x8] sm:$0xff] %v6611
      %6690 = vst [vmem:[#allocation4 + $0x10] sm:$0xff] %v6614
      %6691 = vst [vmem:[#allocation4 + $0x18] sm:$0xff] %v6616
      %6692 = vst [vmem:[#allocation4 + $0x20] sm:$0xff] %v6619
      %6693 = vst [vmem:[#allocation4 + $0x28] sm:$0xff] %v6621
      %6694 = vst [vmem:[#allocation4 + $0x30] sm:$0xff] %v6624
      %6695 = vst [vmem:[#allocation4 + $0x38] sm:$0xff] %v6626
      %6696 = vst [vmem:[#allocation4 + $0x40] sm:$0xff] %v6629
      %6697 = vst [vmem:[#allocation4 + $0x48] sm:$0xff] %v6631
      %6698 = vst [vmem:[#allocation4 + $0x50] sm:$0xff] %v6634
      %6699 = vst [vmem:[#allocation4 + $0x58] sm:$0xff] %v6636
      %6700 = vst [vmem:[#allocation4 + $0x60] sm:$0xff] %v6639
      %6701 = vst [vmem:[#allocation4 + $0x68] sm:$0xff] %v6641
      %6702 = vst [vmem:[#allocation4 + $0x70] sm:$0xff] %v6644
      %6703 = vst [vmem:[#allocation4 + $0x78] sm:$0xff] %v6646
      %6704 = vst [vmem:[#allocation4 + $0x80] sm:$0xff] %v6649
      %6705 = vst [vmem:[#allocation4 + $0x88] sm:$0xff] %v6651
      %6706 = vst [vmem:[#allocation4 + $0x90] sm:$0xff] %v6654
      %6707 = vst [vmem:[#allocation4 + $0x98] sm:$0xff] %v6656
      %6708 = vst [vmem:[#allocation4 + $0xa0] sm:$0xff] %v6659
      %6709 = vst [vmem:[#allocation4 + $0xa8] sm:$0xff] %v6661
      %6710 = vst [vmem:[#allocation4 + $0xb0] sm:$0xff] %v6664
      %6711 = vst [vmem:[#allocation4 + $0xb8] sm:$0xff] %v6666
      %6712 = vst [vmem:[#allocation4 + $0xc0] sm:$0xff] %v6669
      %6713 = vst [vmem:[#allocation4 + $0xc8] sm:$0xff] %v6671
      %6714 = vst [vmem:[#allocation4 + $0xd0] sm:$0xff] %v6674
      %6715 = vst [vmem:[#allocation4 + $0xd8] sm:$0xff] %v6676
      %6716 = vst [vmem:[#allocation4 + $0xe0] sm:$0xff] %v6679
      %6717 = vst [vmem:[#allocation4 + $0xe8] sm:$0xff] %v6681
      %6718 = vst [vmem:[#allocation4 + $0xf0] sm:$0xff] %v6684
      %6719 = vst [vmem:[#allocation4 + $0xf8] sm:$0xff] %v6686
      %v6720 = vld [vmem:[#allocation3] sm:$0xf]
      %v6721 = vld [vmem:[#allocation3 + $0x4] sm:$0xf]
      %v6722 = vld [vmem:[#allocation3 + $0x8] sm:$0x1]
      %v6723 = vld [vmem:[#allocation3 + $0xc] sm:$0xf]
      %v6724 = vld [vmem:[#allocation3 + $0x10] sm:$0xf]
      %v6725 = vld [vmem:[#allocation3 + $0x14] sm:$0x1]
      %v6726 = vld [vmem:[#allocation3 + $0x18] sm:$0xf]
      %v6727 = vld [vmem:[#allocation3 + $0x1c] sm:$0xf]
      %v6728 = vld [vmem:[#allocation3 + $0x20] sm:$0x1]
      %v6729 = vld [vmem:[#allocation3 + $0x24] sm:$0xf]
      %v6730 = vld [vmem:[#allocation3 + $0x28] sm:$0xf]
      %v6731 = vld [vmem:[#allocation3 + $0x2c] sm:$0x1]
      %v6732 = vld [vmem:[#allocation3 + $0x30] sm:$0xf]
      %v6733 = vld [vmem:[#allocation3 + $0x34] sm:$0xf]
      %v6734 = vld [vmem:[#allocation3 + $0x38] sm:$0x1]
      %v6735 = vld [vmem:[#allocation3 + $0x3c] sm:$0xf]
      %v6736 = vld [vmem:[#allocation3 + $0x40] sm:$0xf]
      %v6737 = vld [vmem:[#allocation3 + $0x44] sm:$0x1]
      %v6738 = vld [vmem:[#allocation3 + $0x48] sm:$0xf]
      %v6739 = vld [vmem:[#allocation3 + $0x4c] sm:$0xf]
      %v6740 = vld [vmem:[#allocation3 + $0x50] sm:$0x1]
      %v6741 = vld [vmem:[#allocation3 + $0x54] sm:$0xf]
      %v6742 = vld [vmem:[#allocation3 + $0x58] sm:$0xf]
      %v6743 = vld [vmem:[#allocation3 + $0x5c] sm:$0x1]
      %v6744 = vld [vmem:[#allocation3 + $0x60] sm:$0xf]
      %v6745 = vld [vmem:[#allocation3 + $0x64] sm:$0xf]
      %v6746 = vld [vmem:[#allocation3 + $0x68] sm:$0x1]
      %v6747 = vld [vmem:[#allocation3 + $0x6c] sm:$0xf]
      %v6748 = vld [vmem:[#allocation3 + $0x70] sm:$0xf]
      %v6749 = vld [vmem:[#allocation3 + $0x74] sm:$0x1]
      %v6750 = vld [vmem:[#allocation3 + $0x78] sm:$0xf]
      %v6751 = vld [vmem:[#allocation3 + $0x7c] sm:$0xf]
      %v6752 = vld [vmem:[#allocation3 + $0x80] sm:$0x1]
      %v6753 = vld [vmem:[#allocation3 + $0x84] sm:$0xf]
      %v6754 = vld [vmem:[#allocation3 + $0x88] sm:$0xf]
      %v6755 = vld [vmem:[#allocation3 + $0x8c] sm:$0x1]
      %v6756 = vld [vmem:[#allocation3 + $0x90] sm:$0xf]
      %v6757 = vld [vmem:[#allocation3 + $0x94] sm:$0xf]
      %v6758 = vld [vmem:[#allocation3 + $0x98] sm:$0x1]
      %v6759 = vld [vmem:[#allocation3 + $0x9c] sm:$0xf]
      %v6760 = vld [vmem:[#allocation3 + $0xa0] sm:$0xf]
      %v6761 = vld [vmem:[#allocation3 + $0xa4] sm:$0x1]
      %v6762 = vld [vmem:[#allocation3 + $0xa8] sm:$0xf]
      %v6763 = vld [vmem:[#allocation3 + $0xac] sm:$0xf]
      %v6764 = vld [vmem:[#allocation3 + $0xb0] sm:$0x1]
      %v6765 = vld [vmem:[#allocation3 + $0xb4] sm:$0xf]
      %v6766 = vld [vmem:[#allocation3 + $0xb8] sm:$0xf]
      %v6767 = vld [vmem:[#allocation3 + $0xbc] sm:$0x1]
      %v6769 = vshrl.u32 %v6720, 16
      %v6771 = vrot.slane %v6769, 4
      %v6772 = vshll.u32 %v6720, 16
      %v6774 = vrot.slane %v6772, 5
      %v6775 = vor.u32 %v6771, %v6774
      %v6776 = vrot.slane %v6775, 4
      %v6778 = vshll.u32 %v6721, 16
      %v6780 = vrot.slane %v6778, 5
      %v6781 = vsel %vm1325, %v6776, %v6780
      %v6782 = vshrl.u32 %v6721, 16
      %v6784 = vrot.slane %v6782, 4
      %v6785 = vor.u32 %v6784, %v6780
      %v6786 = vrot.slane %v6785, 4
      %v6788 = vshll.u32 %v6722, 16
      %v6790 = vrot.slane %v6788, 5
      %v6791 = vsel %vm1325, %v6786, %v6790
      %v6793 = vshrl.u32 %v6723, 16
      %v6795 = vrot.slane %v6793, 4
      %v6796 = vshll.u32 %v6723, 16
      %v6798 = vrot.slane %v6796, 5
      %v6799 = vor.u32 %v6795, %v6798
      %v6800 = vrot.slane %v6799, 4
      %v6802 = vshll.u32 %v6724, 16
      %v6804 = vrot.slane %v6802, 5
      %v6805 = vsel %vm1325, %v6800, %v6804
      %v6806 = vshrl.u32 %v6724, 16
      %v6808 = vrot.slane %v6806, 4
      %v6809 = vor.u32 %v6808, %v6804
      %v6810 = vrot.slane %v6809, 4
      %v6812 = vshll.u32 %v6725, 16
      %v6814 = vrot.slane %v6812, 5
      %v6815 = vsel %vm1325, %v6810, %v6814
      %v6817 = vshrl.u32 %v6726, 16
      %v6819 = vrot.slane %v6817, 4
      %v6820 = vshll.u32 %v6726, 16
      %v6822 = vrot.slane %v6820, 5
      %v6823 = vor.u32 %v6819, %v6822
      %v6824 = vrot.slane %v6823, 4
      %v6826 = vshll.u32 %v6727, 16
      %v6828 = vrot.slane %v6826, 5
      %v6829 = vsel %vm1325, %v6824, %v6828
      %v6830 = vshrl.u32 %v6727, 16
      %v6832 = vrot.slane %v6830, 4
      %v6833 = vor.u32 %v6832, %v6828
      %v6834 = vrot.slane %v6833, 4
      %v6836 = vshll.u32 %v6728, 16
      %v6838 = vrot.slane %v6836, 5
      %v6839 = vsel %vm1325, %v6834, %v6838
      %v6841 = vshrl.u32 %v6729, 16
      %v6843 = vrot.slane %v6841, 4
      %v6844 = vshll.u32 %v6729, 16
      %v6846 = vrot.slane %v6844, 5
      %v6847 = vor.u32 %v6843, %v6846
      %v6848 = vrot.slane %v6847, 4
      %v6850 = vshll.u32 %v6730, 16
      %v6852 = vrot.slane %v6850, 5
      %v6853 = vsel %vm1325, %v6848, %v6852
      %v6854 = vshrl.u32 %v6730, 16
      %v6856 = vrot.slane %v6854, 4
      %v6857 = vor.u32 %v6856, %v6852
      %v6858 = vrot.slane %v6857, 4
      %v6860 = vshll.u32 %v6731, 16
      %v6862 = vrot.slane %v6860, 5
      %v6863 = vsel %vm1325, %v6858, %v6862
      %v6865 = vshrl.u32 %v6732, 16
      %v6867 = vrot.slane %v6865, 4
      %v6868 = vshll.u32 %v6732, 16
      %v6870 = vrot.slane %v6868, 5
      %v6871 = vor.u32 %v6867, %v6870
      %v6872 = vrot.slane %v6871, 4
      %v6874 = vshll.u32 %v6733, 16
      %v6876 = vrot.slane %v6874, 5
      %v6877 = vsel %vm1325, %v6872, %v6876
      %v6878 = vshrl.u32 %v6733, 16
      %v6880 = vrot.slane %v6878, 4
      %v6881 = vor.u32 %v6880, %v6876
      %v6882 = vrot.slane %v6881, 4
      %v6884 = vshll.u32 %v6734, 16
      %v6886 = vrot.slane %v6884, 5
      %v6887 = vsel %vm1325, %v6882, %v6886
      %v6889 = vshrl.u32 %v6735, 16
      %v6891 = vrot.slane %v6889, 4
      %v6892 = vshll.u32 %v6735, 16
      %v6894 = vrot.slane %v6892, 5
      %v6895 = vor.u32 %v6891, %v6894
      %v6896 = vrot.slane %v6895, 4
      %v6898 = vshll.u32 %v6736, 16
      %v6900 = vrot.slane %v6898, 5
      %v6901 = vsel %vm1325, %v6896, %v6900
      %v6902 = vshrl.u32 %v6736, 16
      %v6904 = vrot.slane %v6902, 4
      %v6905 = vor.u32 %v6904, %v6900
      %v6906 = vrot.slane %v6905, 4
      %v6908 = vshll.u32 %v6737, 16
      %v6910 = vrot.slane %v6908, 5
      %v6911 = vsel %vm1325, %v6906, %v6910
      %v6913 = vshrl.u32 %v6738, 16
      %v6915 = vrot.slane %v6913, 4
      %v6916 = vshll.u32 %v6738, 16
      %v6918 = vrot.slane %v6916, 5
      %v6919 = vor.u32 %v6915, %v6918
      %v6920 = vrot.slane %v6919, 4
      %v6922 = vshll.u32 %v6739, 16
      %v6924 = vrot.slane %v6922, 5
      %v6925 = vsel %vm1325, %v6920, %v6924
      %v6926 = vshrl.u32 %v6739, 16
      %v6928 = vrot.slane %v6926, 4
      %v6929 = vor.u32 %v6928, %v6924
      %v6930 = vrot.slane %v6929, 4
      %v6932 = vshll.u32 %v6740, 16
      %v6934 = vrot.slane %v6932, 5
      %v6935 = vsel %vm1325, %v6930, %v6934
      %v6937 = vshrl.u32 %v6741, 16
      %v6939 = vrot.slane %v6937, 4
      %v6940 = vshll.u32 %v6741, 16
      %v6942 = vrot.slane %v6940, 5
      %v6943 = vor.u32 %v6939, %v6942
      %v6944 = vrot.slane %v6943, 4
      %v6946 = vshll.u32 %v6742, 16
      %v6948 = vrot.slane %v6946, 5
      %v6949 = vsel %vm1325, %v6944, %v6948
      %v6950 = vshrl.u32 %v6742, 16
      %v6952 = vrot.slane %v6950, 4
      %v6953 = vor.u32 %v6952, %v6948
      %v6954 = vrot.slane %v6953, 4
      %v6956 = vshll.u32 %v6743, 16
      %v6958 = vrot.slane %v6956, 5
      %v6959 = vsel %vm1325, %v6954, %v6958
      %v6961 = vshrl.u32 %v6744, 16
      %v6963 = vrot.slane %v6961, 4
      %v6964 = vshll.u32 %v6744, 16
      %v6966 = vrot.slane %v6964, 5
      %v6967 = vor.u32 %v6963, %v6966
      %v6968 = vrot.slane %v6967, 4
      %v6970 = vshll.u32 %v6745, 16
      %v6972 = vrot.slane %v6970, 5
      %v6973 = vsel %vm1325, %v6968, %v6972
      %v6974 = vshrl.u32 %v6745, 16
      %v6976 = vrot.slane %v6974, 4
      %v6977 = vor.u32 %v6976, %v6972
      %v6978 = vrot.slane %v6977, 4
      %v6980 = vshll.u32 %v6746, 16
      %v6982 = vrot.slane %v6980, 5
      %v6983 = vsel %vm1325, %v6978, %v6982
      %v6985 = vshrl.u32 %v6747, 16
      %v6987 = vrot.slane %v6985, 4
      %v6988 = vshll.u32 %v6747, 16
      %v6990 = vrot.slane %v6988, 5
      %v6991 = vor.u32 %v6987, %v6990
      %v6992 = vrot.slane %v6991, 4
      %v6994 = vshll.u32 %v6748, 16
      %v6996 = vrot.slane %v6994, 5
      %v6997 = vsel %vm1325, %v6992, %v6996
      %v6998 = vshrl.u32 %v6748, 16
      %v7000 = vrot.slane %v6998, 4
      %v7001 = vor.u32 %v7000, %v6996
      %v7002 = vrot.slane %v7001, 4
      %v7004 = vshll.u32 %v6749, 16
      %v7006 = vrot.slane %v7004, 5
      %v7007 = vsel %vm1325, %v7002, %v7006
      %v7009 = vshrl.u32 %v6750, 16
      %v7011 = vrot.slane %v7009, 4
      %v7012 = vshll.u32 %v6750, 16
      %v7014 = vrot.slane %v7012, 5
      %v7015 = vor.u32 %v7011, %v7014
      %v7016 = vrot.slane %v7015, 4
      %v7018 = vshll.u32 %v6751, 16
      %v7020 = vrot.slane %v7018, 5
      %v7021 = vsel %vm1325, %v7016, %v7020
      %v7022 = vshrl.u32 %v6751, 16
      %v7024 = vrot.slane %v7022, 4
      %v7025 = vor.u32 %v7024, %v7020
      %v7026 = vrot.slane %v7025, 4
      %v7028 = vshll.u32 %v6752, 16
      %v7030 = vrot.slane %v7028, 5
      %v7031 = vsel %vm1325, %v7026, %v7030
      %v7033 = vshrl.u32 %v6753, 16
      %v7035 = vrot.slane %v7033, 4
      %v7036 = vshll.u32 %v6753, 16
      %v7038 = vrot.slane %v7036, 5
      %v7039 = vor.u32 %v7035, %v7038
      %v7040 = vrot.slane %v7039, 4
      %v7042 = vshll.u32 %v6754, 16
      %v7044 = vrot.slane %v7042, 5
      %v7045 = vsel %vm1325, %v7040, %v7044
      %v7046 = vshrl.u32 %v6754, 16
      %v7048 = vrot.slane %v7046, 4
      %v7049 = vor.u32 %v7048, %v7044
      %v7050 = vrot.slane %v7049, 4
      %v7052 = vshll.u32 %v6755, 16
      %v7054 = vrot.slane %v7052, 5
      %v7055 = vsel %vm1325, %v7050, %v7054
      %v7057 = vshrl.u32 %v6756, 16
      %v7059 = vrot.slane %v7057, 4
      %v7060 = vshll.u32 %v6756, 16
      %v7062 = vrot.slane %v7060, 5
      %v7063 = vor.u32 %v7059, %v7062
      %v7064 = vrot.slane %v7063, 4
      %v7066 = vshll.u32 %v6757, 16
      %v7068 = vrot.slane %v7066, 5
      %v7069 = vsel %vm1325, %v7064, %v7068
      %v7070 = vshrl.u32 %v6757, 16
      %v7072 = vrot.slane %v7070, 4
      %v7073 = vor.u32 %v7072, %v7068
      %v7074 = vrot.slane %v7073, 4
      %v7076 = vshll.u32 %v6758, 16
      %v7078 = vrot.slane %v7076, 5
      %v7079 = vsel %vm1325, %v7074, %v7078
      %v7081 = vshrl.u32 %v6759, 16
      %v7083 = vrot.slane %v7081, 4
      %v7084 = vshll.u32 %v6759, 16
      %v7086 = vrot.slane %v7084, 5
      %v7087 = vor.u32 %v7083, %v7086
      %v7088 = vrot.slane %v7087, 4
      %v7090 = vshll.u32 %v6760, 16
      %v7092 = vrot.slane %v7090, 5
      %v7093 = vsel %vm1325, %v7088, %v7092
      %v7094 = vshrl.u32 %v6760, 16
      %v7096 = vrot.slane %v7094, 4
      %v7097 = vor.u32 %v7096, %v7092
      %v7098 = vrot.slane %v7097, 4
      %v7100 = vshll.u32 %v6761, 16
      %v7102 = vrot.slane %v7100, 5
      %v7103 = vsel %vm1325, %v7098, %v7102
      %v7105 = vshrl.u32 %v6762, 16
      %v7107 = vrot.slane %v7105, 4
      %v7108 = vshll.u32 %v6762, 16
      %v7110 = vrot.slane %v7108, 5
      %v7111 = vor.u32 %v7107, %v7110
      %v7112 = vrot.slane %v7111, 4
      %v7114 = vshll.u32 %v6763, 16
      %v7116 = vrot.slane %v7114, 5
      %v7117 = vsel %vm1325, %v7112, %v7116
      %v7118 = vshrl.u32 %v6763, 16
      %v7120 = vrot.slane %v7118, 4
      %v7121 = vor.u32 %v7120, %v7116
      %v7122 = vrot.slane %v7121, 4
      %v7124 = vshll.u32 %v6764, 16
      %v7126 = vrot.slane %v7124, 5
      %v7127 = vsel %vm1325, %v7122, %v7126
      %v7129 = vshrl.u32 %v6765, 16
      %v7131 = vrot.slane %v7129, 4
      %v7132 = vshll.u32 %v6765, 16
      %v7134 = vrot.slane %v7132, 5
      %v7135 = vor.u32 %v7131, %v7134
      %v7136 = vrot.slane %v7135, 4
      %v7138 = vshll.u32 %v6766, 16
      %v7140 = vrot.slane %v7138, 5
      %v7141 = vsel %vm1325, %v7136, %v7140
      %v7142 = vshrl.u32 %v6766, 16
      %v7144 = vrot.slane %v7142, 4
      %v7145 = vor.u32 %v7144, %v7140
      %v7146 = vrot.slane %v7145, 4
      %v7148 = vshll.u32 %v6767, 16
      %v7150 = vrot.slane %v7148, 5
      %v7151 = vsel %vm1325, %v7146, %v7150
      %s7152 = scalar_lea.vmem %s3, 64
      %v7153 = vld [vmem:[%s7152] sm:$0xf]
      %v7154 = vld [vmem:[%s7152 + $0x4] sm:$0xf]
      %v7155 = vld [vmem:[%s7152 + $0x8] sm:$0xf]
      %v7156 = vld [vmem:[%s7152 + $0xc] sm:$0xf]
      %v7157 = vld [vmem:[%s7152 + $0x10] sm:$0xf]
      %v7158 = vld [vmem:[%s7152 + $0x14] sm:$0xf]
      %v7159 = vld [vmem:[%s7152 + $0x18] sm:$0xf]
      %v7160 = vld [vmem:[%s7152 + $0x1c] sm:$0xf]
      %v7161 = vld [vmem:[%s7152 + $0x20] sm:$0xf]
      %v7162 = vld [vmem:[%s7152 + $0x24] sm:$0xf]
      %v7163 = vld [vmem:[%s7152 + $0x28] sm:$0xf]
      %v7164 = vld [vmem:[%s7152 + $0x2c] sm:$0xf]
      %v7165 = vld [vmem:[%s7152 + $0x30] sm:$0xf]
      %v7166 = vld [vmem:[%s7152 + $0x34] sm:$0xf]
      %v7167 = vld [vmem:[%s7152 + $0x38] sm:$0xf]
      %v7168 = vld [vmem:[%s7152 + $0x3c] sm:$0xf]
      %v7169 = vunpack.c.l.b16 %v6781
      %v7170 = vunpack.c.l.b16 %v6791
      %v7171 = vunpack.c.l.b16 %v6805
      %v7172 = vunpack.c.l.b16 %v6815
      %v7173 = vunpack.c.l.b16 %v6829
      %v7174 = vunpack.c.l.b16 %v6839
      %v7175 = vunpack.c.l.b16 %v6853
      %v7176 = vunpack.c.l.b16 %v6863
      %v7177 = vunpack.c.l.b16 %v6877
      %v7178 = vunpack.c.l.b16 %v6887
      %v7179 = vunpack.c.l.b16 %v6901
      %v7180 = vunpack.c.l.b16 %v6911
      %v7181 = vunpack.c.l.b16 %v6925
      %v7182 = vunpack.c.l.b16 %v6935
      %v7183 = vunpack.c.l.b16 %v6949
      %v7184 = vunpack.c.l.b16 %v6959
      %v7185 = vunpack.c.l.b16 %v6973
      %v7186 = vunpack.c.l.b16 %v6983
      %v7187 = vunpack.c.l.b16 %v6997
      %v7188 = vunpack.c.l.b16 %v7007
      %v7189 = vunpack.c.l.b16 %v7021
      %v7190 = vunpack.c.l.b16 %v7031
      %v7191 = vunpack.c.l.b16 %v7045
      %v7192 = vunpack.c.l.b16 %v7055
      %v7193 = vunpack.c.l.b16 %v7069
      %v7194 = vunpack.c.l.b16 %v7079
      %v7195 = vunpack.c.l.b16 %v7093
      %v7196 = vunpack.c.l.b16 %v7103
      %v7197 = vunpack.c.l.b16 %v7117
      %v7198 = vunpack.c.l.b16 %v7127
      %v7199 = vunpack.c.l.b16 %v7141
      %v7200 = vunpack.c.l.b16 %v7151
      %v7201 = vpack.c.b16 %v7170, %v7169
      %v7202 = vpack.c.b16 %v7172, %v7171
      %v7203 = vpack.c.b16 %v7174, %v7173
      %v7204 = vpack.c.b16 %v7176, %v7175
      %v7205 = vpack.c.b16 %v7178, %v7177
      %v7206 = vpack.c.b16 %v7180, %v7179
      %v7207 = vpack.c.b16 %v7182, %v7181
      %v7208 = vpack.c.b16 %v7184, %v7183
      %v7209 = vpack.c.b16 %v7186, %v7185
      %v7210 = vpack.c.b16 %v7188, %v7187
      %v7211 = vpack.c.b16 %v7190, %v7189
      %v7212 = vpack.c.b16 %v7192, %v7191
      %v7213 = vpack.c.b16 %v7194, %v7193
      %v7214 = vpack.c.b16 %v7196, %v7195
      %v7215 = vpack.c.b16 %v7198, %v7197
      %v7216 = vpack.c.b16 %v7200, %v7199
      %v7249 = vunpack.c.l.b16 %v7153
      %v7250 = vunpack.c.l.b16 %v7154
      %v7251 = vunpack.c.l.b16 %v7155
      %v7252 = vunpack.c.l.b16 %v7156
      %v7253 = vunpack.c.l.b16 %v7157
      %v7254 = vunpack.c.l.b16 %v7158
      %v7255 = vunpack.c.l.b16 %v7159
      %v7256 = vunpack.c.l.b16 %v7160
      %v7257 = vunpack.c.l.b16 %v7161
      %v7258 = vunpack.c.l.b16 %v7162
      %v7259 = vunpack.c.l.b16 %v7163
      %v7260 = vunpack.c.l.b16 %v7164
      %v7261 = vunpack.c.l.b16 %v7165
      %v7262 = vunpack.c.l.b16 %v7166
      %v7263 = vunpack.c.l.b16 %v7167
      %v7264 = vunpack.c.l.b16 %v7168
      %v7265 = vpack.c.b16 %v7250, %v7249
      %v7266 = vpack.c.b16 %v7252, %v7251
      %v7267 = vpack.c.b16 %v7254, %v7253
      %v7268 = vpack.c.b16 %v7256, %v7255
      %v7269 = vpack.c.b16 %v7258, %v7257
      %v7270 = vpack.c.b16 %v7260, %v7259
      %v7271 = vpack.c.b16 %v7262, %v7261
      %v7272 = vpack.c.b16 %v7264, %v7263
      %7281 = vmatpush.bf16.msra.mxu0 %v7272
      %7282 = vmatpush.bf16.msra.mxu0 %v7271
      %7283 = vmatpush.bf16.msra.mxu0 %v7270
      %7284 = vmatpush.bf16.msra.mxu0 %v7269
      %7285 = vmatpush.bf16.msra.mxu0 %v7268
      %7286 = vmatpush.bf16.msra.mxu0 %v7267
      %7287 = vmatpush.bf16.msra.mxu0 %v7266
      %7288 = vmatpush.bf16.msra.mxu0 %v7265
      %7289 = vmatmul.bf16.gmra.mxu0 %v7201
      %v7290 = vpop.f32.mrf.mxu0
      %v7291 = vadd.f32 0.0, %v7290
      %v7292 = vpop.f32.mrf.mxu0
      %v7293 = vadd.f32 0.0, %v7292
      %7294 = vmatmul.bf16.gmra.mxu0 %v7202
      %v7295 = vpop.f32.mrf.mxu0
      %v7296 = vadd.f32 0.0, %v7295
      %v7297 = vpop.f32.mrf.mxu0
      %v7298 = vadd.f32 0.0, %v7297
      %7299 = vmatmul.bf16.gmra.mxu0 %v7203
      %v7300 = vpop.f32.mrf.mxu0
      %v7301 = vadd.f32 0.0, %v7300
      %v7302 = vpop.f32.mrf.mxu0
      %v7303 = vadd.f32 0.0, %v7302
      %7304 = vmatmul.bf16.gmra.mxu0 %v7204
      %v7305 = vpop.f32.mrf.mxu0
      %v7306 = vadd.f32 0.0, %v7305
      %v7307 = vpop.f32.mrf.mxu0
      %v7308 = vadd.f32 0.0, %v7307
      %7309 = vmatmul.bf16.gmra.mxu0 %v7205
      %v7310 = vpop.f32.mrf.mxu0
      %v7311 = vadd.f32 0.0, %v7310
      %v7312 = vpop.f32.mrf.mxu0
      %v7313 = vadd.f32 0.0, %v7312
      %7314 = vmatmul.bf16.gmra.mxu0 %v7206
      %v7315 = vpop.f32.mrf.mxu0
      %v7316 = vadd.f32 0.0, %v7315
      %v7317 = vpop.f32.mrf.mxu0
      %v7318 = vadd.f32 0.0, %v7317
      %7319 = vmatmul.bf16.gmra.mxu0 %v7207
      %v7320 = vpop.f32.mrf.mxu0
      %v7321 = vadd.f32 0.0, %v7320
      %v7322 = vpop.f32.mrf.mxu0
      %v7323 = vadd.f32 0.0, %v7322
      %7324 = vmatmul.bf16.gmra.mxu0 %v7208
      %v7325 = vpop.f32.mrf.mxu0
      %v7326 = vadd.f32 0.0, %v7325
      %v7327 = vpop.f32.mrf.mxu0
      %v7328 = vadd.f32 0.0, %v7327
      %7329 = vmatmul.bf16.gmra.mxu0 %v7209
      %v7330 = vpop.f32.mrf.mxu0
      %v7331 = vadd.f32 0.0, %v7330
      %v7332 = vpop.f32.mrf.mxu0
      %v7333 = vadd.f32 0.0, %v7332
      %7334 = vmatmul.bf16.gmra.mxu0 %v7210
      %v7335 = vpop.f32.mrf.mxu0
      %v7336 = vadd.f32 0.0, %v7335
      %v7337 = vpop.f32.mrf.mxu0
      %v7338 = vadd.f32 0.0, %v7337
      %7339 = vmatmul.bf16.gmra.mxu0 %v7211
      %v7340 = vpop.f32.mrf.mxu0
      %v7341 = vadd.f32 0.0, %v7340
      %v7342 = vpop.f32.mrf.mxu0
      %v7343 = vadd.f32 0.0, %v7342
      %7344 = vmatmul.bf16.gmra.mxu0 %v7212
      %v7345 = vpop.f32.mrf.mxu0
      %v7346 = vadd.f32 0.0, %v7345
      %v7347 = vpop.f32.mrf.mxu0
      %v7348 = vadd.f32 0.0, %v7347
      %7349 = vmatmul.bf16.gmra.mxu0 %v7213
      %v7350 = vpop.f32.mrf.mxu0
      %v7351 = vadd.f32 0.0, %v7350
      %v7352 = vpop.f32.mrf.mxu0
      %v7353 = vadd.f32 0.0, %v7352
      %7354 = vmatmul.bf16.gmra.mxu0 %v7214
      %v7355 = vpop.f32.mrf.mxu0
      %v7356 = vadd.f32 0.0, %v7355
      %v7357 = vpop.f32.mrf.mxu0
      %v7358 = vadd.f32 0.0, %v7357
      %7359 = vmatmul.bf16.gmra.mxu0 %v7215
      %v7360 = vpop.f32.mrf.mxu0
      %v7361 = vadd.f32 0.0, %v7360
      %v7362 = vpop.f32.mrf.mxu0
      %v7363 = vadd.f32 0.0, %v7362
      %7364 = vmatmul.bf16.gmra.mxu0 %v7216
      %v7365 = vpop.f32.mrf.mxu0
      %v7366 = vadd.f32 0.0, %v7365
      %v7367 = vpop.f32.mrf.mxu0
      %v7368 = vadd.f32 0.0, %v7367
      %7369 = vdwg.mxu0
      %v7370 = vld [vmem:[#allocation4] sm:$0xff]
      %v7371 = vld [vmem:[#allocation4 + $0x8] sm:$0xff]
      %v7372 = vld [vmem:[#allocation4 + $0x10] sm:$0xff]
      %v7373 = vld [vmem:[#allocation4 + $0x18] sm:$0xff]
      %v7374 = vld [vmem:[#allocation4 + $0x20] sm:$0xff]
      %v7375 = vld [vmem:[#allocation4 + $0x28] sm:$0xff]
      %v7376 = vld [vmem:[#allocation4 + $0x30] sm:$0xff]
      %v7377 = vld [vmem:[#allocation4 + $0x38] sm:$0xff]
      %v7378 = vld [vmem:[#allocation4 + $0x40] sm:$0xff]
      %v7379 = vld [vmem:[#allocation4 + $0x48] sm:$0xff]
      %v7380 = vld [vmem:[#allocation4 + $0x50] sm:$0xff]
      %v7381 = vld [vmem:[#allocation4 + $0x58] sm:$0xff]
      %v7382 = vld [vmem:[#allocation4 + $0x60] sm:$0xff]
      %v7383 = vld [vmem:[#allocation4 + $0x68] sm:$0xff]
      %v7384 = vld [vmem:[#allocation4 + $0x70] sm:$0xff]
      %v7385 = vld [vmem:[#allocation4 + $0x78] sm:$0xff]
      %v7386 = vld [vmem:[#allocation4 + $0x80] sm:$0xff]
      %v7387 = vld [vmem:[#allocation4 + $0x88] sm:$0xff]
      %v7388 = vld [vmem:[#allocation4 + $0x90] sm:$0xff]
      %v7389 = vld [vmem:[#allocation4 + $0x98] sm:$0xff]
      %v7390 = vld [vmem:[#allocation4 + $0xa0] sm:$0xff]
      %v7391 = vld [vmem:[#allocation4 + $0xa8] sm:$0xff]
      %v7392 = vld [vmem:[#allocation4 + $0xb0] sm:$0xff]
      %v7393 = vld [vmem:[#allocation4 + $0xb8] sm:$0xff]
      %v7394 = vld [vmem:[#allocation4 + $0xc0] sm:$0xff]
      %v7395 = vld [vmem:[#allocation4 + $0xc8] sm:$0xff]
      %v7396 = vld [vmem:[#allocation4 + $0xd0] sm:$0xff]
      %v7397 = vld [vmem:[#allocation4 + $0xd8] sm:$0xff]
      %v7398 = vld [vmem:[#allocation4 + $0xe0] sm:$0xff]
      %v7399 = vld [vmem:[#allocation4 + $0xe8] sm:$0xff]
      %v7400 = vld [vmem:[#allocation4 + $0xf0] sm:$0xff]
      %v7401 = vld [vmem:[#allocation4 + $0xf8] sm:$0xff]
      %v7402 = vadd.f32 %v7370, %v7291
      %v7403 = vadd.f32 %v7371, %v7293
      %v7404 = vadd.f32 %v7372, %v7296
      %v7405 = vadd.f32 %v7373, %v7298
      %v7406 = vadd.f32 %v7374, %v7301
      %v7407 = vadd.f32 %v7375, %v7303
      %v7408 = vadd.f32 %v7376, %v7306
      %v7409 = vadd.f32 %v7377, %v7308
      %v7410 = vadd.f32 %v7378, %v7311
      %v7411 = vadd.f32 %v7379, %v7313
      %v7412 = vadd.f32 %v7380, %v7316
      %v7413 = vadd.f32 %v7381, %v7318
      %v7414 = vadd.f32 %v7382, %v7321
      %v7415 = vadd.f32 %v7383, %v7323
      %v7416 = vadd.f32 %v7384, %v7326
      %v7417 = vadd.f32 %v7385, %v7328
      %v7418 = vadd.f32 %v7386, %v7331
      %v7419 = vadd.f32 %v7387, %v7333
      %v7420 = vadd.f32 %v7388, %v7336
      %v7421 = vadd.f32 %v7389, %v7338
      %v7422 = vadd.f32 %v7390, %v7341
      %v7423 = vadd.f32 %v7391, %v7343
      %v7424 = vadd.f32 %v7392, %v7346
      %v7425 = vadd.f32 %v7393, %v7348
      %v7426 = vadd.f32 %v7394, %v7351
      %v7427 = vadd.f32 %v7395, %v7353
      %v7428 = vadd.f32 %v7396, %v7356
      %v7429 = vadd.f32 %v7397, %v7358
      %v7430 = vadd.f32 %v7398, %v7361
      %v7431 = vadd.f32 %v7399, %v7363
      %v7432 = vadd.f32 %v7400, %v7366
      %v7433 = vadd.f32 %v7401, %v7368
      %7434 = vst [vmem:[#allocation4] sm:$0xff] %v7402
      %7435 = vst [vmem:[#allocation4 + $0x8] sm:$0xff] %v7403
      %7436 = vst [vmem:[#allocation4 + $0x10] sm:$0xff] %v7404
      %7437 = vst [vmem:[#allocation4 + $0x18] sm:$0xff] %v7405
      %7438 = vst [vmem:[#allocation4 + $0x20] sm:$0xff] %v7406
      %7439 = vst [vmem:[#allocation4 + $0x28] sm:$0xff] %v7407
      %7440 = vst [vmem:[#allocation4 + $0x30] sm:$0xff] %v7408
      %7441 = vst [vmem:[#allocation4 + $0x38] sm:$0xff] %v7409
      %7442 = vst [vmem:[#allocation4 + $0x40] sm:$0xff] %v7410
      %7443 = vst [vmem:[#allocation4 + $0x48] sm:$0xff] %v7411
      %7444 = vst [vmem:[#allocation4 + $0x50] sm:$0xff] %v7412
      %7445 = vst [vmem:[#allocation4 + $0x58] sm:$0xff] %v7413
      %7446 = vst [vmem:[#allocation4 + $0x60] sm:$0xff] %v7414
      %7447 = vst [vmem:[#allocation4 + $0x68] sm:$0xff] %v7415
      %7448 = vst [vmem:[#allocation4 + $0x70] sm:$0xff] %v7416
      %7449 = vst [vmem:[#allocation4 + $0x78] sm:$0xff] %v7417
      %7450 = vst [vmem:[#allocation4 + $0x80] sm:$0xff] %v7418
      %7451 = vst [vmem:[#allocation4 + $0x88] sm:$0xff] %v7419
      %7452 = vst [vmem:[#allocation4 + $0x90] sm:$0xff] %v7420
      %7453 = vst [vmem:[#allocation4 + $0x98] sm:$0xff] %v7421
      %7454 = vst [vmem:[#allocation4 + $0xa0] sm:$0xff] %v7422
      %7455 = vst [vmem:[#allocation4 + $0xa8] sm:$0xff] %v7423
      %7456 = vst [vmem:[#allocation4 + $0xb0] sm:$0xff] %v7424
      %7457 = vst [vmem:[#allocation4 + $0xb8] sm:$0xff] %v7425
      %7458 = vst [vmem:[#allocation4 + $0xc0] sm:$0xff] %v7426
      %7459 = vst [vmem:[#allocation4 + $0xc8] sm:$0xff] %v7427
      %7460 = vst [vmem:[#allocation4 + $0xd0] sm:$0xff] %v7428
      %7461 = vst [vmem:[#allocation4 + $0xd8] sm:$0xff] %v7429
      %7462 = vst [vmem:[#allocation4 + $0xe0] sm:$0xff] %v7430
      %7463 = vst [vmem:[#allocation4 + $0xe8] sm:$0xff] %v7431
      %7464 = vst [vmem:[#allocation4 + $0xf0] sm:$0xff] %v7432
      %7465 = vst [vmem:[#allocation4 + $0xf8] sm:$0xff] %v7433
      %v7466 = vld [vmem:[#allocation3] sm:$0xe]
      %v7467 = vld [vmem:[#allocation3 + $0x4] sm:$0xf]
      %v7468 = vld [vmem:[#allocation3 + $0x8] sm:$0x1]
      %v7469 = vld [vmem:[#allocation3 + $0xc] sm:$0xe]
      %v7470 = vld [vmem:[#allocation3 + $0x10] sm:$0xf]
      %v7471 = vld [vmem:[#allocation3 + $0x14] sm:$0x1]
      %v7472 = vld [vmem:[#allocation3 + $0x18] sm:$0xe]
      %v7473 = vld [vmem:[#allocation3 + $0x1c] sm:$0xf]
      %v7474 = vld [vmem:[#allocation3 + $0x20] sm:$0x1]
      %v7475 = vld [vmem:[#allocation3 + $0x24] sm:$0xe]
      %v7476 = vld [vmem:[#allocation3 + $0x28] sm:$0xf]
      %v7477 = vld [vmem:[#allocation3 + $0x2c] sm:$0x1]
      %v7478 = vld [vmem:[#allocation3 + $0x30] sm:$0xe]
      %v7479 = vld [vmem:[#allocation3 + $0x34] sm:$0xf]
      %v7480 = vld [vmem:[#allocation3 + $0x38] sm:$0x1]
      %v7481 = vld [vmem:[#allocation3 + $0x3c] sm:$0xe]
      %v7482 = vld [vmem:[#allocation3 + $0x40] sm:$0xf]
      %v7483 = vld [vmem:[#allocation3 + $0x44] sm:$0x1]
      %v7484 = vld [vmem:[#allocation3 + $0x48] sm:$0xe]
      %v7485 = vld [vmem:[#allocation3 + $0x4c] sm:$0xf]
      %v7486 = vld [vmem:[#allocation3 + $0x50] sm:$0x1]
      %v7487 = vld [vmem:[#allocation3 + $0x54] sm:$0xe]
      %v7488 = vld [vmem:[#allocation3 + $0x58] sm:$0xf]
      %v7489 = vld [vmem:[#allocation3 + $0x5c] sm:$0x1]
      %v7490 = vld [vmem:[#allocation3 + $0x60] sm:$0xe]
      %v7491 = vld [vmem:[#allocation3 + $0x64] sm:$0xf]
      %v7492 = vld [vmem:[#allocation3 + $0x68] sm:$0x1]
      %v7493 = vld [vmem:[#allocation3 + $0x6c] sm:$0xe]
      %v7494 = vld [vmem:[#allocation3 + $0x70] sm:$0xf]
      %v7495 = vld [vmem:[#allocation3 + $0x74] sm:$0x1]
      %v7496 = vld [vmem:[#allocation3 + $0x78] sm:$0xe]
      %v7497 = vld [vmem:[#allocation3 + $0x7c] sm:$0xf]
      %v7498 = vld [vmem:[#allocation3 + $0x80] sm:$0x1]
      %v7499 = vld [vmem:[#allocation3 + $0x84] sm:$0xe]
      %v7500 = vld [vmem:[#allocation3 + $0x88] sm:$0xf]
      %v7501 = vld [vmem:[#allocation3 + $0x8c] sm:$0x1]
      %v7502 = vld [vmem:[#allocation3 + $0x90] sm:$0xe]
      %v7503 = vld [vmem:[#allocation3 + $0x94] sm:$0xf]
      %v7504 = vld [vmem:[#allocation3 + $0x98] sm:$0x1]
      %v7505 = vld [vmem:[#allocation3 + $0x9c] sm:$0xe]
      %v7506 = vld [vmem:[#allocation3 + $0xa0] sm:$0xf]
      %v7507 = vld [vmem:[#allocation3 + $0xa4] sm:$0x1]
      %v7508 = vld [vmem:[#allocation3 + $0xa8] sm:$0xe]
      %v7509 = vld [vmem:[#allocation3 + $0xac] sm:$0xf]
      %v7510 = vld [vmem:[#allocation3 + $0xb0] sm:$0x1]
      %v7511 = vld [vmem:[#allocation3 + $0xb4] sm:$0xe]
      %v7512 = vld [vmem:[#allocation3 + $0xb8] sm:$0xf]
      %v7513 = vld [vmem:[#allocation3 + $0xbc] sm:$0x1]
      %v7562 = vrot.slane %v7466, 5
      %v7563 = vrot.slane %v7562, 4
      %v7564 = vrot.slane %v7467, 5
      %v7565 = vsel %vm2122, %v7563, %v7564
      %v7566 = vrot.slane %v7564, 4
      %v7567 = vrot.slane %v7468, 5
      %v7568 = vsel %vm2122, %v7566, %v7567
      %v7569 = vrot.slane %v7469, 5
      %v7570 = vrot.slane %v7569, 4
      %v7571 = vrot.slane %v7470, 5
      %v7572 = vsel %vm2122, %v7570, %v7571
      %v7573 = vrot.slane %v7571, 4
      %v7574 = vrot.slane %v7471, 5
      %v7575 = vsel %vm2122, %v7573, %v7574
      %v7576 = vrot.slane %v7472, 5
      %v7577 = vrot.slane %v7576, 4
      %v7578 = vrot.slane %v7473, 5
      %v7579 = vsel %vm2122, %v7577, %v7578
      %v7580 = vrot.slane %v7578, 4
      %v7581 = vrot.slane %v7474, 5
      %v7582 = vsel %vm2122, %v7580, %v7581
      %v7583 = vrot.slane %v7475, 5
      %v7584 = vrot.slane %v7583, 4
      %v7585 = vrot.slane %v7476, 5
      %v7586 = vsel %vm2122, %v7584, %v7585
      %v7587 = vrot.slane %v7585, 4
      %v7588 = vrot.slane %v7477, 5
      %v7589 = vsel %vm2122, %v7587, %v7588
      %v7590 = vrot.slane %v7478, 5
      %v7591 = vrot.slane %v7590, 4
      %v7592 = vrot.slane %v7479, 5
      %v7593 = vsel %vm2122, %v7591, %v7592
      %v7594 = vrot.slane %v7592, 4
      %v7595 = vrot.slane %v7480, 5
      %v7596 = vsel %vm2122, %v7594, %v7595
      %v7597 = vrot.slane %v7481, 5
      %v7598 = vrot.slane %v7597, 4
      %v7599 = vrot.slane %v7482, 5
      %v7600 = vsel %vm2122, %v7598, %v7599
      %v7601 = vrot.slane %v7599, 4
      %v7602 = vrot.slane %v7483, 5
      %v7603 = vsel %vm2122, %v7601, %v7602
      %v7604 = vrot.slane %v7484, 5
      %v7605 = vrot.slane %v7604, 4
      %v7606 = vrot.slane %v7485, 5
      %v7607 = vsel %vm2122, %v7605, %v7606
      %v7608 = vrot.slane %v7606, 4
      %v7609 = vrot.slane %v7486, 5
      %v7610 = vsel %vm2122, %v7608, %v7609
      %v7611 = vrot.slane %v7487, 5
      %v7612 = vrot.slane %v7611, 4
      %v7613 = vrot.slane %v7488, 5
      %v7614 = vsel %vm2122, %v7612, %v7613
      %v7615 = vrot.slane %v7613, 4
      %v7616 = vrot.slane %v7489, 5
      %v7617 = vsel %vm2122, %v7615, %v7616
      %v7618 = vrot.slane %v7490, 5
      %v7619 = vrot.slane %v7618, 4
      %v7620 = vrot.slane %v7491, 5
      %v7621 = vsel %vm2122, %v7619, %v7620
      %v7622 = vrot.slane %v7620, 4
      %v7623 = vrot.slane %v7492, 5
      %v7624 = vsel %vm2122, %v7622, %v7623
      %v7625 = vrot.slane %v7493, 5
      %v7626 = vrot.slane %v7625, 4
      %v7627 = vrot.slane %v7494, 5
      %v7628 = vsel %vm2122, %v7626, %v7627
      %v7629 = vrot.slane %v7627, 4
      %v7630 = vrot.slane %v7495, 5
      %v7631 = vsel %vm2122, %v7629, %v7630
      %v7632 = vrot.slane %v7496, 5
      %v7633 = vrot.slane %v7632, 4
      %v7634 = vrot.slane %v7497, 5
      %v7635 = vsel %vm2122, %v7633, %v7634
      %v7636 = vrot.slane %v7634, 4
      %v7637 = vrot.slane %v7498, 5
      %v7638 = vsel %vm2122, %v7636, %v7637
      %v7639 = vrot.slane %v7499, 5
      %v7640 = vrot.slane %v7639, 4
      %v7641 = vrot.slane %v7500, 5
      %v7642 = vsel %vm2122, %v7640, %v7641
      %v7643 = vrot.slane %v7641, 4
      %v7644 = vrot.slane %v7501, 5
      %v7645 = vsel %vm2122, %v7643, %v7644
      %v7646 = vrot.slane %v7502, 5
      %v7647 = vrot.slane %v7646, 4
      %v7648 = vrot.slane %v7503, 5
      %v7649 = vsel %vm2122, %v7647, %v7648
      %v7650 = vrot.slane %v7648, 4
      %v7651 = vrot.slane %v7504, 5
      %v7652 = vsel %vm2122, %v7650, %v7651
      %v7653 = vrot.slane %v7505, 5
      %v7654 = vrot.slane %v7653, 4
      %v7655 = vrot.slane %v7506, 5
      %v7656 = vsel %vm2122, %v7654, %v7655
      %v7657 = vrot.slane %v7655, 4
      %v7658 = vrot.slane %v7507, 5
      %v7659 = vsel %vm2122, %v7657, %v7658
      %v7660 = vrot.slane %v7508, 5
      %v7661 = vrot.slane %v7660, 4
      %v7662 = vrot.slane %v7509, 5
      %v7663 = vsel %vm2122, %v7661, %v7662
      %v7664 = vrot.slane %v7662, 4
      %v7665 = vrot.slane %v7510, 5
      %v7666 = vsel %vm2122, %v7664, %v7665
      %v7667 = vrot.slane %v7511, 5
      %v7668 = vrot.slane %v7667, 4
      %v7669 = vrot.slane %v7512, 5
      %v7670 = vsel %vm2122, %v7668, %v7669
      %v7671 = vrot.slane %v7669, 4
      %v7672 = vrot.slane %v7513, 5
      %v7673 = vsel %vm2122, %v7671, %v7672
      %s7674 = scalar_lea.vmem %s3, 128
      %v7675 = vld [vmem:[%s7674] sm:$0xf]
      %v7676 = vld [vmem:[%s7674 + $0x4] sm:$0xf]
      %v7677 = vld [vmem:[%s7674 + $0x8] sm:$0xf]
      %v7678 = vld [vmem:[%s7674 + $0xc] sm:$0xf]
      %v7679 = vld [vmem:[%s7674 + $0x10] sm:$0xf]
      %v7680 = vld [vmem:[%s7674 + $0x14] sm:$0xf]
      %v7681 = vld [vmem:[%s7674 + $0x18] sm:$0xf]
      %v7682 = vld [vmem:[%s7674 + $0x1c] sm:$0xf]
      %v7683 = vld [vmem:[%s7674 + $0x20] sm:$0xf]
      %v7684 = vld [vmem:[%s7674 + $0x24] sm:$0xf]
      %v7685 = vld [vmem:[%s7674 + $0x28] sm:$0xf]
      %v7686 = vld [vmem:[%s7674 + $0x2c] sm:$0xf]
      %v7687 = vld [vmem:[%s7674 + $0x30] sm:$0xf]
      %v7688 = vld [vmem:[%s7674 + $0x34] sm:$0xf]
      %v7689 = vld [vmem:[%s7674 + $0x38] sm:$0xf]
      %v7690 = vld [vmem:[%s7674 + $0x3c] sm:$0xf]
      %v7691 = vunpack.c.l.b16 %v7565
      %v7692 = vunpack.c.l.b16 %v7568
      %v7693 = vunpack.c.l.b16 %v7572
      %v7694 = vunpack.c.l.b16 %v7575
      %v7695 = vunpack.c.l.b16 %v7579
      %v7696 = vunpack.c.l.b16 %v7582
      %v7697 = vunpack.c.l.b16 %v7586
      %v7698 = vunpack.c.l.b16 %v7589
      %v7699 = vunpack.c.l.b16 %v7593
      %v7700 = vunpack.c.l.b16 %v7596
      %v7701 = vunpack.c.l.b16 %v7600
      %v7702 = vunpack.c.l.b16 %v7603
      %v7703 = vunpack.c.l.b16 %v7607
      %v7704 = vunpack.c.l.b16 %v7610
      %v7705 = vunpack.c.l.b16 %v7614
      %v7706 = vunpack.c.l.b16 %v7617
      %v7707 = vunpack.c.l.b16 %v7621
      %v7708 = vunpack.c.l.b16 %v7624
      %v7709 = vunpack.c.l.b16 %v7628
      %v7710 = vunpack.c.l.b16 %v7631
      %v7711 = vunpack.c.l.b16 %v7635
      %v7712 = vunpack.c.l.b16 %v7638
      %v7713 = vunpack.c.l.b16 %v7642
      %v7714 = vunpack.c.l.b16 %v7645
      %v7715 = vunpack.c.l.b16 %v7649
      %v7716 = vunpack.c.l.b16 %v7652
      %v7717 = vunpack.c.l.b16 %v7656
      %v7718 = vunpack.c.l.b16 %v7659
      %v7719 = vunpack.c.l.b16 %v7663
      %v7720 = vunpack.c.l.b16 %v7666
      %v7721 = vunpack.c.l.b16 %v7670
      %v7722 = vunpack.c.l.b16 %v7673
      %v7723 = vpack.c.b16 %v7692, %v7691
      %v7724 = vpack.c.b16 %v7694, %v7693
      %v7725 = vpack.c.b16 %v7696, %v7695
      %v7726 = vpack.c.b16 %v7698, %v7697
      %v7727 = vpack.c.b16 %v7700, %v7699
      %v7728 = vpack.c.b16 %v7702, %v7701
      %v7729 = vpack.c.b16 %v7704, %v7703
      %v7730 = vpack.c.b16 %v7706, %v7705
      %v7731 = vpack.c.b16 %v7708, %v7707
      %v7732 = vpack.c.b16 %v7710, %v7709
      %v7733 = vpack.c.b16 %v7712, %v7711
      %v7734 = vpack.c.b16 %v7714, %v7713
      %v7735 = vpack.c.b16 %v7716, %v7715
      %v7736 = vpack.c.b16 %v7718, %v7717
      %v7737 = vpack.c.b16 %v7720, %v7719
      %v7738 = vpack.c.b16 %v7722, %v7721
      %v7771 = vunpack.c.l.b16 %v7675
      %v7772 = vunpack.c.l.b16 %v7676
      %v7773 = vunpack.c.l.b16 %v7677
      %v7774 = vunpack.c.l.b16 %v7678
      %v7775 = vunpack.c.l.b16 %v7679
      %v7776 = vunpack.c.l.b16 %v7680
      %v7777 = vunpack.c.l.b16 %v7681
      %v7778 = vunpack.c.l.b16 %v7682
      %v7779 = vunpack.c.l.b16 %v7683
      %v7780 = vunpack.c.l.b16 %v7684
      %v7781 = vunpack.c.l.b16 %v7685
      %v7782 = vunpack.c.l.b16 %v7686
      %v7783 = vunpack.c.l.b16 %v7687
      %v7784 = vunpack.c.l.b16 %v7688
      %v7785 = vunpack.c.l.b16 %v7689
      %v7786 = vunpack.c.l.b16 %v7690
      %v7787 = vpack.c.b16 %v7772, %v7771
      %v7788 = vpack.c.b16 %v7774, %v7773
      %v7789 = vpack.c.b16 %v7776, %v7775
      %v7790 = vpack.c.b16 %v7778, %v7777
      %v7791 = vpack.c.b16 %v7780, %v7779
      %v7792 = vpack.c.b16 %v7782, %v7781
      %v7793 = vpack.c.b16 %v7784, %v7783
      %v7794 = vpack.c.b16 %v7786, %v7785
      %7803 = vmatpush.bf16.msra.mxu0 %v7794
      %7804 = vmatpush.bf16.msra.mxu0 %v7793
      %7805 = vmatpush.bf16.msra.mxu0 %v7792
      %7806 = vmatpush.bf16.msra.mxu0 %v7791
      %7807 = vmatpush.bf16.msra.mxu0 %v7790
      %7808 = vmatpush.bf16.msra.mxu0 %v7789
      %7809 = vmatpush.bf16.msra.mxu0 %v7788
      %7810 = vmatpush.bf16.msra.mxu0 %v7787
      %7811 = vmatmul.bf16.gmra.mxu0 %v7723
      %v7812 = vpop.f32.mrf.mxu0
      %v7813 = vadd.f32 0.0, %v7812
      %v7814 = vpop.f32.mrf.mxu0
      %v7815 = vadd.f32 0.0, %v7814
      %7816 = vmatmul.bf16.gmra.mxu0 %v7724
      %v7817 = vpop.f32.mrf.mxu0
      %v7818 = vadd.f32 0.0, %v7817
      %v7819 = vpop.f32.mrf.mxu0
      %v7820 = vadd.f32 0.0, %v7819
      %7821 = vmatmul.bf16.gmra.mxu0 %v7725
      %v7822 = vpop.f32.mrf.mxu0
      %v7823 = vadd.f32 0.0, %v7822
      %v7824 = vpop.f32.mrf.mxu0
      %v7825 = vadd.f32 0.0, %v7824
      %7826 = vmatmul.bf16.gmra.mxu0 %v7726
      %v7827 = vpop.f32.mrf.mxu0
      %v7828 = vadd.f32 0.0, %v7827
      %v7829 = vpop.f32.mrf.mxu0
      %v7830 = vadd.f32 0.0, %v7829
      %7831 = vmatmul.bf16.gmra.mxu0 %v7727
      %v7832 = vpop.f32.mrf.mxu0
      %v7833 = vadd.f32 0.0, %v7832
      %v7834 = vpop.f32.mrf.mxu0
      %v7835 = vadd.f32 0.0, %v7834
      %7836 = vmatmul.bf16.gmra.mxu0 %v7728
      %v7837 = vpop.f32.mrf.mxu0
      %v7838 = vadd.f32 0.0, %v7837
      %v7839 = vpop.f32.mrf.mxu0
      %v7840 = vadd.f32 0.0, %v7839
      %7841 = vmatmul.bf16.gmra.mxu0 %v7729
      %v7842 = vpop.f32.mrf.mxu0
      %v7843 = vadd.f32 0.0, %v7842
      %v7844 = vpop.f32.mrf.mxu0
      %v7845 = vadd.f32 0.0, %v7844
      %7846 = vmatmul.bf16.gmra.mxu0 %v7730
      %v7847 = vpop.f32.mrf.mxu0
      %v7848 = vadd.f32 0.0, %v7847
      %v7849 = vpop.f32.mrf.mxu0
      %v7850 = vadd.f32 0.0, %v7849
      %7851 = vmatmul.bf16.gmra.mxu0 %v7731
      %v7852 = vpop.f32.mrf.mxu0
      %v7853 = vadd.f32 0.0, %v7852
      %v7854 = vpop.f32.mrf.mxu0
      %v7855 = vadd.f32 0.0, %v7854
      %7856 = vmatmul.bf16.gmra.mxu0 %v7732
      %v7857 = vpop.f32.mrf.mxu0
      %v7858 = vadd.f32 0.0, %v7857
      %v7859 = vpop.f32.mrf.mxu0
      %v7860 = vadd.f32 0.0, %v7859
      %7861 = vmatmul.bf16.gmra.mxu0 %v7733
      %v7862 = vpop.f32.mrf.mxu0
      %v7863 = vadd.f32 0.0, %v7862
      %v7864 = vpop.f32.mrf.mxu0
      %v7865 = vadd.f32 0.0, %v7864
      %7866 = vmatmul.bf16.gmra.mxu0 %v7734
      %v7867 = vpop.f32.mrf.mxu0
      %v7868 = vadd.f32 0.0, %v7867
      %v7869 = vpop.f32.mrf.mxu0
      %v7870 = vadd.f32 0.0, %v7869
      %7871 = vmatmul.bf16.gmra.mxu0 %v7735
      %v7872 = vpop.f32.mrf.mxu0
      %v7873 = vadd.f32 0.0, %v7872
      %v7874 = vpop.f32.mrf.mxu0
      %v7875 = vadd.f32 0.0, %v7874
      %7876 = vmatmul.bf16.gmra.mxu0 %v7736
      %v7877 = vpop.f32.mrf.mxu0
      %v7878 = vadd.f32 0.0, %v7877
      %v7879 = vpop.f32.mrf.mxu0
      %v7880 = vadd.f32 0.0, %v7879
      %7881 = vmatmul.bf16.gmra.mxu0 %v7737
      %v7882 = vpop.f32.mrf.mxu0
      %v7883 = vadd.f32 0.0, %v7882
      %v7884 = vpop.f32.mrf.mxu0
      %v7885 = vadd.f32 0.0, %v7884
      %7886 = vmatmul.bf16.gmra.mxu0 %v7738
      %v7887 = vpop.f32.mrf.mxu0
      %v7888 = vadd.f32 0.0, %v7887
      %v7889 = vpop.f32.mrf.mxu0
      %v7890 = vadd.f32 0.0, %v7889
      %7891 = vdwg.mxu0
      %v7892 = vld [vmem:[#allocation4] sm:$0xff]
      %v7893 = vld [vmem:[#allocation4 + $0x8] sm:$0xff]
      %v7894 = vld [vmem:[#allocation4 + $0x10] sm:$0xff]
      %v7895 = vld [vmem:[#allocation4 + $0x18] sm:$0xff]
      %v7896 = vld [vmem:[#allocation4 + $0x20] sm:$0xff]
      %v7897 = vld [vmem:[#allocation4 + $0x28] sm:$0xff]
      %v7898 = vld [vmem:[#allocation4 + $0x30] sm:$0xff]
      %v7899 = vld [vmem:[#allocation4 + $0x38] sm:$0xff]
      %v7900 = vld [vmem:[#allocation4 + $0x40] sm:$0xff]
      %v7901 = vld [vmem:[#allocation4 + $0x48] sm:$0xff]
      %v7902 = vld [vmem:[#allocation4 + $0x50] sm:$0xff]
      %v7903 = vld [vmem:[#allocation4 + $0x58] sm:$0xff]
      %v7904 = vld [vmem:[#allocation4 + $0x60] sm:$0xff]
      %v7905 = vld [vmem:[#allocation4 + $0x68] sm:$0xff]
      %v7906 = vld [vmem:[#allocation4 + $0x70] sm:$0xff]
      %v7907 = vld [vmem:[#allocation4 + $0x78] sm:$0xff]
      %v7908 = vld [vmem:[#allocation4 + $0x80] sm:$0xff]
      %v7909 = vld [vmem:[#allocation4 + $0x88] sm:$0xff]
      %v7910 = vld [vmem:[#allocation4 + $0x90] sm:$0xff]
      %v7911 = vld [vmem:[#allocation4 + $0x98] sm:$0xff]
      %v7912 = vld [vmem:[#allocation4 + $0xa0] sm:$0xff]
      %v7913 = vld [vmem:[#allocation4 + $0xa8] sm:$0xff]
      %v7914 = vld [vmem:[#allocation4 + $0xb0] sm:$0xff]
      %v7915 = vld [vmem:[#allocation4 + $0xb8] sm:$0xff]
      %v7916 = vld [vmem:[#allocation4 + $0xc0] sm:$0xff]
      %v7917 = vld [vmem:[#allocation4 + $0xc8] sm:$0xff]
      %v7918 = vld [vmem:[#allocation4 + $0xd0] sm:$0xff]
      %v7919 = vld [vmem:[#allocation4 + $0xd8] sm:$0xff]
      %v7920 = vld [vmem:[#allocation4 + $0xe0] sm:$0xff]
      %v7921 = vld [vmem:[#allocation4 + $0xe8] sm:$0xff]
      %v7922 = vld [vmem:[#allocation4 + $0xf0] sm:$0xff]
      %v7923 = vld [vmem:[#allocation4 + $0xf8] sm:$0xff]
      %v7924 = vadd.f32 %v7892, %v7813
      %v7925 = vadd.f32 %v7893, %v7815
      %v7926 = vadd.f32 %v7894, %v7818
      %v7927 = vadd.f32 %v7895, %v7820
      %v7928 = vadd.f32 %v7896, %v7823
      %v7929 = vadd.f32 %v7897, %v7825
      %v7930 = vadd.f32 %v7898, %v7828
      %v7931 = vadd.f32 %v7899, %v7830
      %v7932 = vadd.f32 %v7900, %v7833
      %v7933 = vadd.f32 %v7901, %v7835
      %v7934 = vadd.f32 %v7902, %v7838
      %v7935 = vadd.f32 %v7903, %v7840
      %v7936 = vadd.f32 %v7904, %v7843
      %v7937 = vadd.f32 %v7905, %v7845
      %v7938 = vadd.f32 %v7906, %v7848
      %v7939 = vadd.f32 %v7907, %v7850
      %v7940 = vadd.f32 %v7908, %v7853
      %v7941 = vadd.f32 %v7909, %v7855
      %v7942 = vadd.f32 %v7910, %v7858
      %v7943 = vadd.f32 %v7911, %v7860
      %v7944 = vadd.f32 %v7912, %v7863
      %v7945 = vadd.f32 %v7913, %v7865
      %v7946 = vadd.f32 %v7914, %v7868
      %v7947 = vadd.f32 %v7915, %v7870
      %v7948 = vadd.f32 %v7916, %v7873
      %v7949 = vadd.f32 %v7917, %v7875
      %v7950 = vadd.f32 %v7918, %v7878
      %v7951 = vadd.f32 %v7919, %v7880
      %v7952 = vadd.f32 %v7920, %v7883
      %v7953 = vadd.f32 %v7921, %v7885
      %v7954 = vadd.f32 %v7922, %v7888
      %v7955 = vadd.f32 %v7923, %v7890
      %7956 = vst [vmem:[#allocation4] sm:$0xff] %v7924
      %7957 = vst [vmem:[#allocation4 + $0x8] sm:$0xff] %v7925
      %7958 = vst [vmem:[#allocation4 + $0x10] sm:$0xff] %v7926
      %7959 = vst [vmem:[#allocation4 + $0x18] sm:$0xff] %v7927
      %7960 = vst [vmem:[#allocation4 + $0x20] sm:$0xff] %v7928
      %7961 = vst [vmem:[#allocation4 + $0x28] sm:$0xff] %v7929
      %7962 = vst [vmem:[#allocation4 + $0x30] sm:$0xff] %v7930
      %7963 = vst [vmem:[#allocation4 + $0x38] sm:$0xff] %v7931
      %7964 = vst [vmem:[#allocation4 + $0x40] sm:$0xff] %v7932
      %7965 = vst [vmem:[#allocation4 + $0x48] sm:$0xff] %v7933
      %7966 = vst [vmem:[#allocation4 + $0x50] sm:$0xff] %v7934
      %7967 = vst [vmem:[#allocation4 + $0x58] sm:$0xff] %v7935
      %7968 = vst [vmem:[#allocation4 + $0x60] sm:$0xff] %v7936
      %7969 = vst [vmem:[#allocation4 + $0x68] sm:$0xff] %v7937
      %7970 = vst [vmem:[#allocation4 + $0x70] sm:$0xff] %v7938
      %7971 = vst [vmem:[#allocation4 + $0x78] sm:$0xff] %v7939
      %7972 = vst [vmem:[#allocation4 + $0x80] sm:$0xff] %v7940
      %7973 = vst [vmem:[#allocation4 + $0x88] sm:$0xff] %v7941
      %7974 = vst [vmem:[#allocation4 + $0x90] sm:$0xff] %v7942
      %7975 = vst [vmem:[#allocation4 + $0x98] sm:$0xff] %v7943
      %7976 = vst [vmem:[#allocation4 + $0xa0] sm:$0xff] %v7944
      %7977 = vst [vmem:[#allocation4 + $0xa8] sm:$0xff] %v7945
      %7978 = vst [vmem:[#allocation4 + $0xb0] sm:$0xff] %v7946
      %7979 = vst [vmem:[#allocation4 + $0xb8] sm:$0xff] %v7947
      %7980 = vst [vmem:[#allocation4 + $0xc0] sm:$0xff] %v7948
      %7981 = vst [vmem:[#allocation4 + $0xc8] sm:$0xff] %v7949
      %7982 = vst [vmem:[#allocation4 + $0xd0] sm:$0xff] %v7950
      %7983 = vst [vmem:[#allocation4 + $0xd8] sm:$0xff] %v7951
      %7984 = vst [vmem:[#allocation4 + $0xe0] sm:$0xff] %v7952
      %7985 = vst [vmem:[#allocation4 + $0xe8] sm:$0xff] %v7953
      %7986 = vst [vmem:[#allocation4 + $0xf0] sm:$0xff] %v7954
      %7987 = vst [vmem:[#allocation4 + $0xf8] sm:$0xff] %v7955
      %v7988 = vld [vmem:[%s6294] sm:$0xf]
      %v7989 = vld [vmem:[%s6294 + $0x4] sm:$0xf]
      %v7990 = vld [vmem:[%s6294 + $0xc] sm:$0xf]
      %v7991 = vld [vmem:[%s6294 + $0x10] sm:$0xf]
      %v7992 = vld [vmem:[%s6294 + $0x18] sm:$0xf]
      %v7993 = vld [vmem:[%s6294 + $0x1c] sm:$0xf]
      %v7994 = vld [vmem:[%s6294 + $0x24] sm:$0xf]
      %v7995 = vld [vmem:[%s6294 + $0x28] sm:$0xf]
      %v7996 = vld [vmem:[%s6294 + $0x30] sm:$0xf]
      %v7997 = vld [vmem:[%s6294 + $0x34] sm:$0xf]
      %v7998 = vld [vmem:[%s6294 + $0x3c] sm:$0xf]
      %v7999 = vld [vmem:[%s6294 + $0x40] sm:$0xf]
      %v8000 = vld [vmem:[%s6294 + $0x48] sm:$0xf]
      %v8001 = vld [vmem:[%s6294 + $0x4c] sm:$0xf]
      %v8002 = vld [vmem:[%s6294 + $0x54] sm:$0xf]
      %v8003 = vld [vmem:[%s6294 + $0x58] sm:$0xf]
      %v8004 = vld [vmem:[%s6294 + $0x60] sm:$0xf]
      %v8005 = vld [vmem:[%s6294 + $0x64] sm:$0xf]
      %v8006 = vld [vmem:[%s6294 + $0x6c] sm:$0xf]
      %v8007 = vld [vmem:[%s6294 + $0x70] sm:$0xf]
      %v8008 = vld [vmem:[%s6294 + $0x78] sm:$0xf]
      %v8009 = vld [vmem:[%s6294 + $0x7c] sm:$0xf]
      %v8010 = vld [vmem:[%s6294 + $0x84] sm:$0xf]
      %v8011 = vld [vmem:[%s6294 + $0x88] sm:$0xf]
      %v8012 = vld [vmem:[%s6294 + $0x90] sm:$0xf]
      %v8013 = vld [vmem:[%s6294 + $0x94] sm:$0xf]
      %v8014 = vld [vmem:[%s6294 + $0x9c] sm:$0xf]
      %v8015 = vld [vmem:[%s6294 + $0xa0] sm:$0xf]
      %v8016 = vld [vmem:[%s6294 + $0xa8] sm:$0xf]
      %v8017 = vld [vmem:[%s6294 + $0xac] sm:$0xf]
      %v8018 = vld [vmem:[%s6294 + $0xb4] sm:$0xf]
      %v8019 = vld [vmem:[%s6294 + $0xb8] sm:$0xf]
      %s8020 = scalar_lea.vmem %s3, 192
      %v8021 = vld [vmem:[%s8020] sm:$0xf]
      %v8022 = vld [vmem:[%s8020 + $0x4] sm:$0xf]
      %v8023 = vld [vmem:[%s8020 + $0x8] sm:$0xf]
      %v8024 = vld [vmem:[%s8020 + $0xc] sm:$0xf]
      %v8025 = vld [vmem:[%s8020 + $0x10] sm:$0xf]
      %v8026 = vld [vmem:[%s8020 + $0x14] sm:$0xf]
      %v8027 = vld [vmem:[%s8020 + $0x18] sm:$0xf]
      %v8028 = vld [vmem:[%s8020 + $0x1c] sm:$0xf]
      %v8029 = vld [vmem:[%s8020 + $0x20] sm:$0xf]
      %v8030 = vld [vmem:[%s8020 + $0x24] sm:$0xf]
      %v8031 = vld [vmem:[%s8020 + $0x28] sm:$0xf]
      %v8032 = vld [vmem:[%s8020 + $0x2c] sm:$0xf]
      %v8033 = vld [vmem:[%s8020 + $0x30] sm:$0xf]
      %v8034 = vld [vmem:[%s8020 + $0x34] sm:$0xf]
      %v8035 = vld [vmem:[%s8020 + $0x38] sm:$0xf]
      %v8036 = vld [vmem:[%s8020 + $0x3c] sm:$0xf]
      %v8069 = vunpack.c.l.b16 %v7988
      %v8070 = vunpack.c.l.b16 %v7989
      %v8071 = vunpack.c.l.b16 %v7990
      %v8072 = vunpack.c.l.b16 %v7991
      %v8073 = vunpack.c.l.b16 %v7992
      %v8074 = vunpack.c.l.b16 %v7993
      %v8075 = vunpack.c.l.b16 %v7994
      %v8076 = vunpack.c.l.b16 %v7995
      %v8077 = vunpack.c.l.b16 %v7996
      %v8078 = vunpack.c.l.b16 %v7997
      %v8079 = vunpack.c.l.b16 %v7998
      %v8080 = vunpack.c.l.b16 %v7999
      %v8081 = vunpack.c.l.b16 %v8000
      %v8082 = vunpack.c.l.b16 %v8001
      %v8083 = vunpack.c.l.b16 %v8002
      %v8084 = vunpack.c.l.b16 %v8003
      %v8085 = vunpack.c.l.b16 %v8004
      %v8086 = vunpack.c.l.b16 %v8005
      %v8087 = vunpack.c.l.b16 %v8006
      %v8088 = vunpack.c.l.b16 %v8007
      %v8089 = vunpack.c.l.b16 %v8008
      %v8090 = vunpack.c.l.b16 %v8009
      %v8091 = vunpack.c.l.b16 %v8010
      %v8092 = vunpack.c.l.b16 %v8011
      %v8093 = vunpack.c.l.b16 %v8012
      %v8094 = vunpack.c.l.b16 %v8013
      %v8095 = vunpack.c.l.b16 %v8014
      %v8096 = vunpack.c.l.b16 %v8015
      %v8097 = vunpack.c.l.b16 %v8016
      %v8098 = vunpack.c.l.b16 %v8017
      %v8099 = vunpack.c.l.b16 %v8018
      %v8100 = vunpack.c.l.b16 %v8019
      %v8101 = vpack.c.b16 %v8070, %v8069
      %v8102 = vpack.c.b16 %v8072, %v8071
      %v8103 = vpack.c.b16 %v8074, %v8073
      %v8104 = vpack.c.b16 %v8076, %v8075
      %v8105 = vpack.c.b16 %v8078, %v8077
      %v8106 = vpack.c.b16 %v8080, %v8079
      %v8107 = vpack.c.b16 %v8082, %v8081
      %v8108 = vpack.c.b16 %v8084, %v8083
      %v8109 = vpack.c.b16 %v8086, %v8085
      %v8110 = vpack.c.b16 %v8088, %v8087
      %v8111 = vpack.c.b16 %v8090, %v8089
      %v8112 = vpack.c.b16 %v8092, %v8091
      %v8113 = vpack.c.b16 %v8094, %v8093
      %v8114 = vpack.c.b16 %v8096, %v8095
      %v8115 = vpack.c.b16 %v8098, %v8097
      %v8116 = vpack.c.b16 %v8100, %v8099
      %v8149 = vunpack.c.l.b16 %v8021
      %v8150 = vunpack.c.l.b16 %v8022
      %v8151 = vunpack.c.l.b16 %v8023
      %v8152 = vunpack.c.l.b16 %v8024
      %v8153 = vunpack.c.l.b16 %v8025
      %v8154 = vunpack.c.l.b16 %v8026
      %v8155 = vunpack.c.l.b16 %v8027
      %v8156 = vunpack.c.l.b16 %v8028
      %v8157 = vunpack.c.l.b16 %v8029
      %v8158 = vunpack.c.l.b16 %v8030
      %v8159 = vunpack.c.l.b16 %v8031
      %v8160 = vunpack.c.l.b16 %v8032
      %v8161 = vunpack.c.l.b16 %v8033
      %v8162 = vunpack.c.l.b16 %v8034
      %v8163 = vunpack.c.l.b16 %v8035
      %v8164 = vunpack.c.l.b16 %v8036
      %v8165 = vpack.c.b16 %v8150, %v8149
      %v8166 = vpack.c.b16 %v8152, %v8151
      %v8167 = vpack.c.b16 %v8154, %v8153
      %v8168 = vpack.c.b16 %v8156, %v8155
      %v8169 = vpack.c.b16 %v8158, %v8157
      %v8170 = vpack.c.b16 %v8160, %v8159
      %v8171 = vpack.c.b16 %v8162, %v8161
      %v8172 = vpack.c.b16 %v8164, %v8163
      %8181 = vmatpush.bf16.msra.mxu0 %v8172
      %8182 = vmatpush.bf16.msra.mxu0 %v8171
      %8183 = vmatpush.bf16.msra.mxu0 %v8170
      %8184 = vmatpush.bf16.msra.mxu0 %v8169
      %8185 = vmatpush.bf16.msra.mxu0 %v8168
      %8186 = vmatpush.bf16.msra.mxu0 %v8167
      %8187 = vmatpush.bf16.msra.mxu0 %v8166
      %8188 = vmatpush.bf16.msra.mxu0 %v8165
      %8189 = vmatmul.bf16.gmra.mxu0 %v8101
      %v8190 = vpop.f32.mrf.mxu0
      %v8191 = vadd.f32 0.0, %v8190
      %v8192 = vpop.f32.mrf.mxu0
      %v8193 = vadd.f32 0.0, %v8192
      %8194 = vmatmul.bf16.gmra.mxu0 %v8102
      %v8195 = vpop.f32.mrf.mxu0
      %v8196 = vadd.f32 0.0, %v8195
      %v8197 = vpop.f32.mrf.mxu0
      %v8198 = vadd.f32 0.0, %v8197
      %8199 = vmatmul.bf16.gmra.mxu0 %v8103
      %v8200 = vpop.f32.mrf.mxu0
      %v8201 = vadd.f32 0.0, %v8200
      %v8202 = vpop.f32.mrf.mxu0
      %v8203 = vadd.f32 0.0, %v8202
      %8204 = vmatmul.bf16.gmra.mxu0 %v8104
      %v8205 = vpop.f32.mrf.mxu0
      %v8206 = vadd.f32 0.0, %v8205
      %v8207 = vpop.f32.mrf.mxu0
      %v8208 = vadd.f32 0.0, %v8207
      %8209 = vmatmul.bf16.gmra.mxu0 %v8105
      %v8210 = vpop.f32.mrf.mxu0
      %v8211 = vadd.f32 0.0, %v8210
      %v8212 = vpop.f32.mrf.mxu0
      %v8213 = vadd.f32 0.0, %v8212
      %8214 = vmatmul.bf16.gmra.mxu0 %v8106
      %v8215 = vpop.f32.mrf.mxu0
      %v8216 = vadd.f32 0.0, %v8215
      %v8217 = vpop.f32.mrf.mxu0
      %v8218 = vadd.f32 0.0, %v8217
      %8219 = vmatmul.bf16.gmra.mxu0 %v8107
      %v8220 = vpop.f32.mrf.mxu0
      %v8221 = vadd.f32 0.0, %v8220
      %v8222 = vpop.f32.mrf.mxu0
      %v8223 = vadd.f32 0.0, %v8222
      %8224 = vmatmul.bf16.gmra.mxu0 %v8108
      %v8225 = vpop.f32.mrf.mxu0
      %v8226 = vadd.f32 0.0, %v8225
      %v8227 = vpop.f32.mrf.mxu0
      %v8228 = vadd.f32 0.0, %v8227
      %8229 = vmatmul.bf16.gmra.mxu0 %v8109
      %v8230 = vpop.f32.mrf.mxu0
      %v8231 = vadd.f32 0.0, %v8230
      %v8232 = vpop.f32.mrf.mxu0
      %v8233 = vadd.f32 0.0, %v8232
      %8234 = vmatmul.bf16.gmra.mxu0 %v8110
      %v8235 = vpop.f32.mrf.mxu0
      %v8236 = vadd.f32 0.0, %v8235
      %v8237 = vpop.f32.mrf.mxu0
      %v8238 = vadd.f32 0.0, %v8237
      %8239 = vmatmul.bf16.gmra.mxu0 %v8111
      %v8240 = vpop.f32.mrf.mxu0
      %v8241 = vadd.f32 0.0, %v8240
      %v8242 = vpop.f32.mrf.mxu0
      %v8243 = vadd.f32 0.0, %v8242
      %8244 = vmatmul.bf16.gmra.mxu0 %v8112
      %v8245 = vpop.f32.mrf.mxu0
      %v8246 = vadd.f32 0.0, %v8245
      %v8247 = vpop.f32.mrf.mxu0
      %v8248 = vadd.f32 0.0, %v8247
      %8249 = vmatmul.bf16.gmra.mxu0 %v8113
      %v8250 = vpop.f32.mrf.mxu0
      %v8251 = vadd.f32 0.0, %v8250
      %v8252 = vpop.f32.mrf.mxu0
      %v8253 = vadd.f32 0.0, %v8252
      %8254 = vmatmul.bf16.gmra.mxu0 %v8114
      %v8255 = vpop.f32.mrf.mxu0
      %v8256 = vadd.f32 0.0, %v8255
      %v8257 = vpop.f32.mrf.mxu0
      %v8258 = vadd.f32 0.0, %v8257
      %8259 = vmatmul.bf16.gmra.mxu0 %v8115
      %v8260 = vpop.f32.mrf.mxu0
      %v8261 = vadd.f32 0.0, %v8260
      %v8262 = vpop.f32.mrf.mxu0
      %v8263 = vadd.f32 0.0, %v8262
      %8264 = vmatmul.bf16.gmra.mxu0 %v8116
      %v8265 = vpop.f32.mrf.mxu0
      %v8266 = vadd.f32 0.0, %v8265
      %v8267 = vpop.f32.mrf.mxu0
      %v8268 = vadd.f32 0.0, %v8267
      %8269 = vdwg.mxu0
      %v8270 = vld [vmem:[#allocation4] sm:$0xff]
      %v8271 = vld [vmem:[#allocation4 + $0x8] sm:$0xff]
      %v8272 = vld [vmem:[#allocation4 + $0x10] sm:$0xff]
      %v8273 = vld [vmem:[#allocation4 + $0x18] sm:$0xff]
      %v8274 = vld [vmem:[#allocation4 + $0x20] sm:$0xff]
      %v8275 = vld [vmem:[#allocation4 + $0x28] sm:$0xff]
      %v8276 = vld [vmem:[#allocation4 + $0x30] sm:$0xff]
      %v8277 = vld [vmem:[#allocation4 + $0x38] sm:$0xff]
      %v8278 = vld [vmem:[#allocation4 + $0x40] sm:$0xff]
      %v8279 = vld [vmem:[#allocation4 + $0x48] sm:$0xff]
      %v8280 = vld [vmem:[#allocation4 + $0x50] sm:$0xff]
      %v8281 = vld [vmem:[#allocation4 + $0x58] sm:$0xff]
      %v8282 = vld [vmem:[#allocation4 + $0x60] sm:$0xff]
      %v8283 = vld [vmem:[#allocation4 + $0x68] sm:$0xff]
      %v8284 = vld [vmem:[#allocation4 + $0x70] sm:$0xff]
      %v8285 = vld [vmem:[#allocation4 + $0x78] sm:$0xff]
      %v8286 = vld [vmem:[#allocation4 + $0x80] sm:$0xff]
      %v8287 = vld [vmem:[#allocation4 + $0x88] sm:$0xff]
      %v8288 = vld [vmem:[#allocation4 + $0x90] sm:$0xff]
      %v8289 = vld [vmem:[#allocation4 + $0x98] sm:$0xff]
      %v8290 = vld [vmem:[#allocation4 + $0xa0] sm:$0xff]
      %v8291 = vld [vmem:[#allocation4 + $0xa8] sm:$0xff]
      %v8292 = vld [vmem:[#allocation4 + $0xb0] sm:$0xff]
      %v8293 = vld [vmem:[#allocation4 + $0xb8] sm:$0xff]
      %v8294 = vld [vmem:[#allocation4 + $0xc0] sm:$0xff]
      %v8295 = vld [vmem:[#allocation4 + $0xc8] sm:$0xff]
      %v8296 = vld [vmem:[#allocation4 + $0xd0] sm:$0xff]
      %v8297 = vld [vmem:[#allocation4 + $0xd8] sm:$0xff]
      %v8298 = vld [vmem:[#allocation4 + $0xe0] sm:$0xff]
      %v8299 = vld [vmem:[#allocation4 + $0xe8] sm:$0xff]
      %v8300 = vld [vmem:[#allocation4 + $0xf0] sm:$0xff]
      %v8301 = vld [vmem:[#allocation4 + $0xf8] sm:$0xff]
      %v8302 = vadd.f32 %v8270, %v8191
      %v8303 = vadd.f32 %v8271, %v8193
      %v8304 = vadd.f32 %v8272, %v8196
      %v8305 = vadd.f32 %v8273, %v8198
      %v8306 = vadd.f32 %v8274, %v8201
      %v8307 = vadd.f32 %v8275, %v8203
      %v8308 = vadd.f32 %v8276, %v8206
      %v8309 = vadd.f32 %v8277, %v8208
      %v8310 = vadd.f32 %v8278, %v8211
      %v8311 = vadd.f32 %v8279, %v8213
      %v8312 = vadd.f32 %v8280, %v8216
      %v8313 = vadd.f32 %v8281, %v8218
      %v8314 = vadd.f32 %v8282, %v8221
      %v8315 = vadd.f32 %v8283, %v8223
      %v8316 = vadd.f32 %v8284, %v8226
      %v8317 = vadd.f32 %v8285, %v8228
      %v8318 = vadd.f32 %v8286, %v8231
      %v8319 = vadd.f32 %v8287, %v8233
      %v8320 = vadd.f32 %v8288, %v8236
      %v8321 = vadd.f32 %v8289, %v8238
      %v8322 = vadd.f32 %v8290, %v8241
      %v8323 = vadd.f32 %v8291, %v8243
      %v8324 = vadd.f32 %v8292, %v8246
      %v8325 = vadd.f32 %v8293, %v8248
      %v8326 = vadd.f32 %v8294, %v8251
      %v8327 = vadd.f32 %v8295, %v8253
      %v8328 = vadd.f32 %v8296, %v8256
      %v8329 = vadd.f32 %v8297, %v8258
      %v8330 = vadd.f32 %v8298, %v8261
      %v8331 = vadd.f32 %v8299, %v8263
      %v8332 = vadd.f32 %v8300, %v8266
      %v8333 = vadd.f32 %v8301, %v8268
      %8334 = vst [vmem:[#allocation4] sm:$0xff] %v8302
      %8335 = vst [vmem:[#allocation4 + $0x8] sm:$0xff] %v8303
      %8336 = vst [vmem:[#allocation4 + $0x10] sm:$0xff] %v8304
      %8337 = vst [vmem:[#allocation4 + $0x18] sm:$0xff] %v8305
      %8338 = vst [vmem:[#allocation4 + $0x20] sm:$0xff] %v8306
      %8339 = vst [vmem:[#allocation4 + $0x28] sm:$0xff] %v8307
      %8340 = vst [vmem:[#allocation4 + $0x30] sm:$0xff] %v8308
      %8341 = vst [vmem:[#allocation4 + $0x38] sm:$0xff] %v8309
      %8342 = vst [vmem:[#allocation4 + $0x40] sm:$0xff] %v8310
      %8343 = vst [vmem:[#allocation4 + $0x48] sm:$0xff] %v8311
      %8344 = vst [vmem:[#allocation4 + $0x50] sm:$0xff] %v8312
      %8345 = vst [vmem:[#allocation4 + $0x58] sm:$0xff] %v8313
      %8346 = vst [vmem:[#allocation4 + $0x60] sm:$0xff] %v8314
      %8347 = vst [vmem:[#allocation4 + $0x68] sm:$0xff] %v8315
      %8348 = vst [vmem:[#allocation4 + $0x70] sm:$0xff] %v8316
      %8349 = vst [vmem:[#allocation4 + $0x78] sm:$0xff] %v8317
      %8350 = vst [vmem:[#allocation4 + $0x80] sm:$0xff] %v8318
      %8351 = vst [vmem:[#allocation4 + $0x88] sm:$0xff] %v8319
      %8352 = vst [vmem:[#allocation4 + $0x90] sm:$0xff] %v8320
      %8353 = vst [vmem:[#allocation4 + $0x98] sm:$0xff] %v8321
      %8354 = vst [vmem:[#allocation4 + $0xa0] sm:$0xff] %v8322
      %8355 = vst [vmem:[#allocation4 + $0xa8] sm:$0xff] %v8323
      %8356 = vst [vmem:[#allocation4 + $0xb0] sm:$0xff] %v8324
      %8357 = vst [vmem:[#allocation4 + $0xb8] sm:$0xff] %v8325
      %8358 = vst [vmem:[#allocation4 + $0xc0] sm:$0xff] %v8326
      %8359 = vst [vmem:[#allocation4 + $0xc8] sm:$0xff] %v8327
      %8360 = vst [vmem:[#allocation4 + $0xd0] sm:$0xff] %v8328
      %8361 = vst [vmem:[#allocation4 + $0xd8] sm:$0xff] %v8329
      %8362 = vst [vmem:[#allocation4 + $0xe0] sm:$0xff] %v8330
      %8363 = vst [vmem:[#allocation4 + $0xe8] sm:$0xff] %v8331
      %8364 = vst [vmem:[#allocation4 + $0xf0] sm:$0xff] %v8332
      %8365 = vst [vmem:[#allocation4 + $0xf8] sm:$0xff] %v8333
      %v8366 = vld [vmem:[%s6294] sm:$0xf]
      %v8367 = vld [vmem:[%s6294 + $0x4] sm:$0xf]
      %v8368 = vld [vmem:[%s6294 + $0x8] sm:$0x1]
      %v8369 = vld [vmem:[%s6294 + $0xc] sm:$0xf]
      %v8370 = vld [vmem:[%s6294 + $0x10] sm:$0xf]
      %v8371 = vld [vmem:[%s6294 + $0x14] sm:$0x1]
      %v8372 = vld [vmem:[%s6294 + $0x18] sm:$0xf]
      %v8373 = vld [vmem:[%s6294 + $0x1c] sm:$0xf]
      %v8374 = vld [vmem:[%s6294 + $0x20] sm:$0x1]
      %v8375 = vld [vmem:[%s6294 + $0x24] sm:$0xf]
      %v8376 = vld [vmem:[%s6294 + $0x28] sm:$0xf]
      %v8377 = vld [vmem:[%s6294 + $0x2c] sm:$0x1]
      %v8378 = vld [vmem:[%s6294 + $0x30] sm:$0xf]
      %v8379 = vld [vmem:[%s6294 + $0x34] sm:$0xf]
      %v8380 = vld [vmem:[%s6294 + $0x38] sm:$0x1]
      %v8381 = vld [vmem:[%s6294 + $0x3c] sm:$0xf]
      %v8382 = vld [vmem:[%s6294 + $0x40] sm:$0xf]
      %v8383 = vld [vmem:[%s6294 + $0x44] sm:$0x1]
      %v8384 = vld [vmem:[%s6294 + $0x48] sm:$0xf]
      %v8385 = vld [vmem:[%s6294 + $0x4c] sm:$0xf]
      %v8386 = vld [vmem:[%s6294 + $0x50] sm:$0x1]
      %v8387 = vld [vmem:[%s6294 + $0x54] sm:$0xf]
      %v8388 = vld [vmem:[%s6294 + $0x58] sm:$0xf]
      %v8389 = vld [vmem:[%s6294 + $0x5c] sm:$0x1]
      %v8390 = vld [vmem:[%s6294 + $0x60] sm:$0xf]
      %v8391 = vld [vmem:[%s6294 + $0x64] sm:$0xf]
      %v8392 = vld [vmem:[%s6294 + $0x68] sm:$0x1]
      %v8393 = vld [vmem:[%s6294 + $0x6c] sm:$0xf]
      %v8394 = vld [vmem:[%s6294 + $0x70] sm:$0xf]
      %v8395 = vld [vmem:[%s6294 + $0x74] sm:$0x1]
      %v8396 = vld [vmem:[%s6294 + $0x78] sm:$0xf]
      %v8397 = vld [vmem:[%s6294 + $0x7c] sm:$0xf]
      %v8398 = vld [vmem:[%s6294 + $0x80] sm:$0x1]
      %v8399 = vld [vmem:[%s6294 + $0x84] sm:$0xf]
      %v8400 = vld [vmem:[%s6294 + $0x88] sm:$0xf]
      %v8401 = vld [vmem:[%s6294 + $0x8c] sm:$0x1]
      %v8402 = vld [vmem:[%s6294 + $0x90] sm:$0xf]
      %v8403 = vld [vmem:[%s6294 + $0x94] sm:$0xf]
      %v8404 = vld [vmem:[%s6294 + $0x98] sm:$0x1]
      %v8405 = vld [vmem:[%s6294 + $0x9c] sm:$0xf]
      %v8406 = vld [vmem:[%s6294 + $0xa0] sm:$0xf]
      %v8407 = vld [vmem:[%s6294 + $0xa4] sm:$0x1]
      %v8408 = vld [vmem:[%s6294 + $0xa8] sm:$0xf]
      %v8409 = vld [vmem:[%s6294 + $0xac] sm:$0xf]
      %v8410 = vld [vmem:[%s6294 + $0xb0] sm:$0x1]
      %v8411 = vld [vmem:[%s6294 + $0xb4] sm:$0xf]
      %v8412 = vld [vmem:[%s6294 + $0xb8] sm:$0xf]
      %v8413 = vld [vmem:[%s6294 + $0xbc] sm:$0x1]
      %v8415 = vshrl.u32 %v8366, 16
      %v8417 = vrot.slane %v8415, 4
      %v8418 = vshll.u32 %v8366, 16
      %v8420 = vrot.slane %v8418, 5
      %v8421 = vor.u32 %v8417, %v8420
      %v8422 = vrot.slane %v8421, 4
      %v8424 = vshll.u32 %v8367, 16
      %v8426 = vrot.slane %v8424, 5
      %v8427 = vsel %vm1325, %v8422, %v8426
      %v8428 = vshrl.u32 %v8367, 16
      %v8430 = vrot.slane %v8428, 4
      %v8431 = vor.u32 %v8430, %v8426
      %v8432 = vrot.slane %v8431, 4
      %v8434 = vshll.u32 %v8368, 16
      %v8436 = vrot.slane %v8434, 5
      %v8437 = vsel %vm1325, %v8432, %v8436
      %v8439 = vshrl.u32 %v8369, 16
      %v8441 = vrot.slane %v8439, 4
      %v8442 = vshll.u32 %v8369, 16
      %v8444 = vrot.slane %v8442, 5
      %v8445 = vor.u32 %v8441, %v8444
      %v8446 = vrot.slane %v8445, 4
      %v8448 = vshll.u32 %v8370, 16
      %v8450 = vrot.slane %v8448, 5
      %v8451 = vsel %vm1325, %v8446, %v8450
      %v8452 = vshrl.u32 %v8370, 16
      %v8454 = vrot.slane %v8452, 4
      %v8455 = vor.u32 %v8454, %v8450
      %v8456 = vrot.slane %v8455, 4
      %v8458 = vshll.u32 %v8371, 16
      %v8460 = vrot.slane %v8458, 5
      %v8461 = vsel %vm1325, %v8456, %v8460
      %v8463 = vshrl.u32 %v8372, 16
      %v8465 = vrot.slane %v8463, 4
      %v8466 = vshll.u32 %v8372, 16
      %v8468 = vrot.slane %v8466, 5
      %v8469 = vor.u32 %v8465, %v8468
      %v8470 = vrot.slane %v8469, 4
      %v8472 = vshll.u32 %v8373, 16
      %v8474 = vrot.slane %v8472, 5
      %v8475 = vsel %vm1325, %v8470, %v8474
      %v8476 = vshrl.u32 %v8373, 16
      %v8478 = vrot.slane %v8476, 4
      %v8479 = vor.u32 %v8478, %v8474
      %v8480 = vrot.slane %v8479, 4
      %v8482 = vshll.u32 %v8374, 16
      %v8484 = vrot.slane %v8482, 5
      %v8485 = vsel %vm1325, %v8480, %v8484
      %v8487 = vshrl.u32 %v8375, 16
      %v8489 = vrot.slane %v8487, 4
      %v8490 = vshll.u32 %v8375, 16
      %v8492 = vrot.slane %v8490, 5
      %v8493 = vor.u32 %v8489, %v8492
      %v8494 = vrot.slane %v8493, 4
      %v8496 = vshll.u32 %v8376, 16
      %v8498 = vrot.slane %v8496, 5
      %v8499 = vsel %vm1325, %v8494, %v8498
      %v8500 = vshrl.u32 %v8376, 16
      %v8502 = vrot.slane %v8500, 4
      %v8503 = vor.u32 %v8502, %v8498
      %v8504 = vrot.slane %v8503, 4
      %v8506 = vshll.u32 %v8377, 16
      %v8508 = vrot.slane %v8506, 5
      %v8509 = vsel %vm1325, %v8504, %v8508
      %v8511 = vshrl.u32 %v8378, 16
      %v8513 = vrot.slane %v8511, 4
      %v8514 = vshll.u32 %v8378, 16
      %v8516 = vrot.slane %v8514, 5
      %v8517 = vor.u32 %v8513, %v8516
      %v8518 = vrot.slane %v8517, 4
      %v8520 = vshll.u32 %v8379, 16
      %v8522 = vrot.slane %v8520, 5
      %v8523 = vsel %vm1325, %v8518, %v8522
      %v8524 = vshrl.u32 %v8379, 16
      %v8526 = vrot.slane %v8524, 4
      %v8527 = vor.u32 %v8526, %v8522
      %v8528 = vrot.slane %v8527, 4
      %v8530 = vshll.u32 %v8380, 16
      %v8532 = vrot.slane %v8530, 5
      %v8533 = vsel %vm1325, %v8528, %v8532
      %v8535 = vshrl.u32 %v8381, 16
      %v8537 = vrot.slane %v8535, 4
      %v8538 = vshll.u32 %v8381, 16
      %v8540 = vrot.slane %v8538, 5
      %v8541 = vor.u32 %v8537, %v8540
      %v8542 = vrot.slane %v8541, 4
      %v8544 = vshll.u32 %v8382, 16
      %v8546 = vrot.slane %v8544, 5
      %v8547 = vsel %vm1325, %v8542, %v8546
      %v8548 = vshrl.u32 %v8382, 16
      %v8550 = vrot.slane %v8548, 4
      %v8551 = vor.u32 %v8550, %v8546
      %v8552 = vrot.slane %v8551, 4
      %v8554 = vshll.u32 %v8383, 16
      %v8556 = vrot.slane %v8554, 5
      %v8557 = vsel %vm1325, %v8552, %v8556
      %v8559 = vshrl.u32 %v8384, 16
      %v8561 = vrot.slane %v8559, 4
      %v8562 = vshll.u32 %v8384, 16
      %v8564 = vrot.slane %v8562, 5
      %v8565 = vor.u32 %v8561, %v8564
      %v8566 = vrot.slane %v8565, 4
      %v8568 = vshll.u32 %v8385, 16
      %v8570 = vrot.slane %v8568, 5
      %v8571 = vsel %vm1325, %v8566, %v8570
      %v8572 = vshrl.u32 %v8385, 16
      %v8574 = vrot.slane %v8572, 4
      %v8575 = vor.u32 %v8574, %v8570
      %v8576 = vrot.slane %v8575, 4
      %v8578 = vshll.u32 %v8386, 16
      %v8580 = vrot.slane %v8578, 5
      %v8581 = vsel %vm1325, %v8576, %v8580
      %v8583 = vshrl.u32 %v8387, 16
      %v8585 = vrot.slane %v8583, 4
      %v8586 = vshll.u32 %v8387, 16
      %v8588 = vrot.slane %v8586, 5
      %v8589 = vor.u32 %v8585, %v8588
      %v8590 = vrot.slane %v8589, 4
      %v8592 = vshll.u32 %v8388, 16
      %v8594 = vrot.slane %v8592, 5
      %v8595 = vsel %vm1325, %v8590, %v8594
      %v8596 = vshrl.u32 %v8388, 16
      %v8598 = vrot.slane %v8596, 4
      %v8599 = vor.u32 %v8598, %v8594
      %v8600 = vrot.slane %v8599, 4
      %v8602 = vshll.u32 %v8389, 16
      %v8604 = vrot.slane %v8602, 5
      %v8605 = vsel %vm1325, %v8600, %v8604
      %v8607 = vshrl.u32 %v8390, 16
      %v8609 = vrot.slane %v8607, 4
      %v8610 = vshll.u32 %v8390, 16
      %v8612 = vrot.slane %v8610, 5
      %v8613 = vor.u32 %v8609, %v8612
      %v8614 = vrot.slane %v8613, 4
      %v8616 = vshll.u32 %v8391, 16
      %v8618 = vrot.slane %v8616, 5
      %v8619 = vsel %vm1325, %v8614, %v8618
      %v8620 = vshrl.u32 %v8391, 16
      %v8622 = vrot.slane %v8620, 4
      %v8623 = vor.u32 %v8622, %v8618
      %v8624 = vrot.slane %v8623, 4
      %v8626 = vshll.u32 %v8392, 16
      %v8628 = vrot.slane %v8626, 5
      %v8629 = vsel %vm1325, %v8624, %v8628
      %v8631 = vshrl.u32 %v8393, 16
      %v8633 = vrot.slane %v8631, 4
      %v8634 = vshll.u32 %v8393, 16
      %v8636 = vrot.slane %v8634, 5
      %v8637 = vor.u32 %v8633, %v8636
      %v8638 = vrot.slane %v8637, 4
      %v8640 = vshll.u32 %v8394, 16
      %v8642 = vrot.slane %v8640, 5
      %v8643 = vsel %vm1325, %v8638, %v8642
      %v8644 = vshrl.u32 %v8394, 16
      %v8646 = vrot.slane %v8644, 4
      %v8647 = vor.u32 %v8646, %v8642
      %v8648 = vrot.slane %v8647, 4
      %v8650 = vshll.u32 %v8395, 16
      %v8652 = vrot.slane %v8650, 5
      %v8653 = vsel %vm1325, %v8648, %v8652
      %v8655 = vshrl.u32 %v8396, 16
      %v8657 = vrot.slane %v8655, 4
      %v8658 = vshll.u32 %v8396, 16
      %v8660 = vrot.slane %v8658, 5
      %v8661 = vor.u32 %v8657, %v8660
      %v8662 = vrot.slane %v8661, 4
      %v8664 = vshll.u32 %v8397, 16
      %v8666 = vrot.slane %v8664, 5
      %v8667 = vsel %vm1325, %v8662, %v8666
      %v8668 = vshrl.u32 %v8397, 16
      %v8670 = vrot.slane %v8668, 4
      %v8671 = vor.u32 %v8670, %v8666
      %v8672 = vrot.slane %v8671, 4
      %v8674 = vshll.u32 %v8398, 16
      %v8676 = vrot.slane %v8674, 5
      %v8677 = vsel %vm1325, %v8672, %v8676
      %v8679 = vshrl.u32 %v8399, 16
      %v8681 = vrot.slane %v8679, 4
      %v8682 = vshll.u32 %v8399, 16
      %v8684 = vrot.slane %v8682, 5
      %v8685 = vor.u32 %v8681, %v8684
      %v8686 = vrot.slane %v8685, 4
      %v8688 = vshll.u32 %v8400, 16
      %v8690 = vrot.slane %v8688, 5
      %v8691 = vsel %vm1325, %v8686, %v8690
      %v8692 = vshrl.u32 %v8400, 16
      %v8694 = vrot.slane %v8692, 4
      %v8695 = vor.u32 %v8694, %v8690
      %v8696 = vrot.slane %v8695, 4
      %v8698 = vshll.u32 %v8401, 16
      %v8700 = vrot.slane %v8698, 5
      %v8701 = vsel %vm1325, %v8696, %v8700
      %v8703 = vshrl.u32 %v8402, 16
      %v8705 = vrot.slane %v8703, 4
      %v8706 = vshll.u32 %v8402, 16
      %v8708 = vrot.slane %v8706, 5
      %v8709 = vor.u32 %v8705, %v8708
      %v8710 = vrot.slane %v8709, 4
      %v8712 = vshll.u32 %v8403, 16
      %v8714 = vrot.slane %v8712, 5
      %v8715 = vsel %vm1325, %v8710, %v8714
      %v8716 = vshrl.u32 %v8403, 16
      %v8718 = vrot.slane %v8716, 4
      %v8719 = vor.u32 %v8718, %v8714
      %v8720 = vrot.slane %v8719, 4
      %v8722 = vshll.u32 %v8404, 16
      %v8724 = vrot.slane %v8722, 5
      %v8725 = vsel %vm1325, %v8720, %v8724
      %v8727 = vshrl.u32 %v8405, 16
      %v8729 = vrot.slane %v8727, 4
      %v8730 = vshll.u32 %v8405, 16
      %v8732 = vrot.slane %v8730, 5
      %v8733 = vor.u32 %v8729, %v8732
      %v8734 = vrot.slane %v8733, 4
      %v8736 = vshll.u32 %v8406, 16
      %v8738 = vrot.slane %v8736, 5
      %v8739 = vsel %vm1325, %v8734, %v8738
      %v8740 = vshrl.u32 %v8406, 16
      %v8742 = vrot.slane %v8740, 4
      %v8743 = vor.u32 %v8742, %v8738
      %v8744 = vrot.slane %v8743, 4
      %v8746 = vshll.u32 %v8407, 16
      %v8748 = vrot.slane %v8746, 5
      %v8749 = vsel %vm1325, %v8744, %v8748
      %v8751 = vshrl.u32 %v8408, 16
      %v8753 = vrot.slane %v8751, 4
      %v8754 = vshll.u32 %v8408, 16
      %v8756 = vrot.slane %v8754, 5
      %v8757 = vor.u32 %v8753, %v8756
      %v8758 = vrot.slane %v8757, 4
      %v8760 = vshll.u32 %v8409, 16
      %v8762 = vrot.slane %v8760, 5
      %v8763 = vsel %vm1325, %v8758, %v8762
      %v8764 = vshrl.u32 %v8409, 16
      %v8766 = vrot.slane %v8764, 4
      %v8767 = vor.u32 %v8766, %v8762
      %v8768 = vrot.slane %v8767, 4
      %v8770 = vshll.u32 %v8410, 16
      %v8772 = vrot.slane %v8770, 5
      %v8773 = vsel %vm1325, %v8768, %v8772
      %v8775 = vshrl.u32 %v8411, 16
      %v8777 = vrot.slane %v8775, 4
      %v8778 = vshll.u32 %v8411, 16
      %v8780 = vrot.slane %v8778, 5
      %v8781 = vor.u32 %v8777, %v8780
      %v8782 = vrot.slane %v8781, 4
      %v8784 = vshll.u32 %v8412, 16
      %v8786 = vrot.slane %v8784, 5
      %v8787 = vsel %vm1325, %v8782, %v8786
      %v8788 = vshrl.u32 %v8412, 16
      %v8790 = vrot.slane %v8788, 4
      %v8791 = vor.u32 %v8790, %v8786
      %v8792 = vrot.slane %v8791, 4
      %v8794 = vshll.u32 %v8413, 16
      %v8796 = vrot.slane %v8794, 5
      %v8797 = vsel %vm1325, %v8792, %v8796
      %s8798 = scalar_lea.vmem %s3, 256
      %v8799 = vld [vmem:[%s8798] sm:$0xf]
      %v8800 = vld [vmem:[%s8798 + $0x4] sm:$0xf]
      %v8801 = vld [vmem:[%s8798 + $0x8] sm:$0xf]
      %v8802 = vld [vmem:[%s8798 + $0xc] sm:$0xf]
      %v8803 = vld [vmem:[%s8798 + $0x10] sm:$0xf]
      %v8804 = vld [vmem:[%s8798 + $0x14] sm:$0xf]
      %v8805 = vld [vmem:[%s8798 + $0x18] sm:$0xf]
      %v8806 = vld [vmem:[%s8798 + $0x1c] sm:$0xf]
      %v8807 = vld [vmem:[%s8798 + $0x20] sm:$0xf]
      %v8808 = vld [vmem:[%s8798 + $0x24] sm:$0xf]
      %v8809 = vld [vmem:[%s8798 + $0x28] sm:$0xf]
      %v8810 = vld [vmem:[%s8798 + $0x2c] sm:$0xf]
      %v8811 = vld [vmem:[%s8798 + $0x30] sm:$0xf]
      %v8812 = vld [vmem:[%s8798 + $0x34] sm:$0xf]
      %v8813 = vld [vmem:[%s8798 + $0x38] sm:$0xf]
      %v8814 = vld [vmem:[%s8798 + $0x3c] sm:$0xf]
      %v8815 = vunpack.c.l.b16 %v8427
      %v8816 = vunpack.c.l.b16 %v8437
      %v8817 = vunpack.c.l.b16 %v8451
      %v8818 = vunpack.c.l.b16 %v8461
      %v8819 = vunpack.c.l.b16 %v8475
      %v8820 = vunpack.c.l.b16 %v8485
      %v8821 = vunpack.c.l.b16 %v8499
      %v8822 = vunpack.c.l.b16 %v8509
      %v8823 = vunpack.c.l.b16 %v8523
      %v8824 = vunpack.c.l.b16 %v8533
      %v8825 = vunpack.c.l.b16 %v8547
      %v8826 = vunpack.c.l.b16 %v8557
      %v8827 = vunpack.c.l.b16 %v8571
      %v8828 = vunpack.c.l.b16 %v8581
      %v8829 = vunpack.c.l.b16 %v8595
      %v8830 = vunpack.c.l.b16 %v8605
      %v8831 = vunpack.c.l.b16 %v8619
      %v8832 = vunpack.c.l.b16 %v8629
      %v8833 = vunpack.c.l.b16 %v8643
      %v8834 = vunpack.c.l.b16 %v8653
      %v8835 = vunpack.c.l.b16 %v8667
      %v8836 = vunpack.c.l.b16 %v8677
      %v8837 = vunpack.c.l.b16 %v8691
      %v8838 = vunpack.c.l.b16 %v8701
      %v8839 = vunpack.c.l.b16 %v8715
      %v8840 = vunpack.c.l.b16 %v8725
      %v8841 = vunpack.c.l.b16 %v8739
      %v8842 = vunpack.c.l.b16 %v8749
      %v8843 = vunpack.c.l.b16 %v8763
      %v8844 = vunpack.c.l.b16 %v8773
      %v8845 = vunpack.c.l.b16 %v8787
      %v8846 = vunpack.c.l.b16 %v8797
      %v8847 = vpack.c.b16 %v8816, %v8815
      %v8848 = vpack.c.b16 %v8818, %v8817
      %v8849 = vpack.c.b16 %v8820, %v8819
      %v8850 = vpack.c.b16 %v8822, %v8821
      %v8851 = vpack.c.b16 %v8824, %v8823
      %v8852 = vpack.c.b16 %v8826, %v8825
      %v8853 = vpack.c.b16 %v8828, %v8827
      %v8854 = vpack.c.b16 %v8830, %v8829
      %v8855 = vpack.c.b16 %v8832, %v8831
      %v8856 = vpack.c.b16 %v8834, %v8833
      %v8857 = vpack.c.b16 %v8836, %v8835
      %v8858 = vpack.c.b16 %v8838, %v8837
      %v8859 = vpack.c.b16 %v8840, %v8839
      %v8860 = vpack.c.b16 %v8842, %v8841
      %v8861 = vpack.c.b16 %v8844, %v8843
      %v8862 = vpack.c.b16 %v8846, %v8845
      %v8895 = vunpack.c.l.b16 %v8799
      %v8896 = vunpack.c.l.b16 %v8800
      %v8897 = vunpack.c.l.b16 %v8801
      %v8898 = vunpack.c.l.b16 %v8802
      %v8899 = vunpack.c.l.b16 %v8803
      %v8900 = vunpack.c.l.b16 %v8804
      %v8901 = vunpack.c.l.b16 %v8805
      %v8902 = vunpack.c.l.b16 %v8806
      %v8903 = vunpack.c.l.b16 %v8807
      %v8904 = vunpack.c.l.b16 %v8808
      %v8905 = vunpack.c.l.b16 %v8809
      %v8906 = vunpack.c.l.b16 %v8810
      %v8907 = vunpack.c.l.b16 %v8811
      %v8908 = vunpack.c.l.b16 %v8812
      %v8909 = vunpack.c.l.b16 %v8813
      %v8910 = vunpack.c.l.b16 %v8814
      %v8911 = vpack.c.b16 %v8896, %v8895
      %v8912 = vpack.c.b16 %v8898, %v8897
      %v8913 = vpack.c.b16 %v8900, %v8899
      %v8914 = vpack.c.b16 %v8902, %v8901
      %v8915 = vpack.c.b16 %v8904, %v8903
      %v8916 = vpack.c.b16 %v8906, %v8905
      %v8917 = vpack.c.b16 %v8908, %v8907
      %v8918 = vpack.c.b16 %v8910, %v8909
      %8927 = vmatpush.bf16.msra.mxu0 %v8918
      %8928 = vmatpush.bf16.msra.mxu0 %v8917
      %8929 = vmatpush.bf16.msra.mxu0 %v8916
      %8930 = vmatpush.bf16.msra.mxu0 %v8915
      %8931 = vmatpush.bf16.msra.mxu0 %v8914
      %8932 = vmatpush.bf16.msra.mxu0 %v8913
      %8933 = vmatpush.bf16.msra.mxu0 %v8912
      %8934 = vmatpush.bf16.msra.mxu0 %v8911
      %8935 = vmatmul.bf16.gmra.mxu0 %v8847
      %v8936 = vpop.f32.mrf.mxu0
      %v8937 = vadd.f32 0.0, %v8936
      %v8938 = vpop.f32.mrf.mxu0
      %v8939 = vadd.f32 0.0, %v8938
      %8940 = vmatmul.bf16.gmra.mxu0 %v8848
      %v8941 = vpop.f32.mrf.mxu0
      %v8942 = vadd.f32 0.0, %v8941
      %v8943 = vpop.f32.mrf.mxu0
      %v8944 = vadd.f32 0.0, %v8943
      %8945 = vmatmul.bf16.gmra.mxu0 %v8849
      %v8946 = vpop.f32.mrf.mxu0
      %v8947 = vadd.f32 0.0, %v8946
      %v8948 = vpop.f32.mrf.mxu0
      %v8949 = vadd.f32 0.0, %v8948
      %8950 = vmatmul.bf16.gmra.mxu0 %v8850
      %v8951 = vpop.f32.mrf.mxu0
      %v8952 = vadd.f32 0.0, %v8951
      %v8953 = vpop.f32.mrf.mxu0
      %v8954 = vadd.f32 0.0, %v8953
      %8955 = vmatmul.bf16.gmra.mxu0 %v8851
      %v8956 = vpop.f32.mrf.mxu0
      %v8957 = vadd.f32 0.0, %v8956
      %v8958 = vpop.f32.mrf.mxu0
      %v8959 = vadd.f32 0.0, %v8958
      %8960 = vmatmul.bf16.gmra.mxu0 %v8852
      %v8961 = vpop.f32.mrf.mxu0
      %v8962 = vadd.f32 0.0, %v8961
      %v8963 = vpop.f32.mrf.mxu0
      %v8964 = vadd.f32 0.0, %v8963
      %8965 = vmatmul.bf16.gmra.mxu0 %v8853
      %v8966 = vpop.f32.mrf.mxu0
      %v8967 = vadd.f32 0.0, %v8966
      %v8968 = vpop.f32.mrf.mxu0
      %v8969 = vadd.f32 0.0, %v8968
      %8970 = vmatmul.bf16.gmra.mxu0 %v8854
      %v8971 = vpop.f32.mrf.mxu0
      %v8972 = vadd.f32 0.0, %v8971
      %v8973 = vpop.f32.mrf.mxu0
      %v8974 = vadd.f32 0.0, %v8973
      %8975 = vmatmul.bf16.gmra.mxu0 %v8855
      %v8976 = vpop.f32.mrf.mxu0
      %v8977 = vadd.f32 0.0, %v8976
      %v8978 = vpop.f32.mrf.mxu0
      %v8979 = vadd.f32 0.0, %v8978
      %8980 = vmatmul.bf16.gmra.mxu0 %v8856
      %v8981 = vpop.f32.mrf.mxu0
      %v8982 = vadd.f32 0.0, %v8981
      %v8983 = vpop.f32.mrf.mxu0
      %v8984 = vadd.f32 0.0, %v8983
      %8985 = vmatmul.bf16.gmra.mxu0 %v8857
      %v8986 = vpop.f32.mrf.mxu0
      %v8987 = vadd.f32 0.0, %v8986
      %v8988 = vpop.f32.mrf.mxu0
      %v8989 = vadd.f32 0.0, %v8988
      %8990 = vmatmul.bf16.gmra.mxu0 %v8858
      %v8991 = vpop.f32.mrf.mxu0
      %v8992 = vadd.f32 0.0, %v8991
      %v8993 = vpop.f32.mrf.mxu0
      %v8994 = vadd.f32 0.0, %v8993
      %8995 = vmatmul.bf16.gmra.mxu0 %v8859
      %v8996 = vpop.f32.mrf.mxu0
      %v8997 = vadd.f32 0.0, %v8996
      %v8998 = vpop.f32.mrf.mxu0
      %v8999 = vadd.f32 0.0, %v8998
      %9000 = vmatmul.bf16.gmra.mxu0 %v8860
      %v9001 = vpop.f32.mrf.mxu0
      %v9002 = vadd.f32 0.0, %v9001
      %v9003 = vpop.f32.mrf.mxu0
      %v9004 = vadd.f32 0.0, %v9003
      %9005 = vmatmul.bf16.gmra.mxu0 %v8861
      %v9006 = vpop.f32.mrf.mxu0
      %v9007 = vadd.f32 0.0, %v9006
      %v9008 = vpop.f32.mrf.mxu0
      %v9009 = vadd.f32 0.0, %v9008
      %9010 = vmatmul.bf16.gmra.mxu0 %v8862
      %v9011 = vpop.f32.mrf.mxu0
      %v9012 = vadd.f32 0.0, %v9011
      %v9013 = vpop.f32.mrf.mxu0
      %v9014 = vadd.f32 0.0, %v9013
      %9015 = vdwg.mxu0
      %v9016 = vld [vmem:[#allocation4] sm:$0xff]
      %v9017 = vld [vmem:[#allocation4 + $0x8] sm:$0xff]
      %v9018 = vld [vmem:[#allocation4 + $0x10] sm:$0xff]
      %v9019 = vld [vmem:[#allocation4 + $0x18] sm:$0xff]
      %v9020 = vld [vmem:[#allocation4 + $0x20] sm:$0xff]
      %v9021 = vld [vmem:[#allocation4 + $0x28] sm:$0xff]
      %v9022 = vld [vmem:[#allocation4 + $0x30] sm:$0xff]
      %v9023 = vld [vmem:[#allocation4 + $0x38] sm:$0xff]
      %v9024 = vld [vmem:[#allocation4 + $0x40] sm:$0xff]
      %v9025 = vld [vmem:[#allocation4 + $0x48] sm:$0xff]
      %v9026 = vld [vmem:[#allocation4 + $0x50] sm:$0xff]
      %v9027 = vld [vmem:[#allocation4 + $0x58] sm:$0xff]
      %v9028 = vld [vmem:[#allocation4 + $0x60] sm:$0xff]
      %v9029 = vld [vmem:[#allocation4 + $0x68] sm:$0xff]
      %v9030 = vld [vmem:[#allocation4 + $0x70] sm:$0xff]
      %v9031 = vld [vmem:[#allocation4 + $0x78] sm:$0xff]
      %v9032 = vld [vmem:[#allocation4 + $0x80] sm:$0xff]
      %v9033 = vld [vmem:[#allocation4 + $0x88] sm:$0xff]
      %v9034 = vld [vmem:[#allocation4 + $0x90] sm:$0xff]
      %v9035 = vld [vmem:[#allocation4 + $0x98] sm:$0xff]
      %v9036 = vld [vmem:[#allocation4 + $0xa0] sm:$0xff]
      %v9037 = vld [vmem:[#allocation4 + $0xa8] sm:$0xff]
      %v9038 = vld [vmem:[#allocation4 + $0xb0] sm:$0xff]
      %v9039 = vld [vmem:[#allocation4 + $0xb8] sm:$0xff]
      %v9040 = vld [vmem:[#allocation4 + $0xc0] sm:$0xff]
      %v9041 = vld [vmem:[#allocation4 + $0xc8] sm:$0xff]
      %v9042 = vld [vmem:[#allocation4 + $0xd0] sm:$0xff]
      %v9043 = vld [vmem:[#allocation4 + $0xd8] sm:$0xff]
      %v9044 = vld [vmem:[#allocation4 + $0xe0] sm:$0xff]
      %v9045 = vld [vmem:[#allocation4 + $0xe8] sm:$0xff]
      %v9046 = vld [vmem:[#allocation4 + $0xf0] sm:$0xff]
      %v9047 = vld [vmem:[#allocation4 + $0xf8] sm:$0xff]
      %v9048 = vadd.f32 %v9016, %v8937
      %v9049 = vadd.f32 %v9017, %v8939
      %v9050 = vadd.f32 %v9018, %v8942
      %v9051 = vadd.f32 %v9019, %v8944
      %v9052 = vadd.f32 %v9020, %v8947
      %v9053 = vadd.f32 %v9021, %v8949
      %v9054 = vadd.f32 %v9022, %v8952
      %v9055 = vadd.f32 %v9023, %v8954
      %v9056 = vadd.f32 %v9024, %v8957
      %v9057 = vadd.f32 %v9025, %v8959
      %v9058 = vadd.f32 %v9026, %v8962
      %v9059 = vadd.f32 %v9027, %v8964
      %v9060 = vadd.f32 %v9028, %v8967
      %v9061 = vadd.f32 %v9029, %v8969
      %v9062 = vadd.f32 %v9030, %v8972
      %v9063 = vadd.f32 %v9031, %v8974
      %v9064 = vadd.f32 %v9032, %v8977
      %v9065 = vadd.f32 %v9033, %v8979
      %v9066 = vadd.f32 %v9034, %v8982
      %v9067 = vadd.f32 %v9035, %v8984
      %v9068 = vadd.f32 %v9036, %v8987
      %v9069 = vadd.f32 %v9037, %v8989
      %v9070 = vadd.f32 %v9038, %v8992
      %v9071 = vadd.f32 %v9039, %v8994
      %v9072 = vadd.f32 %v9040, %v8997
      %v9073 = vadd.f32 %v9041, %v8999
      %v9074 = vadd.f32 %v9042, %v9002
      %v9075 = vadd.f32 %v9043, %v9004
      %v9076 = vadd.f32 %v9044, %v9007
      %v9077 = vadd.f32 %v9045, %v9009
      %v9078 = vadd.f32 %v9046, %v9012
      %v9079 = vadd.f32 %v9047, %v9014
      %9080 = vst [vmem:[#allocation4] sm:$0xff] %v9048
      %9081 = vst [vmem:[#allocation4 + $0x8] sm:$0xff] %v9049
      %9082 = vst [vmem:[#allocation4 + $0x10] sm:$0xff] %v9050
      %9083 = vst [vmem:[#allocation4 + $0x18] sm:$0xff] %v9051
      %9084 = vst [vmem:[#allocation4 + $0x20] sm:$0xff] %v9052
      %9085 = vst [vmem:[#allocation4 + $0x28] sm:$0xff] %v9053
      %9086 = vst [vmem:[#allocation4 + $0x30] sm:$0xff] %v9054
      %9087 = vst [vmem:[#allocation4 + $0x38] sm:$0xff] %v9055
      %9088 = vst [vmem:[#allocation4 + $0x40] sm:$0xff] %v9056
      %9089 = vst [vmem:[#allocation4 + $0x48] sm:$0xff] %v9057
      %9090 = vst [vmem:[#allocation4 + $0x50] sm:$0xff] %v9058
      %9091 = vst [vmem:[#allocation4 + $0x58] sm:$0xff] %v9059
      %9092 = vst [vmem:[#allocation4 + $0x60] sm:$0xff] %v9060
      %9093 = vst [vmem:[#allocation4 + $0x68] sm:$0xff] %v9061
      %9094 = vst [vmem:[#allocation4 + $0x70] sm:$0xff] %v9062
      %9095 = vst [vmem:[#allocation4 + $0x78] sm:$0xff] %v9063
      %9096 = vst [vmem:[#allocation4 + $0x80] sm:$0xff] %v9064
      %9097 = vst [vmem:[#allocation4 + $0x88] sm:$0xff] %v9065
      %9098 = vst [vmem:[#allocation4 + $0x90] sm:$0xff] %v9066
      %9099 = vst [vmem:[#allocation4 + $0x98] sm:$0xff] %v9067
      %9100 = vst [vmem:[#allocation4 + $0xa0] sm:$0xff] %v9068
      %9101 = vst [vmem:[#allocation4 + $0xa8] sm:$0xff] %v9069
      %9102 = vst [vmem:[#allocation4 + $0xb0] sm:$0xff] %v9070
      %9103 = vst [vmem:[#allocation4 + $0xb8] sm:$0xff] %v9071
      %9104 = vst [vmem:[#allocation4 + $0xc0] sm:$0xff] %v9072
      %9105 = vst [vmem:[#allocation4 + $0xc8] sm:$0xff] %v9073
      %9106 = vst [vmem:[#allocation4 + $0xd0] sm:$0xff] %v9074
      %9107 = vst [vmem:[#allocation4 + $0xd8] sm:$0xff] %v9075
      %9108 = vst [vmem:[#allocation4 + $0xe0] sm:$0xff] %v9076
      %9109 = vst [vmem:[#allocation4 + $0xe8] sm:$0xff] %v9077
      %9110 = vst [vmem:[#allocation4 + $0xf0] sm:$0xff] %v9078
      %9111 = vst [vmem:[#allocation4 + $0xf8] sm:$0xff] %v9079
      %v9112 = vld [vmem:[%s6294] sm:$0xe]
      %v9113 = vld [vmem:[%s6294 + $0x4] sm:$0xf]
      %v9114 = vld [vmem:[%s6294 + $0x8] sm:$0x1]
      %v9115 = vld [vmem:[%s6294 + $0xc] sm:$0xe]
      %v9116 = vld [vmem:[%s6294 + $0x10] sm:$0xf]
      %v9117 = vld [vmem:[%s6294 + $0x14] sm:$0x1]
      %v9118 = vld [vmem:[%s6294 + $0x18] sm:$0xe]
      %v9119 = vld [vmem:[%s6294 + $0x1c] sm:$0xf]
      %v9120 = vld [vmem:[%s6294 + $0x20] sm:$0x1]
      %v9121 = vld [vmem:[%s6294 + $0x24] sm:$0xe]
      %v9122 = vld [vmem:[%s6294 + $0x28] sm:$0xf]
      %v9123 = vld [vmem:[%s6294 + $0x2c] sm:$0x1]
      %v9124 = vld [vmem:[%s6294 + $0x30] sm:$0xe]
      %v9125 = vld [vmem:[%s6294 + $0x34] sm:$0xf]
      %v9126 = vld [vmem:[%s6294 + $0x38] sm:$0x1]
      %v9127 = vld [vmem:[%s6294 + $0x3c] sm:$0xe]
      %v9128 = vld [vmem:[%s6294 + $0x40] sm:$0xf]
      %v9129 = vld [vmem:[%s6294 + $0x44] sm:$0x1]
      %v9130 = vld [vmem:[%s6294 + $0x48] sm:$0xe]
      %v9131 = vld [vmem:[%s6294 + $0x4c] sm:$0xf]
      %v9132 = vld [vmem:[%s6294 + $0x50] sm:$0x1]
      %v9133 = vld [vmem:[%s6294 + $0x54] sm:$0xe]
      %v9134 = vld [vmem:[%s6294 + $0x58] sm:$0xf]
      %v9135 = vld [vmem:[%s6294 + $0x5c] sm:$0x1]
      %v9136 = vld [vmem:[%s6294 + $0x60] sm:$0xe]
      %v9137 = vld [vmem:[%s6294 + $0x64] sm:$0xf]
      %v9138 = vld [vmem:[%s6294 + $0x68] sm:$0x1]
      %v9139 = vld [vmem:[%s6294 + $0x6c] sm:$0xe]
      %v9140 = vld [vmem:[%s6294 + $0x70] sm:$0xf]
      %v9141 = vld [vmem:[%s6294 + $0x74] sm:$0x1]
      %v9142 = vld [vmem:[%s6294 + $0x78] sm:$0xe]
      %v9143 = vld [vmem:[%s6294 + $0x7c] sm:$0xf]
      %v9144 = vld [vmem:[%s6294 + $0x80] sm:$0x1]
      %v9145 = vld [vmem:[%s6294 + $0x84] sm:$0xe]
      %v9146 = vld [vmem:[%s6294 + $0x88] sm:$0xf]
      %v9147 = vld [vmem:[%s6294 + $0x8c] sm:$0x1]
      %v9148 = vld [vmem:[%s6294 + $0x90] sm:$0xe]
      %v9149 = vld [vmem:[%s6294 + $0x94] sm:$0xf]
      %v9150 = vld [vmem:[%s6294 + $0x98] sm:$0x1]
      %v9151 = vld [vmem:[%s6294 + $0x9c] sm:$0xe]
      %v9152 = vld [vmem:[%s6294 + $0xa0] sm:$0xf]
      %v9153 = vld [vmem:[%s6294 + $0xa4] sm:$0x1]
      %v9154 = vld [vmem:[%s6294 + $0xa8] sm:$0xe]
      %v9155 = vld [vmem:[%s6294 + $0xac] sm:$0xf]
      %v9156 = vld [vmem:[%s6294 + $0xb0] sm:$0x1]
      %v9157 = vld [vmem:[%s6294 + $0xb4] sm:$0xe]
      %v9158 = vld [vmem:[%s6294 + $0xb8] sm:$0xf]
      %v9159 = vld [vmem:[%s6294 + $0xbc] sm:$0x1]
      %v9208 = vrot.slane %v9112, 5
      %v9209 = vrot.slane %v9208, 4
      %v9210 = vrot.slane %v9113, 5
      %v9211 = vsel %vm2122, %v9209, %v9210
      %v9212 = vrot.slane %v9210, 4
      %v9213 = vrot.slane %v9114, 5
      %v9214 = vsel %vm2122, %v9212, %v9213
      %v9215 = vrot.slane %v9115, 5
      %v9216 = vrot.slane %v9215, 4
      %v9217 = vrot.slane %v9116, 5
      %v9218 = vsel %vm2122, %v9216, %v9217
      %v9219 = vrot.slane %v9217, 4
      %v9220 = vrot.slane %v9117, 5
      %v9221 = vsel %vm2122, %v9219, %v9220
      %v9222 = vrot.slane %v9118, 5
      %v9223 = vrot.slane %v9222, 4
      %v9224 = vrot.slane %v9119, 5
      %v9225 = vsel %vm2122, %v9223, %v9224
      %v9226 = vrot.slane %v9224, 4
      %v9227 = vrot.slane %v9120, 5
      %v9228 = vsel %vm2122, %v9226, %v9227
      %v9229 = vrot.slane %v9121, 5
      %v9230 = vrot.slane %v9229, 4
      %v9231 = vrot.slane %v9122, 5
      %v9232 = vsel %vm2122, %v9230, %v9231
      %v9233 = vrot.slane %v9231, 4
      %v9234 = vrot.slane %v9123, 5
      %v9235 = vsel %vm2122, %v9233, %v9234
      %v9236 = vrot.slane %v9124, 5
      %v9237 = vrot.slane %v9236, 4
      %v9238 = vrot.slane %v9125, 5
      %v9239 = vsel %vm2122, %v9237, %v9238
      %v9240 = vrot.slane %v9238, 4
      %v9241 = vrot.slane %v9126, 5
      %v9242 = vsel %vm2122, %v9240, %v9241
      %v9243 = vrot.slane %v9127, 5
      %v9244 = vrot.slane %v9243, 4
      %v9245 = vrot.slane %v9128, 5
      %v9246 = vsel %vm2122, %v9244, %v9245
      %v9247 = vrot.slane %v9245, 4
      %v9248 = vrot.slane %v9129, 5
      %v9249 = vsel %vm2122, %v9247, %v9248
      %v9250 = vrot.slane %v9130, 5
      %v9251 = vrot.slane %v9250, 4
      %v9252 = vrot.slane %v9131, 5
      %v9253 = vsel %vm2122, %v9251, %v9252
      %v9254 = vrot.slane %v9252, 4
      %v9255 = vrot.slane %v9132, 5
      %v9256 = vsel %vm2122, %v9254, %v9255
      %v9257 = vrot.slane %v9133, 5
      %v9258 = vrot.slane %v9257, 4
      %v9259 = vrot.slane %v9134, 5
      %v9260 = vsel %vm2122, %v9258, %v9259
      %v9261 = vrot.slane %v9259, 4
      %v9262 = vrot.slane %v9135, 5
      %v9263 = vsel %vm2122, %v9261, %v9262
      %v9264 = vrot.slane %v9136, 5
      %v9265 = vrot.slane %v9264, 4
      %v9266 = vrot.slane %v9137, 5
      %v9267 = vsel %vm2122, %v9265, %v9266
      %v9268 = vrot.slane %v9266, 4
      %v9269 = vrot.slane %v9138, 5
      %v9270 = vsel %vm2122, %v9268, %v9269
      %v9271 = vrot.slane %v9139, 5
      %v9272 = vrot.slane %v9271, 4
      %v9273 = vrot.slane %v9140, 5
      %v9274 = vsel %vm2122, %v9272, %v9273
      %v9275 = vrot.slane %v9273, 4
      %v9276 = vrot.slane %v9141, 5
      %v9277 = vsel %vm2122, %v9275, %v9276
      %v9278 = vrot.slane %v9142, 5
      %v9279 = vrot.slane %v9278, 4
      %v9280 = vrot.slane %v9143, 5
      %v9281 = vsel %vm2122, %v9279, %v9280
      %v9282 = vrot.slane %v9280, 4
      %v9283 = vrot.slane %v9144, 5
      %v9284 = vsel %vm2122, %v9282, %v9283
      %v9285 = vrot.slane %v9145, 5
      %v9286 = vrot.slane %v9285, 4
      %v9287 = vrot.slane %v9146, 5
      %v9288 = vsel %vm2122, %v9286, %v9287
      %v9289 = vrot.slane %v9287, 4
      %v9290 = vrot.slane %v9147, 5
      %v9291 = vsel %vm2122, %v9289, %v9290
      %v9292 = vrot.slane %v9148, 5
      %v9293 = vrot.slane %v9292, 4
      %v9294 = vrot.slane %v9149, 5
      %v9295 = vsel %vm2122, %v9293, %v9294
      %v9296 = vrot.slane %v9294, 4
      %v9297 = vrot.slane %v9150, 5
      %v9298 = vsel %vm2122, %v9296, %v9297
      %v9299 = vrot.slane %v9151, 5
      %v9300 = vrot.slane %v9299, 4
      %v9301 = vrot.slane %v9152, 5
      %v9302 = vsel %vm2122, %v9300, %v9301
      %v9303 = vrot.slane %v9301, 4
      %v9304 = vrot.slane %v9153, 5
      %v9305 = vsel %vm2122, %v9303, %v9304
      %v9306 = vrot.slane %v9154, 5
      %v9307 = vrot.slane %v9306, 4
      %v9308 = vrot.slane %v9155, 5
      %v9309 = vsel %vm2122, %v9307, %v9308
      %v9310 = vrot.slane %v9308, 4
      %v9311 = vrot.slane %v9156, 5
      %v9312 = vsel %vm2122, %v9310, %v9311
      %v9313 = vrot.slane %v9157, 5
      %v9314 = vrot.slane %v9313, 4
      %v9315 = vrot.slane %v9158, 5
      %v9316 = vsel %vm2122, %v9314, %v9315
      %v9317 = vrot.slane %v9315, 4
      %v9318 = vrot.slane %v9159, 5
      %v9319 = vsel %vm2122, %v9317, %v9318
      %s9320 = scalar_lea.vmem %s3, 320
      %v9321 = vld [vmem:[%s9320] sm:$0xf]
      %v9322 = vld [vmem:[%s9320 + $0x4] sm:$0xf]
      %v9323 = vld [vmem:[%s9320 + $0x8] sm:$0xf]
      %v9324 = vld [vmem:[%s9320 + $0xc] sm:$0xf]
      %v9325 = vld [vmem:[%s9320 + $0x10] sm:$0xf]
      %v9326 = vld [vmem:[%s9320 + $0x14] sm:$0xf]
      %v9327 = vld [vmem:[%s9320 + $0x18] sm:$0xf]
      %v9328 = vld [vmem:[%s9320 + $0x1c] sm:$0xf]
      %v9329 = vld [vmem:[%s9320 + $0x20] sm:$0xf]
      %v9330 = vld [vmem:[%s9320 + $0x24] sm:$0xf]
      %v9331 = vld [vmem:[%s9320 + $0x28] sm:$0xf]
      %v9332 = vld [vmem:[%s9320 + $0x2c] sm:$0xf]
      %v9333 = vld [vmem:[%s9320 + $0x30] sm:$0xf]
      %v9334 = vld [vmem:[%s9320 + $0x34] sm:$0xf]
      %v9335 = vld [vmem:[%s9320 + $0x38] sm:$0xf]
      %v9336 = vld [vmem:[%s9320 + $0x3c] sm:$0xf]
      %v9337 = vunpack.c.l.b16 %v9211
      %v9338 = vunpack.c.l.b16 %v9214
      %v9339 = vunpack.c.l.b16 %v9218
      %v9340 = vunpack.c.l.b16 %v9221
      %v9341 = vunpack.c.l.b16 %v9225
      %v9342 = vunpack.c.l.b16 %v9228
      %v9343 = vunpack.c.l.b16 %v9232
      %v9344 = vunpack.c.l.b16 %v9235
      %v9345 = vunpack.c.l.b16 %v9239
      %v9346 = vunpack.c.l.b16 %v9242
      %v9347 = vunpack.c.l.b16 %v9246
      %v9348 = vunpack.c.l.b16 %v9249
      %v9349 = vunpack.c.l.b16 %v9253
      %v9350 = vunpack.c.l.b16 %v9256
      %v9351 = vunpack.c.l.b16 %v9260
      %v9352 = vunpack.c.l.b16 %v9263
      %v9353 = vunpack.c.l.b16 %v9267
      %v9354 = vunpack.c.l.b16 %v9270
      %v9355 = vunpack.c.l.b16 %v9274
      %v9356 = vunpack.c.l.b16 %v9277
      %v9357 = vunpack.c.l.b16 %v9281
      %v9358 = vunpack.c.l.b16 %v9284
      %v9359 = vunpack.c.l.b16 %v9288
      %v9360 = vunpack.c.l.b16 %v9291
      %v9361 = vunpack.c.l.b16 %v9295
      %v9362 = vunpack.c.l.b16 %v9298
      %v9363 = vunpack.c.l.b16 %v9302
      %v9364 = vunpack.c.l.b16 %v9305
      %v9365 = vunpack.c.l.b16 %v9309
      %v9366 = vunpack.c.l.b16 %v9312
      %v9367 = vunpack.c.l.b16 %v9316
      %v9368 = vunpack.c.l.b16 %v9319
      %v9369 = vpack.c.b16 %v9338, %v9337
      %v9370 = vpack.c.b16 %v9340, %v9339
      %v9371 = vpack.c.b16 %v9342, %v9341
      %v9372 = vpack.c.b16 %v9344, %v9343
      %v9373 = vpack.c.b16 %v9346, %v9345
      %v9374 = vpack.c.b16 %v9348, %v9347
      %v9375 = vpack.c.b16 %v9350, %v9349
      %v9376 = vpack.c.b16 %v9352, %v9351
      %v9377 = vpack.c.b16 %v9354, %v9353
      %v9378 = vpack.c.b16 %v9356, %v9355
      %v9379 = vpack.c.b16 %v9358, %v9357
      %v9380 = vpack.c.b16 %v9360, %v9359
      %v9381 = vpack.c.b16 %v9362, %v9361
      %v9382 = vpack.c.b16 %v9364, %v9363
      %v9383 = vpack.c.b16 %v9366, %v9365
      %v9384 = vpack.c.b16 %v9368, %v9367
      %v9417 = vunpack.c.l.b16 %v9321
      %v9418 = vunpack.c.l.b16 %v9322
      %v9419 = vunpack.c.l.b16 %v9323
      %v9420 = vunpack.c.l.b16 %v9324
      %v9421 = vunpack.c.l.b16 %v9325
      %v9422 = vunpack.c.l.b16 %v9326
      %v9423 = vunpack.c.l.b16 %v9327
      %v9424 = vunpack.c.l.b16 %v9328
      %v9425 = vunpack.c.l.b16 %v9329
      %v9426 = vunpack.c.l.b16 %v9330
      %v9427 = vunpack.c.l.b16 %v9331
      %v9428 = vunpack.c.l.b16 %v9332
      %v9429 = vunpack.c.l.b16 %v9333
      %v9430 = vunpack.c.l.b16 %v9334
      %v9431 = vunpack.c.l.b16 %v9335
      %v9432 = vunpack.c.l.b16 %v9336
      %v9433 = vpack.c.b16 %v9418, %v9417
      %v9434 = vpack.c.b16 %v9420, %v9419
      %v9435 = vpack.c.b16 %v9422, %v9421
      %v9436 = vpack.c.b16 %v9424, %v9423
      %v9437 = vpack.c.b16 %v9426, %v9425
      %v9438 = vpack.c.b16 %v9428, %v9427
      %v9439 = vpack.c.b16 %v9430, %v9429
      %v9440 = vpack.c.b16 %v9432, %v9431
      %9449 = vmatpush.bf16.msra.mxu0 %v9440
      %9450 = vmatpush.bf16.msra.mxu0 %v9439
      %9451 = vmatpush.bf16.msra.mxu0 %v9438
      %9452 = vmatpush.bf16.msra.mxu0 %v9437
      %9453 = vmatpush.bf16.msra.mxu0 %v9436
      %9454 = vmatpush.bf16.msra.mxu0 %v9435
      %9455 = vmatpush.bf16.msra.mxu0 %v9434
      %9456 = vmatpush.bf16.msra.mxu0 %v9433
      %9457 = vmatmul.bf16.gmra.mxu0 %v9369
      %v9458 = vpop.f32.mrf.mxu0
      %v9459 = vadd.f32 0.0, %v9458
      %v9460 = vpop.f32.mrf.mxu0
      %v9461 = vadd.f32 0.0, %v9460
      %9462 = vmatmul.bf16.gmra.mxu0 %v9370
      %v9463 = vpop.f32.mrf.mxu0
      %v9464 = vadd.f32 0.0, %v9463
      %v9465 = vpop.f32.mrf.mxu0
      %v9466 = vadd.f32 0.0, %v9465
      %9467 = vmatmul.bf16.gmra.mxu0 %v9371
      %v9468 = vpop.f32.mrf.mxu0
      %v9469 = vadd.f32 0.0, %v9468
      %v9470 = vpop.f32.mrf.mxu0
      %v9471 = vadd.f32 0.0, %v9470
      %9472 = vmatmul.bf16.gmra.mxu0 %v9372
      %v9473 = vpop.f32.mrf.mxu0
      %v9474 = vadd.f32 0.0, %v9473
      %v9475 = vpop.f32.mrf.mxu0
      %v9476 = vadd.f32 0.0, %v9475
      %9477 = vmatmul.bf16.gmra.mxu0 %v9373
      %v9478 = vpop.f32.mrf.mxu0
      %v9479 = vadd.f32 0.0, %v9478
      %v9480 = vpop.f32.mrf.mxu0
      %v9481 = vadd.f32 0.0, %v9480
      %9482 = vmatmul.bf16.gmra.mxu0 %v9374
      %v9483 = vpop.f32.mrf.mxu0
      %v9484 = vadd.f32 0.0, %v9483
      %v9485 = vpop.f32.mrf.mxu0
      %v9486 = vadd.f32 0.0, %v9485
      %9487 = vmatmul.bf16.gmra.mxu0 %v9375
      %v9488 = vpop.f32.mrf.mxu0
      %v9489 = vadd.f32 0.0, %v9488
      %v9490 = vpop.f32.mrf.mxu0
      %v9491 = vadd.f32 0.0, %v9490
      %9492 = vmatmul.bf16.gmra.mxu0 %v9376
      %v9493 = vpop.f32.mrf.mxu0
      %v9494 = vadd.f32 0.0, %v9493
      %v9495 = vpop.f32.mrf.mxu0
      %v9496 = vadd.f32 0.0, %v9495
      %9497 = vmatmul.bf16.gmra.mxu0 %v9377
      %v9498 = vpop.f32.mrf.mxu0
      %v9499 = vadd.f32 0.0, %v9498
      %v9500 = vpop.f32.mrf.mxu0
      %v9501 = vadd.f32 0.0, %v9500
      %9502 = vmatmul.bf16.gmra.mxu0 %v9378
      %v9503 = vpop.f32.mrf.mxu0
      %v9504 = vadd.f32 0.0, %v9503
      %v9505 = vpop.f32.mrf.mxu0
      %v9506 = vadd.f32 0.0, %v9505
      %9507 = vmatmul.bf16.gmra.mxu0 %v9379
      %v9508 = vpop.f32.mrf.mxu0
      %v9509 = vadd.f32 0.0, %v9508
      %v9510 = vpop.f32.mrf.mxu0
      %v9511 = vadd.f32 0.0, %v9510
      %9512 = vmatmul.bf16.gmra.mxu0 %v9380
      %v9513 = vpop.f32.mrf.mxu0
      %v9514 = vadd.f32 0.0, %v9513
      %v9515 = vpop.f32.mrf.mxu0
      %v9516 = vadd.f32 0.0, %v9515
      %9517 = vmatmul.bf16.gmra.mxu0 %v9381
      %v9518 = vpop.f32.mrf.mxu0
      %v9519 = vadd.f32 0.0, %v9518
      %v9520 = vpop.f32.mrf.mxu0
      %v9521 = vadd.f32 0.0, %v9520
      %9522 = vmatmul.bf16.gmra.mxu0 %v9382
      %v9523 = vpop.f32.mrf.mxu0
      %v9524 = vadd.f32 0.0, %v9523
      %v9525 = vpop.f32.mrf.mxu0
      %v9526 = vadd.f32 0.0, %v9525
      %9527 = vmatmul.bf16.gmra.mxu0 %v9383
      %v9528 = vpop.f32.mrf.mxu0
      %v9529 = vadd.f32 0.0, %v9528
      %v9530 = vpop.f32.mrf.mxu0
      %v9531 = vadd.f32 0.0, %v9530
      %9532 = vmatmul.bf16.gmra.mxu0 %v9384
      %v9533 = vpop.f32.mrf.mxu0
      %v9534 = vadd.f32 0.0, %v9533
      %v9535 = vpop.f32.mrf.mxu0
      %v9536 = vadd.f32 0.0, %v9535
      %9537 = vdwg.mxu0
      %v9538 = vld [vmem:[#allocation4] sm:$0xff]
      %v9539 = vld [vmem:[#allocation4 + $0x8] sm:$0xff]
      %v9540 = vld [vmem:[#allocation4 + $0x10] sm:$0xff]
      %v9541 = vld [vmem:[#allocation4 + $0x18] sm:$0xff]
      %v9542 = vld [vmem:[#allocation4 + $0x20] sm:$0xff]
      %v9543 = vld [vmem:[#allocation4 + $0x28] sm:$0xff]
      %v9544 = vld [vmem:[#allocation4 + $0x30] sm:$0xff]
      %v9545 = vld [vmem:[#allocation4 + $0x38] sm:$0xff]
      %v9546 = vld [vmem:[#allocation4 + $0x40] sm:$0xff]
      %v9547 = vld [vmem:[#allocation4 + $0x48] sm:$0xff]
      %v9548 = vld [vmem:[#allocation4 + $0x50] sm:$0xff]
      %v9549 = vld [vmem:[#allocation4 + $0x58] sm:$0xff]
      %v9550 = vld [vmem:[#allocation4 + $0x60] sm:$0xff]
      %v9551 = vld [vmem:[#allocation4 + $0x68] sm:$0xff]
      %v9552 = vld [vmem:[#allocation4 + $0x70] sm:$0xff]
      %v9553 = vld [vmem:[#allocation4 + $0x78] sm:$0xff]
      %v9554 = vld [vmem:[#allocation4 + $0x80] sm:$0xff]
      %v9555 = vld [vmem:[#allocation4 + $0x88] sm:$0xff]
      %v9556 = vld [vmem:[#allocation4 + $0x90] sm:$0xff]
      %v9557 = vld [vmem:[#allocation4 + $0x98] sm:$0xff]
      %v9558 = vld [vmem:[#allocation4 + $0xa0] sm:$0xff]
      %v9559 = vld [vmem:[#allocation4 + $0xa8] sm:$0xff]
      %v9560 = vld [vmem:[#allocation4 + $0xb0] sm:$0xff]
      %v9561 = vld [vmem:[#allocation4 + $0xb8] sm:$0xff]
      %v9562 = vld [vmem:[#allocation4 + $0xc0] sm:$0xff]
      %v9563 = vld [vmem:[#allocation4 + $0xc8] sm:$0xff]
      %v9564 = vld [vmem:[#allocation4 + $0xd0] sm:$0xff]
      %v9565 = vld [vmem:[#allocation4 + $0xd8] sm:$0xff]
      %v9566 = vld [vmem:[#allocation4 + $0xe0] sm:$0xff]
      %v9567 = vld [vmem:[#allocation4 + $0xe8] sm:$0xff]
      %v9568 = vld [vmem:[#allocation4 + $0xf0] sm:$0xff]
      %v9569 = vld [vmem:[#allocation4 + $0xf8] sm:$0xff]
      %v9570 = vadd.f32 %v9538, %v9459
      %v9571 = vadd.f32 %v9539, %v9461
      %v9572 = vadd.f32 %v9540, %v9464
      %v9573 = vadd.f32 %v9541, %v9466
      %v9574 = vadd.f32 %v9542, %v9469
      %v9575 = vadd.f32 %v9543, %v9471
      %v9576 = vadd.f32 %v9544, %v9474
      %v9577 = vadd.f32 %v9545, %v9476
      %v9578 = vadd.f32 %v9546, %v9479
      %v9579 = vadd.f32 %v9547, %v9481
      %v9580 = vadd.f32 %v9548, %v9484
      %v9581 = vadd.f32 %v9549, %v9486
      %v9582 = vadd.f32 %v9550, %v9489
      %v9583 = vadd.f32 %v9551, %v9491
      %v9584 = vadd.f32 %v9552, %v9494
      %v9585 = vadd.f32 %v9553, %v9496
      %v9586 = vadd.f32 %v9554, %v9499
      %v9587 = vadd.f32 %v9555, %v9501
      %v9588 = vadd.f32 %v9556, %v9504
      %v9589 = vadd.f32 %v9557, %v9506
      %v9590 = vadd.f32 %v9558, %v9509
      %v9591 = vadd.f32 %v9559, %v9511
      %v9592 = vadd.f32 %v9560, %v9514
      %v9593 = vadd.f32 %v9561, %v9516
      %v9594 = vadd.f32 %v9562, %v9519
      %v9595 = vadd.f32 %v9563, %v9521
      %v9596 = vadd.f32 %v9564, %v9524
      %v9597 = vadd.f32 %v9565, %v9526
      %v9598 = vadd.f32 %v9566, %v9529
      %v9599 = vadd.f32 %v9567, %v9531
      %v9600 = vadd.f32 %v9568, %v9534
      %v9601 = vadd.f32 %v9569, %v9536
      %9602 = vst [vmem:[#allocation4] sm:$0xff] %v9570
      %9603 = vst [vmem:[#allocation4 + $0x8] sm:$0xff] %v9571
      %9604 = vst [vmem:[#allocation4 + $0x10] sm:$0xff] %v9572
      %9605 = vst [vmem:[#allocation4 + $0x18] sm:$0xff] %v9573
      %9606 = vst [vmem:[#allocation4 + $0x20] sm:$0xff] %v9574
      %9607 = vst [vmem:[#allocation4 + $0x28] sm:$0xff] %v9575
      %9608 = vst [vmem:[#allocation4 + $0x30] sm:$0xff] %v9576
      %9609 = vst [vmem:[#allocation4 + $0x38] sm:$0xff] %v9577
      %9610 = vst [vmem:[#allocation4 + $0x40] sm:$0xff] %v9578
      %9611 = vst [vmem:[#allocation4 + $0x48] sm:$0xff] %v9579
      %9612 = vst [vmem:[#allocation4 + $0x50] sm:$0xff] %v9580
      %9613 = vst [vmem:[#allocation4 + $0x58] sm:$0xff] %v9581
      %9614 = vst [vmem:[#allocation4 + $0x60] sm:$0xff] %v9582
      %9615 = vst [vmem:[#allocation4 + $0x68] sm:$0xff] %v9583
      %9616 = vst [vmem:[#allocation4 + $0x70] sm:$0xff] %v9584
      %9617 = vst [vmem:[#allocation4 + $0x78] sm:$0xff] %v9585
      %9618 = vst [vmem:[#allocation4 + $0x80] sm:$0xff] %v9586
      %9619 = vst [vmem:[#allocation4 + $0x88] sm:$0xff] %v9587
      %9620 = vst [vmem:[#allocation4 + $0x90] sm:$0xff] %v9588
      %9621 = vst [vmem:[#allocation4 + $0x98] sm:$0xff] %v9589
      %9622 = vst [vmem:[#allocation4 + $0xa0] sm:$0xff] %v9590
      %9623 = vst [vmem:[#allocation4 + $0xa8] sm:$0xff] %v9591
      %9624 = vst [vmem:[#allocation4 + $0xb0] sm:$0xff] %v9592
      %9625 = vst [vmem:[#allocation4 + $0xb8] sm:$0xff] %v9593
      %9626 = vst [vmem:[#allocation4 + $0xc0] sm:$0xff] %v9594
      %9627 = vst [vmem:[#allocation4 + $0xc8] sm:$0xff] %v9595
      %9628 = vst [vmem:[#allocation4 + $0xd0] sm:$0xff] %v9596
      %9629 = vst [vmem:[#allocation4 + $0xd8] sm:$0xff] %v9597
      %9630 = vst [vmem:[#allocation4 + $0xe0] sm:$0xff] %v9598
      %9631 = vst [vmem:[#allocation4 + $0xe8] sm:$0xff] %v9599
      %9632 = vst [vmem:[#allocation4 + $0xf0] sm:$0xff] %v9600
      %9633 = vst [vmem:[#allocation4 + $0xf8] sm:$0xff] %v9601
      %s9634 = scalar_lea.vmem [#allocation3], 24
      %v9635 = vld [vmem:[%s9634] sm:$0xf]
      %v9636 = vld [vmem:[%s9634 + $0x4] sm:$0xf]
      %v9637 = vld [vmem:[%s9634 + $0xc] sm:$0xf]
      %v9638 = vld [vmem:[%s9634 + $0x10] sm:$0xf]
      %v9639 = vld [vmem:[%s9634 + $0x18] sm:$0xf]
      %v9640 = vld [vmem:[%s9634 + $0x1c] sm:$0xf]
      %v9641 = vld [vmem:[%s9634 + $0x24] sm:$0xf]
      %v9642 = vld [vmem:[%s9634 + $0x28] sm:$0xf]
      %v9643 = vld [vmem:[%s9634 + $0x30] sm:$0xf]
      %v9644 = vld [vmem:[%s9634 + $0x34] sm:$0xf]
      %v9645 = vld [vmem:[%s9634 + $0x3c] sm:$0xf]
      %v9646 = vld [vmem:[%s9634 + $0x40] sm:$0xf]
      %v9647 = vld [vmem:[%s9634 + $0x48] sm:$0xf]
      %v9648 = vld [vmem:[%s9634 + $0x4c] sm:$0xf]
      %v9649 = vld [vmem:[%s9634 + $0x54] sm:$0xf]
      %v9650 = vld [vmem:[%s9634 + $0x58] sm:$0xf]
      %v9651 = vld [vmem:[%s9634 + $0x60] sm:$0xf]
      %v9652 = vld [vmem:[%s9634 + $0x64] sm:$0xf]
      %v9653 = vld [vmem:[%s9634 + $0x6c] sm:$0xf]
      %v9654 = vld [vmem:[%s9634 + $0x70] sm:$0xf]
      %v9655 = vld [vmem:[%s9634 + $0x78] sm:$0xf]
      %v9656 = vld [vmem:[%s9634 + $0x7c] sm:$0xf]
      %v9657 = vld [vmem:[%s9634 + $0x84] sm:$0xf]
      %v9658 = vld [vmem:[%s9634 + $0x88] sm:$0xf]
      %v9659 = vld [vmem:[%s9634 + $0x90] sm:$0xf]
      %v9660 = vld [vmem:[%s9634 + $0x94] sm:$0xf]
      %v9661 = vld [vmem:[%s9634 + $0x9c] sm:$0xf]
      %v9662 = vld [vmem:[%s9634 + $0xa0] sm:$0xf]
      %v9663 = vld [vmem:[%s9634 + $0xa8] sm:$0xf]
      %v9664 = vld [vmem:[%s9634 + $0xac] sm:$0xf]
      %v9665 = vld [vmem:[%s9634 + $0xb4] sm:$0xf]
      %v9666 = vld [vmem:[%s9634 + $0xb8] sm:$0xf]
      %s9667 = scalar_lea.vmem %s3, 384
      %v9668 = vld [vmem:[%s9667] sm:$0xf]
      %v9669 = vld [vmem:[%s9667 + $0x4] sm:$0xf]
      %v9670 = vld [vmem:[%s9667 + $0x8] sm:$0xf]
      %v9671 = vld [vmem:[%s9667 + $0xc] sm:$0xf]
      %v9672 = vld [vmem:[%s9667 + $0x10] sm:$0xf]
      %v9673 = vld [vmem:[%s9667 + $0x14] sm:$0xf]
      %v9674 = vld [vmem:[%s9667 + $0x18] sm:$0xf]
      %v9675 = vld [vmem:[%s9667 + $0x1c] sm:$0xf]
      %v9676 = vld [vmem:[%s9667 + $0x20] sm:$0xf]
      %v9677 = vld [vmem:[%s9667 + $0x24] sm:$0xf]
      %v9678 = vld [vmem:[%s9667 + $0x28] sm:$0xf]
      %v9679 = vld [vmem:[%s9667 + $0x2c] sm:$0xf]
      %v9680 = vld [vmem:[%s9667 + $0x30] sm:$0xf]
      %v9681 = vld [vmem:[%s9667 + $0x34] sm:$0xf]
      %v9682 = vld [vmem:[%s9667 + $0x38] sm:$0xf]
      %v9683 = vld [vmem:[%s9667 + $0x3c] sm:$0xf]
      %v9716 = vunpack.c.l.b16 %v9635
      %v9717 = vunpack.c.l.b16 %v9636
      %v9718 = vunpack.c.l.b16 %v9637
      %v9719 = vunpack.c.l.b16 %v9638
      %v9720 = vunpack.c.l.b16 %v9639
      %v9721 = vunpack.c.l.b16 %v9640
      %v9722 = vunpack.c.l.b16 %v9641
      %v9723 = vunpack.c.l.b16 %v9642
      %v9724 = vunpack.c.l.b16 %v9643
      %v9725 = vunpack.c.l.b16 %v9644
      %v9726 = vunpack.c.l.b16 %v9645
      %v9727 = vunpack.c.l.b16 %v9646
      %v9728 = vunpack.c.l.b16 %v9647
      %v9729 = vunpack.c.l.b16 %v9648
      %v9730 = vunpack.c.l.b16 %v9649
      %v9731 = vunpack.c.l.b16 %v9650
      %v9732 = vunpack.c.l.b16 %v9651
      %v9733 = vunpack.c.l.b16 %v9652
      %v9734 = vunpack.c.l.b16 %v9653
      %v9735 = vunpack.c.l.b16 %v9654
      %v9736 = vunpack.c.l.b16 %v9655
      %v9737 = vunpack.c.l.b16 %v9656
      %v9738 = vunpack.c.l.b16 %v9657
      %v9739 = vunpack.c.l.b16 %v9658
      %v9740 = vunpack.c.l.b16 %v9659
      %v9741 = vunpack.c.l.b16 %v9660
      %v9742 = vunpack.c.l.b16 %v9661
      %v9743 = vunpack.c.l.b16 %v9662
      %v9744 = vunpack.c.l.b16 %v9663
      %v9745 = vunpack.c.l.b16 %v9664
      %v9746 = vunpack.c.l.b16 %v9665
      %v9747 = vunpack.c.l.b16 %v9666
      %v9748 = vpack.c.b16 %v9717, %v9716
      %v9749 = vpack.c.b16 %v9719, %v9718
      %v9750 = vpack.c.b16 %v9721, %v9720
      %v9751 = vpack.c.b16 %v9723, %v9722
      %v9752 = vpack.c.b16 %v9725, %v9724
      %v9753 = vpack.c.b16 %v9727, %v9726
      %v9754 = vpack.c.b16 %v9729, %v9728
      %v9755 = vpack.c.b16 %v9731, %v9730
      %v9756 = vpack.c.b16 %v9733, %v9732
      %v9757 = vpack.c.b16 %v9735, %v9734
      %v9758 = vpack.c.b16 %v9737, %v9736
      %v9759 = vpack.c.b16 %v9739, %v9738
      %v9760 = vpack.c.b16 %v9741, %v9740
      %v9761 = vpack.c.b16 %v9743, %v9742
      %v9762 = vpack.c.b16 %v9745, %v9744
      %v9763 = vpack.c.b16 %v9747, %v9746
      %v9796 = vunpack.c.l.b16 %v9668
      %v9797 = vunpack.c.l.b16 %v9669
      %v9798 = vunpack.c.l.b16 %v9670
      %v9799 = vunpack.c.l.b16 %v9671
      %v9800 = vunpack.c.l.b16 %v9672
      %v9801 = vunpack.c.l.b16 %v9673
      %v9802 = vunpack.c.l.b16 %v9674
      %v9803 = vunpack.c.l.b16 %v9675
      %v9804 = vunpack.c.l.b16 %v9676
      %v9805 = vunpack.c.l.b16 %v9677
      %v9806 = vunpack.c.l.b16 %v9678
      %v9807 = vunpack.c.l.b16 %v9679
      %v9808 = vunpack.c.l.b16 %v9680
      %v9809 = vunpack.c.l.b16 %v9681
      %v9810 = vunpack.c.l.b16 %v9682
      %v9811 = vunpack.c.l.b16 %v9683
      %v9812 = vpack.c.b16 %v9797, %v9796
      %v9813 = vpack.c.b16 %v9799, %v9798
      %v9814 = vpack.c.b16 %v9801, %v9800
      %v9815 = vpack.c.b16 %v9803, %v9802
      %v9816 = vpack.c.b16 %v9805, %v9804
      %v9817 = vpack.c.b16 %v9807, %v9806
      %v9818 = vpack.c.b16 %v9809, %v9808
      %v9819 = vpack.c.b16 %v9811, %v9810
      %9828 = vmatpush.bf16.msra.mxu0 %v9819
      %9829 = vmatpush.bf16.msra.mxu0 %v9818
      %9830 = vmatpush.bf16.msra.mxu0 %v9817
      %9831 = vmatpush.bf16.msra.mxu0 %v9816
      %9832 = vmatpush.bf16.msra.mxu0 %v9815
      %9833 = vmatpush.bf16.msra.mxu0 %v9814
      %9834 = vmatpush.bf16.msra.mxu0 %v9813
      %9835 = vmatpush.bf16.msra.mxu0 %v9812
      %9836 = vmatmul.bf16.gmra.mxu0 %v9748
      %v9837 = vpop.f32.mrf.mxu0
      %v9838 = vadd.f32 0.0, %v9837
      %v9839 = vpop.f32.mrf.mxu0
      %v9840 = vadd.f32 0.0, %v9839
      %9841 = vmatmul.bf16.gmra.mxu0 %v9749
      %v9842 = vpop.f32.mrf.mxu0
      %v9843 = vadd.f32 0.0, %v9842
      %v9844 = vpop.f32.mrf.mxu0
      %v9845 = vadd.f32 0.0, %v9844
      %9846 = vmatmul.bf16.gmra.mxu0 %v9750
      %v9847 = vpop.f32.mrf.mxu0
      %v9848 = vadd.f32 0.0, %v9847
      %v9849 = vpop.f32.mrf.mxu0
      %v9850 = vadd.f32 0.0, %v9849
      %9851 = vmatmul.bf16.gmra.mxu0 %v9751
      %v9852 = vpop.f32.mrf.mxu0
      %v9853 = vadd.f32 0.0, %v9852
      %v9854 = vpop.f32.mrf.mxu0
      %v9855 = vadd.f32 0.0, %v9854
      %9856 = vmatmul.bf16.gmra.mxu0 %v9752
      %v9857 = vpop.f32.mrf.mxu0
      %v9858 = vadd.f32 0.0, %v9857
      %v9859 = vpop.f32.mrf.mxu0
      %v9860 = vadd.f32 0.0, %v9859
      %9861 = vmatmul.bf16.gmra.mxu0 %v9753
      %v9862 = vpop.f32.mrf.mxu0
      %v9863 = vadd.f32 0.0, %v9862
      %v9864 = vpop.f32.mrf.mxu0
      %v9865 = vadd.f32 0.0, %v9864
      %9866 = vmatmul.bf16.gmra.mxu0 %v9754
      %v9867 = vpop.f32.mrf.mxu0
      %v9868 = vadd.f32 0.0, %v9867
      %v9869 = vpop.f32.mrf.mxu0
      %v9870 = vadd.f32 0.0, %v9869
      %9871 = vmatmul.bf16.gmra.mxu0 %v9755
      %v9872 = vpop.f32.mrf.mxu0
      %v9873 = vadd.f32 0.0, %v9872
      %v9874 = vpop.f32.mrf.mxu0
      %v9875 = vadd.f32 0.0, %v9874
      %9876 = vmatmul.bf16.gmra.mxu0 %v9756
      %v9877 = vpop.f32.mrf.mxu0
      %v9878 = vadd.f32 0.0, %v9877
      %v9879 = vpop.f32.mrf.mxu0
      %v9880 = vadd.f32 0.0, %v9879
      %9881 = vmatmul.bf16.gmra.mxu0 %v9757
      %v9882 = vpop.f32.mrf.mxu0
      %v9883 = vadd.f32 0.0, %v9882
      %v9884 = vpop.f32.mrf.mxu0
      %v9885 = vadd.f32 0.0, %v9884
      %9886 = vmatmul.bf16.gmra.mxu0 %v9758
      %v9887 = vpop.f32.mrf.mxu0
      %v9888 = vadd.f32 0.0, %v9887
      %v9889 = vpop.f32.mrf.mxu0
      %v9890 = vadd.f32 0.0, %v9889
      %9891 = vmatmul.bf16.gmra.mxu0 %v9759
      %v9892 = vpop.f32.mrf.mxu0
      %v9893 = vadd.f32 0.0, %v9892
      %v9894 = vpop.f32.mrf.mxu0
      %v9895 = vadd.f32 0.0, %v9894
      %9896 = vmatmul.bf16.gmra.mxu0 %v9760
      %v9897 = vpop.f32.mrf.mxu0
      %v9898 = vadd.f32 0.0, %v9897
      %v9899 = vpop.f32.mrf.mxu0
      %v9900 = vadd.f32 0.0, %v9899
      %9901 = vmatmul.bf16.gmra.mxu0 %v9761
      %v9902 = vpop.f32.mrf.mxu0
      %v9903 = vadd.f32 0.0, %v9902
      %v9904 = vpop.f32.mrf.mxu0
      %v9905 = vadd.f32 0.0, %v9904
      %9906 = vmatmul.bf16.gmra.mxu0 %v9762
      %v9907 = vpop.f32.mrf.mxu0
      %v9908 = vadd.f32 0.0, %v9907
      %v9909 = vpop.f32.mrf.mxu0
      %v9910 = vadd.f32 0.0, %v9909
      %9911 = vmatmul.bf16.gmra.mxu0 %v9763
      %v9912 = vpop.f32.mrf.mxu0
      %v9913 = vadd.f32 0.0, %v9912
      %v9914 = vpop.f32.mrf.mxu0
      %v9915 = vadd.f32 0.0, %v9914
      %9916 = vdwg.mxu0
      %v9917 = vld [vmem:[#allocation4] sm:$0xff]
      %v9918 = vld [vmem:[#allocation4 + $0x8] sm:$0xff]
      %v9919 = vld [vmem:[#allocation4 + $0x10] sm:$0xff]
      %v9920 = vld [vmem:[#allocation4 + $0x18] sm:$0xff]
      %v9921 = vld [vmem:[#allocation4 + $0x20] sm:$0xff]
      %v9922 = vld [vmem:[#allocation4 + $0x28] sm:$0xff]
      %v9923 = vld [vmem:[#allocation4 + $0x30] sm:$0xff]
      %v9924 = vld [vmem:[#allocation4 + $0x38] sm:$0xff]
      %v9925 = vld [vmem:[#allocation4 + $0x40] sm:$0xff]
      %v9926 = vld [vmem:[#allocation4 + $0x48] sm:$0xff]
      %v9927 = vld [vmem:[#allocation4 + $0x50] sm:$0xff]
      %v9928 = vld [vmem:[#allocation4 + $0x58] sm:$0xff]
      %v9929 = vld [vmem:[#allocation4 + $0x60] sm:$0xff]
      %v9930 = vld [vmem:[#allocation4 + $0x68] sm:$0xff]
      %v9931 = vld [vmem:[#allocation4 + $0x70] sm:$0xff]
      %v9932 = vld [vmem:[#allocation4 + $0x78] sm:$0xff]
      %v9933 = vld [vmem:[#allocation4 + $0x80] sm:$0xff]
      %v9934 = vld [vmem:[#allocation4 + $0x88] sm:$0xff]
      %v9935 = vld [vmem:[#allocation4 + $0x90] sm:$0xff]
      %v9936 = vld [vmem:[#allocation4 + $0x98] sm:$0xff]
      %v9937 = vld [vmem:[#allocation4 + $0xa0] sm:$0xff]
      %v9938 = vld [vmem:[#allocation4 + $0xa8] sm:$0xff]
      %v9939 = vld [vmem:[#allocation4 + $0xb0] sm:$0xff]
      %v9940 = vld [vmem:[#allocation4 + $0xb8] sm:$0xff]
      %v9941 = vld [vmem:[#allocation4 + $0xc0] sm:$0xff]
      %v9942 = vld [vmem:[#allocation4 + $0xc8] sm:$0xff]
      %v9943 = vld [vmem:[#allocation4 + $0xd0] sm:$0xff]
      %v9944 = vld [vmem:[#allocation4 + $0xd8] sm:$0xff]
      %v9945 = vld [vmem:[#allocation4 + $0xe0] sm:$0xff]
      %v9946 = vld [vmem:[#allocation4 + $0xe8] sm:$0xff]
      %v9947 = vld [vmem:[#allocation4 + $0xf0] sm:$0xff]
      %v9948 = vld [vmem:[#allocation4 + $0xf8] sm:$0xff]
      %v9949 = vadd.f32 %v9917, %v9838
      %v9950 = vadd.f32 %v9918, %v9840
      %v9951 = vadd.f32 %v9919, %v9843
      %v9952 = vadd.f32 %v9920, %v9845
      %v9953 = vadd.f32 %v9921, %v9848
      %v9954 = vadd.f32 %v9922, %v9850
      %v9955 = vadd.f32 %v9923, %v9853
      %v9956 = vadd.f32 %v9924, %v9855
      %v9957 = vadd.f32 %v9925, %v9858
      %v9958 = vadd.f32 %v9926, %v9860
      %v9959 = vadd.f32 %v9927, %v9863
      %v9960 = vadd.f32 %v9928, %v9865
      %v9961 = vadd.f32 %v9929, %v9868
      %v9962 = vadd.f32 %v9930, %v9870
      %v9963 = vadd.f32 %v9931, %v9873
      %v9964 = vadd.f32 %v9932, %v9875
      %v9965 = vadd.f32 %v9933, %v9878
      %v9966 = vadd.f32 %v9934, %v9880
      %v9967 = vadd.f32 %v9935, %v9883
      %v9968 = vadd.f32 %v9936, %v9885
      %v9969 = vadd.f32 %v9937, %v9888
      %v9970 = vadd.f32 %v9938, %v9890
      %v9971 = vadd.f32 %v9939, %v9893
      %v9972 = vadd.f32 %v9940, %v9895
      %v9973 = vadd.f32 %v9941, %v9898
      %v9974 = vadd.f32 %v9942, %v9900
      %v9975 = vadd.f32 %v9943, %v9903
      %v9976 = vadd.f32 %v9944, %v9905
      %v9977 = vadd.f32 %v9945, %v9908
      %v9978 = vadd.f32 %v9946, %v9910
      %v9979 = vadd.f32 %v9947, %v9913
      %v9980 = vadd.f32 %v9948, %v9915
      %9981 = vst [vmem:[#allocation4] sm:$0xff] %v9949
      %9982 = vst [vmem:[#allocation4 + $0x8] sm:$0xff] %v9950
      %9983 = vst [vmem:[#allocation4 + $0x10] sm:$0xff] %v9951
      %9984 = vst [vmem:[#allocation4 + $0x18] sm:$0xff] %v9952
      %9985 = vst [vmem:[#allocation4 + $0x20] sm:$0xff] %v9953
      %9986 = vst [vmem:[#allocation4 + $0x28] sm:$0xff] %v9954
      %9987 = vst [vmem:[#allocation4 + $0x30] sm:$0xff] %v9955
      %9988 = vst [vmem:[#allocation4 + $0x38] sm:$0xff] %v9956
      %9989 = vst [vmem:[#allocation4 + $0x40] sm:$0xff] %v9957
      %9990 = vst [vmem:[#allocation4 + $0x48] sm:$0xff] %v9958
      %9991 = vst [vmem:[#allocation4 + $0x50] sm:$0xff] %v9959
      %9992 = vst [vmem:[#allocation4 + $0x58] sm:$0xff] %v9960
      %9993 = vst [vmem:[#allocation4 + $0x60] sm:$0xff] %v9961
      %9994 = vst [vmem:[#allocation4 + $0x68] sm:$0xff] %v9962
      %9995 = vst [vmem:[#allocation4 + $0x70] sm:$0xff] %v9963
      %9996 = vst [vmem:[#allocation4 + $0x78] sm:$0xff] %v9964
      %9997 = vst [vmem:[#allocation4 + $0x80] sm:$0xff] %v9965
      %9998 = vst [vmem:[#allocation4 + $0x88] sm:$0xff] %v9966
      %9999 = vst [vmem:[#allocation4 + $0x90] sm:$0xff] %v9967
      %10000 = vst [vmem:[#allocation4 + $0x98] sm:$0xff] %v9968
      %10001 = vst [vmem:[#allocation4 + $0xa0] sm:$0xff] %v9969
      %10002 = vst [vmem:[#allocation4 + $0xa8] sm:$0xff] %v9970
      %10003 = vst [vmem:[#allocation4 + $0xb0] sm:$0xff] %v9971
      %10004 = vst [vmem:[#allocation4 + $0xb8] sm:$0xff] %v9972
      %10005 = vst [vmem:[#allocation4 + $0xc0] sm:$0xff] %v9973
      %10006 = vst [vmem:[#allocation4 + $0xc8] sm:$0xff] %v9974
      %10007 = vst [vmem:[#allocation4 + $0xd0] sm:$0xff] %v9975
      %10008 = vst [vmem:[#allocation4 + $0xd8] sm:$0xff] %v9976
      %10009 = vst [vmem:[#allocation4 + $0xe0] sm:$0xff] %v9977
      %10010 = vst [vmem:[#allocation4 + $0xe8] sm:$0xff] %v9978
      %10011 = vst [vmem:[#allocation4 + $0xf0] sm:$0xff] %v9979
      %10012 = vst [vmem:[#allocation4 + $0xf8] sm:$0xff] %v9980
      %v10013 = vld [vmem:[%s9634] sm:$0xf]
      %v10014 = vld [vmem:[%s9634 + $0x4] sm:$0xf]
      %v10015 = vld [vmem:[%s9634 + $0x8] sm:$0x1]
      %v10016 = vld [vmem:[%s9634 + $0xc] sm:$0xf]
      %v10017 = vld [vmem:[%s9634 + $0x10] sm:$0xf]
      %v10018 = vld [vmem:[%s9634 + $0x14] sm:$0x1]
      %v10019 = vld [vmem:[%s9634 + $0x18] sm:$0xf]
      %v10020 = vld [vmem:[%s9634 + $0x1c] sm:$0xf]
      %v10021 = vld [vmem:[%s9634 + $0x20] sm:$0x1]
      %v10022 = vld [vmem:[%s9634 + $0x24] sm:$0xf]
      %v10023 = vld [vmem:[%s9634 + $0x28] sm:$0xf]
      %v10024 = vld [vmem:[%s9634 + $0x2c] sm:$0x1]
      %v10025 = vld [vmem:[%s9634 + $0x30] sm:$0xf]
      %v10026 = vld [vmem:[%s9634 + $0x34] sm:$0xf]
      %v10027 = vld [vmem:[%s9634 + $0x38] sm:$0x1]
      %v10028 = vld [vmem:[%s9634 + $0x3c] sm:$0xf]
      %v10029 = vld [vmem:[%s9634 + $0x40] sm:$0xf]
      %v10030 = vld [vmem:[%s9634 + $0x44] sm:$0x1]
      %v10031 = vld [vmem:[%s9634 + $0x48] sm:$0xf]
      %v10032 = vld [vmem:[%s9634 + $0x4c] sm:$0xf]
      %v10033 = vld [vmem:[%s9634 + $0x50] sm:$0x1]
      %v10034 = vld [vmem:[%s9634 + $0x54] sm:$0xf]
      %v10035 = vld [vmem:[%s9634 + $0x58] sm:$0xf]
      %v10036 = vld [vmem:[%s9634 + $0x5c] sm:$0x1]
      %v10037 = vld [vmem:[%s9634 + $0x60] sm:$0xf]
      %v10038 = vld [vmem:[%s9634 + $0x64] sm:$0xf]
      %v10039 = vld [vmem:[%s9634 + $0x68] sm:$0x1]
      %v10040 = vld [vmem:[%s9634 + $0x6c] sm:$0xf]
      %v10041 = vld [vmem:[%s9634 + $0x70] sm:$0xf]
      %v10042 = vld [vmem:[%s9634 + $0x74] sm:$0x1]
      %v10043 = vld [vmem:[%s9634 + $0x78] sm:$0xf]
      %v10044 = vld [vmem:[%s9634 + $0x7c] sm:$0xf]
      %v10045 = vld [vmem:[%s9634 + $0x80] sm:$0x1]
      %v10046 = vld [vmem:[%s9634 + $0x84] sm:$0xf]
      %v10047 = vld [vmem:[%s9634 + $0x88] sm:$0xf]
      %v10048 = vld [vmem:[%s9634 + $0x8c] sm:$0x1]
      %v10049 = vld [vmem:[%s9634 + $0x90] sm:$0xf]
      %v10050 = vld [vmem:[%s9634 + $0x94] sm:$0xf]
      %v10051 = vld [vmem:[%s9634 + $0x98] sm:$0x1]
      %v10052 = vld [vmem:[%s9634 + $0x9c] sm:$0xf]
      %v10053 = vld [vmem:[%s9634 + $0xa0] sm:$0xf]
      %v10054 = vld [vmem:[%s9634 + $0xa4] sm:$0x1]
      %v10055 = vld [vmem:[%s9634 + $0xa8] sm:$0xf]
      %v10056 = vld [vmem:[%s9634 + $0xac] sm:$0xf]
      %v10057 = vld [vmem:[%s9634 + $0xb0] sm:$0x1]
      %v10058 = vld [vmem:[%s9634 + $0xb4] sm:$0xf]
      %v10059 = vld [vmem:[%s9634 + $0xb8] sm:$0xf]
      %v10060 = vld [vmem:[%s9634 + $0xbc] sm:$0x1]
      %v10062 = vshrl.u32 %v10013, 16
      %v10064 = vrot.slane %v10062, 4
      %v10065 = vshll.u32 %v10013, 16
      %v10067 = vrot.slane %v10065, 5
      %v10068 = vor.u32 %v10064, %v10067
      %v10069 = vrot.slane %v10068, 4
      %v10071 = vshll.u32 %v10014, 16
      %v10073 = vrot.slane %v10071, 5
      %v10074 = vsel %vm1325, %v10069, %v10073
      %v10075 = vshrl.u32 %v10014, 16
      %v10077 = vrot.slane %v10075, 4
      %v10078 = vor.u32 %v10077, %v10073
      %v10079 = vrot.slane %v10078, 4
      %v10081 = vshll.u32 %v10015, 16
      %v10083 = vrot.slane %v10081, 5
      %v10084 = vsel %vm1325, %v10079, %v10083
      %v10086 = vshrl.u32 %v10016, 16
      %v10088 = vrot.slane %v10086, 4
      %v10089 = vshll.u32 %v10016, 16
      %v10091 = vrot.slane %v10089, 5
      %v10092 = vor.u32 %v10088, %v10091
      %v10093 = vrot.slane %v10092, 4
      %v10095 = vshll.u32 %v10017, 16
      %v10097 = vrot.slane %v10095, 5
      %v10098 = vsel %vm1325, %v10093, %v10097
      %v10099 = vshrl.u32 %v10017, 16
      %v10101 = vrot.slane %v10099, 4
      %v10102 = vor.u32 %v10101, %v10097
      %v10103 = vrot.slane %v10102, 4
      %v10105 = vshll.u32 %v10018, 16
      %v10107 = vrot.slane %v10105, 5
      %v10108 = vsel %vm1325, %v10103, %v10107
      %v10110 = vshrl.u32 %v10019, 16
      %v10112 = vrot.slane %v10110, 4
      %v10113 = vshll.u32 %v10019, 16
      %v10115 = vrot.slane %v10113, 5
      %v10116 = vor.u32 %v10112, %v10115
      %v10117 = vrot.slane %v10116, 4
      %v10119 = vshll.u32 %v10020, 16
      %v10121 = vrot.slane %v10119, 5
      %v10122 = vsel %vm1325, %v10117, %v10121
      %v10123 = vshrl.u32 %v10020, 16
      %v10125 = vrot.slane %v10123, 4
      %v10126 = vor.u32 %v10125, %v10121
      %v10127 = vrot.slane %v10126, 4
      %v10129 = vshll.u32 %v10021, 16
      %v10131 = vrot.slane %v10129, 5
      %v10132 = vsel %vm1325, %v10127, %v10131
      %v10134 = vshrl.u32 %v10022, 16
      %v10136 = vrot.slane %v10134, 4
      %v10137 = vshll.u32 %v10022, 16
      %v10139 = vrot.slane %v10137, 5
      %v10140 = vor.u32 %v10136, %v10139
      %v10141 = vrot.slane %v10140, 4
      %v10143 = vshll.u32 %v10023, 16
      %v10145 = vrot.slane %v10143, 5
      %v10146 = vsel %vm1325, %v10141, %v10145
      %v10147 = vshrl.u32 %v10023, 16
      %v10149 = vrot.slane %v10147, 4
      %v10150 = vor.u32 %v10149, %v10145
      %v10151 = vrot.slane %v10150, 4
      %v10153 = vshll.u32 %v10024, 16
      %v10155 = vrot.slane %v10153, 5
      %v10156 = vsel %vm1325, %v10151, %v10155
      %v10158 = vshrl.u32 %v10025, 16
      %v10160 = vrot.slane %v10158, 4
      %v10161 = vshll.u32 %v10025, 16
      %v10163 = vrot.slane %v10161, 5
      %v10164 = vor.u32 %v10160, %v10163
      %v10165 = vrot.slane %v10164, 4
      %v10167 = vshll.u32 %v10026, 16
      %v10169 = vrot.slane %v10167, 5
      %v10170 = vsel %vm1325, %v10165, %v10169
      %v10171 = vshrl.u32 %v10026, 16
      %v10173 = vrot.slane %v10171, 4
      %v10174 = vor.u32 %v10173, %v10169
      %v10175 = vrot.slane %v10174, 4
      %v10177 = vshll.u32 %v10027, 16
      %v10179 = vrot.slane %v10177, 5
      %v10180 = vsel %vm1325, %v10175, %v10179
      %v10182 = vshrl.u32 %v10028, 16
      %v10184 = vrot.slane %v10182, 4
      %v10185 = vshll.u32 %v10028, 16
      %v10187 = vrot.slane %v10185, 5
      %v10188 = vor.u32 %v10184, %v10187
      %v10189 = vrot.slane %v10188, 4
      %v10191 = vshll.u32 %v10029, 16
      %v10193 = vrot.slane %v10191, 5
      %v10194 = vsel %vm1325, %v10189, %v10193
      %v10195 = vshrl.u32 %v10029, 16
      %v10197 = vrot.slane %v10195, 4
      %v10198 = vor.u32 %v10197, %v10193
      %v10199 = vrot.slane %v10198, 4
      %v10201 = vshll.u32 %v10030, 16
      %v10203 = vrot.slane %v10201, 5
      %v10204 = vsel %vm1325, %v10199, %v10203
      %v10206 = vshrl.u32 %v10031, 16
      %v10208 = vrot.slane %v10206, 4
      %v10209 = vshll.u32 %v10031, 16
      %v10211 = vrot.slane %v10209, 5
      %v10212 = vor.u32 %v10208, %v10211
      %v10213 = vrot.slane %v10212, 4
      %v10215 = vshll.u32 %v10032, 16
      %v10217 = vrot.slane %v10215, 5
      %v10218 = vsel %vm1325, %v10213, %v10217
      %v10219 = vshrl.u32 %v10032, 16
      %v10221 = vrot.slane %v10219, 4
      %v10222 = vor.u32 %v10221, %v10217
      %v10223 = vrot.slane %v10222, 4
      %v10225 = vshll.u32 %v10033, 16
      %v10227 = vrot.slane %v10225, 5
      %v10228 = vsel %vm1325, %v10223, %v10227
      %v10230 = vshrl.u32 %v10034, 16
      %v10232 = vrot.slane %v10230, 4
      %v10233 = vshll.u32 %v10034, 16
      %v10235 = vrot.slane %v10233, 5
      %v10236 = vor.u32 %v10232, %v10235
      %v10237 = vrot.slane %v10236, 4
      %v10239 = vshll.u32 %v10035, 16
      %v10241 = vrot.slane %v10239, 5
      %v10242 = vsel %vm1325, %v10237, %v10241
      %v10243 = vshrl.u32 %v10035, 16
      %v10245 = vrot.slane %v10243, 4
      %v10246 = vor.u32 %v10245, %v10241
      %v10247 = vrot.slane %v10246, 4
      %v10249 = vshll.u32 %v10036, 16
      %v10251 = vrot.slane %v10249, 5
      %v10252 = vsel %vm1325, %v10247, %v10251
      %v10254 = vshrl.u32 %v10037, 16
      %v10256 = vrot.slane %v10254, 4
      %v10257 = vshll.u32 %v10037, 16
      %v10259 = vrot.slane %v10257, 5
      %v10260 = vor.u32 %v10256, %v10259
      %v10261 = vrot.slane %v10260, 4
      %v10263 = vshll.u32 %v10038, 16
      %v10265 = vrot.slane %v10263, 5
      %v10266 = vsel %vm1325, %v10261, %v10265
      %v10267 = vshrl.u32 %v10038, 16
      %v10269 = vrot.slane %v10267, 4
      %v10270 = vor.u32 %v10269, %v10265
      %v10271 = vrot.slane %v10270, 4
      %v10273 = vshll.u32 %v10039, 16
      %v10275 = vrot.slane %v10273, 5
      %v10276 = vsel %vm1325, %v10271, %v10275
      %v10278 = vshrl.u32 %v10040, 16
      %v10280 = vrot.slane %v10278, 4
      %v10281 = vshll.u32 %v10040, 16
      %v10283 = vrot.slane %v10281, 5
      %v10284 = vor.u32 %v10280, %v10283
      %v10285 = vrot.slane %v10284, 4
      %v10287 = vshll.u32 %v10041, 16
      %v10289 = vrot.slane %v10287, 5
      %v10290 = vsel %vm1325, %v10285, %v10289
      %v10291 = vshrl.u32 %v10041, 16
      %v10293 = vrot.slane %v10291, 4
      %v10294 = vor.u32 %v10293, %v10289
      %v10295 = vrot.slane %v10294, 4
      %v10297 = vshll.u32 %v10042, 16
      %v10299 = vrot.slane %v10297, 5
      %v10300 = vsel %vm1325, %v10295, %v10299
      %v10302 = vshrl.u32 %v10043, 16
      %v10304 = vrot.slane %v10302, 4
      %v10305 = vshll.u32 %v10043, 16
      %v10307 = vrot.slane %v10305, 5
      %v10308 = vor.u32 %v10304, %v10307
      %v10309 = vrot.slane %v10308, 4
      %v10311 = vshll.u32 %v10044, 16
      %v10313 = vrot.slane %v10311, 5
      %v10314 = vsel %vm1325, %v10309, %v10313
      %v10315 = vshrl.u32 %v10044, 16
      %v10317 = vrot.slane %v10315, 4
      %v10318 = vor.u32 %v10317, %v10313
      %v10319 = vrot.slane %v10318, 4
      %v10321 = vshll.u32 %v10045, 16
      %v10323 = vrot.slane %v10321, 5
      %v10324 = vsel %vm1325, %v10319, %v10323
      %v10326 = vshrl.u32 %v10046, 16
      %v10328 = vrot.slane %v10326, 4
      %v10329 = vshll.u32 %v10046, 16
      %v10331 = vrot.slane %v10329, 5
      %v10332 = vor.u32 %v10328, %v10331
      %v10333 = vrot.slane %v10332, 4
      %v10335 = vshll.u32 %v10047, 16
      %v10337 = vrot.slane %v10335, 5
      %v10338 = vsel %vm1325, %v10333, %v10337
      %v10339 = vshrl.u32 %v10047, 16
      %v10341 = vrot.slane %v10339, 4
      %v10342 = vor.u32 %v10341, %v10337
      %v10343 = vrot.slane %v10342, 4
      %v10345 = vshll.u32 %v10048, 16
      %v10347 = vrot.slane %v10345, 5
      %v10348 = vsel %vm1325, %v10343, %v10347
      %v10350 = vshrl.u32 %v10049, 16
      %v10352 = vrot.slane %v10350, 4
      %v10353 = vshll.u32 %v10049, 16
      %v10355 = vrot.slane %v10353, 5
      %v10356 = vor.u32 %v10352, %v10355
      %v10357 = vrot.slane %v10356, 4
      %v10359 = vshll.u32 %v10050, 16
      %v10361 = vrot.slane %v10359, 5
      %v10362 = vsel %vm1325, %v10357, %v10361
      %v10363 = vshrl.u32 %v10050, 16
      %v10365 = vrot.slane %v10363, 4
      %v10366 = vor.u32 %v10365, %v10361
      %v10367 = vrot.slane %v10366, 4
      %v10369 = vshll.u32 %v10051, 16
      %v10371 = vrot.slane %v10369, 5
      %v10372 = vsel %vm1325, %v10367, %v10371
      %v10374 = vshrl.u32 %v10052, 16
      %v10376 = vrot.slane %v10374, 4
      %v10377 = vshll.u32 %v10052, 16
      %v10379 = vrot.slane %v10377, 5
      %v10380 = vor.u32 %v10376, %v10379
      %v10381 = vrot.slane %v10380, 4
      %v10383 = vshll.u32 %v10053, 16
      %v10385 = vrot.slane %v10383, 5
      %v10386 = vsel %vm1325, %v10381, %v10385
      %v10387 = vshrl.u32 %v10053, 16
      %v10389 = vrot.slane %v10387, 4
      %v10390 = vor.u32 %v10389, %v10385
      %v10391 = vrot.slane %v10390, 4
      %v10393 = vshll.u32 %v10054, 16
      %v10395 = vrot.slane %v10393, 5
      %v10396 = vsel %vm1325, %v10391, %v10395
      %v10398 = vshrl.u32 %v10055, 16
      %v10400 = vrot.slane %v10398, 4
      %v10401 = vshll.u32 %v10055, 16
      %v10403 = vrot.slane %v10401, 5
      %v10404 = vor.u32 %v10400, %v10403
      %v10405 = vrot.slane %v10404, 4
      %v10407 = vshll.u32 %v10056, 16
      %v10409 = vrot.slane %v10407, 5
      %v10410 = vsel %vm1325, %v10405, %v10409
      %v10411 = vshrl.u32 %v10056, 16
      %v10413 = vrot.slane %v10411, 4
      %v10414 = vor.u32 %v10413, %v10409
      %v10415 = vrot.slane %v10414, 4
      %v10417 = vshll.u32 %v10057, 16
      %v10419 = vrot.slane %v10417, 5
      %v10420 = vsel %vm1325, %v10415, %v10419
      %v10422 = vshrl.u32 %v10058, 16
      %v10424 = vrot.slane %v10422, 4
      %v10425 = vshll.u32 %v10058, 16
      %v10427 = vrot.slane %v10425, 5
      %v10428 = vor.u32 %v10424, %v10427
      %v10429 = vrot.slane %v10428, 4
      %v10431 = vshll.u32 %v10059, 16
      %v10433 = vrot.slane %v10431, 5
      %v10434 = vsel %vm1325, %v10429, %v10433
      %v10435 = vshrl.u32 %v10059, 16
      %v10437 = vrot.slane %v10435, 4
      %v10438 = vor.u32 %v10437, %v10433
      %v10439 = vrot.slane %v10438, 4
      %v10441 = vshll.u32 %v10060, 16
      %v10443 = vrot.slane %v10441, 5
      %v10444 = vsel %vm1325, %v10439, %v10443
      %s10445 = scalar_lea.vmem %s3, 448
      %v10446 = vld [vmem:[%s10445] sm:$0xf]
      %v10447 = vld [vmem:[%s10445 + $0x4] sm:$0xf]
      %v10448 = vld [vmem:[%s10445 + $0x8] sm:$0xf]
      %v10449 = vld [vmem:[%s10445 + $0xc] sm:$0xf]
      %v10450 = vld [vmem:[%s10445 + $0x10] sm:$0xf]
      %v10451 = vld [vmem:[%s10445 + $0x14] sm:$0xf]
      %v10452 = vld [vmem:[%s10445 + $0x18] sm:$0xf]
      %v10453 = vld [vmem:[%s10445 + $0x1c] sm:$0xf]
      %v10454 = vld [vmem:[%s10445 + $0x20] sm:$0xf]
      %v10455 = vld [vmem:[%s10445 + $0x24] sm:$0xf]
      %v10456 = vld [vmem:[%s10445 + $0x28] sm:$0xf]
      %v10457 = vld [vmem:[%s10445 + $0x2c] sm:$0xf]
      %v10458 = vld [vmem:[%s10445 + $0x30] sm:$0xf]
      %v10459 = vld [vmem:[%s10445 + $0x34] sm:$0xf]
      %v10460 = vld [vmem:[%s10445 + $0x38] sm:$0xf]
      %v10461 = vld [vmem:[%s10445 + $0x3c] sm:$0xf]
      %v10462 = vunpack.c.l.b16 %v10074
      %v10463 = vunpack.c.l.b16 %v10084
      %v10464 = vunpack.c.l.b16 %v10098
      %v10465 = vunpack.c.l.b16 %v10108
      %v10466 = vunpack.c.l.b16 %v10122
      %v10467 = vunpack.c.l.b16 %v10132
      %v10468 = vunpack.c.l.b16 %v10146
      %v10469 = vunpack.c.l.b16 %v10156
      %v10470 = vunpack.c.l.b16 %v10170
      %v10471 = vunpack.c.l.b16 %v10180
      %v10472 = vunpack.c.l.b16 %v10194
      %v10473 = vunpack.c.l.b16 %v10204
      %v10474 = vunpack.c.l.b16 %v10218
      %v10475 = vunpack.c.l.b16 %v10228
      %v10476 = vunpack.c.l.b16 %v10242
      %v10477 = vunpack.c.l.b16 %v10252
      %v10478 = vunpack.c.l.b16 %v10266
      %v10479 = vunpack.c.l.b16 %v10276
      %v10480 = vunpack.c.l.b16 %v10290
      %v10481 = vunpack.c.l.b16 %v10300
      %v10482 = vunpack.c.l.b16 %v10314
      %v10483 = vunpack.c.l.b16 %v10324
      %v10484 = vunpack.c.l.b16 %v10338
      %v10485 = vunpack.c.l.b16 %v10348
      %v10486 = vunpack.c.l.b16 %v10362
      %v10487 = vunpack.c.l.b16 %v10372
      %v10488 = vunpack.c.l.b16 %v10386
      %v10489 = vunpack.c.l.b16 %v10396
      %v10490 = vunpack.c.l.b16 %v10410
      %v10491 = vunpack.c.l.b16 %v10420
      %v10492 = vunpack.c.l.b16 %v10434
      %v10493 = vunpack.c.l.b16 %v10444
      %v10494 = vpack.c.b16 %v10463, %v10462
      %v10495 = vpack.c.b16 %v10465, %v10464
      %v10496 = vpack.c.b16 %v10467, %v10466
      %v10497 = vpack.c.b16 %v10469, %v10468
      %v10498 = vpack.c.b16 %v10471, %v10470
      %v10499 = vpack.c.b16 %v10473, %v10472
      %v10500 = vpack.c.b16 %v10475, %v10474
      %v10501 = vpack.c.b16 %v10477, %v10476
      %v10502 = vpack.c.b16 %v10479, %v10478
      %v10503 = vpack.c.b16 %v10481, %v10480
      %v10504 = vpack.c.b16 %v10483, %v10482
      %v10505 = vpack.c.b16 %v10485, %v10484
      %v10506 = vpack.c.b16 %v10487, %v10486
      %v10507 = vpack.c.b16 %v10489, %v10488
      %v10508 = vpack.c.b16 %v10491, %v10490
      %v10509 = vpack.c.b16 %v10493, %v10492
      %v10542 = vunpack.c.l.b16 %v10446
      %v10543 = vunpack.c.l.b16 %v10447
      %v10544 = vunpack.c.l.b16 %v10448
      %v10545 = vunpack.c.l.b16 %v10449
      %v10546 = vunpack.c.l.b16 %v10450
      %v10547 = vunpack.c.l.b16 %v10451
      %v10548 = vunpack.c.l.b16 %v10452
      %v10549 = vunpack.c.l.b16 %v10453
      %v10550 = vunpack.c.l.b16 %v10454
      %v10551 = vunpack.c.l.b16 %v10455
      %v10552 = vunpack.c.l.b16 %v10456
      %v10553 = vunpack.c.l.b16 %v10457
      %v10554 = vunpack.c.l.b16 %v10458
      %v10555 = vunpack.c.l.b16 %v10459
      %v10556 = vunpack.c.l.b16 %v10460
      %v10557 = vunpack.c.l.b16 %v10461
      %v10558 = vpack.c.b16 %v10543, %v10542
      %v10559 = vpack.c.b16 %v10545, %v10544
      %v10560 = vpack.c.b16 %v10547, %v10546
      %v10561 = vpack.c.b16 %v10549, %v10548
      %v10562 = vpack.c.b16 %v10551, %v10550
      %v10563 = vpack.c.b16 %v10553, %v10552
      %v10564 = vpack.c.b16 %v10555, %v10554
      %v10565 = vpack.c.b16 %v10557, %v10556
      %10574 = vmatpush.bf16.msra.mxu0 %v10565
      %10575 = vmatpush.bf16.msra.mxu0 %v10564
      %10576 = vmatpush.bf16.msra.mxu0 %v10563
      %10577 = vmatpush.bf16.msra.mxu0 %v10562
      %10578 = vmatpush.bf16.msra.mxu0 %v10561
      %10579 = vmatpush.bf16.msra.mxu0 %v10560
      %10580 = vmatpush.bf16.msra.mxu0 %v10559
      %10581 = vmatpush.bf16.msra.mxu0 %v10558
      %10582 = vmatmul.bf16.gmra.mxu0 %v10494
      %v10583 = vpop.f32.mrf.mxu0
      %v10584 = vadd.f32 0.0, %v10583
      %v10585 = vpop.f32.mrf.mxu0
      %v10586 = vadd.f32 0.0, %v10585
      %10587 = vmatmul.bf16.gmra.mxu0 %v10495
      %v10588 = vpop.f32.mrf.mxu0
      %v10589 = vadd.f32 0.0, %v10588
      %v10590 = vpop.f32.mrf.mxu0
      %v10591 = vadd.f32 0.0, %v10590
      %10592 = vmatmul.bf16.gmra.mxu0 %v10496
      %v10593 = vpop.f32.mrf.mxu0
      %v10594 = vadd.f32 0.0, %v10593
      %v10595 = vpop.f32.mrf.mxu0
      %v10596 = vadd.f32 0.0, %v10595
      %10597 = vmatmul.bf16.gmra.mxu0 %v10497
      %v10598 = vpop.f32.mrf.mxu0
      %v10599 = vadd.f32 0.0, %v10598
      %v10600 = vpop.f32.mrf.mxu0
      %v10601 = vadd.f32 0.0, %v10600
      %10602 = vmatmul.bf16.gmra.mxu0 %v10498
      %v10603 = vpop.f32.mrf.mxu0
      %v10604 = vadd.f32 0.0, %v10603
      %v10605 = vpop.f32.mrf.mxu0
      %v10606 = vadd.f32 0.0, %v10605
      %10607 = vmatmul.bf16.gmra.mxu0 %v10499
      %v10608 = vpop.f32.mrf.mxu0
      %v10609 = vadd.f32 0.0, %v10608
      %v10610 = vpop.f32.mrf.mxu0
      %v10611 = vadd.f32 0.0, %v10610
      %10612 = vmatmul.bf16.gmra.mxu0 %v10500
      %v10613 = vpop.f32.mrf.mxu0
      %v10614 = vadd.f32 0.0, %v10613
      %v10615 = vpop.f32.mrf.mxu0
      %v10616 = vadd.f32 0.0, %v10615
      %10617 = vmatmul.bf16.gmra.mxu0 %v10501
      %v10618 = vpop.f32.mrf.mxu0
      %v10619 = vadd.f32 0.0, %v10618
      %v10620 = vpop.f32.mrf.mxu0
      %v10621 = vadd.f32 0.0, %v10620
      %10622 = vmatmul.bf16.gmra.mxu0 %v10502
      %v10623 = vpop.f32.mrf.mxu0
      %v10624 = vadd.f32 0.0, %v10623
      %v10625 = vpop.f32.mrf.mxu0
      %v10626 = vadd.f32 0.0, %v10625
      %10627 = vmatmul.bf16.gmra.mxu0 %v10503
      %v10628 = vpop.f32.mrf.mxu0
      %v10629 = vadd.f32 0.0, %v10628
      %v10630 = vpop.f32.mrf.mxu0
      %v10631 = vadd.f32 0.0, %v10630
      %10632 = vmatmul.bf16.gmra.mxu0 %v10504
      %v10633 = vpop.f32.mrf.mxu0
      %v10634 = vadd.f32 0.0, %v10633
      %v10635 = vpop.f32.mrf.mxu0
      %v10636 = vadd.f32 0.0, %v10635
      %10637 = vmatmul.bf16.gmra.mxu0 %v10505
      %v10638 = vpop.f32.mrf.mxu0
      %v10639 = vadd.f32 0.0, %v10638
      %v10640 = vpop.f32.mrf.mxu0
      %v10641 = vadd.f32 0.0, %v10640
      %10642 = vmatmul.bf16.gmra.mxu0 %v10506
      %v10643 = vpop.f32.mrf.mxu0
      %v10644 = vadd.f32 0.0, %v10643
      %v10645 = vpop.f32.mrf.mxu0
      %v10646 = vadd.f32 0.0, %v10645
      %10647 = vmatmul.bf16.gmra.mxu0 %v10507
      %v10648 = vpop.f32.mrf.mxu0
      %v10649 = vadd.f32 0.0, %v10648
      %v10650 = vpop.f32.mrf.mxu0
      %v10651 = vadd.f32 0.0, %v10650
      %10652 = vmatmul.bf16.gmra.mxu0 %v10508
      %v10653 = vpop.f32.mrf.mxu0
      %v10654 = vadd.f32 0.0, %v10653
      %v10655 = vpop.f32.mrf.mxu0
      %v10656 = vadd.f32 0.0, %v10655
      %10657 = vmatmul.bf16.gmra.mxu0 %v10509
      %v10658 = vpop.f32.mrf.mxu0
      %v10659 = vadd.f32 0.0, %v10658
      %v10660 = vpop.f32.mrf.mxu0
      %v10661 = vadd.f32 0.0, %v10660
      %10662 = vdwg.mxu0
      %v10663 = vld [vmem:[#allocation4] sm:$0xff]
      %v10664 = vld [vmem:[#allocation4 + $0x8] sm:$0xff]
      %v10665 = vld [vmem:[#allocation4 + $0x10] sm:$0xff]
      %v10666 = vld [vmem:[#allocation4 + $0x18] sm:$0xff]
      %v10667 = vld [vmem:[#allocation4 + $0x20] sm:$0xff]
      %v10668 = vld [vmem:[#allocation4 + $0x28] sm:$0xff]
      %v10669 = vld [vmem:[#allocation4 + $0x30] sm:$0xff]
      %v10670 = vld [vmem:[#allocation4 + $0x38] sm:$0xff]
      %v10671 = vld [vmem:[#allocation4 + $0x40] sm:$0xff]
      %v10672 = vld [vmem:[#allocation4 + $0x48] sm:$0xff]
      %v10673 = vld [vmem:[#allocation4 + $0x50] sm:$0xff]
      %v10674 = vld [vmem:[#allocation4 + $0x58] sm:$0xff]
      %v10675 = vld [vmem:[#allocation4 + $0x60] sm:$0xff]
      %v10676 = vld [vmem:[#allocation4 + $0x68] sm:$0xff]
      %v10677 = vld [vmem:[#allocation4 + $0x70] sm:$0xff]
      %v10678 = vld [vmem:[#allocation4 + $0x78] sm:$0xff]
      %v10679 = vld [vmem:[#allocation4 + $0x80] sm:$0xff]
      %v10680 = vld [vmem:[#allocation4 + $0x88] sm:$0xff]
      %v10681 = vld [vmem:[#allocation4 + $0x90] sm:$0xff]
      %v10682 = vld [vmem:[#allocation4 + $0x98] sm:$0xff]
      %v10683 = vld [vmem:[#allocation4 + $0xa0] sm:$0xff]
      %v10684 = vld [vmem:[#allocation4 + $0xa8] sm:$0xff]
      %v10685 = vld [vmem:[#allocation4 + $0xb0] sm:$0xff]
      %v10686 = vld [vmem:[#allocation4 + $0xb8] sm:$0xff]
      %v10687 = vld [vmem:[#allocation4 + $0xc0] sm:$0xff]
      %v10688 = vld [vmem:[#allocation4 + $0xc8] sm:$0xff]
      %v10689 = vld [vmem:[#allocation4 + $0xd0] sm:$0xff]
      %v10690 = vld [vmem:[#allocation4 + $0xd8] sm:$0xff]
      %v10691 = vld [vmem:[#allocation4 + $0xe0] sm:$0xff]
      %v10692 = vld [vmem:[#allocation4 + $0xe8] sm:$0xff]
      %v10693 = vld [vmem:[#allocation4 + $0xf0] sm:$0xff]
      %v10694 = vld [vmem:[#allocation4 + $0xf8] sm:$0xff]
      %v10695 = vadd.f32 %v10663, %v10584
      %v10696 = vadd.f32 %v10664, %v10586
      %v10697 = vadd.f32 %v10665, %v10589
      %v10698 = vadd.f32 %v10666, %v10591
      %v10699 = vadd.f32 %v10667, %v10594
      %v10700 = vadd.f32 %v10668, %v10596
      %v10701 = vadd.f32 %v10669, %v10599
      %v10702 = vadd.f32 %v10670, %v10601
      %v10703 = vadd.f32 %v10671, %v10604
      %v10704 = vadd.f32 %v10672, %v10606
      %v10705 = vadd.f32 %v10673, %v10609
      %v10706 = vadd.f32 %v10674, %v10611
      %v10707 = vadd.f32 %v10675, %v10614
      %v10708 = vadd.f32 %v10676, %v10616
      %v10709 = vadd.f32 %v10677, %v10619
      %v10710 = vadd.f32 %v10678, %v10621
      %v10711 = vadd.f32 %v10679, %v10624
      %v10712 = vadd.f32 %v10680, %v10626
      %v10713 = vadd.f32 %v10681, %v10629
      %v10714 = vadd.f32 %v10682, %v10631
      %v10715 = vadd.f32 %v10683, %v10634
      %v10716 = vadd.f32 %v10684, %v10636
      %v10717 = vadd.f32 %v10685, %v10639
      %v10718 = vadd.f32 %v10686, %v10641
      %v10719 = vadd.f32 %v10687, %v10644
      %v10720 = vadd.f32 %v10688, %v10646
      %v10721 = vadd.f32 %v10689, %v10649
      %v10722 = vadd.f32 %v10690, %v10651
      %v10723 = vadd.f32 %v10691, %v10654
      %v10724 = vadd.f32 %v10692, %v10656
      %v10725 = vadd.f32 %v10693, %v10659
      %v10726 = vadd.f32 %v10694, %v10661
      %10727 = vst [vmem:[#allocation4] sm:$0xff] %v10695
      %10728 = vst [vmem:[#allocation4 + $0x8] sm:$0xff] %v10696
      %10729 = vst [vmem:[#allocation4 + $0x10] sm:$0xff] %v10697
      %10730 = vst [vmem:[#allocation4 + $0x18] sm:$0xff] %v10698
      %10731 = vst [vmem:[#allocation4 + $0x20] sm:$0xff] %v10699
      %10732 = vst [vmem:[#allocation4 + $0x28] sm:$0xff] %v10700
      %10733 = vst [vmem:[#allocation4 + $0x30] sm:$0xff] %v10701
      %10734 = vst [vmem:[#allocation4 + $0x38] sm:$0xff] %v10702
      %10735 = vst [vmem:[#allocation4 + $0x40] sm:$0xff] %v10703
      %10736 = vst [vmem:[#allocation4 + $0x48] sm:$0xff] %v10704
      %10737 = vst [vmem:[#allocation4 + $0x50] sm:$0xff] %v10705
      %10738 = vst [vmem:[#allocation4 + $0x58] sm:$0xff] %v10706
      %10739 = vst [vmem:[#allocation4 + $0x60] sm:$0xff] %v10707
      %10740 = vst [vmem:[#allocation4 + $0x68] sm:$0xff] %v10708
      %10741 = vst [vmem:[#allocation4 + $0x70] sm:$0xff] %v10709
      %10742 = vst [vmem:[#allocation4 + $0x78] sm:$0xff] %v10710
      %10743 = vst [vmem:[#allocation4 + $0x80] sm:$0xff] %v10711
      %10744 = vst [vmem:[#allocation4 + $0x88] sm:$0xff] %v10712
      %10745 = vst [vmem:[#allocation4 + $0x90] sm:$0xff] %v10713
      %10746 = vst [vmem:[#allocation4 + $0x98] sm:$0xff] %v10714
      %10747 = vst [vmem:[#allocation4 + $0xa0] sm:$0xff] %v10715
      %10748 = vst [vmem:[#allocation4 + $0xa8] sm:$0xff] %v10716
      %10749 = vst [vmem:[#allocation4 + $0xb0] sm:$0xff] %v10717
      %10750 = vst [vmem:[#allocation4 + $0xb8] sm:$0xff] %v10718
      %10751 = vst [vmem:[#allocation4 + $0xc0] sm:$0xff] %v10719
      %10752 = vst [vmem:[#allocation4 + $0xc8] sm:$0xff] %v10720
      %10753 = vst [vmem:[#allocation4 + $0xd0] sm:$0xff] %v10721
      %10754 = vst [vmem:[#allocation4 + $0xd8] sm:$0xff] %v10722
      %10755 = vst [vmem:[#allocation4 + $0xe0] sm:$0xff] %v10723
      %10756 = vst [vmem:[#allocation4 + $0xe8] sm:$0xff] %v10724
      %10757 = vst [vmem:[#allocation4 + $0xf0] sm:$0xff] %v10725
      %10758 = vst [vmem:[#allocation4 + $0xf8] sm:$0xff] %v10726
      %v10759 = vld [vmem:[%s9634] sm:$0xe]
      %v10760 = vld [vmem:[%s9634 + $0x4] sm:$0xf]
      %v10761 = vld [vmem:[%s9634 + $0x8] sm:$0x1]
      %v10762 = vld [vmem:[%s9634 + $0xc] sm:$0xe]
      %v10763 = vld [vmem:[%s9634 + $0x10] sm:$0xf]
      %v10764 = vld [vmem:[%s9634 + $0x14] sm:$0x1]
      %v10765 = vld [vmem:[%s9634 + $0x18] sm:$0xe]
      %v10766 = vld [vmem:[%s9634 + $0x1c] sm:$0xf]
      %v10767 = vld [vmem:[%s9634 + $0x20] sm:$0x1]
      %v10768 = vld [vmem:[%s9634 + $0x24] sm:$0xe]
      %v10769 = vld [vmem:[%s9634 + $0x28] sm:$0xf]
      %v10770 = vld [vmem:[%s9634 + $0x2c] sm:$0x1]
      %v10771 = vld [vmem:[%s9634 + $0x30] sm:$0xe]
      %v10772 = vld [vmem:[%s9634 + $0x34] sm:$0xf]
      %v10773 = vld [vmem:[%s9634 + $0x38] sm:$0x1]
      %v10774 = vld [vmem:[%s9634 + $0x3c] sm:$0xe]
      %v10775 = vld [vmem:[%s9634 + $0x40] sm:$0xf]
      %v10776 = vld [vmem:[%s9634 + $0x44] sm:$0x1]
      %v10777 = vld [vmem:[%s9634 + $0x48] sm:$0xe]
      %v10778 = vld [vmem:[%s9634 + $0x4c] sm:$0xf]
      %v10779 = vld [vmem:[%s9634 + $0x50] sm:$0x1]
      %v10780 = vld [vmem:[%s9634 + $0x54] sm:$0xe]
      %v10781 = vld [vmem:[%s9634 + $0x58] sm:$0xf]
      %v10782 = vld [vmem:[%s9634 + $0x5c] sm:$0x1]
      %v10783 = vld [vmem:[%s9634 + $0x60] sm:$0xe]
      %v10784 = vld [vmem:[%s9634 + $0x64] sm:$0xf]
      %v10785 = vld [vmem:[%s9634 + $0x68] sm:$0x1]
      %v10786 = vld [vmem:[%s9634 + $0x6c] sm:$0xe]
      %v10787 = vld [vmem:[%s9634 + $0x70] sm:$0xf]
      %v10788 = vld [vmem:[%s9634 + $0x74] sm:$0x1]
      %v10789 = vld [vmem:[%s9634 + $0x78] sm:$0xe]
      %v10790 = vld [vmem:[%s9634 + $0x7c] sm:$0xf]
      %v10791 = vld [vmem:[%s9634 + $0x80] sm:$0x1]
      %v10792 = vld [vmem:[%s9634 + $0x84] sm:$0xe]
      %v10793 = vld [vmem:[%s9634 + $0x88] sm:$0xf]
      %v10794 = vld [vmem:[%s9634 + $0x8c] sm:$0x1]
      %v10795 = vld [vmem:[%s9634 + $0x90] sm:$0xe]
      %v10796 = vld [vmem:[%s9634 + $0x94] sm:$0xf]
      %v10797 = vld [vmem:[%s9634 + $0x98] sm:$0x1]
      %v10798 = vld [vmem:[%s9634 + $0x9c] sm:$0xe]
      %v10799 = vld [vmem:[%s9634 + $0xa0] sm:$0xf]
      %v10800 = vld [vmem:[%s9634 + $0xa4] sm:$0x1]
      %v10801 = vld [vmem:[%s9634 + $0xa8] sm:$0xe]
      %v10802 = vld [vmem:[%s9634 + $0xac] sm:$0xf]
      %v10803 = vld [vmem:[%s9634 + $0xb0] sm:$0x1]
      %v10804 = vld [vmem:[%s9634 + $0xb4] sm:$0xe]
      %v10805 = vld [vmem:[%s9634 + $0xb8] sm:$0xf]
      %v10806 = vld [vmem:[%s9634 + $0xbc] sm:$0x1]
      %v10855 = vrot.slane %v10759, 5
      %v10856 = vrot.slane %v10855, 4
      %v10857 = vrot.slane %v10760, 5
      %v10858 = vsel %vm2122, %v10856, %v10857
      %v10859 = vrot.slane %v10857, 4
      %v10860 = vrot.slane %v10761, 5
      %v10861 = vsel %vm2122, %v10859, %v10860
      %v10862 = vrot.slane %v10762, 5
      %v10863 = vrot.slane %v10862, 4
      %v10864 = vrot.slane %v10763, 5
      %v10865 = vsel %vm2122, %v10863, %v10864
      %v10866 = vrot.slane %v10864, 4
      %v10867 = vrot.slane %v10764, 5
      %v10868 = vsel %vm2122, %v10866, %v10867
      %v10869 = vrot.slane %v10765, 5
      %v10870 = vrot.slane %v10869, 4
      %v10871 = vrot.slane %v10766, 5
      %v10872 = vsel %vm2122, %v10870, %v10871
      %v10873 = vrot.slane %v10871, 4
      %v10874 = vrot.slane %v10767, 5
      %v10875 = vsel %vm2122, %v10873, %v10874
      %v10876 = vrot.slane %v10768, 5
      %v10877 = vrot.slane %v10876, 4
      %v10878 = vrot.slane %v10769, 5
      %v10879 = vsel %vm2122, %v10877, %v10878
      %v10880 = vrot.slane %v10878, 4
      %v10881 = vrot.slane %v10770, 5
      %v10882 = vsel %vm2122, %v10880, %v10881
      %v10883 = vrot.slane %v10771, 5
      %v10884 = vrot.slane %v10883, 4
      %v10885 = vrot.slane %v10772, 5
      %v10886 = vsel %vm2122, %v10884, %v10885
      %v10887 = vrot.slane %v10885, 4
      %v10888 = vrot.slane %v10773, 5
      %v10889 = vsel %vm2122, %v10887, %v10888
      %v10890 = vrot.slane %v10774, 5
      %v10891 = vrot.slane %v10890, 4
      %v10892 = vrot.slane %v10775, 5
      %v10893 = vsel %vm2122, %v10891, %v10892
      %v10894 = vrot.slane %v10892, 4
      %v10895 = vrot.slane %v10776, 5
      %v10896 = vsel %vm2122, %v10894, %v10895
      %v10897 = vrot.slane %v10777, 5
      %v10898 = vrot.slane %v10897, 4
      %v10899 = vrot.slane %v10778, 5
      %v10900 = vsel %vm2122, %v10898, %v10899
      %v10901 = vrot.slane %v10899, 4
      %v10902 = vrot.slane %v10779, 5
      %v10903 = vsel %vm2122, %v10901, %v10902
      %v10904 = vrot.slane %v10780, 5
      %v10905 = vrot.slane %v10904, 4
      %v10906 = vrot.slane %v10781, 5
      %v10907 = vsel %vm2122, %v10905, %v10906
      %v10908 = vrot.slane %v10906, 4
      %v10909 = vrot.slane %v10782, 5
      %v10910 = vsel %vm2122, %v10908, %v10909
      %v10911 = vrot.slane %v10783, 5
      %v10912 = vrot.slane %v10911, 4
      %v10913 = vrot.slane %v10784, 5
      %v10914 = vsel %vm2122, %v10912, %v10913
      %v10915 = vrot.slane %v10913, 4
      %v10916 = vrot.slane %v10785, 5
      %v10917 = vsel %vm2122, %v10915, %v10916
      %v10918 = vrot.slane %v10786, 5
      %v10919 = vrot.slane %v10918, 4
      %v10920 = vrot.slane %v10787, 5
      %v10921 = vsel %vm2122, %v10919, %v10920
      %v10922 = vrot.slane %v10920, 4
      %v10923 = vrot.slane %v10788, 5
      %v10924 = vsel %vm2122, %v10922, %v10923
      %v10925 = vrot.slane %v10789, 5
      %v10926 = vrot.slane %v10925, 4
      %v10927 = vrot.slane %v10790, 5
      %v10928 = vsel %vm2122, %v10926, %v10927
      %v10929 = vrot.slane %v10927, 4
      %v10930 = vrot.slane %v10791, 5
      %v10931 = vsel %vm2122, %v10929, %v10930
      %v10932 = vrot.slane %v10792, 5
      %v10933 = vrot.slane %v10932, 4
      %v10934 = vrot.slane %v10793, 5
      %v10935 = vsel %vm2122, %v10933, %v10934
      %v10936 = vrot.slane %v10934, 4
      %v10937 = vrot.slane %v10794, 5
      %v10938 = vsel %vm2122, %v10936, %v10937
      %v10939 = vrot.slane %v10795, 5
      %v10940 = vrot.slane %v10939, 4
      %v10941 = vrot.slane %v10796, 5
      %v10942 = vsel %vm2122, %v10940, %v10941
      %v10943 = vrot.slane %v10941, 4
      %v10944 = vrot.slane %v10797, 5
      %v10945 = vsel %vm2122, %v10943, %v10944
      %v10946 = vrot.slane %v10798, 5
      %v10947 = vrot.slane %v10946, 4
      %v10948 = vrot.slane %v10799, 5
      %v10949 = vsel %vm2122, %v10947, %v10948
      %v10950 = vrot.slane %v10948, 4
      %v10951 = vrot.slane %v10800, 5
      %v10952 = vsel %vm2122, %v10950, %v10951
      %v10953 = vrot.slane %v10801, 5
      %v10954 = vrot.slane %v10953, 4
      %v10955 = vrot.slane %v10802, 5
      %v10956 = vsel %vm2122, %v10954, %v10955
      %v10957 = vrot.slane %v10955, 4
      %v10958 = vrot.slane %v10803, 5
      %v10959 = vsel %vm2122, %v10957, %v10958
      %v10960 = vrot.slane %v10804, 5
      %v10961 = vrot.slane %v10960, 4
      %v10962 = vrot.slane %v10805, 5
      %v10963 = vsel %vm2122, %v10961, %v10962
      %v10964 = vrot.slane %v10962, 4
      %v10965 = vrot.slane %v10806, 5
      %v10966 = vsel %vm2122, %v10964, %v10965
      %s10967 = scalar_lea.vmem %s3, 512
      %v10968 = vld [vmem:[%s10967] sm:$0xf]
      %v10969 = vld [vmem:[%s10967 + $0x4] sm:$0xf]
      %v10970 = vld [vmem:[%s10967 + $0x8] sm:$0xf]
      %v10971 = vld [vmem:[%s10967 + $0xc] sm:$0xf]
      %v10972 = vld [vmem:[%s10967 + $0x10] sm:$0xf]
      %v10973 = vld [vmem:[%s10967 + $0x14] sm:$0xf]
      %v10974 = vld [vmem:[%s10967 + $0x18] sm:$0xf]
      %v10975 = vld [vmem:[%s10967 + $0x1c] sm:$0xf]
      %v10976 = vld [vmem:[%s10967 + $0x20] sm:$0xf]
      %v10977 = vld [vmem:[%s10967 + $0x24] sm:$0xf]
      %v10978 = vld [vmem:[%s10967 + $0x28] sm:$0xf]
      %v10979 = vld [vmem:[%s10967 + $0x2c] sm:$0xf]
      %v10980 = vld [vmem:[%s10967 + $0x30] sm:$0xf]
      %v10981 = vld [vmem:[%s10967 + $0x34] sm:$0xf]
      %v10982 = vld [vmem:[%s10967 + $0x38] sm:$0xf]
      %v10983 = vld [vmem:[%s10967 + $0x3c] sm:$0xf]
      %v10984 = vunpack.c.l.b16 %v10858
      %v10985 = vunpack.c.l.b16 %v10861
      %v10986 = vunpack.c.l.b16 %v10865
      %v10987 = vunpack.c.l.b16 %v10868
      %v10988 = vunpack.c.l.b16 %v10872
      %v10989 = vunpack.c.l.b16 %v10875
      %v10990 = vunpack.c.l.b16 %v10879
      %v10991 = vunpack.c.l.b16 %v10882
      %v10992 = vunpack.c.l.b16 %v10886
      %v10993 = vunpack.c.l.b16 %v10889
      %v10994 = vunpack.c.l.b16 %v10893
      %v10995 = vunpack.c.l.b16 %v10896
      %v10996 = vunpack.c.l.b16 %v10900
      %v10997 = vunpack.c.l.b16 %v10903
      %v10998 = vunpack.c.l.b16 %v10907
      %v10999 = vunpack.c.l.b16 %v10910
      %v11000 = vunpack.c.l.b16 %v10914
      %v11001 = vunpack.c.l.b16 %v10917
      %v11002 = vunpack.c.l.b16 %v10921
      %v11003 = vunpack.c.l.b16 %v10924
      %v11004 = vunpack.c.l.b16 %v10928
      %v11005 = vunpack.c.l.b16 %v10931
      %v11006 = vunpack.c.l.b16 %v10935
      %v11007 = vunpack.c.l.b16 %v10938
      %v11008 = vunpack.c.l.b16 %v10942
      %v11009 = vunpack.c.l.b16 %v10945
      %v11010 = vunpack.c.l.b16 %v10949
      %v11011 = vunpack.c.l.b16 %v10952
      %v11012 = vunpack.c.l.b16 %v10956
      %v11013 = vunpack.c.l.b16 %v10959
      %v11014 = vunpack.c.l.b16 %v10963
      %v11015 = vunpack.c.l.b16 %v10966
      %v11016 = vpack.c.b16 %v10985, %v10984
      %v11017 = vpack.c.b16 %v10987, %v10986
      %v11018 = vpack.c.b16 %v10989, %v10988
      %v11019 = vpack.c.b16 %v10991, %v10990
      %v11020 = vpack.c.b16 %v10993, %v10992
      %v11021 = vpack.c.b16 %v10995, %v10994
      %v11022 = vpack.c.b16 %v10997, %v10996
      %v11023 = vpack.c.b16 %v10999, %v10998
      %v11024 = vpack.c.b16 %v11001, %v11000
      %v11025 = vpack.c.b16 %v11003, %v11002
      %v11026 = vpack.c.b16 %v11005, %v11004
      %v11027 = vpack.c.b16 %v11007, %v11006
      %v11028 = vpack.c.b16 %v11009, %v11008
      %v11029 = vpack.c.b16 %v11011, %v11010
      %v11030 = vpack.c.b16 %v11013, %v11012
      %v11031 = vpack.c.b16 %v11015, %v11014
      %v11064 = vunpack.c.l.b16 %v10968
      %v11065 = vunpack.c.l.b16 %v10969
      %v11066 = vunpack.c.l.b16 %v10970
      %v11067 = vunpack.c.l.b16 %v10971
      %v11068 = vunpack.c.l.b16 %v10972
      %v11069 = vunpack.c.l.b16 %v10973
      %v11070 = vunpack.c.l.b16 %v10974
      %v11071 = vunpack.c.l.b16 %v10975
      %v11072 = vunpack.c.l.b16 %v10976
      %v11073 = vunpack.c.l.b16 %v10977
      %v11074 = vunpack.c.l.b16 %v10978
      %v11075 = vunpack.c.l.b16 %v10979
      %v11076 = vunpack.c.l.b16 %v10980
      %v11077 = vunpack.c.l.b16 %v10981
      %v11078 = vunpack.c.l.b16 %v10982
      %v11079 = vunpack.c.l.b16 %v10983
      %v11080 = vpack.c.b16 %v11065, %v11064
      %v11081 = vpack.c.b16 %v11067, %v11066
      %v11082 = vpack.c.b16 %v11069, %v11068
      %v11083 = vpack.c.b16 %v11071, %v11070
      %v11084 = vpack.c.b16 %v11073, %v11072
      %v11085 = vpack.c.b16 %v11075, %v11074
      %v11086 = vpack.c.b16 %v11077, %v11076
      %v11087 = vpack.c.b16 %v11079, %v11078
      %11096 = vmatpush.bf16.msra.mxu0 %v11087
      %11097 = vmatpush.bf16.msra.mxu0 %v11086
      %11098 = vmatpush.bf16.msra.mxu0 %v11085
      %11099 = vmatpush.bf16.msra.mxu0 %v11084
      %11100 = vmatpush.bf16.msra.mxu0 %v11083
      %11101 = vmatpush.bf16.msra.mxu0 %v11082
      %11102 = vmatpush.bf16.msra.mxu0 %v11081
      %11103 = vmatpush.bf16.msra.mxu0 %v11080
      %11104 = vmatmul.bf16.gmra.mxu0 %v11016
      %v11105 = vpop.f32.mrf.mxu0
      %v11106 = vadd.f32 0.0, %v11105
      %v11107 = vpop.f32.mrf.mxu0
      %v11108 = vadd.f32 0.0, %v11107
      %11109 = vmatmul.bf16.gmra.mxu0 %v11017
      %v11110 = vpop.f32.mrf.mxu0
      %v11111 = vadd.f32 0.0, %v11110
      %v11112 = vpop.f32.mrf.mxu0
      %v11113 = vadd.f32 0.0, %v11112
      %11114 = vmatmul.bf16.gmra.mxu0 %v11018
      %v11115 = vpop.f32.mrf.mxu0
      %v11116 = vadd.f32 0.0, %v11115
      %v11117 = vpop.f32.mrf.mxu0
      %v11118 = vadd.f32 0.0, %v11117
      %11119 = vmatmul.bf16.gmra.mxu0 %v11019
      %v11120 = vpop.f32.mrf.mxu0
      %v11121 = vadd.f32 0.0, %v11120
      %v11122 = vpop.f32.mrf.mxu0
      %v11123 = vadd.f32 0.0, %v11122
      %11124 = vmatmul.bf16.gmra.mxu0 %v11020
      %v11125 = vpop.f32.mrf.mxu0
      %v11126 = vadd.f32 0.0, %v11125
      %v11127 = vpop.f32.mrf.mxu0
      %v11128 = vadd.f32 0.0, %v11127
      %11129 = vmatmul.bf16.gmra.mxu0 %v11021
      %v11130 = vpop.f32.mrf.mxu0
      %v11131 = vadd.f32 0.0, %v11130
      %v11132 = vpop.f32.mrf.mxu0
      %v11133 = vadd.f32 0.0, %v11132
      %11134 = vmatmul.bf16.gmra.mxu0 %v11022
      %v11135 = vpop.f32.mrf.mxu0
      %v11136 = vadd.f32 0.0, %v11135
      %v11137 = vpop.f32.mrf.mxu0
      %v11138 = vadd.f32 0.0, %v11137
      %11139 = vmatmul.bf16.gmra.mxu0 %v11023
      %v11140 = vpop.f32.mrf.mxu0
      %v11141 = vadd.f32 0.0, %v11140
      %v11142 = vpop.f32.mrf.mxu0
      %v11143 = vadd.f32 0.0, %v11142
      %11144 = vmatmul.bf16.gmra.mxu0 %v11024
      %v11145 = vpop.f32.mrf.mxu0
      %v11146 = vadd.f32 0.0, %v11145
      %v11147 = vpop.f32.mrf.mxu0
      %v11148 = vadd.f32 0.0, %v11147
      %11149 = vmatmul.bf16.gmra.mxu0 %v11025
      %v11150 = vpop.f32.mrf.mxu0
      %v11151 = vadd.f32 0.0, %v11150
      %v11152 = vpop.f32.mrf.mxu0
      %v11153 = vadd.f32 0.0, %v11152
      %11154 = vmatmul.bf16.gmra.mxu0 %v11026
      %v11155 = vpop.f32.mrf.mxu0
      %v11156 = vadd.f32 0.0, %v11155
      %v11157 = vpop.f32.mrf.mxu0
      %v11158 = vadd.f32 0.0, %v11157
      %11159 = vmatmul.bf16.gmra.mxu0 %v11027
      %v11160 = vpop.f32.mrf.mxu0
      %v11161 = vadd.f32 0.0, %v11160
      %v11162 = vpop.f32.mrf.mxu0
      %v11163 = vadd.f32 0.0, %v11162
      %11164 = vmatmul.bf16.gmra.mxu0 %v11028
      %v11165 = vpop.f32.mrf.mxu0
      %v11166 = vadd.f32 0.0, %v11165
      %v11167 = vpop.f32.mrf.mxu0
      %v11168 = vadd.f32 0.0, %v11167
      %11169 = vmatmul.bf16.gmra.mxu0 %v11029
      %v11170 = vpop.f32.mrf.mxu0
      %v11171 = vadd.f32 0.0, %v11170
      %v11172 = vpop.f32.mrf.mxu0
      %v11173 = vadd.f32 0.0, %v11172
      %11174 = vmatmul.bf16.gmra.mxu0 %v11030
      %v11175 = vpop.f32.mrf.mxu0
      %v11176 = vadd.f32 0.0, %v11175
      %v11177 = vpop.f32.mrf.mxu0
      %v11178 = vadd.f32 0.0, %v11177
      %11179 = vmatmul.bf16.gmra.mxu0 %v11031
      %v11180 = vpop.f32.mrf.mxu0
      %v11181 = vadd.f32 0.0, %v11180
      %v11182 = vpop.f32.mrf.mxu0
      %v11183 = vadd.f32 0.0, %v11182
      %11184 = vdwg.mxu0
      %v11185 = vld [vmem:[#allocation4] sm:$0xff]
      %v11186 = vld [vmem:[#allocation4 + $0x8] sm:$0xff]
      %v11187 = vld [vmem:[#allocation4 + $0x10] sm:$0xff]
      %v11188 = vld [vmem:[#allocation4 + $0x18] sm:$0xff]
      %v11189 = vld [vmem:[#allocation4 + $0x20] sm:$0xff]
      %v11190 = vld [vmem:[#allocation4 + $0x28] sm:$0xff]
      %v11191 = vld [vmem:[#allocation4 + $0x30] sm:$0xff]
      %v11192 = vld [vmem:[#allocation4 + $0x38] sm:$0xff]
      %v11193 = vld [vmem:[#allocation4 + $0x40] sm:$0xff]
      %v11194 = vld [vmem:[#allocation4 + $0x48] sm:$0xff]
      %v11195 = vld [vmem:[#allocation4 + $0x50] sm:$0xff]
      %v11196 = vld [vmem:[#allocation4 + $0x58] sm:$0xff]
      %v11197 = vld [vmem:[#allocation4 + $0x60] sm:$0xff]
      %v11198 = vld [vmem:[#allocation4 + $0x68] sm:$0xff]
      %v11199 = vld [vmem:[#allocation4 + $0x70] sm:$0xff]
      %v11200 = vld [vmem:[#allocation4 + $0x78] sm:$0xff]
      %v11201 = vld [vmem:[#allocation4 + $0x80] sm:$0xff]
      %v11202 = vld [vmem:[#allocation4 + $0x88] sm:$0xff]
      %v11203 = vld [vmem:[#allocation4 + $0x90] sm:$0xff]
      %v11204 = vld [vmem:[#allocation4 + $0x98] sm:$0xff]
      %v11205 = vld [vmem:[#allocation4 + $0xa0] sm:$0xff]
      %v11206 = vld [vmem:[#allocation4 + $0xa8] sm:$0xff]
      %v11207 = vld [vmem:[#allocation4 + $0xb0] sm:$0xff]
      %v11208 = vld [vmem:[#allocation4 + $0xb8] sm:$0xff]
      %v11209 = vld [vmem:[#allocation4 + $0xc0] sm:$0xff]
      %v11210 = vld [vmem:[#allocation4 + $0xc8] sm:$0xff]
      %v11211 = vld [vmem:[#allocation4 + $0xd0] sm:$0xff]
      %v11212 = vld [vmem:[#allocation4 + $0xd8] sm:$0xff]
      %v11213 = vld [vmem:[#allocation4 + $0xe0] sm:$0xff]
      %v11214 = vld [vmem:[#allocation4 + $0xe8] sm:$0xff]
      %v11215 = vld [vmem:[#allocation4 + $0xf0] sm:$0xff]
      %v11216 = vld [vmem:[#allocation4 + $0xf8] sm:$0xff]
      %v11217 = vadd.f32 %v11185, %v11106
      %v11218 = vadd.f32 %v11186, %v11108
      %v11219 = vadd.f32 %v11187, %v11111
      %v11220 = vadd.f32 %v11188, %v11113
      %v11221 = vadd.f32 %v11189, %v11116
      %v11222 = vadd.f32 %v11190, %v11118
      %v11223 = vadd.f32 %v11191, %v11121
      %v11224 = vadd.f32 %v11192, %v11123
      %v11225 = vadd.f32 %v11193, %v11126
      %v11226 = vadd.f32 %v11194, %v11128
      %v11227 = vadd.f32 %v11195, %v11131
      %v11228 = vadd.f32 %v11196, %v11133
      %v11229 = vadd.f32 %v11197, %v11136
      %v11230 = vadd.f32 %v11198, %v11138
      %v11231 = vadd.f32 %v11199, %v11141
      %v11232 = vadd.f32 %v11200, %v11143
      %v11233 = vadd.f32 %v11201, %v11146
      %v11234 = vadd.f32 %v11202, %v11148
      %v11235 = vadd.f32 %v11203, %v11151
      %v11236 = vadd.f32 %v11204, %v11153
      %v11237 = vadd.f32 %v11205, %v11156
      %v11238 = vadd.f32 %v11206, %v11158
      %v11239 = vadd.f32 %v11207, %v11161
      %v11240 = vadd.f32 %v11208, %v11163
      %v11241 = vadd.f32 %v11209, %v11166
      %v11242 = vadd.f32 %v11210, %v11168
      %v11243 = vadd.f32 %v11211, %v11171
      %v11244 = vadd.f32 %v11212, %v11173
      %v11245 = vadd.f32 %v11213, %v11176
      %v11246 = vadd.f32 %v11214, %v11178
      %v11247 = vadd.f32 %v11215, %v11181
      %v11248 = vadd.f32 %v11216, %v11183
      %11249 = vst [vmem:[#allocation4] sm:$0xff] %v11217
      %11250 = vst [vmem:[#allocation4 + $0x8] sm:$0xff] %v11218
      %11251 = vst [vmem:[#allocation4 + $0x10] sm:$0xff] %v11219
      %11252 = vst [vmem:[#allocation4 + $0x18] sm:$0xff] %v11220
      %11253 = vst [vmem:[#allocation4 + $0x20] sm:$0xff] %v11221
      %11254 = vst [vmem:[#allocation4 + $0x28] sm:$0xff] %v11222
      %11255 = vst [vmem:[#allocation4 + $0x30] sm:$0xff] %v11223
      %11256 = vst [vmem:[#allocation4 + $0x38] sm:$0xff] %v11224
      %11257 = vst [vmem:[#allocation4 + $0x40] sm:$0xff] %v11225
      %11258 = vst [vmem:[#allocation4 + $0x48] sm:$0xff] %v11226
      %11259 = vst [vmem:[#allocation4 + $0x50] sm:$0xff] %v11227
      %11260 = vst [vmem:[#allocation4 + $0x58] sm:$0xff] %v11228
      %11261 = vst [vmem:[#allocation4 + $0x60] sm:$0xff] %v11229
      %11262 = vst [vmem:[#allocation4 + $0x68] sm:$0xff] %v11230
      %11263 = vst [vmem:[#allocation4 + $0x70] sm:$0xff] %v11231
      %11264 = vst [vmem:[#allocation4 + $0x78] sm:$0xff] %v11232
      %11265 = vst [vmem:[#allocation4 + $0x80] sm:$0xff] %v11233
      %11266 = vst [vmem:[#allocation4 + $0x88] sm:$0xff] %v11234
      %11267 = vst [vmem:[#allocation4 + $0x90] sm:$0xff] %v11235
      %11268 = vst [vmem:[#allocation4 + $0x98] sm:$0xff] %v11236
      %11269 = vst [vmem:[#allocation4 + $0xa0] sm:$0xff] %v11237
      %11270 = vst [vmem:[#allocation4 + $0xa8] sm:$0xff] %v11238
      %11271 = vst [vmem:[#allocation4 + $0xb0] sm:$0xff] %v11239
      %11272 = vst [vmem:[#allocation4 + $0xb8] sm:$0xff] %v11240
      %11273 = vst [vmem:[#allocation4 + $0xc0] sm:$0xff] %v11241
      %11274 = vst [vmem:[#allocation4 + $0xc8] sm:$0xff] %v11242
      %11275 = vst [vmem:[#allocation4 + $0xd0] sm:$0xff] %v11243
      %11276 = vst [vmem:[#allocation4 + $0xd8] sm:$0xff] %v11244
      %11277 = vst [vmem:[#allocation4 + $0xe0] sm:$0xff] %v11245
      %11278 = vst [vmem:[#allocation4 + $0xe8] sm:$0xff] %v11246
      %11279 = vst [vmem:[#allocation4 + $0xf0] sm:$0xff] %v11247
      %11280 = vst [vmem:[#allocation4 + $0xf8] sm:$0xff] %v11248
      %v11281 = vld [vmem:[#allocation4] sm:$0xff]
      %v11282 = vld [vmem:[#allocation4 + $0x8] sm:$0xff]
      %v11283 = vld [vmem:[#allocation4 + $0x10] sm:$0xff]
      %v11284 = vld [vmem:[#allocation4 + $0x18] sm:$0xff]
      %v11285 = vld [vmem:[#allocation4 + $0x20] sm:$0xff]
      %v11286 = vld [vmem:[#allocation4 + $0x28] sm:$0xff]
      %v11287 = vld [vmem:[#allocation4 + $0x30] sm:$0xff]
      %v11288 = vld [vmem:[#allocation4 + $0x38] sm:$0xff]
      %v11289 = vld [vmem:[#allocation4 + $0x40] sm:$0xff]
      %v11290 = vld [vmem:[#allocation4 + $0x48] sm:$0xff]
      %v11291 = vld [vmem:[#allocation4 + $0x50] sm:$0xff]
      %v11292 = vld [vmem:[#allocation4 + $0x58] sm:$0xff]
      %v11293 = vld [vmem:[#allocation4 + $0x60] sm:$0xff]
      %v11294 = vld [vmem:[#allocation4 + $0x68] sm:$0xff]
      %v11295 = vld [vmem:[#allocation4 + $0x70] sm:$0xff]
      %v11296 = vld [vmem:[#allocation4 + $0x78] sm:$0xff]
      %v11297 = vld [vmem:[#allocation4 + $0x80] sm:$0xff]
      %v11298 = vld [vmem:[#allocation4 + $0x88] sm:$0xff]
      %v11299 = vld [vmem:[#allocation4 + $0x90] sm:$0xff]
      %v11300 = vld [vmem:[#allocation4 + $0x98] sm:$0xff]
      %v11301 = vld [vmem:[#allocation4 + $0xa0] sm:$0xff]
      %v11302 = vld [vmem:[#allocation4 + $0xa8] sm:$0xff]
      %v11303 = vld [vmem:[#allocation4 + $0xb0] sm:$0xff]
      %v11304 = vld [vmem:[#allocation4 + $0xb8] sm:$0xff]
      %v11305 = vld [vmem:[#allocation4 + $0xc0] sm:$0xff]
      %v11306 = vld [vmem:[#allocation4 + $0xc8] sm:$0xff]
      %v11307 = vld [vmem:[#allocation4 + $0xd0] sm:$0xff]
      %v11308 = vld [vmem:[#allocation4 + $0xd8] sm:$0xff]
      %v11309 = vld [vmem:[#allocation4 + $0xe0] sm:$0xff]
      %v11310 = vld [vmem:[#allocation4 + $0xe8] sm:$0xff]
      %v11311 = vld [vmem:[#allocation4 + $0xf0] sm:$0xff]
      %v11312 = vld [vmem:[#allocation4 + $0xf8] sm:$0xff]
      %v11313 = vld [vmem:[%s4] sm:$0x1]
      %v11315 = vperm.slane %v11313, 0
      %v11317 = vadd.f32 %v11281, %v11315
      %v11318 = vadd.f32 %v11282, %v11315
      %v11319 = vadd.f32 %v11283, %v11315
      %v11320 = vadd.f32 %v11284, %v11315
      %v11321 = vadd.f32 %v11285, %v11315
      %v11322 = vadd.f32 %v11286, %v11315
      %v11323 = vadd.f32 %v11287, %v11315
      %v11324 = vadd.f32 %v11288, %v11315
      %v11325 = vadd.f32 %v11289, %v11315
      %v11326 = vadd.f32 %v11290, %v11315
      %v11327 = vadd.f32 %v11291, %v11315
      %v11328 = vadd.f32 %v11292, %v11315
      %v11329 = vadd.f32 %v11293, %v11315
      %v11330 = vadd.f32 %v11294, %v11315
      %v11331 = vadd.f32 %v11295, %v11315
      %v11332 = vadd.f32 %v11296, %v11315
      %v11333 = vadd.f32 %v11297, %v11315
      %v11334 = vadd.f32 %v11298, %v11315
      %v11335 = vadd.f32 %v11299, %v11315
      %v11336 = vadd.f32 %v11300, %v11315
      %v11337 = vadd.f32 %v11301, %v11315
      %v11338 = vadd.f32 %v11302, %v11315
      %v11339 = vadd.f32 %v11303, %v11315
      %v11340 = vadd.f32 %v11304, %v11315
      %v11341 = vadd.f32 %v11305, %v11315
      %v11342 = vadd.f32 %v11306, %v11315
      %v11343 = vadd.f32 %v11307, %v11315
      %v11344 = vadd.f32 %v11308, %v11315
      %v11345 = vadd.f32 %v11309, %v11315
      %v11346 = vadd.f32 %v11310, %v11315
      %v11347 = vadd.f32 %v11311, %v11315
      %v11348 = vadd.f32 %v11312, %v11315
      %v11349 = vld [vmem:[%s219] sm:$0xff]
      %v11350 = vld [vmem:[%s219 + $0x8] sm:$0xff]
      %v11351 = vld [vmem:[%s219 + $0x10] sm:$0xff]
      %v11352 = vld [vmem:[%s219 + $0x18] sm:$0xff]
      %v11353 = vld [vmem:[%s219 + $0x20] sm:$0xff]
      %v11354 = vld [vmem:[%s219 + $0x28] sm:$0xff]
      %v11355 = vld [vmem:[%s219 + $0x30] sm:$0xff]
      %v11356 = vld [vmem:[%s219 + $0x38] sm:$0xff]
      %v11357 = vld [vmem:[%s219 + $0x40] sm:$0xff]
      %v11358 = vld [vmem:[%s219 + $0x48] sm:$0xff]
      %v11359 = vld [vmem:[%s219 + $0x50] sm:$0xff]
      %v11360 = vld [vmem:[%s219 + $0x58] sm:$0xff]
      %v11361 = vld [vmem:[%s219 + $0x60] sm:$0xff]
      %v11362 = vld [vmem:[%s219 + $0x68] sm:$0xff]
      %v11363 = vld [vmem:[%s219 + $0x70] sm:$0xff]
      %v11364 = vld [vmem:[%s219 + $0x78] sm:$0xff]
      %v11365 = vld [vmem:[%s219 + $0x80] sm:$0xff]
      %v11366 = vld [vmem:[%s219 + $0x88] sm:$0xff]
      %v11367 = vld [vmem:[%s219 + $0x90] sm:$0xff]
      %v11368 = vld [vmem:[%s219 + $0x98] sm:$0xff]
      %v11369 = vld [vmem:[%s219 + $0xa0] sm:$0xff]
      %v11370 = vld [vmem:[%s219 + $0xa8] sm:$0xff]
      %v11371 = vld [vmem:[%s219 + $0xb0] sm:$0xff]
      %v11372 = vld [vmem:[%s219 + $0xb8] sm:$0xff]
      %v11373 = vld [vmem:[%s219 + $0xc0] sm:$0xff]
      %v11374 = vld [vmem:[%s219 + $0xc8] sm:$0xff]
      %v11375 = vld [vmem:[%s219 + $0xd0] sm:$0xff]
      %v11376 = vld [vmem:[%s219 + $0xd8] sm:$0xff]
      %v11377 = vld [vmem:[%s219 + $0xe0] sm:$0xff]
      %v11378 = vld [vmem:[%s219 + $0xe8] sm:$0xff]
      %v11379 = vld [vmem:[%s219 + $0xf0] sm:$0xff]
      %v11380 = vld [vmem:[%s219 + $0xf8] sm:$0xff]
      %v11381 = vadd.f32 %v11317, %v11349
      %v11382 = vadd.f32 %v11318, %v11350
      %v11383 = vadd.f32 %v11319, %v11351
      %v11384 = vadd.f32 %v11320, %v11352
      %v11385 = vadd.f32 %v11321, %v11353
      %v11386 = vadd.f32 %v11322, %v11354
      %v11387 = vadd.f32 %v11323, %v11355
      %v11388 = vadd.f32 %v11324, %v11356
      %v11389 = vadd.f32 %v11325, %v11357
      %v11390 = vadd.f32 %v11326, %v11358
      %v11391 = vadd.f32 %v11327, %v11359
      %v11392 = vadd.f32 %v11328, %v11360
      %v11393 = vadd.f32 %v11329, %v11361
      %v11394 = vadd.f32 %v11330, %v11362
      %v11395 = vadd.f32 %v11331, %v11363
      %v11396 = vadd.f32 %v11332, %v11364
      %v11397 = vadd.f32 %v11333, %v11365
      %v11398 = vadd.f32 %v11334, %v11366
      %v11399 = vadd.f32 %v11335, %v11367
      %v11400 = vadd.f32 %v11336, %v11368
      %v11401 = vadd.f32 %v11337, %v11369
      %v11402 = vadd.f32 %v11338, %v11370
      %v11403 = vadd.f32 %v11339, %v11371
      %v11404 = vadd.f32 %v11340, %v11372
      %v11405 = vadd.f32 %v11341, %v11373
      %v11406 = vadd.f32 %v11342, %v11374
      %v11407 = vadd.f32 %v11343, %v11375
      %v11408 = vadd.f32 %v11344, %v11376
      %v11409 = vadd.f32 %v11345, %v11377
      %v11410 = vadd.f32 %v11346, %v11378
      %v11411 = vadd.f32 %v11347, %v11379
      %v11412 = vadd.f32 %v11348, %v11380
      %v11413 = vmax.f32 %v11381, 0.0
      %v11414 = vmax.f32 %v11382, 0.0
      %v11415 = vmax.f32 %v11383, 0.0
      %v11416 = vmax.f32 %v11384, 0.0
      %v11417 = vmax.f32 %v11385, 0.0
      %v11418 = vmax.f32 %v11386, 0.0
      %v11419 = vmax.f32 %v11387, 0.0
      %v11420 = vmax.f32 %v11388, 0.0
      %v11421 = vmax.f32 %v11389, 0.0
      %v11422 = vmax.f32 %v11390, 0.0
      %v11423 = vmax.f32 %v11391, 0.0
      %v11424 = vmax.f32 %v11392, 0.0
      %v11425 = vmax.f32 %v11393, 0.0
      %v11426 = vmax.f32 %v11394, 0.0
      %v11427 = vmax.f32 %v11395, 0.0
      %v11428 = vmax.f32 %v11396, 0.0
      %v11429 = vmax.f32 %v11397, 0.0
      %v11430 = vmax.f32 %v11398, 0.0
      %v11431 = vmax.f32 %v11399, 0.0
      %v11432 = vmax.f32 %v11400, 0.0
      %v11433 = vmax.f32 %v11401, 0.0
      %v11434 = vmax.f32 %v11402, 0.0
      %v11435 = vmax.f32 %v11403, 0.0
      %v11436 = vmax.f32 %v11404, 0.0
      %v11437 = vmax.f32 %v11405, 0.0
      %v11438 = vmax.f32 %v11406, 0.0
      %v11439 = vmax.f32 %v11407, 0.0
      %v11440 = vmax.f32 %v11408, 0.0
      %v11441 = vmax.f32 %v11409, 0.0
      %v11442 = vmax.f32 %v11410, 0.0
      %v11443 = vmax.f32 %v11411, 0.0
      %v11444 = vmax.f32 %v11412, 0.0
      %11445 = vst [vmem:[%s224] sm:$0xff] %v11413
      %11446 = vst [vmem:[%s224 + $0x8] sm:$0xff] %v11414
      %11447 = vst [vmem:[%s224 + $0x10] sm:$0xff] %v11415
      %11448 = vst [vmem:[%s224 + $0x18] sm:$0xff] %v11416
      %11449 = vst [vmem:[%s224 + $0x20] sm:$0xff] %v11417
      %11450 = vst [vmem:[%s224 + $0x28] sm:$0xff] %v11418
      %11451 = vst [vmem:[%s224 + $0x30] sm:$0xff] %v11419
      %11452 = vst [vmem:[%s224 + $0x38] sm:$0xff] %v11420
      %11453 = vst [vmem:[%s224 + $0x40] sm:$0xff] %v11421
      %11454 = vst [vmem:[%s224 + $0x48] sm:$0xff] %v11422
      %11455 = vst [vmem:[%s224 + $0x50] sm:$0xff] %v11423
      %11456 = vst [vmem:[%s224 + $0x58] sm:$0xff] %v11424
      %11457 = vst [vmem:[%s224 + $0x60] sm:$0xff] %v11425
      %11458 = vst [vmem:[%s224 + $0x68] sm:$0xff] %v11426
      %11459 = vst [vmem:[%s224 + $0x70] sm:$0xff] %v11427
      %11460 = vst [vmem:[%s224 + $0x78] sm:$0xff] %v11428
      %11461 = vst [vmem:[%s224 + $0x80] sm:$0xff] %v11429
      %11462 = vst [vmem:[%s224 + $0x88] sm:$0xff] %v11430
      %11463 = vst [vmem:[%s224 + $0x90] sm:$0xff] %v11431
      %11464 = vst [vmem:[%s224 + $0x98] sm:$0xff] %v11432
      %11465 = vst [vmem:[%s224 + $0xa0] sm:$0xff] %v11433
      %11466 = vst [vmem:[%s224 + $0xa8] sm:$0xff] %v11434
      %11467 = vst [vmem:[%s224 + $0xb0] sm:$0xff] %v11435
      %11468 = vst [vmem:[%s224 + $0xb8] sm:$0xff] %v11436
      %11469 = vst [vmem:[%s224 + $0xc0] sm:$0xff] %v11437
      %11470 = vst [vmem:[%s224 + $0xc8] sm:$0xff] %v11438
      %11471 = vst [vmem:[%s224 + $0xd0] sm:$0xff] %v11439
      %11472 = vst [vmem:[%s224 + $0xd8] sm:$0xff] %v11440
      %11473 = vst [vmem:[%s224 + $0xe0] sm:$0xff] %v11441
      %11474 = vst [vmem:[%s224 + $0xe8] sm:$0xff] %v11442
      %11475 = vst [vmem:[%s224 + $0xf0] sm:$0xff] %v11443
      %11476 = vst [vmem:[%s224 + $0xf8] sm:$0xff] %v11444
      %p11477 = scmp.lt.s32.totalorder %s16, 1
      %s11478 = scalar_select %p11477, %s16, 1
      %s11479 = smul.addr %s11478, 32
      %s11480 = smul.addr %s11479, 8
      %s11481 = scalar_lea.vmem %s5, %s11480
      // Predicated region
      $region41: #{basic_block_forward.1} parent=39 // pred_check
        %p11482 = pneg %p144
      $region42: #{basic_block_forward.1} parent=39 // pred_check_branch
        %11484 = sbr.rel (%p11482) target = $region44
      $region43: #{basic_block_forward.1} parent=39 // pred_region
        _
      $region44: #{basic_block_forward.1} parent=39 // pred_fallthru
        _
    $region40: #{basic_block_forward.1} parent=5 // pred_fallthru
      _
    %p11485 = scmp.le.s32.totalorder 2, %s11
    // Predicated region
    $region45: #{basic_block_forward.1} parent=5 // pred_check
      %p11486 = pneg %p11485
    $region46: #{basic_block_forward.1} parent=5 // pred_check_branch
      %11488 = sbr.rel (%p11486) target = $region48
    $region47: #{basic_block_forward.1} parent=5 // pred_region
      %s11489 = ssub.s32 %s11, 2
      // Predicated region
      $region49: #{basic_block_forward.1} parent=47 // pred_check
        %p11490 = pneg %p150
      $region50: #{basic_block_forward.1} parent=47 // pred_check_branch
        %11492 = sbr.rel (%p11490) target = $region52
      $region51: #{basic_block_forward.1} parent=47 // pred_region
        %p11493 = scmp.lt.s32.totalorder %s17, 1
        %s11494 = scalar_select %p11493, %s17, 1
        %s11495 = smul.addr %s11494, 32
        %s11496 = smul.addr %s11495, 8
        %s11497 = scalar_lea.vmem %s5, %s11496
      $region52: #{basic_block_forward.1} parent=47 // pred_fallthru
        _
    $region48: #{basic_block_forward.1} parent=5 // pred_fallthru
      _
  $region6: #{basic_block_forward.1} parent=0 // loop_footer
    %s15 = sadd.s32 1, %s11
  $region7: #{basic_block_forward.1} parent=0 // loop_footer_branch
    %10 = sbr.rel target = $region3
  $region8: #{basic_block_forward.1} parent=0 // loop_exit
    _

</llo_original>
